<compile_context>
chip_gen: v6e
topology: v6e:2x2x1
jax: 0.10.0
libtpu: 0.0.40
codegen_flags: <defaults>
</compile_context>

<pallas_src>
import functools

import jax
import jax.numpy as jnp
from jax.experimental import pallas as pl
from jax.experimental.pallas import tpu as pltpu

PAD = 12              # halo rows = max dilation of the two 3x3 branches
DILATIONS = (6, 12)


def aspp_kernel(x_hbm, wc_ref, w6_ref, w12_ref, bias_ref, o_ref,
                xbuf, copy_sem, acc_ref):
    # x_hbm   : (N, Hp + 2*PAD, Wp, Cinp) bf16, HBM (pl.ANY) - manual DMA
    # wc_ref  : (Cinp, Coutp)             bf16, folded 1x1 + both 3x3 centre taps
    # w6/w12  : (3, 3, Cinp, Coutp)       bf16, folded dilated weights
    # bias_ref: (1, Coutp)                f32, per-image bias (pool branch + biases + BN)
    # o_ref   : (TH, Wp, Coutp)           bf16 output row band
    # xbuf    : (2, TH + 2*PAD, Wp, Cinp) bf16 VMEM double buffer
    # copy_sem: (2,) DMA semaphores
    # acc_ref : (TH, Wp, Coutp)           f32 VMEM accumulator
    TH, Wp, Coutp = o_ref.shape
    THp = xbuf.shape[1]
    Cinp = xbuf.shape[-1]
    M = TH * Wp

    n = pl.program_id(0)
    r = pl.program_id(1)
    num_r = pl.num_programs(1)
    slot = r % 2

    def issue_copy(row_band, dst_slot):
        pltpu.make_async_copy(
            x_hbm.at[n, pl.ds(row_band * TH, THp)],
            xbuf.at[dst_slot],
            copy_sem.at[dst_slot]).start()

    # Prime the pipeline at the first row band of every image.  Megacore-safe:
    # the DMA chain never crosses the parallel N axis.
    @pl.when(r == 0)
    def _():
        issue_copy(0, 0)

    # Prefetch the next row band while computing the current one.
    @pl.when(r + 1 < num_r)
    def _():
        issue_copy(r + 1, 1 - slot)

    # Wait for the current row band.
    pltpu.make_async_copy(
        x_hbm.at[n, pl.ds(r * TH, THp)], xbuf.at[slot], copy_sem.at[slot]).wait()

    def tap(row_off):
        # Leading-dim slice of the halo tile (no lane/sublane shuffle), then a
        # layout-preserving flatten (Wp % 8 == 0) for the MXU.
        return xbuf[slot, row_off:row_off + TH, :, :].reshape(M, Cinp)

    # Centre tap: folded 1x1 conv + centre taps of both dilated 3x3 convs.
    acc = jnp.dot(tap(PAD), wc_ref[...], preferred_element_type=jnp.float32)

    shifted = []
    for dil, w_ref in zip(DILATIONS, (w6_ref, w12_ref)):
        do_shift = dil < Wp   # if dil >= Wp the shifted taps land entirely in padding
        p_left = None         # kx = 0 (source col = x - dil)
        p_right = None        # kx = 2 (source col = x + dil)
        for ky in range(3):
            xt = tap(PAD + (ky - 1) * dil)       # each row-shifted tap loaded lazily
            if ky != 1:                          # kx = 1 column (ky=1 centre is in wc)
                acc = acc + jnp.dot(xt, w_ref[ky, 1, :, :],
                                    preferred_element_type=jnp.float32)
            if do_shift:
                lcol = jnp.dot(xt, w_ref[ky, 0, :, :],
                               preferred_element_type=jnp.float32)
                rcol = jnp.dot(xt, w_ref[ky, 2, :, :],
                               preferred_element_type=jnp.float32)
                p_left = lcol if p_left is None else p_left + lcol
                p_right = rcol if p_right is None else p_right + rcol
        if do_shift:
            shifted.append((dil,
                            p_left.reshape(TH, Wp, Coutp),
                            p_right.reshape(TH, Wp, Coutp)))

    # Single full-tile store of all horizontally aligned contributions ...
    acc_ref[...] = acc.reshape(TH, Wp, Coutp)
    # ... then the four horizontally shifted accumulates (zero-padded source
    # columns contribute nothing, so no W halo is needed).
    for dil, p0, p2 in shifted:
        # out[:, x] += P0[:, x - dil]   (valid only for x >= dil)
        acc_ref[:, dil:, :] += p0[:, :Wp - dil, :]
        # out[:, x] += P2[:, x + dil]   (valid only for x < Wp - dil)
        acc_ref[:, :Wp - dil, :] += p2[:, dil:, :]

    # Bias (pool branch + conv biases + BN shift) + ReLU; bf16 store halves writeback.
    o_ref[...] = jnp.maximum(acc_ref[...] + bias_ref[...], 0.0).astype(o_ref.dtype)


def _round_up(v, m):
    return (v + m - 1) // m * m


def _vmem_capacity_bytes():
    try:
        return int(pltpu.get_tpu_info().vmem_capacity_bytes)
    except Exception:
        return 64 * 1024 * 1024   # conservative default (v7x per-core VMEM)


def _vmem_need_bytes(th, wp, cinp, coutp, weight_bufs):
    thp = th + 2 * PAD
    weights = weight_bufs * 19 * cinp * coutp * 2            # wc + 2 * (3x3), bf16
    inputs = 2 * thp * wp * cinp * 2                         # double-buffered halo tile
    acc = th * wp * coutp * 4                                # f32 accumulator scratch
    outs = 2 * th * wp * coutp * 2                           # double-buffered bf16 out
    live = 6 * th * wp * coutp * 4 + 2 * th * wp * cinp * 2  # live partial sums + taps
    return weights + inputs + acc + outs + live + 4 * coutp * 4


def _auto_tile_rows(h, wp, cinp, coutp, weight_bufs, vmem_cap):
    budget = int(0.6 * vmem_cap)
    cap = min(128, _round_up(h, 8))
    best = 8
    for th in range(8, cap + 1, 8):
        if _vmem_need_bytes(th, wp, cinp, coutp, weight_bufs) <= budget:
            best = th
        else:
            break
    return min(best, cap)


@functools.partial(jax.jit, static_argnames=("tile_rows", "weights_resident"))
def _aspp_forward(x_nchw, params, tile_rows=None, weights_resident=True):
    N, Cin, H, W = x_nchw.shape
    Cout = params["w1"].shape[-1]
    Cinp = _round_up(Cin, 128)          # lane-dense channels
    Coutp = _round_up(Cout, 128)
    Wp = _round_up(W, 8)                # sublane-dense columns -> free MXU reshapes

    vmem_cap = _vmem_capacity_bytes()
    weight_bufs = 1 if weights_resident else 2
    if tile_rows is None:
        TH = _auto_tile_rows(H, Wp, Cinp, Coutp, weight_bufs, vmem_cap)
    else:
        TH = max(1, int(tile_rows))
        if TH >= 8:
            TH = (TH // 8) * 8          # keep DMA row offsets sublane-aligned
    TH = min(TH, _round_up(H, 8))
    Hp = _round_up(H, TH)               # pad odd H (33/65/129) instead of shrinking TH
    R = Hp // TH
    THp = TH + 2 * PAD

    x = jnp.transpose(x_nchw, (0, 2, 3, 1)).astype(jnp.float32)   # NHWC, f32

    # ---- fold fusion 1x1 conv + BN scale into the branch weights (f32) --------
    wf = params["wf"]                               # (4*Cout, Cout)
    scale = params["bn_scale"]                      # (1, Cout)
    shift = params["bn_shift"]                      # (1, Cout)
    wf0, wf1, wf2, wf3 = (wf[i * Cout:(i + 1) * Cout] for i in range(4))
    w1f = (params["w1"] @ wf0) * scale                              # (Cin, Cout)
    w2f = jnp.einsum("hwio,ou->hwiu", params["w2"], wf1) * scale    # (3,3,Cin,Cout)
    w3f = jnp.einsum("hwio,ou->hwiu", params["w3"], wf2) * scale
    wc = w1f + w2f[1, 1] + w3f[1, 1]                # merged centre taps

    # ---- image pooling branch + all biases + BN shift -> per-image bias --------
    pooled = jnp.mean(x, axis=(1, 2))                               # (N, Cin)
    const_b = (params["b1"] @ wf0 + params["b2"] @ wf1 +
               params["b3"] @ wf2 + params["b4"] @ wf3 + params["bf"])
    pool_b = (pooled @ params["w4"]) @ wf3                          # (N, Cout)
    bias = scale * (pool_b + const_b) + shift                       # (N, Cout), f32

    # ---- pad channels to lane-dense multiples of 128, cast weights to bf16 -----
    def pad_last2(a, ci, co):
        return jnp.pad(a, [(0, 0)] * (a.ndim - 2) +
                       [(0, ci - a.shape[-2]), (0, co - a.shape[-1])])

    wc_p = pad_last2(wc, Cinp, Coutp).astype(jnp.bfloat16)
    w6_p = pad_last2(w2f, Cinp, Coutp).astype(jnp.bfloat16)
    w12_p = pad_last2(w3f, Cinp, Coutp).astype(jnp.bfloat16)
    bias_p = jnp.pad(bias, ((0, 0), (0, Coutp - Cout))).reshape(N, 1, Coutp)

    # ---- activations: channel/W pad, bf16, halo-pad rows (NO duplication) ------
    xp = jnp.pad(x, ((0, 0), (0, 0), (0, Wp - W), (0, Cinp - Cin))).astype(jnp.bfloat16)
    xh = jnp.pad(xp, ((0, 0), (PAD, Hp - H + PAD), (0, 0), (0, 0)))

    if weights_resident:
        # Whole-array, single-buffered VMEM residents (copied in once).
        w_spec_1 = pl.BlockSpec(memory_space=pltpu.MemorySpace.VMEM)
        w_spec_3a = pl.BlockSpec(memory_space=pltpu.MemorySpace.VMEM)
        w_spec_3b = pl.BlockSpec(memory_space=pltpu.MemorySpace.VMEM)
    else:
        # Fallback: auto-pipelined (double-buffered) blocks, constant index map.
        w_spec_1 = pl.BlockSpec((Cinp, Coutp), lambda n, r: (0, 0))
        w_spec_3a = pl.BlockSpec((3, 3, Cinp, Coutp), lambda n, r: (0, 0, 0, 0))
        w_spec_3b = pl.BlockSpec((3, 3, Cinp, Coutp), lambda n, r: (0, 0, 0, 0))

    in_specs = [
        pl.BlockSpec(memory_space=pl.ANY),          # activation stays in HBM
        w_spec_1, w_spec_3a, w_spec_3b,
        pl.BlockSpec((None, 1, Coutp), lambda n, r: (n, 0, 0)),
    ]
    out_spec = pl.BlockSpec((None, TH, Wp, Coutp), lambda n, r: (n, r, 0, 0))

    need = _vmem_need_bytes(TH, Wp, Cinp, Coutp, weight_bufs)
    vmem_limit = int(min(0.8 * vmem_cap, max(need + (16 << 20), 48 << 20)))

    flops = 2 * N * Hp * Wp * Cinp * Coutp * 17
    bytes_accessed = (N * R * THp * Wp * Cinp * 2 + 19 * Cinp * Coutp * 2 +
                      N * Coutp * 4 + N * Hp * Wp * Coutp * 2)

    out = pl.pallas_call(
        aspp_kernel,
        out_shape=jax.ShapeDtypeStruct((N, Hp, Wp, Coutp), jnp.bfloat16),
        grid_spec=pltpu.PrefetchScalarGridSpec(
            num_scalar_prefetch=0,
            grid=(N, R),
            in_specs=in_specs,
            out_specs=out_spec,
            scratch_shapes=[
                pltpu.VMEM((2, THp, Wp, Cinp), jnp.bfloat16),   # halo double buffer
                pltpu.SemaphoreType.DMA((2,)),
                pltpu.VMEM((TH, Wp, Coutp), jnp.float32),       # accumulator
            ]),
        compiler_params=pltpu.CompilerParams(
            dimension_semantics=("parallel", "arbitrary"),
            vmem_limit_bytes=vmem_limit),
        cost_estimate=pl.CostEstimate(flops=flops, transcendentals=0,
                                      bytes_accessed=bytes_accessed),
    )(xh, wc_p, w6_p, w12_p, bias_p)

    out = out[:, :H, :W, :Cout]                           # drop H/W/lane padding
    return jnp.transpose(out, (0, 3, 1, 2)).astype(jnp.float32)   # NCHW, f32


def aspp_forward(x_nchw, params, tile_rows=None):
    try:
        return _aspp_forward(x_nchw, params, tile_rows=tile_rows,
                             weights_resident=True)
    except Exception:
        # Fallback if this Pallas version rejects whole-array VMEM-resident inputs.
        return _aspp_forward(x_nchw, params, tile_rows=tile_rows,
                             weights_resident=False)


def init_params(key, in_channels, out_channels):
    ks = jax.random.split(key, 12)
    s = 0.1
    p = {
        "w1": s * jax.random.normal(ks[0], (in_channels, out_channels), jnp.float32),
        "b1": s * jax.random.normal(ks[1], (1, out_channels), jnp.float32),
        "w2": s * jax.random.normal(ks[2], (3, 3, in_channels, out_channels), jnp.float32),
        "b2": s * jax.random.normal(ks[3], (1, out_channels), jnp.float32),
        "w3": s * jax.random.normal(ks[4], (3, 3, in_channels, out_channels), jnp.float32),
        "b3": s * jax.random.normal(ks[5], (1, out_channels), jnp.float32),
        "w4": s * jax.random.normal(ks[6], (in_channels, out_channels), jnp.float32),
        "b4": s * jax.random.normal(ks[7], (1, out_channels), jnp.float32),
        "wf": s * jax.random.normal(ks[8], (4 * out_channels, out_channels), jnp.float32),
        "bf": s * jax.random.normal(ks[9], (1, out_channels), jnp.float32),
    }
    # BatchNorm (inference): fold gamma/beta/running stats into scale + shift.
    gamma = 1.0 + 0.1 * jax.random.normal(ks[10], (1, out_channels), jnp.float32)
    beta = 0.1 * jax.random.normal(ks[11], (1, out_channels), jnp.float32)
    running_mean = jnp.zeros((1, out_channels), jnp.float32)
    running_var = jnp.ones((1, out_channels), jnp.float32)
    eps = 1e-5
    scale = gamma / jnp.sqrt(running_var + eps)
    p["bn_scale"] = scale
    p["bn_shift"] = beta - running_mean * scale
    return p


def reference(x_nchw, p):
    """Pure-JAX (f32) reference of the same forward pass, for correctness check."""
    x = jnp.transpose(x_nchw, (0, 2, 3, 1)).astype(jnp.float32)
    N, H, W, Cin = x.shape

    def conv2d(inp, w_hwio, b, dil=1):
        k = w_hwio.shape[0]
        pad = dil * (k // 2)
        y = jax.lax.conv_general_dilated(
            inp, w_hwio, (1, 1), [(pad, pad), (pad, pad)],
            rhs_dilation=(dil, dil),
            dimension_numbers=("NHWC", "HWIO", "NHWC"))
        return y + b.reshape(1, 1, 1, -1)

    br0 = conv2d(x, p["w1"].reshape(1, 1, *p["w1"].shape), p["b1"])
    br1 = conv2d(x, p["w2"], p["b2"], 6)
    br2 = conv2d(x, p["w3"], p["b3"], 12)
    pooled = jnp.mean(x, axis=(1, 2), keepdims=True)
    br3 = conv2d(pooled, p["w4"].reshape(1, 1, *p["w4"].shape), p["b4"])
    # bilinear upsample of a 1x1 (constant) map back to (H, W) == broadcast
    br3 = jnp.broadcast_to(br3, (N, H, W, br3.shape[-1]))
    cat = jnp.concatenate([br0, br1, br2, br3], axis=-1)
    fused = conv2d(cat, p["wf"].reshape(1, 1, *p["wf"].shape), p["bf"])
    fused = fused * p["bn_scale"].reshape(1, 1, 1, -1) + p["bn_shift"].reshape(1, 1, 1, -1)
    fused = jnp.maximum(fused, 0.0)
    return jnp.transpose(fused, (0, 3, 1, 2))


if __name__ == "__main__":
    key = jax.random.PRNGKey(0)
    k_x, k_p = jax.random.split(key)

    # W=12 (padded to 16 in the kernel) also exercises the column-padding path.
    N, Cin, H, W = 2, 4, 16, 12
    Cout = 8
    x = jax.random.normal(k_x, (N, Cin, H, W), jnp.float32)
    params = init_params(k_p, Cin, Cout)

    ref = jax.block_until_ready(reference(x, params))

    # Explicit small row tile -> 2 grid steps per image: exercises the manual
    # double-buffered halo DMA chain (prime / prefetch / wait).
    out = jax.block_until_ready(aspp_forward(x, params, tile_rows=8))
    assert out.shape == (N, Cout, H, W)
    # Kernel computes and stores in bf16 (f32 accumulation); reference is full f32.
    err = float(jnp.max(jnp.abs(out - ref)))
    assert jnp.allclose(out, ref, rtol=5e-2, atol=5e-2), \
        f"mismatch vs reference, max abs err={err}"

    # Default auto-sized tile (single row band per image) as a second config.
    out_auto = jax.block_until_ready(aspp_forward(x, params))
    err_auto = float(jnp.max(jnp.abs(out_auto - ref)))
    assert jnp.allclose(out_auto, ref, rtol=5e-2, atol=5e-2), \
        f"mismatch vs reference (auto tile), max abs err={err_auto}"

    print("KERNEL_OK")
</pallas_src>

<mosaic_0001>
module attributes {stable_mosaic.version = 11 : i64} {
  func.func @aspp_kernel(%arg0: i32, %arg1: i32, %arg2: memref<2x40x16x128xbf16, #tpu.memory_space<any>>, %arg3: memref<128x128xbf16, #tpu.memory_space<vmem>>, %arg4: memref<3x3x128x128xbf16, #tpu.memory_space<vmem>>, %arg5: memref<3x3x128x128xbf16, #tpu.memory_space<vmem>>, %arg6: memref<1x1x128xf32, #tpu.memory_space<vmem>>, %arg7: memref<1x8x16x128xbf16, #tpu.memory_space<vmem>>, %arg8: memref<2x32x16x128xbf16, #tpu.memory_space<vmem>>, %arg9: memref<2x!tpu.dma_semaphore, #tpu.memory_space<semaphore_mem>>, %arg10: memref<8x16x128xf32, #tpu.memory_space<vmem>>) attributes {dimension_semantics = [#tpu.dimension_semantics<parallel>, #tpu.dimension_semantics<arbitrary>], iteration_bounds = array<i64: 2, 2>, scalar_prefetch = 0 : i64, scratch_operands = 3 : i64, tpu.core_type = #tpu.core_type<tc>, window_params = [{}, {pipeline_mode = #tpu.pipeline_mode<synchronous>, transform_indices = @transform_1, window_bounds = array<i64: 128, 128>}, {pipeline_mode = #tpu.pipeline_mode<synchronous>, transform_indices = @transform_2, window_bounds = array<i64: 3, 3, 128, 128>}, {pipeline_mode = #tpu.pipeline_mode<synchronous>, transform_indices = @transform_3, window_bounds = array<i64: 3, 3, 128, 128>}, {transform_indices = @transform_4, window_bounds = array<i64: 1, 1, 128>}, {transform_indices = @transform_5, window_bounds = array<i64: 1, 8, 16, 128>}]} {
    %c2_i32 = arith.constant 2 : i32
    %c0_i32 = arith.constant 0 : i32
    %0 = arith.cmpi eq, %c2_i32, %c0_i32 : i32
    %c1_i32 = arith.constant 1 : i32
    %1 = arith.select %0, %c1_i32, %c2_i32 : i32
    %2 = arith.remsi %arg1, %1 : i32
    %c0_i32_0 = arith.constant 0 : i32
    %3 = arith.cmpi ne, %2, %c0_i32_0 : i32
    %c0_i32_1 = arith.constant 0 : i32
    %4 = arith.cmpi slt, %2, %c0_i32_1 : i32
    %c0_i32_2 = arith.constant 0 : i32
    %5 = arith.cmpi slt, %1, %c0_i32_2 : i32
    %6 = arith.xori %4, %5 : i1
    %7 = arith.andi %6, %3 : i1
    %8 = arith.addi %2, %1 : i32
    %9 = arith.select %7, %8, %2 : i32
    %c0_i32_3 = arith.constant 0 : i32
    %10 = arith.cmpi eq, %arg1, %c0_i32_3 : i32
    %11 = arith.extui %10 : i1 to i32
    %c0_i32_4 = arith.constant 0 : i32
    %12 = arith.cmpi ne, %11, %c0_i32_4 : i32
    scf.if %12 {
      %c0_i32_147 = arith.constant 0 : i32
      %c0_i32_148 = arith.constant 0 : i32
      %c0_i32_149 = arith.constant 0 : i32
      %c0_i32_150 = arith.constant 0 : i32
      %c0_i32_151 = arith.constant 0 : i32
      %148 = tpu.memref_slice %arg2[%arg0, %c0_i32_149, %c0_i32_150, %c0_i32_151] : memref<2x40x16x128xbf16, #tpu.memory_space<any>> -> memref<1x32x16x128xbf16, #tpu.memory_space<any>>
      %149 = tpu.memref_squeeze %148 : memref<1x32x16x128xbf16, #tpu.memory_space<any>> -> memref<32x16x128xbf16, #tpu.memory_space<any>>
      %c0_i32_152 = arith.constant 0 : i32
      %c0_i32_153 = arith.constant 0 : i32
      %c0_i32_154 = arith.constant 0 : i32
      %150 = tpu.memref_slice %arg8[%c0_i32_147, %c0_i32_152, %c0_i32_153, %c0_i32_154] : memref<2x32x16x128xbf16, #tpu.memory_space<vmem>> -> memref<1x32x16x128xbf16, #tpu.memory_space<vmem>>
      %151 = tpu.memref_squeeze %150 : memref<1x32x16x128xbf16, #tpu.memory_space<vmem>> -> memref<32x16x128xbf16, #tpu.memory_space<vmem>>
      %152 = tpu.memref_slice %arg9[%c0_i32_148] : memref<2x!tpu.dma_semaphore, #tpu.memory_space<semaphore_mem>> -> memref<1x!tpu.dma_semaphore, #tpu.memory_space<semaphore_mem>>
      %153 = tpu.memref_squeeze %152 : memref<1x!tpu.dma_semaphore, #tpu.memory_space<semaphore_mem>> -> memref<!tpu.dma_semaphore, #tpu.memory_space<semaphore_mem>>
      tpu.enqueue_dma source(%149 : memref<32x16x128xbf16, #tpu.memory_space<any>>) target(%151 : memref<32x16x128xbf16, #tpu.memory_space<vmem>>) target_semaphore(%153 : memref<!tpu.dma_semaphore, #tpu.memory_space<semaphore_mem>>)
    } else {
    }
    %c1_i32_5 = arith.constant 1 : i32
    %13 = arith.addi %arg1, %c1_i32_5 : i32
    %c2_i32_6 = arith.constant 2 : i32
    %14 = arith.cmpi slt, %13, %c2_i32_6 : i32
    %15 = arith.extui %14 : i1 to i32
    %c0_i32_7 = arith.constant 0 : i32
    %16 = arith.cmpi ne, %15, %c0_i32_7 : i32
    scf.if %16 {
      %c1_i32_147 = arith.constant 1 : i32
      %148 = arith.addi %arg1, %c1_i32_147 : i32
      %c1_i32_148 = arith.constant 1 : i32
      %149 = arith.subi %c1_i32_148, %9 : i32
      %c8_i32_149 = arith.constant 8 : i32
      %150 = arith.muli %148, %c8_i32_149 : i32
      %c0_i32_150 = arith.constant 0 : i32
      %c0_i32_151 = arith.constant 0 : i32
      %151 = tpu.memref_slice %arg2[%arg0, %150, %c0_i32_150, %c0_i32_151] : memref<2x40x16x128xbf16, #tpu.memory_space<any>> -> memref<1x32x16x128xbf16, #tpu.memory_space<any>>
      %152 = tpu.memref_squeeze %151 : memref<1x32x16x128xbf16, #tpu.memory_space<any>> -> memref<32x16x128xbf16, #tpu.memory_space<any>>
      %c0_i32_152 = arith.constant 0 : i32
      %c0_i32_153 = arith.constant 0 : i32
      %c0_i32_154 = arith.constant 0 : i32
      %153 = tpu.memref_slice %arg8[%149, %c0_i32_152, %c0_i32_153, %c0_i32_154] : memref<2x32x16x128xbf16, #tpu.memory_space<vmem>> -> memref<1x32x16x128xbf16, #tpu.memory_space<vmem>>
      %154 = tpu.memref_squeeze %153 : memref<1x32x16x128xbf16, #tpu.memory_space<vmem>> -> memref<32x16x128xbf16, #tpu.memory_space<vmem>>
      %155 = tpu.memref_slice %arg9[%149] : memref<2x!tpu.dma_semaphore, #tpu.memory_space<semaphore_mem>> -> memref<1x!tpu.dma_semaphore, #tpu.memory_space<semaphore_mem>>
      %156 = tpu.memref_squeeze %155 : memref<1x!tpu.dma_semaphore, #tpu.memory_space<semaphore_mem>> -> memref<!tpu.dma_semaphore, #tpu.memory_space<semaphore_mem>>
      tpu.enqueue_dma source(%152 : memref<32x16x128xbf16, #tpu.memory_space<any>>) target(%154 : memref<32x16x128xbf16, #tpu.memory_space<vmem>>) target_semaphore(%156 : memref<!tpu.dma_semaphore, #tpu.memory_space<semaphore_mem>>)
    } else {
    }
    %c8_i32 = arith.constant 8 : i32
    %17 = arith.muli %arg1, %c8_i32 : i32
    %c0_i32_8 = arith.constant 0 : i32
    %c0_i32_9 = arith.constant 0 : i32
    %18 = tpu.memref_slice %arg2[%arg0, %17, %c0_i32_8, %c0_i32_9] : memref<2x40x16x128xbf16, #tpu.memory_space<any>> -> memref<1x32x16x128xbf16, #tpu.memory_space<any>>
    %19 = tpu.memref_squeeze %18 : memref<1x32x16x128xbf16, #tpu.memory_space<any>> -> memref<32x16x128xbf16, #tpu.memory_space<any>>
    %c0_i32_10 = arith.constant 0 : i32
    %c0_i32_11 = arith.constant 0 : i32
    %c0_i32_12 = arith.constant 0 : i32
    %20 = tpu.memref_slice %arg8[%9, %c0_i32_10, %c0_i32_11, %c0_i32_12] : memref<2x32x16x128xbf16, #tpu.memory_space<vmem>> -> memref<1x32x16x128xbf16, #tpu.memory_space<vmem>>
    %21 = tpu.memref_squeeze %20 : memref<1x32x16x128xbf16, #tpu.memory_space<vmem>> -> memref<32x16x128xbf16, #tpu.memory_space<vmem>>
    %22 = tpu.memref_slice %arg9[%9] : memref<2x!tpu.dma_semaphore, #tpu.memory_space<semaphore_mem>> -> memref<1x!tpu.dma_semaphore, #tpu.memory_space<semaphore_mem>>
    %23 = tpu.memref_squeeze %22 : memref<1x!tpu.dma_semaphore, #tpu.memory_space<semaphore_mem>> -> memref<!tpu.dma_semaphore, #tpu.memory_space<semaphore_mem>>
    tpu.wait_dma2 semaphore(%23 : memref<!tpu.dma_semaphore, #tpu.memory_space<semaphore_mem>>) src(%19 : memref<32x16x128xbf16, #tpu.memory_space<any>>) dst(%21 : memref<32x16x128xbf16, #tpu.memory_space<vmem>>)
    %24 = arith.index_cast %9 : i32 to index
    %c12 = arith.constant 12 : index
    %c0 = arith.constant 0 : index
    %c0_13 = arith.constant 0 : index
    %25 = vector.load %arg8[%24, %c12, %c0, %c0_13] : memref<2x32x16x128xbf16, #tpu.memory_space<vmem>>, vector<1x8x16x128xbf16>
    %26 = vector.shape_cast %25 : vector<1x8x16x128xbf16> to vector<8x16x128xbf16>
    %27 = vector.shape_cast %26 : vector<8x16x128xbf16> to vector<128x128xbf16>
    %c0_14 = arith.constant 0 : index
    %c0_15 = arith.constant 0 : index
    %28 = vector.load %arg3[%c0_14, %c0_15] : memref<128x128xbf16, #tpu.memory_space<vmem>>, vector<128x128xbf16>
    %cst = arith.constant dense<0.000000e+00> : vector<128x128xf32>
    %29 = tpu.matmul %27, %28, %cst {dimension_numbers = #tpu.dot_dimension_numbers<[1], [0], [0], [1], [0, 0, 1, 1], [], []>} : vector<128x128xbf16>, vector<128x128xbf16>, vector<128x128xf32> -> vector<128x128xf32>
    %30 = arith.index_cast %9 : i32 to index
    %c6 = arith.constant 6 : index
    %c0_16 = arith.constant 0 : index
    %c0_17 = arith.constant 0 : index
    %31 = vector.load %arg8[%30, %c6, %c0_16, %c0_17] : memref<2x32x16x128xbf16, #tpu.memory_space<vmem>>, vector<1x8x16x128xbf16>
    %32 = vector.shape_cast %31 : vector<1x8x16x128xbf16> to vector<8x16x128xbf16>
    %33 = vector.shape_cast %32 : vector<8x16x128xbf16> to vector<128x128xbf16>
    %c0_18 = arith.constant 0 : index
    %c1 = arith.constant 1 : index
    %c0_19 = arith.constant 0 : index
    %c0_20 = arith.constant 0 : index
    %34 = vector.load %arg4[%c0_18, %c1, %c0_19, %c0_20] : memref<3x3x128x128xbf16, #tpu.memory_space<vmem>>, vector<1x1x128x128xbf16>
    %35 = vector.shape_cast %34 : vector<1x1x128x128xbf16> to vector<128x128xbf16>
    %cst_21 = arith.constant dense<0.000000e+00> : vector<128x128xf32>
    %36 = tpu.matmul %33, %35, %cst_21 {dimension_numbers = #tpu.dot_dimension_numbers<[1], [0], [0], [1], [0, 0, 1, 1], [], []>} : vector<128x128xbf16>, vector<128x128xbf16>, vector<128x128xf32> -> vector<128x128xf32>
    %37 = arith.addf %29, %36 : vector<128x128xf32>
    %c0_22 = arith.constant 0 : index
    %c0_23 = arith.constant 0 : index
    %c0_24 = arith.constant 0 : index
    %c0_25 = arith.constant 0 : index
    %38 = vector.load %arg4[%c0_22, %c0_23, %c0_24, %c0_25] : memref<3x3x128x128xbf16, #tpu.memory_space<vmem>>, vector<1x1x128x128xbf16>
    %39 = vector.shape_cast %38 : vector<1x1x128x128xbf16> to vector<128x128xbf16>
    %cst_26 = arith.constant dense<0.000000e+00> : vector<128x128xf32>
    %40 = tpu.matmul %33, %39, %cst_26 {dimension_numbers = #tpu.dot_dimension_numbers<[1], [0], [0], [1], [0, 0, 1, 1], [], []>} : vector<128x128xbf16>, vector<128x128xbf16>, vector<128x128xf32> -> vector<128x128xf32>
    %c0_27 = arith.constant 0 : index
    %c2 = arith.constant 2 : index
    %c0_28 = arith.constant 0 : index
    %c0_29 = arith.constant 0 : index
    %41 = vector.load %arg4[%c0_27, %c2, %c0_28, %c0_29] : memref<3x3x128x128xbf16, #tpu.memory_space<vmem>>, vector<1x1x128x128xbf16>
    %42 = vector.shape_cast %41 : vector<1x1x128x128xbf16> to vector<128x128xbf16>
    %cst_30 = arith.constant dense<0.000000e+00> : vector<128x128xf32>
    %43 = tpu.matmul %33, %42, %cst_30 {dimension_numbers = #tpu.dot_dimension_numbers<[1], [0], [0], [1], [0, 0, 1, 1], [], []>} : vector<128x128xbf16>, vector<128x128xbf16>, vector<128x128xf32> -> vector<128x128xf32>
    %44 = arith.index_cast %9 : i32 to index
    %c12_31 = arith.constant 12 : index
    %c0_32 = arith.constant 0 : index
    %c0_33 = arith.constant 0 : index
    %45 = vector.load %arg8[%44, %c12_31, %c0_32, %c0_33] : memref<2x32x16x128xbf16, #tpu.memory_space<vmem>>, vector<1x8x16x128xbf16>
    %46 = vector.shape_cast %45 : vector<1x8x16x128xbf16> to vector<8x16x128xbf16>
    %47 = vector.shape_cast %46 : vector<8x16x128xbf16> to vector<128x128xbf16>
    %c1_34 = arith.constant 1 : index
    %c0_35 = arith.constant 0 : index
    %c0_36 = arith.constant 0 : index
    %c0_37 = arith.constant 0 : index
    %48 = vector.load %arg4[%c1_34, %c0_35, %c0_36, %c0_37] : memref<3x3x128x128xbf16, #tpu.memory_space<vmem>>, vector<1x1x128x128xbf16>
    %49 = vector.shape_cast %48 : vector<1x1x128x128xbf16> to vector<128x128xbf16>
    %cst_38 = arith.constant dense<0.000000e+00> : vector<128x128xf32>
    %50 = tpu.matmul %47, %49, %cst_38 {dimension_numbers = #tpu.dot_dimension_numbers<[1], [0], [0], [1], [0, 0, 1, 1], [], []>} : vector<128x128xbf16>, vector<128x128xbf16>, vector<128x128xf32> -> vector<128x128xf32>
    %c1_39 = arith.constant 1 : index
    %c2_40 = arith.constant 2 : index
    %c0_41 = arith.constant 0 : index
    %c0_42 = arith.constant 0 : index
    %51 = vector.load %arg4[%c1_39, %c2_40, %c0_41, %c0_42] : memref<3x3x128x128xbf16, #tpu.memory_space<vmem>>, vector<1x1x128x128xbf16>
    %52 = vector.shape_cast %51 : vector<1x1x128x128xbf16> to vector<128x128xbf16>
    %cst_43 = arith.constant dense<0.000000e+00> : vector<128x128xf32>
    %53 = tpu.matmul %47, %52, %cst_43 {dimension_numbers = #tpu.dot_dimension_numbers<[1], [0], [0], [1], [0, 0, 1, 1], [], []>} : vector<128x128xbf16>, vector<128x128xbf16>, vector<128x128xf32> -> vector<128x128xf32>
    %54 = arith.addf %40, %50 : vector<128x128xf32>
    %55 = arith.addf %43, %53 : vector<128x128xf32>
    %56 = arith.index_cast %9 : i32 to index
    %c18 = arith.constant 18 : index
    %c0_44 = arith.constant 0 : index
    %c0_45 = arith.constant 0 : index
    %57 = vector.load %arg8[%56, %c18, %c0_44, %c0_45] : memref<2x32x16x128xbf16, #tpu.memory_space<vmem>>, vector<1x8x16x128xbf16>
    %58 = vector.shape_cast %57 : vector<1x8x16x128xbf16> to vector<8x16x128xbf16>
    %59 = vector.shape_cast %58 : vector<8x16x128xbf16> to vector<128x128xbf16>
    %c2_46 = arith.constant 2 : index
    %c1_47 = arith.constant 1 : index
    %c0_48 = arith.constant 0 : index
    %c0_49 = arith.constant 0 : index
    %60 = vector.load %arg4[%c2_46, %c1_47, %c0_48, %c0_49] : memref<3x3x128x128xbf16, #tpu.memory_space<vmem>>, vector<1x1x128x128xbf16>
    %61 = vector.shape_cast %60 : vector<1x1x128x128xbf16> to vector<128x128xbf16>
    %cst_50 = arith.constant dense<0.000000e+00> : vector<128x128xf32>
    %62 = tpu.matmul %59, %61, %cst_50 {dimension_numbers = #tpu.dot_dimension_numbers<[1], [0], [0], [1], [0, 0, 1, 1], [], []>} : vector<128x128xbf16>, vector<128x128xbf16>, vector<128x128xf32> -> vector<128x128xf32>
    %63 = arith.addf %37, %62 : vector<128x128xf32>
    %c2_51 = arith.constant 2 : index
    %c0_52 = arith.constant 0 : index
    %c0_53 = arith.constant 0 : index
    %c0_54 = arith.constant 0 : index
    %64 = vector.load %arg4[%c2_51, %c0_52, %c0_53, %c0_54] : memref<3x3x128x128xbf16, #tpu.memory_space<vmem>>, vector<1x1x128x128xbf16>
    %65 = vector.shape_cast %64 : vector<1x1x128x128xbf16> to vector<128x128xbf16>
    %cst_55 = arith.constant dense<0.000000e+00> : vector<128x128xf32>
    %66 = tpu.matmul %59, %65, %cst_55 {dimension_numbers = #tpu.dot_dimension_numbers<[1], [0], [0], [1], [0, 0, 1, 1], [], []>} : vector<128x128xbf16>, vector<128x128xbf16>, vector<128x128xf32> -> vector<128x128xf32>
    %c2_56 = arith.constant 2 : index
    %c2_57 = arith.constant 2 : index
    %c0_58 = arith.constant 0 : index
    %c0_59 = arith.constant 0 : index
    %67 = vector.load %arg4[%c2_56, %c2_57, %c0_58, %c0_59] : memref<3x3x128x128xbf16, #tpu.memory_space<vmem>>, vector<1x1x128x128xbf16>
    %68 = vector.shape_cast %67 : vector<1x1x128x128xbf16> to vector<128x128xbf16>
    %cst_60 = arith.constant dense<0.000000e+00> : vector<128x128xf32>
    %69 = tpu.matmul %59, %68, %cst_60 {dimension_numbers = #tpu.dot_dimension_numbers<[1], [0], [0], [1], [0, 0, 1, 1], [], []>} : vector<128x128xbf16>, vector<128x128xbf16>, vector<128x128xf32> -> vector<128x128xf32>
    %70 = arith.addf %54, %66 : vector<128x128xf32>
    %71 = arith.addf %55, %69 : vector<128x128xf32>
    %72 = vector.shape_cast %70 : vector<128x128xf32> to vector<8x16x128xf32>
    %73 = vector.shape_cast %71 : vector<128x128xf32> to vector<8x16x128xf32>
    %74 = arith.index_cast %9 : i32 to index
    %c0_61 = arith.constant 0 : index
    %c0_62 = arith.constant 0 : index
    %c0_63 = arith.constant 0 : index
    %75 = vector.load %arg8[%74, %c0_61, %c0_62, %c0_63] : memref<2x32x16x128xbf16, #tpu.memory_space<vmem>>, vector<1x8x16x128xbf16>
    %76 = vector.shape_cast %75 : vector<1x8x16x128xbf16> to vector<8x16x128xbf16>
    %77 = vector.shape_cast %76 : vector<8x16x128xbf16> to vector<128x128xbf16>
    %c0_64 = arith.constant 0 : index
    %c1_65 = arith.constant 1 : index
    %c0_66 = arith.constant 0 : index
    %c0_67 = arith.constant 0 : index
    %78 = vector.load %arg5[%c0_64, %c1_65, %c0_66, %c0_67] : memref<3x3x128x128xbf16, #tpu.memory_space<vmem>>, vector<1x1x128x128xbf16>
    %79 = vector.shape_cast %78 : vector<1x1x128x128xbf16> to vector<128x128xbf16>
    %cst_68 = arith.constant dense<0.000000e+00> : vector<128x128xf32>
    %80 = tpu.matmul %77, %79, %cst_68 {dimension_numbers = #tpu.dot_dimension_numbers<[1], [0], [0], [1], [0, 0, 1, 1], [], []>} : vector<128x128xbf16>, vector<128x128xbf16>, vector<128x128xf32> -> vector<128x128xf32>
    %81 = arith.addf %63, %80 : vector<128x128xf32>
    %c0_69 = arith.constant 0 : index
    %c0_70 = arith.constant 0 : index
    %c0_71 = arith.constant 0 : index
    %c0_72 = arith.constant 0 : index
    %82 = vector.load %arg5[%c0_69, %c0_70, %c0_71, %c0_72] : memref<3x3x128x128xbf16, #tpu.memory_space<vmem>>, vector<1x1x128x128xbf16>
    %83 = vector.shape_cast %82 : vector<1x1x128x128xbf16> to vector<128x128xbf16>
    %cst_73 = arith.constant dense<0.000000e+00> : vector<128x128xf32>
    %84 = tpu.matmul %77, %83, %cst_73 {dimension_numbers = #tpu.dot_dimension_numbers<[1], [0], [0], [1], [0, 0, 1, 1], [], []>} : vector<128x128xbf16>, vector<128x128xbf16>, vector<128x128xf32> -> vector<128x128xf32>
    %c0_74 = arith.constant 0 : index
    %c2_75 = arith.constant 2 : index
    %c0_76 = arith.constant 0 : index
    %c0_77 = arith.constant 0 : index
    %85 = vector.load %arg5[%c0_74, %c2_75, %c0_76, %c0_77] : memref<3x3x128x128xbf16, #tpu.memory_space<vmem>>, vector<1x1x128x128xbf16>
    %86 = vector.shape_cast %85 : vector<1x1x128x128xbf16> to vector<128x128xbf16>
    %cst_78 = arith.constant dense<0.000000e+00> : vector<128x128xf32>
    %87 = tpu.matmul %77, %86, %cst_78 {dimension_numbers = #tpu.dot_dimension_numbers<[1], [0], [0], [1], [0, 0, 1, 1], [], []>} : vector<128x128xbf16>, vector<128x128xbf16>, vector<128x128xf32> -> vector<128x128xf32>
    %88 = arith.index_cast %9 : i32 to index
    %c12_79 = arith.constant 12 : index
    %c0_80 = arith.constant 0 : index
    %c0_81 = arith.constant 0 : index
    %89 = vector.load %arg8[%88, %c12_79, %c0_80, %c0_81] : memref<2x32x16x128xbf16, #tpu.memory_space<vmem>>, vector<1x8x16x128xbf16>
    %90 = vector.shape_cast %89 : vector<1x8x16x128xbf16> to vector<8x16x128xbf16>
    %91 = vector.shape_cast %90 : vector<8x16x128xbf16> to vector<128x128xbf16>
    %c1_82 = arith.constant 1 : index
    %c0_83 = arith.constant 0 : index
    %c0_84 = arith.constant 0 : index
    %c0_85 = arith.constant 0 : index
    %92 = vector.load %arg5[%c1_82, %c0_83, %c0_84, %c0_85] : memref<3x3x128x128xbf16, #tpu.memory_space<vmem>>, vector<1x1x128x128xbf16>
    %93 = vector.shape_cast %92 : vector<1x1x128x128xbf16> to vector<128x128xbf16>
    %cst_86 = arith.constant dense<0.000000e+00> : vector<128x128xf32>
    %94 = tpu.matmul %91, %93, %cst_86 {dimension_numbers = #tpu.dot_dimension_numbers<[1], [0], [0], [1], [0, 0, 1, 1], [], []>} : vector<128x128xbf16>, vector<128x128xbf16>, vector<128x128xf32> -> vector<128x128xf32>
    %c1_87 = arith.constant 1 : index
    %c2_88 = arith.constant 2 : index
    %c0_89 = arith.constant 0 : index
    %c0_90 = arith.constant 0 : index
    %95 = vector.load %arg5[%c1_87, %c2_88, %c0_89, %c0_90] : memref<3x3x128x128xbf16, #tpu.memory_space<vmem>>, vector<1x1x128x128xbf16>
    %96 = vector.shape_cast %95 : vector<1x1x128x128xbf16> to vector<128x128xbf16>
    %cst_91 = arith.constant dense<0.000000e+00> : vector<128x128xf32>
    %97 = tpu.matmul %91, %96, %cst_91 {dimension_numbers = #tpu.dot_dimension_numbers<[1], [0], [0], [1], [0, 0, 1, 1], [], []>} : vector<128x128xbf16>, vector<128x128xbf16>, vector<128x128xf32> -> vector<128x128xf32>
    %98 = arith.addf %84, %94 : vector<128x128xf32>
    %99 = arith.addf %87, %97 : vector<128x128xf32>
    %100 = arith.index_cast %9 : i32 to index
    %c24 = arith.constant 24 : index
    %c0_92 = arith.constant 0 : index
    %c0_93 = arith.constant 0 : index
    %101 = vector.load %arg8[%100, %c24, %c0_92, %c0_93] : memref<2x32x16x128xbf16, #tpu.memory_space<vmem>>, vector<1x8x16x128xbf16>
    %102 = vector.shape_cast %101 : vector<1x8x16x128xbf16> to vector<8x16x128xbf16>
    %103 = vector.shape_cast %102 : vector<8x16x128xbf16> to vector<128x128xbf16>
    %c2_94 = arith.constant 2 : index
    %c1_95 = arith.constant 1 : index
    %c0_96 = arith.constant 0 : index
    %c0_97 = arith.constant 0 : index
    %104 = vector.load %arg5[%c2_94, %c1_95, %c0_96, %c0_97] : memref<3x3x128x128xbf16, #tpu.memory_space<vmem>>, vector<1x1x128x128xbf16>
    %105 = vector.shape_cast %104 : vector<1x1x128x128xbf16> to vector<128x128xbf16>
    %cst_98 = arith.constant dense<0.000000e+00> : vector<128x128xf32>
    %106 = tpu.matmul %103, %105, %cst_98 {dimension_numbers = #tpu.dot_dimension_numbers<[1], [0], [0], [1], [0, 0, 1, 1], [], []>} : vector<128x128xbf16>, vector<128x128xbf16>, vector<128x128xf32> -> vector<128x128xf32>
    %107 = arith.addf %81, %106 : vector<128x128xf32>
    %c2_99 = arith.constant 2 : index
    %c0_100 = arith.constant 0 : index
    %c0_101 = arith.constant 0 : index
    %c0_102 = arith.constant 0 : index
    %108 = vector.load %arg5[%c2_99, %c0_100, %c0_101, %c0_102] : memref<3x3x128x128xbf16, #tpu.memory_space<vmem>>, vector<1x1x128x128xbf16>
    %109 = vector.shape_cast %108 : vector<1x1x128x128xbf16> to vector<128x128xbf16>
    %cst_103 = arith.constant dense<0.000000e+00> : vector<128x128xf32>
    %110 = tpu.matmul %103, %109, %cst_103 {dimension_numbers = #tpu.dot_dimension_numbers<[1], [0], [0], [1], [0, 0, 1, 1], [], []>} : vector<128x128xbf16>, vector<128x128xbf16>, vector<128x128xf32> -> vector<128x128xf32>
    %c2_104 = arith.constant 2 : index
    %c2_105 = arith.constant 2 : index
    %c0_106 = arith.constant 0 : index
    %c0_107 = arith.constant 0 : index
    %111 = vector.load %arg5[%c2_104, %c2_105, %c0_106, %c0_107] : memref<3x3x128x128xbf16, #tpu.memory_space<vmem>>, vector<1x1x128x128xbf16>
    %112 = vector.shape_cast %111 : vector<1x1x128x128xbf16> to vector<128x128xbf16>
    %cst_108 = arith.constant dense<0.000000e+00> : vector<128x128xf32>
    %113 = tpu.matmul %103, %112, %cst_108 {dimension_numbers = #tpu.dot_dimension_numbers<[1], [0], [0], [1], [0, 0, 1, 1], [], []>} : vector<128x128xbf16>, vector<128x128xbf16>, vector<128x128xf32> -> vector<128x128xf32>
    %114 = arith.addf %98, %110 : vector<128x128xf32>
    %115 = arith.addf %99, %113 : vector<128x128xf32>
    %116 = vector.shape_cast %114 : vector<128x128xf32> to vector<8x16x128xf32>
    %117 = vector.shape_cast %115 : vector<128x128xf32> to vector<8x16x128xf32>
    %118 = vector.shape_cast %107 : vector<128x128xf32> to vector<8x16x128xf32>
    %c0_109 = arith.constant 0 : index
    %c0_110 = arith.constant 0 : index
    %c0_111 = arith.constant 0 : index
    %119 = vector.load %arg10[%c0_109, %c0_110, %c0_111] : memref<8x16x128xf32, #tpu.memory_space<vmem>>, vector<8x16x128xf32>
    tpu.vector_store %arg10[%c0_109, %c0_110, %c0_111], %118 {strides = array<i32>} : memref<8x16x128xf32, #tpu.memory_space<vmem>>, vector<8x16x128xf32>,
    %c0_112 = arith.constant 0 : index
    %c6_113 = arith.constant 6 : index
    %c0_114 = arith.constant 0 : index
    %120 = vector.load %arg10[%c0_112, %c6_113, %c0_114] : memref<8x16x128xf32, #tpu.memory_space<vmem>>, vector<8x10x128xf32>
    %121 = vector.extract_strided_slice %72 {offsets = [0, 0, 0], sizes = [8, 10, 128], strides = [1, 1, 1]} : vector<8x16x128xf32> to vector<8x10x128xf32>
    %122 = arith.addf %120, %121 : vector<8x10x128xf32>
    %c0_115 = arith.constant 0 : index
    %c6_116 = arith.constant 6 : index
    %c0_117 = arith.constant 0 : index
    %123 = vector.load %arg10[%c0_115, %c6_116, %c0_117] : memref<8x16x128xf32, #tpu.memory_space<vmem>>, vector<8x10x128xf32>
    tpu.vector_store %arg10[%c0_115, %c6_116, %c0_117], %122 {strides = array<i32>} : memref<8x16x128xf32, #tpu.memory_space<vmem>>, vector<8x10x128xf32>,
    %c0_118 = arith.constant 0 : index
    %c0_119 = arith.constant 0 : index
    %c0_120 = arith.constant 0 : index
    %124 = vector.load %arg10[%c0_118, %c0_119, %c0_120] : memref<8x16x128xf32, #tpu.memory_space<vmem>>, vector<8x10x128xf32>
    %125 = vector.extract_strided_slice %73 {offsets = [0, 6, 0], sizes = [8, 10, 128], strides = [1, 1, 1]} : vector<8x16x128xf32> to vector<8x10x128xf32>
    %126 = arith.addf %124, %125 : vector<8x10x128xf32>
    %c0_121 = arith.constant 0 : index
    %c0_122 = arith.constant 0 : index
    %c0_123 = arith.constant 0 : index
    %127 = vector.load %arg10[%c0_121, %c0_122, %c0_123] : memref<8x16x128xf32, #tpu.memory_space<vmem>>, vector<8x10x128xf32>
    tpu.vector_store %arg10[%c0_121, %c0_122, %c0_123], %126 {strides = array<i32>} : memref<8x16x128xf32, #tpu.memory_space<vmem>>, vector<8x10x128xf32>,
    %c0_124 = arith.constant 0 : index
    %c12_125 = arith.constant 12 : index
    %c0_126 = arith.constant 0 : index
    %128 = vector.load %arg10[%c0_124, %c12_125, %c0_126] : memref<8x16x128xf32, #tpu.memory_space<vmem>>, vector<8x4x128xf32>
    %129 = vector.extract_strided_slice %116 {offsets = [0, 0, 0], sizes = [8, 4, 128], strides = [1, 1, 1]} : vector<8x16x128xf32> to vector<8x4x128xf32>
    %130 = arith.addf %128, %129 : vector<8x4x128xf32>
    %c0_127 = arith.constant 0 : index
    %c12_128 = arith.constant 12 : index
    %c0_129 = arith.constant 0 : index
    %131 = vector.load %arg10[%c0_127, %c12_128, %c0_129] : memref<8x16x128xf32, #tpu.memory_space<vmem>>, vector<8x4x128xf32>
    tpu.vector_store %arg10[%c0_127, %c12_128, %c0_129], %130 {strides = array<i32>} : memref<8x16x128xf32, #tpu.memory_space<vmem>>, vector<8x4x128xf32>,
    %c0_130 = arith.constant 0 : index
    %c0_131 = arith.constant 0 : index
    %c0_132 = arith.constant 0 : index
    %132 = vector.load %arg10[%c0_130, %c0_131, %c0_132] : memref<8x16x128xf32, #tpu.memory_space<vmem>>, vector<8x4x128xf32>
    %133 = vector.extract_strided_slice %117 {offsets = [0, 12, 0], sizes = [8, 4, 128], strides = [1, 1, 1]} : vector<8x16x128xf32> to vector<8x4x128xf32>
    %134 = arith.addf %132, %133 : vector<8x4x128xf32>
    %c0_133 = arith.constant 0 : index
    %c0_134 = arith.constant 0 : index
    %c0_135 = arith.constant 0 : index
    %135 = vector.load %arg10[%c0_133, %c0_134, %c0_135] : memref<8x16x128xf32, #tpu.memory_space<vmem>>, vector<8x4x128xf32>
    tpu.vector_store %arg10[%c0_133, %c0_134, %c0_135], %134 {strides = array<i32>} : memref<8x16x128xf32, #tpu.memory_space<vmem>>, vector<8x4x128xf32>,
    %c0_136 = arith.constant 0 : index
    %c0_137 = arith.constant 0 : index
    %c0_138 = arith.constant 0 : index
    %136 = vector.load %arg10[%c0_136, %c0_137, %c0_138] : memref<8x16x128xf32, #tpu.memory_space<vmem>>, vector<8x16x128xf32>
    %c0_139 = arith.constant 0 : index
    %c0_140 = arith.constant 0 : index
    %c0_141 = arith.constant 0 : index
    %137 = vector.load %arg6[%c0_139, %c0_140, %c0_141] : memref<1x1x128xf32, #tpu.memory_space<vmem>>, vector<1x1x128xf32>
    %138 = vector.shape_cast %137 : vector<1x1x128xf32> to vector<1x128xf32>
    %139 = vector.shape_cast %138 : vector<1x128xf32> to vector<1x1x128xf32>
    %140 = vector.broadcast %139 : vector<1x1x128xf32> to vector<8x16x128xf32>
    %141 = arith.addf %136, %140 : vector<8x16x128xf32>
    %cst_142 = arith.constant 0.000000e+00 : f32
    %142 = vector.broadcast %cst_142 : f32 to vector<8x16x128xf32>
    %143 = arith.maximumf %141, %142 : vector<8x16x128xf32>
    %144 = arith.truncf %143 : vector<8x16x128xf32> to vector<8x16x128xbf16>
    %c0_143 = arith.constant 0 : index
    %c0_144 = arith.constant 0 : index
    %c0_145 = arith.constant 0 : index
    %c0_146 = arith.constant 0 : index
    %145 = vector.load %arg7[%c0_143, %c0_144, %c0_145, %c0_146] : memref<1x8x16x128xbf16, #tpu.memory_space<vmem>>, vector<1x8x16x128xbf16>
    %146 = vector.shape_cast %145 : vector<1x8x16x128xbf16> to vector<8x16x128xbf16>
    %147 = vector.shape_cast %144 : vector<8x16x128xbf16> to vector<1x8x16x128xbf16>
    tpu.vector_store %arg7[%c0_143, %c0_144, %c0_145, %c0_146], %147 {strides = array<i32>} : memref<1x8x16x128xbf16, #tpu.memory_space<vmem>>, vector<1x8x16x128xbf16>,
    return
  }
  func.func @transform_1(%arg0: i32, %arg1: i32) -> (i32, i32) {
    %c0_i32 = arith.constant 0 : i32
    %c0_i32_0 = arith.constant 0 : i32
    %c0_i32_1 = arith.constant 0 : i32
    return %c0_i32, %c0_i32_0 : i32, i32
  }
  func.func @transform_2(%arg0: i32, %arg1: i32) -> (i32, i32, i32, i32) {
    %c0_i32 = arith.constant 0 : i32
    %c0_i32_0 = arith.constant 0 : i32
    %c0_i32_1 = arith.constant 0 : i32
    %c0_i32_2 = arith.constant 0 : i32
    %c0_i32_3 = arith.constant 0 : i32
    return %c0_i32, %c0_i32_0, %c0_i32_1, %c0_i32_2 : i32, i32, i32, i32
  }
  func.func @transform_3(%arg0: i32, %arg1: i32) -> (i32, i32, i32, i32) {
    %c0_i32 = arith.constant 0 : i32
    %c0_i32_0 = arith.constant 0 : i32
    %c0_i32_1 = arith.constant 0 : i32
    %c0_i32_2 = arith.constant 0 : i32
    %c0_i32_3 = arith.constant 0 : i32
    return %c0_i32, %c0_i32_0, %c0_i32_1, %c0_i32_2 : i32, i32, i32, i32
  }
  func.func @transform_4(%arg0: i32, %arg1: i32) -> (i32, i32, i32) {
    %c0_i32 = arith.constant 0 : i32
    %c0_i32_0 = arith.constant 0 : i32
    %c0_i32_1 = arith.constant 0 : i32
    return %arg0, %c0_i32, %c0_i32_0 : i32, i32, i32
  }
  func.func @transform_5(%arg0: i32, %arg1: i32) -> (i32, i32, i32, i32) {
    %c0_i32 = arith.constant 0 : i32
    %c0_i32_0 = arith.constant 0 : i32
    %c0_i32_1 = arith.constant 0 : i32
    return %arg0, %arg1, %c0_i32, %c0_i32_0 : i32, i32, i32, i32
  }
}

module attributes {stable_mosaic.version = 11 : i64} {
  func.func @aspp_kernel(%arg0: i32, %arg1: i32, %arg2: memref<2x40x16x128xbf16, #tpu.memory_space<any>>, %arg3: memref<128x128xbf16, #tpu.memory_space<vmem>>, %arg4: memref<3x3x128x128xbf16, #tpu.memory_space<vmem>>, %arg5: memref<3x3x128x128xbf16, #tpu.memory_space<vmem>>, %arg6: memref<1x1x128xf32, #tpu.memory_space<vmem>>, %arg7: memref<1x8x16x128xbf16, #tpu.memory_space<vmem>>, %arg8: memref<2x32x16x128xbf16, #tpu.memory_space<vmem>>, %arg9: memref<2x!tpu.dma_semaphore, #tpu.memory_space<semaphore_mem>>, %arg10: memref<8x16x128xf32, #tpu.memory_space<vmem>>) attributes {dimension_semantics = [#tpu.dimension_semantics<parallel>, #tpu.dimension_semantics<arbitrary>], iteration_bounds = array<i64: 2, 2>, scalar_prefetch = 0 : i64, scratch_operands = 3 : i64, tpu.core_type = #tpu.core_type<tc>, window_params = [{}, {pipeline_mode = #tpu.pipeline_mode<synchronous>, transform_indices = @transform_1, window_bounds = array<i64: 128, 128>}, {pipeline_mode = #tpu.pipeline_mode<synchronous>, transform_indices = @transform_2, window_bounds = array<i64: 3, 3, 128, 128>}, {pipeline_mode = #tpu.pipeline_mode<synchronous>, transform_indices = @transform_3, window_bounds = array<i64: 3, 3, 128, 128>}, {transform_indices = @transform_4, window_bounds = array<i64: 1, 1, 128>}, {transform_indices = @transform_5, window_bounds = array<i64: 1, 8, 16, 128>}]} {
    %c2_i32 = arith.constant 2 : i32
    %c0_i32 = arith.constant 0 : i32
    %0 = arith.cmpi eq, %c2_i32, %c0_i32 : i32
    %c1_i32 = arith.constant 1 : i32
    %1 = arith.select %0, %c1_i32, %c2_i32 : i32
    %2 = arith.remsi %arg1, %1 : i32
    %c0_i32_0 = arith.constant 0 : i32
    %3 = arith.cmpi ne, %2, %c0_i32_0 : i32
    %c0_i32_1 = arith.constant 0 : i32
    %4 = arith.cmpi slt, %2, %c0_i32_1 : i32
    %c0_i32_2 = arith.constant 0 : i32
    %5 = arith.cmpi slt, %1, %c0_i32_2 : i32
    %6 = arith.xori %4, %5 : i1
    %7 = arith.andi %6, %3 : i1
    %8 = arith.addi %2, %1 : i32
    %9 = arith.select %7, %8, %2 : i32
    %c0_i32_3 = arith.constant 0 : i32
    %10 = arith.cmpi eq, %arg1, %c0_i32_3 : i32
    %11 = arith.extui %10 : i1 to i32
    %c0_i32_4 = arith.constant 0 : i32
    %12 = arith.cmpi ne, %11, %c0_i32_4 : i32
    scf.if %12 {
      %c0_i32_147 = arith.constant 0 : i32
      %c0_i32_148 = arith.constant 0 : i32
      %c0_i32_149 = arith.constant 0 : i32
      %c0_i32_150 = arith.constant 0 : i32
      %c0_i32_151 = arith.constant 0 : i32
      %148 = tpu.memref_slice %arg2[%arg0, %c0_i32_149, %c0_i32_150, %c0_i32_151] : memref<2x40x16x128xbf16, #tpu.memory_space<any>> -> memref<1x32x16x128xbf16, #tpu.memory_space<any>>
      %149 = tpu.memref_squeeze %148 : memref<1x32x16x128xbf16, #tpu.memory_space<any>> -> memref<32x16x128xbf16, #tpu.memory_space<any>>
      %c0_i32_152 = arith.constant 0 : i32
      %c0_i32_153 = arith.constant 0 : i32
      %c0_i32_154 = arith.constant 0 : i32
      %150 = tpu.memref_slice %arg8[%c0_i32_147, %c0_i32_152, %c0_i32_153, %c0_i32_154] : memref<2x32x16x128xbf16, #tpu.memory_space<vmem>> -> memref<1x32x16x128xbf16, #tpu.memory_space<vmem>>
      %151 = tpu.memref_squeeze %150 : memref<1x32x16x128xbf16, #tpu.memory_space<vmem>> -> memref<32x16x128xbf16, #tpu.memory_space<vmem>>
      %152 = tpu.memref_slice %arg9[%c0_i32_148] : memref<2x!tpu.dma_semaphore, #tpu.memory_space<semaphore_mem>> -> memref<1x!tpu.dma_semaphore, #tpu.memory_space<semaphore_mem>>
      %153 = tpu.memref_squeeze %152 : memref<1x!tpu.dma_semaphore, #tpu.memory_space<semaphore_mem>> -> memref<!tpu.dma_semaphore, #tpu.memory_space<semaphore_mem>>
      tpu.enqueue_dma source(%149 : memref<32x16x128xbf16, #tpu.memory_space<any>>) target(%151 : memref<32x16x128xbf16, #tpu.memory_space<vmem>>) target_semaphore(%153 : memref<!tpu.dma_semaphore, #tpu.memory_space<semaphore_mem>>)
    } else {
    }
    %c1_i32_5 = arith.constant 1 : i32
    %13 = arith.addi %arg1, %c1_i32_5 : i32
    %c2_i32_6 = arith.constant 2 : i32
    %14 = arith.cmpi slt, %13, %c2_i32_6 : i32
    %15 = arith.extui %14 : i1 to i32
    %c0_i32_7 = arith.constant 0 : i32
    %16 = arith.cmpi ne, %15, %c0_i32_7 : i32
    scf.if %16 {
      %c1_i32_147 = arith.constant 1 : i32
      %148 = arith.addi %arg1, %c1_i32_147 : i32
      %c1_i32_148 = arith.constant 1 : i32
      %149 = arith.subi %c1_i32_148, %9 : i32
      %c8_i32_149 = arith.constant 8 : i32
      %150 = arith.muli %148, %c8_i32_149 : i32
      %c0_i32_150 = arith.constant 0 : i32
      %c0_i32_151 = arith.constant 0 : i32
      %151 = tpu.memref_slice %arg2[%arg0, %150, %c0_i32_150, %c0_i32_151] : memref<2x40x16x128xbf16, #tpu.memory_space<any>> -> memref<1x32x16x128xbf16, #tpu.memory_space<any>>
      %152 = tpu.memref_squeeze %151 : memref<1x32x16x128xbf16, #tpu.memory_space<any>> -> memref<32x16x128xbf16, #tpu.memory_space<any>>
      %c0_i32_152 = arith.constant 0 : i32
      %c0_i32_153 = arith.constant 0 : i32
      %c0_i32_154 = arith.constant 0 : i32
      %153 = tpu.memref_slice %arg8[%149, %c0_i32_152, %c0_i32_153, %c0_i32_154] : memref<2x32x16x128xbf16, #tpu.memory_space<vmem>> -> memref<1x32x16x128xbf16, #tpu.memory_space<vmem>>
      %154 = tpu.memref_squeeze %153 : memref<1x32x16x128xbf16, #tpu.memory_space<vmem>> -> memref<32x16x128xbf16, #tpu.memory_space<vmem>>
      %155 = tpu.memref_slice %arg9[%149] : memref<2x!tpu.dma_semaphore, #tpu.memory_space<semaphore_mem>> -> memref<1x!tpu.dma_semaphore, #tpu.memory_space<semaphore_mem>>
      %156 = tpu.memref_squeeze %155 : memref<1x!tpu.dma_semaphore, #tpu.memory_space<semaphore_mem>> -> memref<!tpu.dma_semaphore, #tpu.memory_space<semaphore_mem>>
      tpu.enqueue_dma source(%152 : memref<32x16x128xbf16, #tpu.memory_space<any>>) target(%154 : memref<32x16x128xbf16, #tpu.memory_space<vmem>>) target_semaphore(%156 : memref<!tpu.dma_semaphore, #tpu.memory_space<semaphore_mem>>)
    } else {
    }
    %c8_i32 = arith.constant 8 : i32
    %17 = arith.muli %arg1, %c8_i32 : i32
    %c0_i32_8 = arith.constant 0 : i32
    %c0_i32_9 = arith.constant 0 : i32
    %18 = tpu.memref_slice %arg2[%arg0, %17, %c0_i32_8, %c0_i32_9] : memref<2x40x16x128xbf16, #tpu.memory_space<any>> -> memref<1x32x16x128xbf16, #tpu.memory_space<any>>
    %19 = tpu.memref_squeeze %18 : memref<1x32x16x128xbf16, #tpu.memory_space<any>> -> memref<32x16x128xbf16, #tpu.memory_space<any>>
    %c0_i32_10 = arith.constant 0 : i32
    %c0_i32_11 = arith.constant 0 : i32
    %c0_i32_12 = arith.constant 0 : i32
    %20 = tpu.memref_slice %arg8[%9, %c0_i32_10, %c0_i32_11, %c0_i32_12] : memref<2x32x16x128xbf16, #tpu.memory_space<vmem>> -> memref<1x32x16x128xbf16, #tpu.memory_space<vmem>>
    %21 = tpu.memref_squeeze %20 : memref<1x32x16x128xbf16, #tpu.memory_space<vmem>> -> memref<32x16x128xbf16, #tpu.memory_space<vmem>>
    %22 = tpu.memref_slice %arg9[%9] : memref<2x!tpu.dma_semaphore, #tpu.memory_space<semaphore_mem>> -> memref<1x!tpu.dma_semaphore, #tpu.memory_space<semaphore_mem>>
    %23 = tpu.memref_squeeze %22 : memref<1x!tpu.dma_semaphore, #tpu.memory_space<semaphore_mem>> -> memref<!tpu.dma_semaphore, #tpu.memory_space<semaphore_mem>>
    tpu.wait_dma2 semaphore(%23 : memref<!tpu.dma_semaphore, #tpu.memory_space<semaphore_mem>>) src(%19 : memref<32x16x128xbf16, #tpu.memory_space<any>>) dst(%21 : memref<32x16x128xbf16, #tpu.memory_space<vmem>>)
    %24 = arith.index_cast %9 : i32 to index
    %c12 = arith.constant 12 : index
    %c0 = arith.constant 0 : index
    %c0_13 = arith.constant 0 : index
    %25 = vector.load %arg8[%24, %c12, %c0, %c0_13] : memref<2x32x16x128xbf16, #tpu.memory_space<vmem>>, vector<1x8x16x128xbf16>
    %26 = vector.shape_cast %25 : vector<1x8x16x128xbf16> to vector<8x16x128xbf16>
    %27 = vector.shape_cast %26 : vector<8x16x128xbf16> to vector<128x128xbf16>
    %c0_14 = arith.constant 0 : index
    %c0_15 = arith.constant 0 : index
    %28 = vector.load %arg3[%c0_14, %c0_15] : memref<128x128xbf16, #tpu.memory_space<vmem>>, vector<128x128xbf16>
    %cst = arith.constant dense<0.000000e+00> : vector<128x128xf32>
    %29 = tpu.matmul %27, %28, %cst {dimension_numbers = #tpu.dot_dimension_numbers<[1], [0], [0], [1], [0, 0, 1, 1], [], []>} : vector<128x128xbf16>, vector<128x128xbf16>, vector<128x128xf32> -> vector<128x128xf32>
    %30 = arith.index_cast %9 : i32 to index
    %c6 = arith.constant 6 : index
    %c0_16 = arith.constant 0 : index
    %c0_17 = arith.constant 0 : index
    %31 = vector.load %arg8[%30, %c6, %c0_16, %c0_17] : memref<2x32x16x128xbf16, #tpu.memory_space<vmem>>, vector<1x8x16x128xbf16>
    %32 = vector.shape_cast %31 : vector<1x8x16x128xbf16> to vector<8x16x128xbf16>
    %33 = vector.shape_cast %32 : vector<8x16x128xbf16> to vector<128x128xbf16>
    %c0_18 = arith.constant 0 : index
    %c1 = arith.constant 1 : index
    %c0_19 = arith.constant 0 : index
    %c0_20 = arith.constant 0 : index
    %34 = vector.load %arg4[%c0_18, %c1, %c0_19, %c0_20] : memref<3x3x128x128xbf16, #tpu.memory_space<vmem>>, vector<1x1x128x128xbf16>
    %35 = vector.shape_cast %34 : vector<1x1x128x128xbf16> to vector<128x128xbf16>
    %cst_21 = arith.constant dense<0.000000e+00> : vector<128x128xf32>
    %36 = tpu.matmul %33, %35, %cst_21 {dimension_numbers = #tpu.dot_dimension_numbers<[1], [0], [0], [1], [0, 0, 1, 1], [], []>} : vector<128x128xbf16>, vector<128x128xbf16>, vector<128x128xf32> -> vector<128x128xf32>
    %37 = arith.addf %29, %36 : vector<128x128xf32>
    %c0_22 = arith.constant 0 : index
    %c0_23 = arith.constant 0 : index
    %c0_24 = arith.constant 0 : index
    %c0_25 = arith.constant 0 : index
    %38 = vector.load %arg4[%c0_22, %c0_23, %c0_24, %c0_25] : memref<3x3x128x128xbf16, #tpu.memory_space<vmem>>, vector<1x1x128x128xbf16>
    %39 = vector.shape_cast %38 : vector<1x1x128x128xbf16> to vector<128x128xbf16>
    %cst_26 = arith.constant dense<0.000000e+00> : vector<128x128xf32>
    %40 = tpu.matmul %33, %39, %cst_26 {dimension_numbers = #tpu.dot_dimension_numbers<[1], [0], [0], [1], [0, 0, 1, 1], [], []>} : vector<128x128xbf16>, vector<128x128xbf16>, vector<128x128xf32> -> vector<128x128xf32>
    %c0_27 = arith.constant 0 : index
    %c2 = arith.constant 2 : index
    %c0_28 = arith.constant 0 : index
    %c0_29 = arith.constant 0 : index
    %41 = vector.load %arg4[%c0_27, %c2, %c0_28, %c0_29] : memref<3x3x128x128xbf16, #tpu.memory_space<vmem>>, vector<1x1x128x128xbf16>
    %42 = vector.shape_cast %41 : vector<1x1x128x128xbf16> to vector<128x128xbf16>
    %cst_30 = arith.constant dense<0.000000e+00> : vector<128x128xf32>
    %43 = tpu.matmul %33, %42, %cst_30 {dimension_numbers = #tpu.dot_dimension_numbers<[1], [0], [0], [1], [0, 0, 1, 1], [], []>} : vector<128x128xbf16>, vector<128x128xbf16>, vector<128x128xf32> -> vector<128x128xf32>
    %44 = arith.index_cast %9 : i32 to index
    %c12_31 = arith.constant 12 : index
    %c0_32 = arith.constant 0 : index
    %c0_33 = arith.constant 0 : index
    %45 = vector.load %arg8[%44, %c12_31, %c0_32, %c0_33] : memref<2x32x16x128xbf16, #tpu.memory_space<vmem>>, vector<1x8x16x128xbf16>
    %46 = vector.shape_cast %45 : vector<1x8x16x128xbf16> to vector<8x16x128xbf16>
    %47 = vector.shape_cast %46 : vector<8x16x128xbf16> to vector<128x128xbf16>
    %c1_34 = arith.constant 1 : index
    %c0_35 = arith.constant 0 : index
    %c0_36 = arith.constant 0 : index
    %c0_37 = arith.constant 0 : index
    %48 = vector.load %arg4[%c1_34, %c0_35, %c0_36, %c0_37] : memref<3x3x128x128xbf16, #tpu.memory_space<vmem>>, vector<1x1x128x128xbf16>
    %49 = vector.shape_cast %48 : vector<1x1x128x128xbf16> to vector<128x128xbf16>
    %cst_38 = arith.constant dense<0.000000e+00> : vector<128x128xf32>
    %50 = tpu.matmul %47, %49, %cst_38 {dimension_numbers = #tpu.dot_dimension_numbers<[1], [0], [0], [1], [0, 0, 1, 1], [], []>} : vector<128x128xbf16>, vector<128x128xbf16>, vector<128x128xf32> -> vector<128x128xf32>
    %c1_39 = arith.constant 1 : index
    %c2_40 = arith.constant 2 : index
    %c0_41 = arith.constant 0 : index
    %c0_42 = arith.constant 0 : index
    %51 = vector.load %arg4[%c1_39, %c2_40, %c0_41, %c0_42] : memref<3x3x128x128xbf16, #tpu.memory_space<vmem>>, vector<1x1x128x128xbf16>
    %52 = vector.shape_cast %51 : vector<1x1x128x128xbf16> to vector<128x128xbf16>
    %cst_43 = arith.constant dense<0.000000e+00> : vector<128x128xf32>
    %53 = tpu.matmul %47, %52, %cst_43 {dimension_numbers = #tpu.dot_dimension_numbers<[1], [0], [0], [1], [0, 0, 1, 1], [], []>} : vector<128x128xbf16>, vector<128x128xbf16>, vector<128x128xf32> -> vector<128x128xf32>
    %54 = arith.addf %40, %50 : vector<128x128xf32>
    %55 = arith.addf %43, %53 : vector<128x128xf32>
    %56 = arith.index_cast %9 : i32 to index
    %c18 = arith.constant 18 : index
    %c0_44 = arith.constant 0 : index
    %c0_45 = arith.constant 0 : index
    %57 = vector.load %arg8[%56, %c18, %c0_44, %c0_45] : memref<2x32x16x128xbf16, #tpu.memory_space<vmem>>, vector<1x8x16x128xbf16>
    %58 = vector.shape_cast %57 : vector<1x8x16x128xbf16> to vector<8x16x128xbf16>
    %59 = vector.shape_cast %58 : vector<8x16x128xbf16> to vector<128x128xbf16>
    %c2_46 = arith.constant 2 : index
    %c1_47 = arith.constant 1 : index
    %c0_48 = arith.constant 0 : index
    %c0_49 = arith.constant 0 : index
    %60 = vector.load %arg4[%c2_46, %c1_47, %c0_48, %c0_49] : memref<3x3x128x128xbf16, #tpu.memory_space<vmem>>, vector<1x1x128x128xbf16>
    %61 = vector.shape_cast %60 : vector<1x1x128x128xbf16> to vector<128x128xbf16>
    %cst_50 = arith.constant dense<0.000000e+00> : vector<128x128xf32>
    %62 = tpu.matmul %59, %61, %cst_50 {dimension_numbers = #tpu.dot_dimension_numbers<[1], [0], [0], [1], [0, 0, 1, 1], [], []>} : vector<128x128xbf16>, vector<128x128xbf16>, vector<128x128xf32> -> vector<128x128xf32>
    %63 = arith.addf %37, %62 : vector<128x128xf32>
    %c2_51 = arith.constant 2 : index
    %c0_52 = arith.constant 0 : index
    %c0_53 = arith.constant 0 : index
    %c0_54 = arith.constant 0 : index
    %64 = vector.load %arg4[%c2_51, %c0_52, %c0_53, %c0_54] : memref<3x3x128x128xbf16, #tpu.memory_space<vmem>>, vector<1x1x128x128xbf16>
    %65 = vector.shape_cast %64 : vector<1x1x128x128xbf16> to vector<128x128xbf16>
    %cst_55 = arith.constant dense<0.000000e+00> : vector<128x128xf32>
    %66 = tpu.matmul %59, %65, %cst_55 {dimension_numbers = #tpu.dot_dimension_numbers<[1], [0], [0], [1], [0, 0, 1, 1], [], []>} : vector<128x128xbf16>, vector<128x128xbf16>, vector<128x128xf32> -> vector<128x128xf32>
    %c2_56 = arith.constant 2 : index
    %c2_57 = arith.constant 2 : index
    %c0_58 = arith.constant 0 : index
    %c0_59 = arith.constant 0 : index
    %67 = vector.load %arg4[%c2_56, %c2_57, %c0_58, %c0_59] : memref<3x3x128x128xbf16, #tpu.memory_space<vmem>>, vector<1x1x128x128xbf16>
    %68 = vector.shape_cast %67 : vector<1x1x128x128xbf16> to vector<128x128xbf16>
    %cst_60 = arith.constant dense<0.000000e+00> : vector<128x128xf32>
    %69 = tpu.matmul %59, %68, %cst_60 {dimension_numbers = #tpu.dot_dimension_numbers<[1], [0], [0], [1], [0, 0, 1, 1], [], []>} : vector<128x128xbf16>, vector<128x128xbf16>, vector<128x128xf32> -> vector<128x128xf32>
    %70 = arith.addf %54, %66 : vector<128x128xf32>
    %71 = arith.addf %55, %69 : vector<128x128xf32>
    %72 = vector.shape_cast %70 : vector<128x128xf32> to vector<8x16x128xf32>
    %73 = vector.shape_cast %71 : vector<128x128xf32> to vector<8x16x128xf32>
    %74 = arith.index_cast %9 : i32 to index
    %c0_61 = arith.constant 0 : index
    %c0_62 = arith.constant 0 : index
    %c0_63 = arith.constant 0 : index
    %75 = vector.load %arg8[%74, %c0_61, %c0_62, %c0_63] : memref<2x32x16x128xbf16, #tpu.memory_space<vmem>>, vector<1x8x16x128xbf16>
    %76 = vector.shape_cast %75 : vector<1x8x16x128xbf16> to vector<8x16x128xbf16>
    %77 = vector.shape_cast %76 : vector<8x16x128xbf16> to vector<128x128xbf16>
    %c0_64 = arith.constant 0 : index
    %c1_65 = arith.constant 1 : index
    %c0_66 = arith.constant 0 : index
    %c0_67 = arith.constant 0 : index
    %78 = vector.load %arg5[%c0_64, %c1_65, %c0_66, %c0_67] : memref<3x3x128x128xbf16, #tpu.memory_space<vmem>>, vector<1x1x128x128xbf16>
    %79 = vector.shape_cast %78 : vector<1x1x128x128xbf16> to vector<128x128xbf16>
    %cst_68 = arith.constant dense<0.000000e+00> : vector<128x128xf32>
    %80 = tpu.matmul %77, %79, %cst_68 {dimension_numbers = #tpu.dot_dimension_numbers<[1], [0], [0], [1], [0, 0, 1, 1], [], []>} : vector<128x128xbf16>, vector<128x128xbf16>, vector<128x128xf32> -> vector<128x128xf32>
    %81 = arith.addf %63, %80 : vector<128x128xf32>
    %c0_69 = arith.constant 0 : index
    %c0_70 = arith.constant 0 : index
    %c0_71 = arith.constant 0 : index
    %c0_72 = arith.constant 0 : index
    %82 = vector.load %arg5[%c0_69, %c0_70, %c0_71, %c0_72] : memref<3x3x128x128xbf16, #tpu.memory_space<vmem>>, vector<1x1x128x128xbf16>
    %83 = vector.shape_cast %82 : vector<1x1x128x128xbf16> to vector<128x128xbf16>
    %cst_73 = arith.constant dense<0.000000e+00> : vector<128x128xf32>
    %84 = tpu.matmul %77, %83, %cst_73 {dimension_numbers = #tpu.dot_dimension_numbers<[1], [0], [0], [1], [0, 0, 1, 1], [], []>} : vector<128x128xbf16>, vector<128x128xbf16>, vector<128x128xf32> -> vector<128x128xf32>
    %c0_74 = arith.constant 0 : index
    %c2_75 = arith.constant 2 : index
    %c0_76 = arith.constant 0 : index
    %c0_77 = arith.constant 0 : index
    %85 = vector.load %arg5[%c0_74, %c2_75, %c0_76, %c0_77] : memref<3x3x128x128xbf16, #tpu.memory_space<vmem>>, vector<1x1x128x128xbf16>
    %86 = vector.shape_cast %85 : vector<1x1x128x128xbf16> to vector<128x128xbf16>
    %cst_78 = arith.constant dense<0.000000e+00> : vector<128x128xf32>
    %87 = tpu.matmul %77, %86, %cst_78 {dimension_numbers = #tpu.dot_dimension_numbers<[1], [0], [0], [1], [0, 0, 1, 1], [], []>} : vector<128x128xbf16>, vector<128x128xbf16>, vector<128x128xf32> -> vector<128x128xf32>
    %88 = arith.index_cast %9 : i32 to index
    %c12_79 = arith.constant 12 : index
    %c0_80 = arith.constant 0 : index
    %c0_81 = arith.constant 0 : index
    %89 = vector.load %arg8[%88, %c12_79, %c0_80, %c0_81] : memref<2x32x16x128xbf16, #tpu.memory_space<vmem>>, vector<1x8x16x128xbf16>
    %90 = vector.shape_cast %89 : vector<1x8x16x128xbf16> to vector<8x16x128xbf16>
    %91 = vector.shape_cast %90 : vector<8x16x128xbf16> to vector<128x128xbf16>
    %c1_82 = arith.constant 1 : index
    %c0_83 = arith.constant 0 : index
    %c0_84 = arith.constant 0 : index
    %c0_85 = arith.constant 0 : index
    %92 = vector.load %arg5[%c1_82, %c0_83, %c0_84, %c0_85] : memref<3x3x128x128xbf16, #tpu.memory_space<vmem>>, vector<1x1x128x128xbf16>
    %93 = vector.shape_cast %92 : vector<1x1x128x128xbf16> to vector<128x128xbf16>
    %cst_86 = arith.constant dense<0.000000e+00> : vector<128x128xf32>
    %94 = tpu.matmul %91, %93, %cst_86 {dimension_numbers = #tpu.dot_dimension_numbers<[1], [0], [0], [1], [0, 0, 1, 1], [], []>} : vector<128x128xbf16>, vector<128x128xbf16>, vector<128x128xf32> -> vector<128x128xf32>
    %c1_87 = arith.constant 1 : index
    %c2_88 = arith.constant 2 : index
    %c0_89 = arith.constant 0 : index
    %c0_90 = arith.constant 0 : index
    %95 = vector.load %arg5[%c1_87, %c2_88, %c0_89, %c0_90] : memref<3x3x128x128xbf16, #tpu.memory_space<vmem>>, vector<1x1x128x128xbf16>
    %96 = vector.shape_cast %95 : vector<1x1x128x128xbf16> to vector<128x128xbf16>
    %cst_91 = arith.constant dense<0.000000e+00> : vector<128x128xf32>
    %97 = tpu.matmul %91, %96, %cst_91 {dimension_numbers = #tpu.dot_dimension_numbers<[1], [0], [0], [1], [0, 0, 1, 1], [], []>} : vector<128x128xbf16>, vector<128x128xbf16>, vector<128x128xf32> -> vector<128x128xf32>
    %98 = arith.addf %84, %94 : vector<128x128xf32>
    %99 = arith.addf %87, %97 : vector<128x128xf32>
    %100 = arith.index_cast %9 : i32 to index
    %c24 = arith.constant 24 : index
    %c0_92 = arith.constant 0 : index
    %c0_93 = arith.constant 0 : index
    %101 = vector.load %arg8[%100, %c24, %c0_92, %c0_93] : memref<2x32x16x128xbf16, #tpu.memory_space<vmem>>, vector<1x8x16x128xbf16>
    %102 = vector.shape_cast %101 : vector<1x8x16x128xbf16> to vector<8x16x128xbf16>
    %103 = vector.shape_cast %102 : vector<8x16x128xbf16> to vector<128x128xbf16>
    %c2_94 = arith.constant 2 : index
    %c1_95 = arith.constant 1 : index
    %c0_96 = arith.constant 0 : index
    %c0_97 = arith.constant 0 : index
    %104 = vector.load %arg5[%c2_94, %c1_95, %c0_96, %c0_97] : memref<3x3x128x128xbf16, #tpu.memory_space<vmem>>, vector<1x1x128x128xbf16>
    %105 = vector.shape_cast %104 : vector<1x1x128x128xbf16> to vector<128x128xbf16>
    %cst_98 = arith.constant dense<0.000000e+00> : vector<128x128xf32>
    %106 = tpu.matmul %103, %105, %cst_98 {dimension_numbers = #tpu.dot_dimension_numbers<[1], [0], [0], [1], [0, 0, 1, 1], [], []>} : vector<128x128xbf16>, vector<128x128xbf16>, vector<128x128xf32> -> vector<128x128xf32>
    %107 = arith.addf %81, %106 : vector<128x128xf32>
    %c2_99 = arith.constant 2 : index
    %c0_100 = arith.constant 0 : index
    %c0_101 = arith.constant 0 : index
    %c0_102 = arith.constant 0 : index
    %108 = vector.load %arg5[%c2_99, %c0_100, %c0_101, %c0_102] : memref<3x3x128x128xbf16, #tpu.memory_space<vmem>>, vector<1x1x128x128xbf16>
    %109 = vector.shape_cast %108 : vector<1x1x128x128xbf16> to vector<128x128xbf16>
    %cst_103 = arith.constant dense<0.000000e+00> : vector<128x128xf32>
    %110 = tpu.matmul %103, %109, %cst_103 {dimension_numbers = #tpu.dot_dimension_numbers<[1], [0], [0], [1], [0, 0, 1, 1], [], []>} : vector<128x128xbf16>, vector<128x128xbf16>, vector<128x128xf32> -> vector<128x128xf32>
    %c2_104 = arith.constant 2 : index
    %c2_105 = arith.constant 2 : index
    %c0_106 = arith.constant 0 : index
    %c0_107 = arith.constant 0 : index
    %111 = vector.load %arg5[%c2_104, %c2_105, %c0_106, %c0_107] : memref<3x3x128x128xbf16, #tpu.memory_space<vmem>>, vector<1x1x128x128xbf16>
    %112 = vector.shape_cast %111 : vector<1x1x128x128xbf16> to vector<128x128xbf16>
    %cst_108 = arith.constant dense<0.000000e+00> : vector<128x128xf32>
    %113 = tpu.matmul %103, %112, %cst_108 {dimension_numbers = #tpu.dot_dimension_numbers<[1], [0], [0], [1], [0, 0, 1, 1], [], []>} : vector<128x128xbf16>, vector<128x128xbf16>, vector<128x128xf32> -> vector<128x128xf32>
    %114 = arith.addf %98, %110 : vector<128x128xf32>
    %115 = arith.addf %99, %113 : vector<128x128xf32>
    %116 = vector.shape_cast %114 : vector<128x128xf32> to vector<8x16x128xf32>
    %117 = vector.shape_cast %115 : vector<128x128xf32> to vector<8x16x128xf32>
    %118 = vector.shape_cast %107 : vector<128x128xf32> to vector<8x16x128xf32>
    %c0_109 = arith.constant 0 : index
    %c0_110 = arith.constant 0 : index
    %c0_111 = arith.constant 0 : index
    %119 = vector.load %arg10[%c0_109, %c0_110, %c0_111] : memref<8x16x128xf32, #tpu.memory_space<vmem>>, vector<8x16x128xf32>
    tpu.vector_store %arg10[%c0_109, %c0_110, %c0_111], %118 {strides = array<i32>} : memref<8x16x128xf32, #tpu.memory_space<vmem>>, vector<8x16x128xf32>,
    %c0_112 = arith.constant 0 : index
    %c6_113 = arith.constant 6 : index
    %c0_114 = arith.constant 0 : index
    %120 = vector.load %arg10[%c0_112, %c6_113, %c0_114] : memref<8x16x128xf32, #tpu.memory_space<vmem>>, vector<8x10x128xf32>
    %121 = vector.extract_strided_slice %72 {offsets = [0, 0, 0], sizes = [8, 10, 128], strides = [1, 1, 1]} : vector<8x16x128xf32> to vector<8x10x128xf32>
    %122 = arith.addf %120, %121 : vector<8x10x128xf32>
    %c0_115 = arith.constant 0 : index
    %c6_116 = arith.constant 6 : index
    %c0_117 = arith.constant 0 : index
    %123 = vector.load %arg10[%c0_115, %c6_116, %c0_117] : memref<8x16x128xf32, #tpu.memory_space<vmem>>, vector<8x10x128xf32>
    tpu.vector_store %arg10[%c0_115, %c6_116, %c0_117], %122 {strides = array<i32>} : memref<8x16x128xf32, #tpu.memory_space<vmem>>, vector<8x10x128xf32>,
    %c0_118 = arith.constant 0 : index
    %c0_119 = arith.constant 0 : index
    %c0_120 = arith.constant 0 : index
    %124 = vector.load %arg10[%c0_118, %c0_119, %c0_120] : memref<8x16x128xf32, #tpu.memory_space<vmem>>, vector<8x10x128xf32>
    %125 = vector.extract_strided_slice %73 {offsets = [0, 6, 0], sizes = [8, 10, 128], strides = [1, 1, 1]} : vector<8x16x128xf32> to vector<8x10x128xf32>
    %126 = arith.addf %124, %125 : vector<8x10x128xf32>
    %c0_121 = arith.constant 0 : index
    %c0_122 = arith.constant 0 : index
    %c0_123 = arith.constant 0 : index
    %127 = vector.load %arg10[%c0_121, %c0_122, %c0_123] : memref<8x16x128xf32, #tpu.memory_space<vmem>>, vector<8x10x128xf32>
    tpu.vector_store %arg10[%c0_121, %c0_122, %c0_123], %126 {strides = array<i32>} : memref<8x16x128xf32, #tpu.memory_space<vmem>>, vector<8x10x128xf32>,
    %c0_124 = arith.constant 0 : index
    %c12_125 = arith.constant 12 : index
    %c0_126 = arith.constant 0 : index
    %128 = vector.load %arg10[%c0_124, %c12_125, %c0_126] : memref<8x16x128xf32, #tpu.memory_space<vmem>>, vector<8x4x128xf32>
    %129 = vector.extract_strided_slice %116 {offsets = [0, 0, 0], sizes = [8, 4, 128], strides = [1, 1, 1]} : vector<8x16x128xf32> to vector<8x4x128xf32>
    %130 = arith.addf %128, %129 : vector<8x4x128xf32>
    %c0_127 = arith.constant 0 : index
    %c12_128 = arith.constant 12 : index
    %c0_129 = arith.constant 0 : index
    %131 = vector.load %arg10[%c0_127, %c12_128, %c0_129] : memref<8x16x128xf32, #tpu.memory_space<vmem>>, vector<8x4x128xf32>
    tpu.vector_store %arg10[%c0_127, %c12_128, %c0_129], %130 {strides = array<i32>} : memref<8x16x128xf32, #tpu.memory_space<vmem>>, vector<8x4x128xf32>,
    %c0_130 = arith.constant 0 : index
    %c0_131 = arith.constant 0 : index
    %c0_132 = arith.constant 0 : index
    %132 = vector.load %arg10[%c0_130, %c0_131, %c0_132] : memref<8x16x128xf32, #tpu.memory_space<vmem>>, vector<8x4x128xf32>
    %133 = vector.extract_strided_slice %117 {offsets = [0, 12, 0], sizes = [8, 4, 128], strides = [1, 1, 1]} : vector<8x16x128xf32> to vector<8x4x128xf32>
    %134 = arith.addf %132, %133 : vector<8x4x128xf32>
    %c0_133 = arith.constant 0 : index
    %c0_134 = arith.constant 0 : index
    %c0_135 = arith.constant 0 : index
    %135 = vector.load %arg10[%c0_133, %c0_134, %c0_135] : memref<8x16x128xf32, #tpu.memory_space<vmem>>, vector<8x4x128xf32>
    tpu.vector_store %arg10[%c0_133, %c0_134, %c0_135], %134 {strides = array<i32>} : memref<8x16x128xf32, #tpu.memory_space<vmem>>, vector<8x4x128xf32>,
    %c0_136 = arith.constant 0 : index
    %c0_137 = arith.constant 0 : index
    %c0_138 = arith.constant 0 : index
    %136 = vector.load %arg10[%c0_136, %c0_137, %c0_138] : memref<8x16x128xf32, #tpu.memory_space<vmem>>, vector<8x16x128xf32>
    %c0_139 = arith.constant 0 : index
    %c0_140 = arith.constant 0 : index
    %c0_141 = arith.constant 0 : index
    %137 = vector.load %arg6[%c0_139, %c0_140, %c0_141] : memref<1x1x128xf32, #tpu.memory_space<vmem>>, vector<1x1x128xf32>
    %138 = vector.shape_cast %137 : vector<1x1x128xf32> to vector<1x128xf32>
    %139 = vector.shape_cast %138 : vector<1x128xf32> to vector<1x1x128xf32>
    %140 = vector.broadcast %139 : vector<1x1x128xf32> to vector<8x16x128xf32>
    %141 = arith.addf %136, %140 : vector<8x16x128xf32>
    %cst_142 = arith.constant 0.000000e+00 : f32
    %142 = vector.broadcast %cst_142 : f32 to vector<8x16x128xf32>
    %143 = arith.maximumf %141, %142 : vector<8x16x128xf32>
    %144 = arith.truncf %143 : vector<8x16x128xf32> to vector<8x16x128xbf16>
    %c0_143 = arith.constant 0 : index
    %c0_144 = arith.constant 0 : index
    %c0_145 = arith.constant 0 : index
    %c0_146 = arith.constant 0 : index
    %145 = vector.load %arg7[%c0_143, %c0_144, %c0_145, %c0_146] : memref<1x8x16x128xbf16, #tpu.memory_space<vmem>>, vector<1x8x16x128xbf16>
    %146 = vector.shape_cast %145 : vector<1x8x16x128xbf16> to vector<8x16x128xbf16>
    %147 = vector.shape_cast %144 : vector<8x16x128xbf16> to vector<1x8x16x128xbf16>
    tpu.vector_store %arg7[%c0_143, %c0_144, %c0_145, %c0_146], %147 {strides = array<i32>} : memref<1x8x16x128xbf16, #tpu.memory_space<vmem>>, vector<1x8x16x128xbf16>,
    return
  }
  func.func @transform_1(%arg0: i32, %arg1: i32) -> (i32, i32) {
    %c0_i32 = arith.constant 0 : i32
    %c0_i32_0 = arith.constant 0 : i32
    %c0_i32_1 = arith.constant 0 : i32
    return %c0_i32, %c0_i32_0 : i32, i32
  }
  func.func @transform_2(%arg0: i32, %arg1: i32) -> (i32, i32, i32, i32) {
    %c0_i32 = arith.constant 0 : i32
    %c0_i32_0 = arith.constant 0 : i32
    %c0_i32_1 = arith.constant 0 : i32
    %c0_i32_2 = arith.constant 0 : i32
    %c0_i32_3 = arith.constant 0 : i32
    return %c0_i32, %c0_i32_0, %c0_i32_1, %c0_i32_2 : i32, i32, i32, i32
  }
  func.func @transform_3(%arg0: i32, %arg1: i32) -> (i32, i32, i32, i32) {
    %c0_i32 = arith.constant 0 : i32
    %c0_i32_0 = arith.constant 0 : i32
    %c0_i32_1 = arith.constant 0 : i32
    %c0_i32_2 = arith.constant 0 : i32
    %c0_i32_3 = arith.constant 0 : i32
    return %c0_i32, %c0_i32_0, %c0_i32_1, %c0_i32_2 : i32, i32, i32, i32
  }
  func.func @transform_4(%arg0: i32, %arg1: i32) -> (i32, i32, i32) {
    %c0_i32 = arith.constant 0 : i32
    %c0_i32_0 = arith.constant 0 : i32
    %c0_i32_1 = arith.constant 0 : i32
    return %arg0, %c0_i32, %c0_i32_0 : i32, i32, i32
  }
  func.func @transform_5(%arg0: i32, %arg1: i32) -> (i32, i32, i32, i32) {
    %c0_i32 = arith.constant 0 : i32
    %c0_i32_0 = arith.constant 0 : i32
    %c0_i32_1 = arith.constant 0 : i32
    return %arg0, %arg1, %c0_i32, %c0_i32_0 : i32, i32, i32, i32
  }
}

</mosaic_0001>

<llo_original>
// kernel: _aspp_forward.1
$region0: #{_aspp_forward.1}
  #allocation0 [shape = 'u32[]', space=smem, size = 0x4, offset = 0x4, fixed_abs, tag = 'smem constant byte address 0x4 - core index']
  #allocation1 [shape = 'u32[144,128]{1,0:T(1,128)}', space=vmem, size = 0x12000, scoped, tag = 'internal scratch']
  #allocation2 [shape = 'bf16[2,32,16,128]{3,2,1,0:T(8,128)(2,1)}', space=vmem, size = 0x40000, scoped, tag = 'scratch operand']
  #allocation3 [shape = 's32[2]{0}', space=sflag, size = 0x8, scoped, tag = 'scratch operand']
  #allocation4 [shape = 'f32[8,16,128]{2,1,0:T(8,128)}', space=vmem, size = 0x10000, scoped, tag = 'scratch operand']
  #allocation5 [shape = 's32[]', space=sflag, size = 0x4, offset = 0, fixed_abs, tag = 'sflag constant byte address 0x0 - dummy sync flag']
  #allocation6 [shape = 's32[]', space=sflag, size = 0x4, offset = 0, fixed_abs, tag = 'sflag constant byte address 0x0 - dummy sync flag']
  %s0 = inlined_call_operand.vmem [shape: bf16[2,40,16,128], index: 0, kind: input, shape index: {}]
  %s1 = inlined_call_operand.vmem [shape: bf16[128,128], index: 1, kind: input, shape index: {}]
  %s2 = inlined_call_operand.vmem [shape: bf16[3,3,128,128], index: 2, kind: input, shape index: {}]
  %s3 = inlined_call_operand.vmem [shape: bf16[3,3,128,128], index: 3, kind: input, shape index: {}]
  %s4 = inlined_call_operand.vmem [shape: f32[2,1,128], index: 4, kind: input, shape index: {}]
  %s5 = inlined_call_operand.vmem [shape: bf16[2,16,16,128], index: 5, kind: output, shape index: {}]
  %s6 = sld [smem:[#allocation0]]
  $region125: #{_aspp_forward.1} parent=0
    _
  %s8 = ssub.s32 1, %s6
  %s9 = scalar_select 0, %s8, %s6
  loop: start=0, step=1, limit=6
  $region2: #{_aspp_forward.1} parent=0 // loop_pre_header
    _
  $region3: #{_aspp_forward.1} parent=0 // loop_header
    %s11 = sphi 0, %s15
    %p12 = scmp.ge.s32.totalorder %s11, 6
    %s18 = sphi 0, %s30
    %s19 = sphi 0, %s26
    %s20 = sphi 0, %s18
    %s21 = sphi 0, %s19
    %s22 = sphi 0, %s20
    %s23 = sphi 0, %s21
    %s31 = sphi 0, %s31
    %s33 = sphi 0, %s31
    %s34 = sphi 0, %s33
    %s48 = sphi 0, %s34
    %s52 = sphi 0, %s52
    %s54 = sphi 0, %s52
    %s55 = sphi 0, %s54
    %s69 = sphi 0, %s55
    %s73 = sphi 0, %s73
    %s75 = sphi 0, %s73
    %s76 = sphi 0, %s75
    %s90 = sphi 0, %s76
    %s96 = sphi 0, %s98
    %s99 = sphi 0, %s96
    %s100 = sphi 0, %s99
    %s116 = sphi 0, %s100
    %s124 = sphi 0, %s126
    %s127 = sphi 0, %s124
    %s128 = sphi 0, %s127
    %s144 = sphi 0, %s128
  $region4: #{_aspp_forward.1} parent=0 // loop_header_branch
    %14 = sbr.rel (%p12) target = $region8
  $region5: #{_aspp_forward.1} parent=0 // loop_body
    %s16 = ssub.s32 %s11, 1
    %s17 = ssub.s32 %s11, 2
    %s24 = sadd.s32 1, %s19
    %p25 = scmp.ge.s32.totalorder %s24, 2
    %s26 = scalar_select %p25, 0, %s24
    %s27 = sadd.s32 1, %s18
    %s28 = scalar_select %p25, %s27, %s18
    %p29 = scmp.ge.s32.totalorder %s28, 2
    %s30 = scalar_select %p29, 0, %s28
    %s32 = sadd.s32 %s31, 1
    %p35 = scmp.eq.s32.totalorder %s11, 3
    %p36 = scmp.ne.s32.totalorder %s31, %s33
    %p37 = scmp.eq.s32.totalorder %s11, 0
    %p38 = por %p36, %p37
    %p39 = scmp.ne.s32.totalorder %s31, %s33
    %p40 = scmp.eq.s32.totalorder %s16, 3
    %p41 = por %p39, %p40
    %p42 = scmp.ne.s32.totalorder %s33, %s34
    %p43 = scmp.eq.s32.totalorder %s16, 0
    %p44 = por %p42, %p43
    %p45 = scmp.ne.s32.totalorder %s33, %s34
    %p46 = scmp.eq.s32.totalorder %s17, 3
    %p47 = por %p45, %p46
    %p49 = scmp.ne.s32.totalorder %s34, %s48
    %p50 = scmp.eq.s32.totalorder %s17, 0
    %p51 = por %p49, %p50
    %s53 = sadd.s32 %s52, 1
    %p56 = scmp.eq.s32.totalorder %s11, 3
    %p57 = scmp.ne.s32.totalorder %s52, %s54
    %p58 = scmp.eq.s32.totalorder %s11, 0
    %p59 = por %p57, %p58
    %p60 = scmp.ne.s32.totalorder %s52, %s54
    %p61 = scmp.eq.s32.totalorder %s16, 3
    %p62 = por %p60, %p61
    %p63 = scmp.ne.s32.totalorder %s54, %s55
    %p64 = scmp.eq.s32.totalorder %s16, 0
    %p65 = por %p63, %p64
    %p66 = scmp.ne.s32.totalorder %s54, %s55
    %p67 = scmp.eq.s32.totalorder %s17, 3
    %p68 = por %p66, %p67
    %p70 = scmp.ne.s32.totalorder %s55, %s69
    %p71 = scmp.eq.s32.totalorder %s17, 0
    %p72 = por %p70, %p71
    %s74 = sadd.s32 %s73, 1
    %p77 = scmp.eq.s32.totalorder %s11, 3
    %p78 = scmp.ne.s32.totalorder %s73, %s75
    %p79 = scmp.eq.s32.totalorder %s11, 0
    %p80 = por %p78, %p79
    %p81 = scmp.ne.s32.totalorder %s73, %s75
    %p82 = scmp.eq.s32.totalorder %s16, 3
    %p83 = por %p81, %p82
    %p84 = scmp.ne.s32.totalorder %s75, %s76
    %p85 = scmp.eq.s32.totalorder %s16, 0
    %p86 = por %p84, %p85
    %p87 = scmp.ne.s32.totalorder %s75, %s76
    %p88 = scmp.eq.s32.totalorder %s17, 3
    %p89 = por %p87, %p88
    %p91 = scmp.ne.s32.totalorder %s76, %s90
    %p92 = scmp.eq.s32.totalorder %s17, 0
    %p93 = por %p91, %p92
    %s94 = ssub.s32 %s18, %s30
    %p95 = scmp.eq.s32.totalorder %s94, 0
    %s97 = sadd.s32 %s96, 1
    %s98 = scalar_select %p95, %s96, %s97
    %p101 = pneg %p95
    %p102 = scmp.eq.s32.totalorder %s11, 3
    %p103 = por %p101, %p102
    %p104 = scmp.ne.s32.totalorder %s96, %s99
    %p105 = scmp.eq.s32.totalorder %s11, 0
    %p106 = por %p104, %p105
    %p107 = scmp.ne.s32.totalorder %s96, %s99
    %p108 = scmp.eq.s32.totalorder %s16, 3
    %p109 = por %p107, %p108
    %p110 = scmp.ne.s32.totalorder %s99, %s100
    %p111 = scmp.eq.s32.totalorder %s16, 0
    %p112 = por %p110, %p111
    %p113 = scmp.ne.s32.totalorder %s99, %s100
    %p114 = scmp.eq.s32.totalorder %s17, 3
    %p115 = por %p113, %p114
    %p117 = scmp.ne.s32.totalorder %s100, %s116
    %p118 = scmp.eq.s32.totalorder %s17, 0
    %p119 = por %p117, %p118
    %s120 = ssub.s32 %s18, %s30
    %s121 = ssub.s32 %s19, %s26
    %s122 = sor.u32 %s120, %s121
    %p123 = scmp.eq.s32.totalorder %s122, 0
    %s125 = sadd.s32 %s124, 1
    %s126 = scalar_select %p123, %s124, %s125
    %p129 = pneg %p123
    %p130 = scmp.eq.s32.totalorder %s11, 3
    %p131 = por %p129, %p130
    %p132 = scmp.ne.s32.totalorder %s124, %s127
    %p133 = scmp.eq.s32.totalorder %s11, 0
    %p134 = por %p132, %p133
    %p135 = scmp.ne.s32.totalorder %s124, %s127
    %p136 = scmp.eq.s32.totalorder %s16, 3
    %p137 = por %p135, %p136
    %p138 = scmp.ne.s32.totalorder %s127, %s128
    %p139 = scmp.eq.s32.totalorder %s16, 0
    %p140 = por %p138, %p139
    %p141 = scmp.ne.s32.totalorder %s127, %s128
    %p142 = scmp.eq.s32.totalorder %s17, 3
    %p143 = por %p141, %p142
    %p145 = scmp.ne.s32.totalorder %s128, %s144
    %p146 = scmp.eq.s32.totalorder %s17, 0
    %p147 = por %p145, %p146
    %p148 = scmp.le.s32.totalorder 1, %s11
    %p149 = scmp.lt.s32.totalorder %s11, 5
    %p150 = pnand %p148, %p149
    %p151 = pneg %p150
    // Predicated region
    $region9: #{_aspp_forward.1} parent=5 // pred_check
      _
    $region10: #{_aspp_forward.1} parent=5 // pred_check_branch
      %153 = sbr.rel (%p150) target = $region12
    $region11: #{_aspp_forward.1} parent=5 // pred_region
      %s154 = ssub.s32 %s11, 1
      // Predicated region
      $region13: #{_aspp_forward.1} parent=11 // pred_check
        %p155 = pneg %p44
      $region14: #{_aspp_forward.1} parent=11 // pred_check_branch
        %157 = sbr.rel (%p155) target = $region16
      $region15: #{_aspp_forward.1} parent=11 // pred_region
        _
      $region16: #{_aspp_forward.1} parent=11 // pred_fallthru
        _
      // Predicated region
      $region17: #{_aspp_forward.1} parent=11 // pred_check
        %p158 = pneg %p65
      $region18: #{_aspp_forward.1} parent=11 // pred_check_branch
        %160 = sbr.rel (%p158) target = $region20
      $region19: #{_aspp_forward.1} parent=11 // pred_region
        _
      $region20: #{_aspp_forward.1} parent=11 // pred_fallthru
        _
      // Predicated region
      $region21: #{_aspp_forward.1} parent=11 // pred_check
        %p161 = pneg %p86
      $region22: #{_aspp_forward.1} parent=11 // pred_check_branch
        %163 = sbr.rel (%p161) target = $region24
      $region23: #{_aspp_forward.1} parent=11 // pred_region
        _
      $region24: #{_aspp_forward.1} parent=11 // pred_fallthru
        _
    $region12: #{_aspp_forward.1} parent=5 // pred_fallthru
      _
    %p164 = scmp.lt.s32.totalorder %s11, 4
    // Predicated region
    $region25: #{_aspp_forward.1} parent=5 // pred_check
      %p165 = pneg %p164
    $region26: #{_aspp_forward.1} parent=5 // pred_check_branch
      %167 = sbr.rel (%p165) target = $region28
    $region27: #{_aspp_forward.1} parent=5 // pred_region
      // Predicated region
      $region29: #{_aspp_forward.1} parent=27 // pred_check
        %p168 = pneg %p106
      $region30: #{_aspp_forward.1} parent=27 // pred_check_branch
        %170 = sbr.rel (%p168) target = $region32
      $region31: #{_aspp_forward.1} parent=27 // pred_region
        %p171 = scmp.lt.s32.totalorder %s18, 1
        %s172 = scalar_select %p171, %s18, 1
        %s173 = scalar_lea.vmem %s4, %s172
      $region32: #{_aspp_forward.1} parent=27 // pred_fallthru
        _
    $region28: #{_aspp_forward.1} parent=5 // pred_fallthru
      _
    %p174 = scmp.le.s32.totalorder 1, %s11
    %p175 = scmp.lt.s32.totalorder %s11, 5
    %p176 = pnand %p174, %p175
    %p177 = pneg %p176
    // Predicated region
    $region33: #{_aspp_forward.1} parent=5 // pred_check
      _
    $region34: #{_aspp_forward.1} parent=5 // pred_check_branch
      %179 = sbr.rel (%p176) target = $region36
    $region35: #{_aspp_forward.1} parent=5 // pred_region
      %s180 = ssub.s32 %s11, 1
      %p181 = pneg %p44
      %p182 = pneg %p41
      %p183 = pneg %p65
      %p184 = pneg %p62
      %p185 = pneg %p86
      %p186 = pneg %p83
      %p187 = scmp.lt.s32.totalorder %s20, 1
      %s188 = scalar_select %p187, %s20, 1
      %s189 = scalar_lea.vmem %s4, %s188
      %p190 = pneg %p112
      %p191 = pneg %p109
      %p192 = pneg %p140
      %p193 = pneg %p137
      %s194 = smul.u32 8, %s21
      %p195 = scmp.lt.s32.totalorder %s20, 1
      %s196 = scalar_select %p195, %s20, 1
      %p197 = scmp.lt.s32.totalorder %s194, 15
      %s198 = scalar_select %p197, %s194, 15
      %s199 = smul.addr %s198, 2
      %s200 = smul.addr %s196, 32
      %s201 = sadd.s32 %s199, %s200
      %s202 = smul.addr %s201, 4
      %s203 = scalar_lea.vmem %s5, %s202
      %p204 = scmp.lt.s32.totalorder %s20, 1
      %s205 = scalar_select %p204, %s20, 1
      %s206 = scalar_lea.vmem %s4, %s205
      %s207 = smul.u32 8, %s21
      %p208 = scmp.lt.s32.totalorder %s20, 1
      %s209 = scalar_select %p208, %s20, 1
      %p210 = scmp.lt.s32.totalorder %s207, 15
      %s211 = scalar_select %p210, %s207, 15
      %s212 = smul.addr %s211, 2
      %s213 = smul.addr %s209, 32
      %s214 = sadd.s32 %s212, %s213
      %s215 = smul.addr %s214, 4
      %s216 = scalar_lea.vmem %s5, %s215
      %s217 = smul.u32 8, %s21
      %p219 = scmp.lt.s32.totalorder %s21, 0
      %s220 = ssub.s32 0, %s21
      %s221 = scalar_select %p219, %s220, %s21
      %s222 = sand.u32 %s221, 1
      %s223 = ssub.s32 0, %s222
      %s224 = scalar_select %p219, %s223, %s222
      %p225 = scmp.ne.s32.totalorder %s224, 0
      %p226 = scmp.lt.s32.totalorder %s224, 0
      %p227 = pnand %p226, %p225
      %p228 = pneg %p227
      %s229 = sadd.s32 %s224, 2
      %s230 = scalar_select %p228, %s229, %s224
      %p231 = scmp.eq.s32.totalorder %s21, 0
      // Predicated region
      $region37: #{_aspp_forward.1} parent=35 // pred_check
        %p232 = pneg %p231
      $region38: #{_aspp_forward.1} parent=35 // pred_check_branch
        %234 = sbr.rel (%p232) target = $region40
      $region39: #{_aspp_forward.1} parent=35 // pred_region
        %s235 = smul.u32 %s20, 80
        %s236 = smul.addr %s235, 4
        %s237 = scalar_lea.vmem %s0, %s236
        %p239 = scmp.lt.u32.totalorder 256, 8
        %p240 = pneg %p239
        // Predicated region
        $region41: #{_aspp_forward.1} parent=39 // pred_check
          _
        $region42: #{_aspp_forward.1} parent=39 // pred_check_branch
          %242 = sbr.rel (%p239) target = $region44
        $region43: #{_aspp_forward.1} parent=39 // pred_region
          %s258 = sand.u32 256, 7
          %p259 = scmp.eq.s32.totalorder %s258, 0
          // Predicated region
          $region56: #{_aspp_forward.1} parent=43 // pred_check
            %p260 = pneg %p259
          $region57: #{_aspp_forward.1} parent=43 // pred_check_branch
            %262 = sbr.rel (%p260) target = $region59
          $region58: #{_aspp_forward.1} parent=43 // pred_region
            loop: start=0, step=1, limit=1
            $region60: #{_aspp_forward.1} parent=58 // loop_pre_header
              _
            $region61: #{_aspp_forward.1} parent=58 // loop_header
              %s264 = sphi 0, %s268
              %p265 = scmp.ge.s32.totalorder %s264, 1
              %s269 = sphi %s237, %s237
              %s270 = sphi [#allocation2], [#allocation2]
            $region62: #{_aspp_forward.1} parent=58 // loop_header_branch
              %267 = sbr.rel (%p265) target = $region66
            $region63: #{_aspp_forward.1} parent=58 // loop_body
              %v271 = vld [vmem:[%s269] sm:$0xff]
              %272 = vst [vmem:[%s270] sm:$0xff] %v271
              %v273 = vld [vmem:[%s269 + $0x8] sm:$0xff]
              %274 = vst [vmem:[%s270 + $0x8] sm:$0xff] %v273
              %v275 = vld [vmem:[%s269 + $0x10] sm:$0xff]
              %276 = vst [vmem:[%s270 + $0x10] sm:$0xff] %v275
              %v277 = vld [vmem:[%s269 + $0x18] sm:$0xff]
              %278 = vst [vmem:[%s270 + $0x18] sm:$0xff] %v277
              %v279 = vld [vmem:[%s269 + $0x20] sm:$0xff]
              %280 = vst [vmem:[%s270 + $0x20] sm:$0xff] %v279
              %v281 = vld [vmem:[%s269 + $0x28] sm:$0xff]
              %282 = vst [vmem:[%s270 + $0x28] sm:$0xff] %v281
              %v283 = vld [vmem:[%s269 + $0x30] sm:$0xff]
              %284 = vst [vmem:[%s270 + $0x30] sm:$0xff] %v283
              %v285 = vld [vmem:[%s269 + $0x38] sm:$0xff]
              %286 = vst [vmem:[%s270 + $0x38] sm:$0xff] %v285
              %v287 = vld [vmem:[%s269 + $0x40] sm:$0xff]
              %288 = vst [vmem:[%s270 + $0x40] sm:$0xff] %v287
              %v289 = vld [vmem:[%s269 + $0x48] sm:$0xff]
              %290 = vst [vmem:[%s270 + $0x48] sm:$0xff] %v289
              %v291 = vld [vmem:[%s269 + $0x50] sm:$0xff]
              %292 = vst [vmem:[%s270 + $0x50] sm:$0xff] %v291
              %v293 = vld [vmem:[%s269 + $0x58] sm:$0xff]
              %294 = vst [vmem:[%s270 + $0x58] sm:$0xff] %v293
              %v295 = vld [vmem:[%s269 + $0x60] sm:$0xff]
              %296 = vst [vmem:[%s270 + $0x60] sm:$0xff] %v295
              %v297 = vld [vmem:[%s269 + $0x68] sm:$0xff]
              %298 = vst [vmem:[%s270 + $0x68] sm:$0xff] %v297
              %v299 = vld [vmem:[%s269 + $0x70] sm:$0xff]
              %300 = vst [vmem:[%s270 + $0x70] sm:$0xff] %v299
              %v301 = vld [vmem:[%s269 + $0x78] sm:$0xff]
              %302 = vst [vmem:[%s270 + $0x78] sm:$0xff] %v301
              %v303 = vld [vmem:[%s269 + $0x80] sm:$0xff]
              %304 = vst [vmem:[%s270 + $0x80] sm:$0xff] %v303
              %v305 = vld [vmem:[%s269 + $0x88] sm:$0xff]
              %306 = vst [vmem:[%s270 + $0x88] sm:$0xff] %v305
              %v307 = vld [vmem:[%s269 + $0x90] sm:$0xff]
              %308 = vst [vmem:[%s270 + $0x90] sm:$0xff] %v307
              %v309 = vld [vmem:[%s269 + $0x98] sm:$0xff]
              %310 = vst [vmem:[%s270 + $0x98] sm:$0xff] %v309
              %v311 = vld [vmem:[%s269 + $0xa0] sm:$0xff]
              %312 = vst [vmem:[%s270 + $0xa0] sm:$0xff] %v311
              %v313 = vld [vmem:[%s269 + $0xa8] sm:$0xff]
              %314 = vst [vmem:[%s270 + $0xa8] sm:$0xff] %v313
              %v315 = vld [vmem:[%s269 + $0xb0] sm:$0xff]
              %316 = vst [vmem:[%s270 + $0xb0] sm:$0xff] %v315
              %v317 = vld [vmem:[%s269 + $0xb8] sm:$0xff]
              %318 = vst [vmem:[%s270 + $0xb8] sm:$0xff] %v317
              %v319 = vld [vmem:[%s269 + $0xc0] sm:$0xff]
              %320 = vst [vmem:[%s270 + $0xc0] sm:$0xff] %v319
              %v321 = vld [vmem:[%s269 + $0xc8] sm:$0xff]
              %322 = vst [vmem:[%s270 + $0xc8] sm:$0xff] %v321
              %v323 = vld [vmem:[%s269 + $0xd0] sm:$0xff]
              %324 = vst [vmem:[%s270 + $0xd0] sm:$0xff] %v323
              %v325 = vld [vmem:[%s269 + $0xd8] sm:$0xff]
              %326 = vst [vmem:[%s270 + $0xd8] sm:$0xff] %v325
              %v327 = vld [vmem:[%s269 + $0xe0] sm:$0xff]
              %328 = vst [vmem:[%s270 + $0xe0] sm:$0xff] %v327
              %v329 = vld [vmem:[%s269 + $0xe8] sm:$0xff]
              %330 = vst [vmem:[%s270 + $0xe8] sm:$0xff] %v329
              %v331 = vld [vmem:[%s269 + $0xf0] sm:$0xff]
              %332 = vst [vmem:[%s270 + $0xf0] sm:$0xff] %v331
              %v333 = vld [vmem:[%s269 + $0xf8] sm:$0xff]
              %334 = vst [vmem:[%s270 + $0xf8] sm:$0xff] %v333
            $region64: #{_aspp_forward.1} parent=58 // loop_footer
              %s268 = sadd.s32 1, %s264
            $region65: #{_aspp_forward.1} parent=58 // loop_footer_branch
              %263 = sbr.rel target = $region61
            $region66: #{_aspp_forward.1} parent=58 // loop_exit
              _
          $region59: #{_aspp_forward.1} parent=43 // pred_fallthru
            _
          %p335 = pneg %p259
          // Predicated region
          $region67: #{_aspp_forward.1} parent=43 // pred_check
            _
          $region68: #{_aspp_forward.1} parent=43 // pred_check_branch
            %337 = sbr.rel (%p259) target = $region70
          $region69: #{_aspp_forward.1} parent=43 // pred_region
            %s338 = sand.u32 256, 7
          $region70: #{_aspp_forward.1} parent=43 // pred_fallthru
            _
        $region44: #{_aspp_forward.1} parent=39 // pred_fallthru
          _
        // Predicated region
        $region45: #{_aspp_forward.1} parent=39 // pred_check
          %p243 = pneg %p239
        $region46: #{_aspp_forward.1} parent=39 // pred_check_branch
          %245 = sbr.rel (%p243) target = $region48
        $region47: #{_aspp_forward.1} parent=39 // pred_region
          %s246 = sshll.u32 1, 256
          %s247 = ssub.s32 %s246, 1
          loop: start=0, step=1, limit=1
          $region49: #{_aspp_forward.1} parent=47 // loop_pre_header
            _
          $region50: #{_aspp_forward.1} parent=47 // loop_header
            %s249 = sphi 0, %s253
            %p250 = scmp.ge.s32.totalorder %s249, 1
            %s254 = sphi %s237, %s237
            %s255 = sphi [#allocation2], [#allocation2]
          $region51: #{_aspp_forward.1} parent=47 // loop_header_branch
            %252 = sbr.rel (%p250) target = $region55
          $region52: #{_aspp_forward.1} parent=47 // loop_body
            %v256 = vld [vmem:[%s254] sm:%s247]
            %257 = vst [vmem:[%s255] sm:%s247] %v256
          $region53: #{_aspp_forward.1} parent=47 // loop_footer
            %s253 = sadd.s32 1, %s249
          $region54: #{_aspp_forward.1} parent=47 // loop_footer_branch
            %248 = sbr.rel target = $region50
          $region55: #{_aspp_forward.1} parent=47 // loop_exit
            _
        $region48: #{_aspp_forward.1} parent=39 // pred_fallthru
          _
        // Predicated region
        $region71: #{_aspp_forward.1} parent=39 // pred_check
          _
        $region72: #{_aspp_forward.1} parent=39 // pred_check_branch
          %341 = sbr.rel (0) target = $region74
        $region73: #{_aspp_forward.1} parent=39 // pred_region
          %342 = vsyncadd [#allocation3], 4096
        $region74: #{_aspp_forward.1} parent=39 // pred_fallthru
          _
      $region40: #{_aspp_forward.1} parent=35 // pred_fallthru
        _
      %s343 = sadd.s32 %s21, 1
      %p344 = scmp.lt.s32.totalorder %s343, 2
      // Predicated region
      $region75: #{_aspp_forward.1} parent=35 // pred_check
        %p345 = pneg %p344
      $region76: #{_aspp_forward.1} parent=35 // pred_check_branch
        %347 = sbr.rel (%p345) target = $region78
      $region77: #{_aspp_forward.1} parent=35 // pred_region
        %s348 = ssub.s32 1, %s230
        %s349 = smul.u32 %s343, 8
        %s350 = smul.u32 %s349, 2
        %s351 = smul.u32 %s20, 80
        %s352 = sadd.s32 %s350, %s351
        %s353 = smul.addr %s352, 4
        %s354 = scalar_lea.vmem %s0, %s353
        %s355 = smul.u32 %s348, 64
        %s356 = smul.addr %s355, 4
        %s357 = scalar_lea.vmem [#allocation2], %s356
        %s358 = scalar_lea.sflag [#allocation3], %s348
        %p360 = scmp.lt.u32.totalorder 256, 8
        %p361 = pneg %p360
        // Predicated region
        $region79: #{_aspp_forward.1} parent=77 // pred_check
          _
        $region80: #{_aspp_forward.1} parent=77 // pred_check_branch
          %363 = sbr.rel (%p360) target = $region82
        $region81: #{_aspp_forward.1} parent=77 // pred_region
          %s379 = sand.u32 256, 7
          %p380 = scmp.eq.s32.totalorder %s379, 0
          // Predicated region
          $region94: #{_aspp_forward.1} parent=81 // pred_check
            %p381 = pneg %p380
          $region95: #{_aspp_forward.1} parent=81 // pred_check_branch
            %383 = sbr.rel (%p381) target = $region97
          $region96: #{_aspp_forward.1} parent=81 // pred_region
            loop: start=0, step=1, limit=1
            $region98: #{_aspp_forward.1} parent=96 // loop_pre_header
              _
            $region99: #{_aspp_forward.1} parent=96 // loop_header
              %s385 = sphi 0, %s389
              %p386 = scmp.ge.s32.totalorder %s385, 1
              %s390 = sphi %s354, %s354
              %s391 = sphi %s357, %s357
            $region100: #{_aspp_forward.1} parent=96 // loop_header_branch
              %388 = sbr.rel (%p386) target = $region104
            $region101: #{_aspp_forward.1} parent=96 // loop_body
              %v392 = vld [vmem:[%s390] sm:$0xff]
              %393 = vst [vmem:[%s391] sm:$0xff] %v392
              %v394 = vld [vmem:[%s390 + $0x8] sm:$0xff]
              %395 = vst [vmem:[%s391 + $0x8] sm:$0xff] %v394
              %v396 = vld [vmem:[%s390 + $0x10] sm:$0xff]
              %397 = vst [vmem:[%s391 + $0x10] sm:$0xff] %v396
              %v398 = vld [vmem:[%s390 + $0x18] sm:$0xff]
              %399 = vst [vmem:[%s391 + $0x18] sm:$0xff] %v398
              %v400 = vld [vmem:[%s390 + $0x20] sm:$0xff]
              %401 = vst [vmem:[%s391 + $0x20] sm:$0xff] %v400
              %v402 = vld [vmem:[%s390 + $0x28] sm:$0xff]
              %403 = vst [vmem:[%s391 + $0x28] sm:$0xff] %v402
              %v404 = vld [vmem:[%s390 + $0x30] sm:$0xff]
              %405 = vst [vmem:[%s391 + $0x30] sm:$0xff] %v404
              %v406 = vld [vmem:[%s390 + $0x38] sm:$0xff]
              %407 = vst [vmem:[%s391 + $0x38] sm:$0xff] %v406
              %v408 = vld [vmem:[%s390 + $0x40] sm:$0xff]
              %409 = vst [vmem:[%s391 + $0x40] sm:$0xff] %v408
              %v410 = vld [vmem:[%s390 + $0x48] sm:$0xff]
              %411 = vst [vmem:[%s391 + $0x48] sm:$0xff] %v410
              %v412 = vld [vmem:[%s390 + $0x50] sm:$0xff]
              %413 = vst [vmem:[%s391 + $0x50] sm:$0xff] %v412
              %v414 = vld [vmem:[%s390 + $0x58] sm:$0xff]
              %415 = vst [vmem:[%s391 + $0x58] sm:$0xff] %v414
              %v416 = vld [vmem:[%s390 + $0x60] sm:$0xff]
              %417 = vst [vmem:[%s391 + $0x60] sm:$0xff] %v416
              %v418 = vld [vmem:[%s390 + $0x68] sm:$0xff]
              %419 = vst [vmem:[%s391 + $0x68] sm:$0xff] %v418
              %v420 = vld [vmem:[%s390 + $0x70] sm:$0xff]
              %421 = vst [vmem:[%s391 + $0x70] sm:$0xff] %v420
              %v422 = vld [vmem:[%s390 + $0x78] sm:$0xff]
              %423 = vst [vmem:[%s391 + $0x78] sm:$0xff] %v422
              %v424 = vld [vmem:[%s390 + $0x80] sm:$0xff]
              %425 = vst [vmem:[%s391 + $0x80] sm:$0xff] %v424
              %v426 = vld [vmem:[%s390 + $0x88] sm:$0xff]
              %427 = vst [vmem:[%s391 + $0x88] sm:$0xff] %v426
              %v428 = vld [vmem:[%s390 + $0x90] sm:$0xff]
              %429 = vst [vmem:[%s391 + $0x90] sm:$0xff] %v428
              %v430 = vld [vmem:[%s390 + $0x98] sm:$0xff]
              %431 = vst [vmem:[%s391 + $0x98] sm:$0xff] %v430
              %v432 = vld [vmem:[%s390 + $0xa0] sm:$0xff]
              %433 = vst [vmem:[%s391 + $0xa0] sm:$0xff] %v432
              %v434 = vld [vmem:[%s390 + $0xa8] sm:$0xff]
              %435 = vst [vmem:[%s391 + $0xa8] sm:$0xff] %v434
              %v436 = vld [vmem:[%s390 + $0xb0] sm:$0xff]
              %437 = vst [vmem:[%s391 + $0xb0] sm:$0xff] %v436
              %v438 = vld [vmem:[%s390 + $0xb8] sm:$0xff]
              %439 = vst [vmem:[%s391 + $0xb8] sm:$0xff] %v438
              %v440 = vld [vmem:[%s390 + $0xc0] sm:$0xff]
              %441 = vst [vmem:[%s391 + $0xc0] sm:$0xff] %v440
              %v442 = vld [vmem:[%s390 + $0xc8] sm:$0xff]
              %443 = vst [vmem:[%s391 + $0xc8] sm:$0xff] %v442
              %v444 = vld [vmem:[%s390 + $0xd0] sm:$0xff]
              %445 = vst [vmem:[%s391 + $0xd0] sm:$0xff] %v444
              %v446 = vld [vmem:[%s390 + $0xd8] sm:$0xff]
              %447 = vst [vmem:[%s391 + $0xd8] sm:$0xff] %v446
              %v448 = vld [vmem:[%s390 + $0xe0] sm:$0xff]
              %449 = vst [vmem:[%s391 + $0xe0] sm:$0xff] %v448
              %v450 = vld [vmem:[%s390 + $0xe8] sm:$0xff]
              %451 = vst [vmem:[%s391 + $0xe8] sm:$0xff] %v450
              %v452 = vld [vmem:[%s390 + $0xf0] sm:$0xff]
              %453 = vst [vmem:[%s391 + $0xf0] sm:$0xff] %v452
              %v454 = vld [vmem:[%s390 + $0xf8] sm:$0xff]
              %455 = vst [vmem:[%s391 + $0xf8] sm:$0xff] %v454
            $region102: #{_aspp_forward.1} parent=96 // loop_footer
              %s389 = sadd.s32 1, %s385
            $region103: #{_aspp_forward.1} parent=96 // loop_footer_branch
              %384 = sbr.rel target = $region99
            $region104: #{_aspp_forward.1} parent=96 // loop_exit
              _
          $region97: #{_aspp_forward.1} parent=81 // pred_fallthru
            _
          %p456 = pneg %p380
          // Predicated region
          $region105: #{_aspp_forward.1} parent=81 // pred_check
            _
          $region106: #{_aspp_forward.1} parent=81 // pred_check_branch
            %458 = sbr.rel (%p380) target = $region108
          $region107: #{_aspp_forward.1} parent=81 // pred_region
            %s459 = sand.u32 256, 7
          $region108: #{_aspp_forward.1} parent=81 // pred_fallthru
            _
        $region82: #{_aspp_forward.1} parent=77 // pred_fallthru
          _
        // Predicated region
        $region83: #{_aspp_forward.1} parent=77 // pred_check
          %p364 = pneg %p360
        $region84: #{_aspp_forward.1} parent=77 // pred_check_branch
          %366 = sbr.rel (%p364) target = $region86
        $region85: #{_aspp_forward.1} parent=77 // pred_region
          %s367 = sshll.u32 1, 256
          %s368 = ssub.s32 %s367, 1
          loop: start=0, step=1, limit=1
          $region87: #{_aspp_forward.1} parent=85 // loop_pre_header
            _
          $region88: #{_aspp_forward.1} parent=85 // loop_header
            %s370 = sphi 0, %s374
            %p371 = scmp.ge.s32.totalorder %s370, 1
            %s375 = sphi %s354, %s354
            %s376 = sphi %s357, %s357
          $region89: #{_aspp_forward.1} parent=85 // loop_header_branch
            %373 = sbr.rel (%p371) target = $region93
          $region90: #{_aspp_forward.1} parent=85 // loop_body
            %v377 = vld [vmem:[%s375] sm:%s368]
            %378 = vst [vmem:[%s376] sm:%s368] %v377
          $region91: #{_aspp_forward.1} parent=85 // loop_footer
            %s374 = sadd.s32 1, %s370
          $region92: #{_aspp_forward.1} parent=85 // loop_footer_branch
            %369 = sbr.rel target = $region88
          $region93: #{_aspp_forward.1} parent=85 // loop_exit
            _
        $region86: #{_aspp_forward.1} parent=77 // pred_fallthru
          _
        // Predicated region
        $region109: #{_aspp_forward.1} parent=77 // pred_check
          _
        $region110: #{_aspp_forward.1} parent=77 // pred_check_branch
          %462 = sbr.rel (0) target = $region112
        $region111: #{_aspp_forward.1} parent=77 // pred_region
          %463 = vsyncadd %s358, 4096
        $region112: #{_aspp_forward.1} parent=77 // pred_fallthru
          _
      $region78: #{_aspp_forward.1} parent=35 // pred_fallthru
        _
      %s464 = scalar_lea.sflag [#allocation3], %s230
      %s465 = smul.u32 4, 32
      %s466 = smul.u32 %s465, 2
      %s467 = smul.u32 %s466, 1
      %s468 = sshll.u32 %s467, 4
      %469 = dma.done %s464, %s468
      %s470 = smul.u32 %s230, 64
      %s471 = sadd.s32 24, %s470
      %s472 = smul.addr %s471, 4
      %s473 = scalar_lea.vmem [#allocation2], %s472
      %v474 = vld [vmem:[%s473] sm:$0xf]
      %v475 = vld [vmem:[%s473 + $0x4] sm:$0xf]
      %v476 = vld [vmem:[%s473 + $0x8] sm:$0xf]
      %v477 = vld [vmem:[%s473 + $0xc] sm:$0xf]
      %v478 = vld [vmem:[%s473 + $0x10] sm:$0xf]
      %v479 = vld [vmem:[%s473 + $0x14] sm:$0xf]
      %v480 = vld [vmem:[%s473 + $0x18] sm:$0xf]
      %v481 = vld [vmem:[%s473 + $0x1c] sm:$0xf]
      %v482 = vld [vmem:[%s473 + $0x20] sm:$0xf]
      %v483 = vld [vmem:[%s473 + $0x24] sm:$0xf]
      %v484 = vld [vmem:[%s473 + $0x28] sm:$0xf]
      %v485 = vld [vmem:[%s473 + $0x2c] sm:$0xf]
      %v486 = vld [vmem:[%s473 + $0x30] sm:$0xf]
      %v487 = vld [vmem:[%s473 + $0x34] sm:$0xf]
      %v488 = vld [vmem:[%s473 + $0x38] sm:$0xf]
      %v489 = vld [vmem:[%s473 + $0x3c] sm:$0xf]
      %v490 = vld [vmem:[%s1] sm:$0xf]
      %v491 = vld [vmem:[%s1 + $0x4] sm:$0xf]
      %v492 = vld [vmem:[%s1 + $0x8] sm:$0xf]
      %v493 = vld [vmem:[%s1 + $0xc] sm:$0xf]
      %v494 = vld [vmem:[%s1 + $0x10] sm:$0xf]
      %v495 = vld [vmem:[%s1 + $0x14] sm:$0xf]
      %v496 = vld [vmem:[%s1 + $0x18] sm:$0xf]
      %v497 = vld [vmem:[%s1 + $0x1c] sm:$0xf]
      %v498 = vld [vmem:[%s1 + $0x20] sm:$0xf]
      %v499 = vld [vmem:[%s1 + $0x24] sm:$0xf]
      %v500 = vld [vmem:[%s1 + $0x28] sm:$0xf]
      %v501 = vld [vmem:[%s1 + $0x2c] sm:$0xf]
      %v502 = vld [vmem:[%s1 + $0x30] sm:$0xf]
      %v503 = vld [vmem:[%s1 + $0x34] sm:$0xf]
      %v504 = vld [vmem:[%s1 + $0x38] sm:$0xf]
      %v505 = vld [vmem:[%s1 + $0x3c] sm:$0xf]
      %s506 = sadd.s32 12, %s470
      %s507 = smul.addr %s506, 4
      %s508 = scalar_lea.vmem [#allocation2], %s507
      %v509 = vld [vmem:[%s508] sm:$0xf]
      %v510 = vld [vmem:[%s508 + $0x4] sm:$0xf]
      %v511 = vld [vmem:[%s508 + $0x8] sm:$0xf]
      %v512 = vld [vmem:[%s508 + $0xc] sm:$0xf]
      %v513 = vld [vmem:[%s508 + $0x10] sm:$0xf]
      %v514 = vld [vmem:[%s508 + $0x14] sm:$0xf]
      %v515 = vld [vmem:[%s508 + $0x18] sm:$0xf]
      %v516 = vld [vmem:[%s508 + $0x1c] sm:$0xf]
      %v517 = vld [vmem:[%s508 + $0x20] sm:$0xf]
      %v518 = vld [vmem:[%s508 + $0x24] sm:$0xf]
      %v519 = vld [vmem:[%s508 + $0x28] sm:$0xf]
      %v520 = vld [vmem:[%s508 + $0x2c] sm:$0xf]
      %v521 = vld [vmem:[%s508 + $0x30] sm:$0xf]
      %v522 = vld [vmem:[%s508 + $0x34] sm:$0xf]
      %v523 = vld [vmem:[%s508 + $0x38] sm:$0xf]
      %v524 = vld [vmem:[%s508 + $0x3c] sm:$0xf]
      %s525 = scalar_lea.vmem %s2, 64
      %v526 = vld [vmem:[%s525] sm:$0xf]
      %v527 = vld [vmem:[%s525 + $0x4] sm:$0xf]
      %v528 = vld [vmem:[%s525 + $0x8] sm:$0xf]
      %v529 = vld [vmem:[%s525 + $0xc] sm:$0xf]
      %v530 = vld [vmem:[%s525 + $0x10] sm:$0xf]
      %v531 = vld [vmem:[%s525 + $0x14] sm:$0xf]
      %v532 = vld [vmem:[%s525 + $0x18] sm:$0xf]
      %v533 = vld [vmem:[%s525 + $0x1c] sm:$0xf]
      %v534 = vld [vmem:[%s525 + $0x20] sm:$0xf]
      %v535 = vld [vmem:[%s525 + $0x24] sm:$0xf]
      %v536 = vld [vmem:[%s525 + $0x28] sm:$0xf]
      %v537 = vld [vmem:[%s525 + $0x2c] sm:$0xf]
      %v538 = vld [vmem:[%s525 + $0x30] sm:$0xf]
      %v539 = vld [vmem:[%s525 + $0x34] sm:$0xf]
      %v540 = vld [vmem:[%s525 + $0x38] sm:$0xf]
      %v541 = vld [vmem:[%s525 + $0x3c] sm:$0xf]
      %v558 = vunpack.c.l.b16 %v509
      %v559 = vunpack.c.l.b16 %v510
      %v560 = vunpack.c.l.b16 %v511
      %v561 = vunpack.c.l.b16 %v512
      %v562 = vunpack.c.l.b16 %v513
      %v563 = vunpack.c.l.b16 %v514
      %v564 = vunpack.c.l.b16 %v515
      %v565 = vunpack.c.l.b16 %v516
      %v566 = vunpack.c.l.b16 %v517
      %v567 = vunpack.c.l.b16 %v518
      %v568 = vunpack.c.l.b16 %v519
      %v569 = vunpack.c.l.b16 %v520
      %v570 = vunpack.c.l.b16 %v521
      %v571 = vunpack.c.l.b16 %v522
      %v572 = vunpack.c.l.b16 %v523
      %v573 = vunpack.c.l.b16 %v524
      %v574 = vpack.c.b16 %v559, %v558
      %v575 = vpack.c.b16 %v561, %v560
      %v576 = vpack.c.b16 %v563, %v562
      %v577 = vpack.c.b16 %v565, %v564
      %v578 = vpack.c.b16 %v567, %v566
      %v579 = vpack.c.b16 %v569, %v568
      %v580 = vpack.c.b16 %v571, %v570
      %v581 = vpack.c.b16 %v573, %v572
      %v606 = vunpack.c.l.b16 %v526
      %v607 = vunpack.c.l.b16 %v527
      %v608 = vunpack.c.l.b16 %v528
      %v609 = vunpack.c.l.b16 %v529
      %v610 = vunpack.c.l.b16 %v530
      %v611 = vunpack.c.l.b16 %v531
      %v612 = vunpack.c.l.b16 %v532
      %v613 = vunpack.c.l.b16 %v533
      %v614 = vunpack.c.l.b16 %v534
      %v615 = vunpack.c.l.b16 %v535
      %v616 = vunpack.c.l.b16 %v536
      %v617 = vunpack.c.l.b16 %v537
      %v618 = vunpack.c.l.b16 %v538
      %v619 = vunpack.c.l.b16 %v539
      %v620 = vunpack.c.l.b16 %v540
      %v621 = vunpack.c.l.b16 %v541
      %v622 = vpack.c.b16 %v607, %v606
      %v623 = vpack.c.b16 %v609, %v608
      %v624 = vpack.c.b16 %v611, %v610
      %v625 = vpack.c.b16 %v613, %v612
      %v626 = vpack.c.b16 %v615, %v614
      %v627 = vpack.c.b16 %v617, %v616
      %v628 = vpack.c.b16 %v619, %v618
      %v629 = vpack.c.b16 %v621, %v620
      %638 = vmatprep.subr.bf16.mxu0 0
      %639 = vmatpush1.bf16.msra.mxu0 %v629
      %640 = vmatprep.subr.bf16.mxu0 0
      %641 = vmatpush1.bf16.msra.mxu0 %v628
      %642 = vmatprep.subr.bf16.mxu0 0
      %643 = vmatpush1.bf16.msra.mxu0 %v627
      %644 = vmatprep.subr.bf16.mxu0 0
      %645 = vmatpush1.bf16.msra.mxu0 %v626
      %646 = vmatprep.subr.bf16.mxu0 0
      %647 = vmatpush1.bf16.msra.mxu0 %v625
      %648 = vmatprep.subr.bf16.mxu0 0
      %649 = vmatpush1.bf16.msra.mxu0 %v624
      %650 = vmatprep.subr.bf16.mxu0 0
      %651 = vmatpush1.bf16.msra.mxu0 %v623
      %652 = vmatprep.subr.bf16.mxu0 0
      %653 = vmatpush1.bf16.msra.mxu0 %v622
      %654 = vmatprep.subr.bf16.mxu0 0
      %655 = vmatpush2.bf16.msra.mxu0 0
      %656 = vmatprep.subr.bf16.mxu0 0
      %657 = vmatpush2.bf16.msra.mxu0 0
      %658 = vmatprep.subr.bf16.mxu0 0
      %659 = vmatpush2.bf16.msra.mxu0 0
      %660 = vmatprep.subr.bf16.mxu0 0
      %661 = vmatpush2.bf16.msra.mxu0 0
      %662 = vmatprep.subr.bf16.mxu0 0
      %663 = vmatpush2.bf16.msra.mxu0 0
      %664 = vmatprep.subr.bf16.mxu0 0
      %665 = vmatpush2.bf16.msra.mxu0 0
      %666 = vmatprep.subr.bf16.mxu0 0
      %667 = vmatpush2.bf16.msra.mxu0 0
      %668 = vmatprep.subr.bf16.mxu0 0
      %669 = vmatpush2.bf16.msra.mxu0 0
      %670 = vmatprep.mubr.bf16.mxu0 0
      %671 = vmatmul.mubr.bf16.gmra.mxu0 %v574
      %v672 = vpop.f32.mrf.mxu0
      %v673 = vadd.f32 0.0, %v672
      %v674 = vpop.f32.mrf.mxu0
      %v675 = vpop.f32.mrf.mxu0
      %v676 = vadd.f32 0.0, %v675
      %v677 = vpop.f32.mrf.mxu0
      %678 = vmatprep.mubr.bf16.mxu0 0
      %679 = vmatmul.mubr.bf16.gmra.mxu0 %v575
      %v680 = vpop.f32.mrf.mxu0
      %v681 = vadd.f32 0.0, %v680
      %v682 = vpop.f32.mrf.mxu0
      %v683 = vpop.f32.mrf.mxu0
      %v684 = vadd.f32 0.0, %v683
      %v685 = vpop.f32.mrf.mxu0
      %686 = vmatprep.mubr.bf16.mxu0 0
      %687 = vmatmul.mubr.bf16.gmra.mxu0 %v576
      %v688 = vpop.f32.mrf.mxu0
      %v689 = vadd.f32 0.0, %v688
      %v690 = vpop.f32.mrf.mxu0
      %v691 = vpop.f32.mrf.mxu0
      %v692 = vadd.f32 0.0, %v691
      %v693 = vpop.f32.mrf.mxu0
      %694 = vmatprep.mubr.bf16.mxu0 0
      %695 = vmatmul.mubr.bf16.gmra.mxu0 %v577
      %v696 = vpop.f32.mrf.mxu0
      %v697 = vadd.f32 0.0, %v696
      %v698 = vpop.f32.mrf.mxu0
      %v699 = vpop.f32.mrf.mxu0
      %v700 = vadd.f32 0.0, %v699
      %v701 = vpop.f32.mrf.mxu0
      %702 = vmatprep.mubr.bf16.mxu0 0
      %703 = vmatmul.mubr.bf16.gmra.mxu0 %v578
      %v704 = vpop.f32.mrf.mxu0
      %v705 = vadd.f32 0.0, %v704
      %v706 = vpop.f32.mrf.mxu0
      %v707 = vpop.f32.mrf.mxu0
      %v708 = vadd.f32 0.0, %v707
      %v709 = vpop.f32.mrf.mxu0
      %710 = vmatprep.mubr.bf16.mxu0 0
      %711 = vmatmul.mubr.bf16.gmra.mxu0 %v579
      %v712 = vpop.f32.mrf.mxu0
      %v713 = vadd.f32 0.0, %v712
      %v714 = vpop.f32.mrf.mxu0
      %v715 = vpop.f32.mrf.mxu0
      %v716 = vadd.f32 0.0, %v715
      %v717 = vpop.f32.mrf.mxu0
      %718 = vmatprep.mubr.bf16.mxu0 0
      %719 = vmatmul.mubr.bf16.gmra.mxu0 %v580
      %v720 = vpop.f32.mrf.mxu0
      %v721 = vadd.f32 0.0, %v720
      %v722 = vpop.f32.mrf.mxu0
      %v723 = vpop.f32.mrf.mxu0
      %v724 = vadd.f32 0.0, %v723
      %v725 = vpop.f32.mrf.mxu0
      %726 = vmatprep.mubr.bf16.mxu0 0
      %727 = vmatmul.mubr.bf16.gmra.mxu0 %v581
      %v728 = vpop.f32.mrf.mxu0
      %v729 = vadd.f32 0.0, %v728
      %v730 = vpop.f32.mrf.mxu0
      %v731 = vpop.f32.mrf.mxu0
      %v732 = vadd.f32 0.0, %v731
      %v733 = vpop.f32.mrf.mxu0
      %734 = vdwg.mxu0
      %v751 = vunpack.c.l.b16 %v474
      %v752 = vunpack.c.l.b16 %v475
      %v753 = vunpack.c.l.b16 %v476
      %v754 = vunpack.c.l.b16 %v477
      %v755 = vunpack.c.l.b16 %v478
      %v756 = vunpack.c.l.b16 %v479
      %v757 = vunpack.c.l.b16 %v480
      %v758 = vunpack.c.l.b16 %v481
      %v759 = vunpack.c.l.b16 %v482
      %v760 = vunpack.c.l.b16 %v483
      %v761 = vunpack.c.l.b16 %v484
      %v762 = vunpack.c.l.b16 %v485
      %v763 = vunpack.c.l.b16 %v486
      %v764 = vunpack.c.l.b16 %v487
      %v765 = vunpack.c.l.b16 %v488
      %v766 = vunpack.c.l.b16 %v489
      %v767 = vpack.c.b16 %v752, %v751
      %v768 = vpack.c.b16 %v754, %v753
      %v769 = vpack.c.b16 %v756, %v755
      %v770 = vpack.c.b16 %v758, %v757
      %v771 = vpack.c.b16 %v760, %v759
      %v772 = vpack.c.b16 %v762, %v761
      %v773 = vpack.c.b16 %v764, %v763
      %v774 = vpack.c.b16 %v766, %v765
      %v799 = vunpack.c.l.b16 %v490
      %v800 = vunpack.c.l.b16 %v491
      %v801 = vunpack.c.l.b16 %v492
      %v802 = vunpack.c.l.b16 %v493
      %v803 = vunpack.c.l.b16 %v494
      %v804 = vunpack.c.l.b16 %v495
      %v805 = vunpack.c.l.b16 %v496
      %v806 = vunpack.c.l.b16 %v497
      %v807 = vunpack.c.l.b16 %v498
      %v808 = vunpack.c.l.b16 %v499
      %v809 = vunpack.c.l.b16 %v500
      %v810 = vunpack.c.l.b16 %v501
      %v811 = vunpack.c.l.b16 %v502
      %v812 = vunpack.c.l.b16 %v503
      %v813 = vunpack.c.l.b16 %v504
      %v814 = vunpack.c.l.b16 %v505
      %v815 = vpack.c.b16 %v800, %v799
      %v816 = vpack.c.b16 %v802, %v801
      %v817 = vpack.c.b16 %v804, %v803
      %v818 = vpack.c.b16 %v806, %v805
      %v819 = vpack.c.b16 %v808, %v807
      %v820 = vpack.c.b16 %v810, %v809
      %v821 = vpack.c.b16 %v812, %v811
      %v822 = vpack.c.b16 %v814, %v813
      %831 = vmatprep.subr.bf16.mxu0 0
      %832 = vmatpush1.bf16.msra.mxu0 %v822
      %833 = vmatprep.subr.bf16.mxu0 0
      %834 = vmatpush1.bf16.msra.mxu0 %v821
      %835 = vmatprep.subr.bf16.mxu0 0
      %836 = vmatpush1.bf16.msra.mxu0 %v820
      %837 = vmatprep.subr.bf16.mxu0 0
      %838 = vmatpush1.bf16.msra.mxu0 %v819
      %839 = vmatprep.subr.bf16.mxu0 0
      %840 = vmatpush1.bf16.msra.mxu0 %v818
      %841 = vmatprep.subr.bf16.mxu0 0
      %842 = vmatpush1.bf16.msra.mxu0 %v817
      %843 = vmatprep.subr.bf16.mxu0 0
      %844 = vmatpush1.bf16.msra.mxu0 %v816
      %845 = vmatprep.subr.bf16.mxu0 0
      %846 = vmatpush1.bf16.msra.mxu0 %v815
      %847 = vmatprep.subr.bf16.mxu0 0
      %848 = vmatpush2.bf16.msra.mxu0 0
      %849 = vmatprep.subr.bf16.mxu0 0
      %850 = vmatpush2.bf16.msra.mxu0 0
      %851 = vmatprep.subr.bf16.mxu0 0
      %852 = vmatpush2.bf16.msra.mxu0 0
      %853 = vmatprep.subr.bf16.mxu0 0
      %854 = vmatpush2.bf16.msra.mxu0 0
      %855 = vmatprep.subr.bf16.mxu0 0
      %856 = vmatpush2.bf16.msra.mxu0 0
      %857 = vmatprep.subr.bf16.mxu0 0
      %858 = vmatpush2.bf16.msra.mxu0 0
      %859 = vmatprep.subr.bf16.mxu0 0
      %860 = vmatpush2.bf16.msra.mxu0 0
      %861 = vmatprep.subr.bf16.mxu0 0
      %862 = vmatpush2.bf16.msra.mxu0 0
      %863 = vmatprep.mubr.bf16.mxu0 0
      %864 = vmatmul.mubr.bf16.gmra.mxu0 %v767
      %v865 = vpop.f32.mrf.mxu0
      %v866 = vadd.f32 %v673, %v865
      %v867 = vpop.f32.mrf.mxu0
      %v868 = vpop.f32.mrf.mxu0
      %v869 = vadd.f32 %v676, %v868
      %v870 = vpop.f32.mrf.mxu0
      %871 = vmatprep.mubr.bf16.mxu0 0
      %872 = vmatmul.mubr.bf16.gmra.mxu0 %v768
      %v873 = vpop.f32.mrf.mxu0
      %v874 = vadd.f32 %v681, %v873
      %v875 = vpop.f32.mrf.mxu0
      %v876 = vpop.f32.mrf.mxu0
      %v877 = vadd.f32 %v684, %v876
      %v878 = vpop.f32.mrf.mxu0
      %879 = vmatprep.mubr.bf16.mxu0 0
      %880 = vmatmul.mubr.bf16.gmra.mxu0 %v769
      %v881 = vpop.f32.mrf.mxu0
      %v882 = vadd.f32 %v689, %v881
      %v883 = vpop.f32.mrf.mxu0
      %v884 = vpop.f32.mrf.mxu0
      %v885 = vadd.f32 %v692, %v884
      %v886 = vpop.f32.mrf.mxu0
      %887 = vmatprep.mubr.bf16.mxu0 0
      %888 = vmatmul.mubr.bf16.gmra.mxu0 %v770
      %v889 = vpop.f32.mrf.mxu0
      %v890 = vadd.f32 %v697, %v889
      %v891 = vpop.f32.mrf.mxu0
      %v892 = vpop.f32.mrf.mxu0
      %v893 = vadd.f32 %v700, %v892
      %v894 = vpop.f32.mrf.mxu0
      %895 = vmatprep.mubr.bf16.mxu0 0
      %896 = vmatmul.mubr.bf16.gmra.mxu0 %v771
      %v897 = vpop.f32.mrf.mxu0
      %v898 = vadd.f32 %v705, %v897
      %v899 = vpop.f32.mrf.mxu0
      %v900 = vpop.f32.mrf.mxu0
      %v901 = vadd.f32 %v708, %v900
      %v902 = vpop.f32.mrf.mxu0
      %903 = vmatprep.mubr.bf16.mxu0 0
      %904 = vmatmul.mubr.bf16.gmra.mxu0 %v772
      %v905 = vpop.f32.mrf.mxu0
      %v906 = vadd.f32 %v713, %v905
      %v907 = vpop.f32.mrf.mxu0
      %v908 = vpop.f32.mrf.mxu0
      %v909 = vadd.f32 %v716, %v908
      %v910 = vpop.f32.mrf.mxu0
      %911 = vmatprep.mubr.bf16.mxu0 0
      %912 = vmatmul.mubr.bf16.gmra.mxu0 %v773
      %v913 = vpop.f32.mrf.mxu0
      %v914 = vadd.f32 %v721, %v913
      %v915 = vpop.f32.mrf.mxu0
      %v916 = vpop.f32.mrf.mxu0
      %v917 = vadd.f32 %v724, %v916
      %v918 = vpop.f32.mrf.mxu0
      %919 = vmatprep.mubr.bf16.mxu0 0
      %920 = vmatmul.mubr.bf16.gmra.mxu0 %v774
      %v921 = vpop.f32.mrf.mxu0
      %v922 = vadd.f32 %v729, %v921
      %v923 = vpop.f32.mrf.mxu0
      %v924 = vpop.f32.mrf.mxu0
      %v925 = vadd.f32 %v732, %v924
      %v926 = vpop.f32.mrf.mxu0
      %927 = vdwg.mxu0
      %v928 = vld [vmem:[%s2] sm:$0xf]
      %v929 = vld [vmem:[%s2 + $0x4] sm:$0xf]
      %v930 = vld [vmem:[%s2 + $0x8] sm:$0xf]
      %v931 = vld [vmem:[%s2 + $0xc] sm:$0xf]
      %v932 = vld [vmem:[%s2 + $0x10] sm:$0xf]
      %v933 = vld [vmem:[%s2 + $0x14] sm:$0xf]
      %v934 = vld [vmem:[%s2 + $0x18] sm:$0xf]
      %v935 = vld [vmem:[%s2 + $0x1c] sm:$0xf]
      %v936 = vld [vmem:[%s2 + $0x20] sm:$0xf]
      %v937 = vld [vmem:[%s2 + $0x24] sm:$0xf]
      %v938 = vld [vmem:[%s2 + $0x28] sm:$0xf]
      %v939 = vld [vmem:[%s2 + $0x2c] sm:$0xf]
      %v940 = vld [vmem:[%s2 + $0x30] sm:$0xf]
      %v941 = vld [vmem:[%s2 + $0x34] sm:$0xf]
      %v942 = vld [vmem:[%s2 + $0x38] sm:$0xf]
      %v943 = vld [vmem:[%s2 + $0x3c] sm:$0xf]
      %s944 = scalar_lea.vmem %s2, 128
      %v945 = vld [vmem:[%s944] sm:$0xf]
      %v946 = vld [vmem:[%s944 + $0x4] sm:$0xf]
      %v947 = vld [vmem:[%s944 + $0x8] sm:$0xf]
      %v948 = vld [vmem:[%s944 + $0xc] sm:$0xf]
      %v949 = vld [vmem:[%s944 + $0x10] sm:$0xf]
      %v950 = vld [vmem:[%s944 + $0x14] sm:$0xf]
      %v951 = vld [vmem:[%s944 + $0x18] sm:$0xf]
      %v952 = vld [vmem:[%s944 + $0x1c] sm:$0xf]
      %v953 = vld [vmem:[%s944 + $0x20] sm:$0xf]
      %v954 = vld [vmem:[%s944 + $0x24] sm:$0xf]
      %v955 = vld [vmem:[%s944 + $0x28] sm:$0xf]
      %v956 = vld [vmem:[%s944 + $0x2c] sm:$0xf]
      %v957 = vld [vmem:[%s944 + $0x30] sm:$0xf]
      %v958 = vld [vmem:[%s944 + $0x34] sm:$0xf]
      %v959 = vld [vmem:[%s944 + $0x38] sm:$0xf]
      %v960 = vld [vmem:[%s944 + $0x3c] sm:$0xf]
      %s961 = scalar_lea.vmem %s2, 192
      %v962 = vld [vmem:[%s961] sm:$0xf]
      %v963 = vld [vmem:[%s961 + $0x4] sm:$0xf]
      %v964 = vld [vmem:[%s961 + $0x8] sm:$0xf]
      %v965 = vld [vmem:[%s961 + $0xc] sm:$0xf]
      %v966 = vld [vmem:[%s961 + $0x10] sm:$0xf]
      %v967 = vld [vmem:[%s961 + $0x14] sm:$0xf]
      %v968 = vld [vmem:[%s961 + $0x18] sm:$0xf]
      %v969 = vld [vmem:[%s961 + $0x1c] sm:$0xf]
      %v970 = vld [vmem:[%s961 + $0x20] sm:$0xf]
      %v971 = vld [vmem:[%s961 + $0x24] sm:$0xf]
      %v972 = vld [vmem:[%s961 + $0x28] sm:$0xf]
      %v973 = vld [vmem:[%s961 + $0x2c] sm:$0xf]
      %v974 = vld [vmem:[%s961 + $0x30] sm:$0xf]
      %v975 = vld [vmem:[%s961 + $0x34] sm:$0xf]
      %v976 = vld [vmem:[%s961 + $0x38] sm:$0xf]
      %v977 = vld [vmem:[%s961 + $0x3c] sm:$0xf]
      %v994 = vunpack.c.l.b16 %v962
      %v995 = vunpack.c.l.b16 %v963
      %v996 = vunpack.c.l.b16 %v964
      %v997 = vunpack.c.l.b16 %v965
      %v998 = vunpack.c.l.b16 %v966
      %v999 = vunpack.c.l.b16 %v967
      %v1000 = vunpack.c.l.b16 %v968
      %v1001 = vunpack.c.l.b16 %v969
      %v1002 = vunpack.c.l.b16 %v970
      %v1003 = vunpack.c.l.b16 %v971
      %v1004 = vunpack.c.l.b16 %v972
      %v1005 = vunpack.c.l.b16 %v973
      %v1006 = vunpack.c.l.b16 %v974
      %v1007 = vunpack.c.l.b16 %v975
      %v1008 = vunpack.c.l.b16 %v976
      %v1009 = vunpack.c.l.b16 %v977
      %v1010 = vpack.c.b16 %v995, %v994
      %v1011 = vpack.c.b16 %v997, %v996
      %v1012 = vpack.c.b16 %v999, %v998
      %v1013 = vpack.c.b16 %v1001, %v1000
      %v1014 = vpack.c.b16 %v1003, %v1002
      %v1015 = vpack.c.b16 %v1005, %v1004
      %v1016 = vpack.c.b16 %v1007, %v1006
      %v1017 = vpack.c.b16 %v1009, %v1008
      %1026 = vmatprep.subr.bf16.mxu0 0
      %1027 = vmatpush1.bf16.msra.mxu0 %v1017
      %1028 = vmatprep.subr.bf16.mxu0 0
      %1029 = vmatpush1.bf16.msra.mxu0 %v1016
      %1030 = vmatprep.subr.bf16.mxu0 0
      %1031 = vmatpush1.bf16.msra.mxu0 %v1015
      %1032 = vmatprep.subr.bf16.mxu0 0
      %1033 = vmatpush1.bf16.msra.mxu0 %v1014
      %1034 = vmatprep.subr.bf16.mxu0 0
      %1035 = vmatpush1.bf16.msra.mxu0 %v1013
      %1036 = vmatprep.subr.bf16.mxu0 0
      %1037 = vmatpush1.bf16.msra.mxu0 %v1012
      %1038 = vmatprep.subr.bf16.mxu0 0
      %1039 = vmatpush1.bf16.msra.mxu0 %v1011
      %1040 = vmatprep.subr.bf16.mxu0 0
      %1041 = vmatpush1.bf16.msra.mxu0 %v1010
      %1042 = vmatprep.subr.bf16.mxu0 0
      %1043 = vmatpush2.bf16.msra.mxu0 0
      %1044 = vmatprep.subr.bf16.mxu0 0
      %1045 = vmatpush2.bf16.msra.mxu0 0
      %1046 = vmatprep.subr.bf16.mxu0 0
      %1047 = vmatpush2.bf16.msra.mxu0 0
      %1048 = vmatprep.subr.bf16.mxu0 0
      %1049 = vmatpush2.bf16.msra.mxu0 0
      %1050 = vmatprep.subr.bf16.mxu0 0
      %1051 = vmatpush2.bf16.msra.mxu0 0
      %1052 = vmatprep.subr.bf16.mxu0 0
      %1053 = vmatpush2.bf16.msra.mxu0 0
      %1054 = vmatprep.subr.bf16.mxu0 0
      %1055 = vmatpush2.bf16.msra.mxu0 0
      %1056 = vmatprep.subr.bf16.mxu0 0
      %1057 = vmatpush2.bf16.msra.mxu0 0
      %1058 = vmatprep.mubr.bf16.mxu0 0
      %1059 = vmatmul.mubr.bf16.gmra.mxu0 %v767
      %v1060 = vpop.f32.mrf.mxu0
      %v1061 = vadd.f32 0.0, %v1060
      %v1062 = vpop.f32.mrf.mxu0
      %v1063 = vpop.f32.mrf.mxu0
      %v1064 = vadd.f32 0.0, %v1063
      %v1065 = vpop.f32.mrf.mxu0
      %1066 = vmatprep.mubr.bf16.mxu0 0
      %1067 = vmatmul.mubr.bf16.gmra.mxu0 %v768
      %v1068 = vpop.f32.mrf.mxu0
      %v1069 = vadd.f32 0.0, %v1068
      %v1070 = vpop.f32.mrf.mxu0
      %v1071 = vpop.f32.mrf.mxu0
      %v1072 = vadd.f32 0.0, %v1071
      %v1073 = vpop.f32.mrf.mxu0
      %1074 = vmatprep.mubr.bf16.mxu0 0
      %1075 = vmatmul.mubr.bf16.gmra.mxu0 %v769
      %v1076 = vpop.f32.mrf.mxu0
      %v1077 = vadd.f32 0.0, %v1076
      %v1078 = vpop.f32.mrf.mxu0
      %v1079 = vpop.f32.mrf.mxu0
      %v1080 = vadd.f32 0.0, %v1079
      %v1081 = vpop.f32.mrf.mxu0
      %1082 = vmatprep.mubr.bf16.mxu0 0
      %1083 = vmatmul.mubr.bf16.gmra.mxu0 %v770
      %v1084 = vpop.f32.mrf.mxu0
      %v1085 = vadd.f32 0.0, %v1084
      %v1086 = vpop.f32.mrf.mxu0
      %v1087 = vpop.f32.mrf.mxu0
      %v1088 = vadd.f32 0.0, %v1087
      %v1089 = vpop.f32.mrf.mxu0
      %1090 = vmatprep.mubr.bf16.mxu0 0
      %1091 = vmatmul.mubr.bf16.gmra.mxu0 %v771
      %v1092 = vpop.f32.mrf.mxu0
      %v1093 = vadd.f32 0.0, %v1092
      %v1094 = vpop.f32.mrf.mxu0
      %v1095 = vpop.f32.mrf.mxu0
      %v1096 = vadd.f32 0.0, %v1095
      %v1097 = vpop.f32.mrf.mxu0
      %1098 = vmatprep.mubr.bf16.mxu0 0
      %1099 = vmatmul.mubr.bf16.gmra.mxu0 %v772
      %v1100 = vpop.f32.mrf.mxu0
      %v1101 = vadd.f32 0.0, %v1100
      %v1102 = vpop.f32.mrf.mxu0
      %v1103 = vpop.f32.mrf.mxu0
      %v1104 = vadd.f32 0.0, %v1103
      %v1105 = vpop.f32.mrf.mxu0
      %1106 = vmatprep.mubr.bf16.mxu0 0
      %1107 = vmatmul.mubr.bf16.gmra.mxu0 %v773
      %v1108 = vpop.f32.mrf.mxu0
      %v1109 = vadd.f32 0.0, %v1108
      %v1110 = vpop.f32.mrf.mxu0
      %v1111 = vpop.f32.mrf.mxu0
      %v1112 = vadd.f32 0.0, %v1111
      %v1113 = vpop.f32.mrf.mxu0
      %1114 = vmatprep.mubr.bf16.mxu0 0
      %1115 = vmatmul.mubr.bf16.gmra.mxu0 %v774
      %v1116 = vpop.f32.mrf.mxu0
      %v1117 = vadd.f32 0.0, %v1116
      %v1118 = vpop.f32.mrf.mxu0
      %v1119 = vpop.f32.mrf.mxu0
      %v1120 = vadd.f32 0.0, %v1119
      %v1121 = vpop.f32.mrf.mxu0
      %1122 = vdwg.mxu0
      %s1123 = scalar_lea.vmem %s2, 320
      %v1124 = vld [vmem:[%s1123] sm:$0xf]
      %v1125 = vld [vmem:[%s1123 + $0x4] sm:$0xf]
      %v1126 = vld [vmem:[%s1123 + $0x8] sm:$0xf]
      %v1127 = vld [vmem:[%s1123 + $0xc] sm:$0xf]
      %v1128 = vld [vmem:[%s1123 + $0x10] sm:$0xf]
      %v1129 = vld [vmem:[%s1123 + $0x14] sm:$0xf]
      %v1130 = vld [vmem:[%s1123 + $0x18] sm:$0xf]
      %v1131 = vld [vmem:[%s1123 + $0x1c] sm:$0xf]
      %v1132 = vld [vmem:[%s1123 + $0x20] sm:$0xf]
      %v1133 = vld [vmem:[%s1123 + $0x24] sm:$0xf]
      %v1134 = vld [vmem:[%s1123 + $0x28] sm:$0xf]
      %v1135 = vld [vmem:[%s1123 + $0x2c] sm:$0xf]
      %v1136 = vld [vmem:[%s1123 + $0x30] sm:$0xf]
      %v1137 = vld [vmem:[%s1123 + $0x34] sm:$0xf]
      %v1138 = vld [vmem:[%s1123 + $0x38] sm:$0xf]
      %v1139 = vld [vmem:[%s1123 + $0x3c] sm:$0xf]
      %v1156 = vunpack.c.l.b16 %v1124
      %v1157 = vunpack.c.l.b16 %v1125
      %v1158 = vunpack.c.l.b16 %v1126
      %v1159 = vunpack.c.l.b16 %v1127
      %v1160 = vunpack.c.l.b16 %v1128
      %v1161 = vunpack.c.l.b16 %v1129
      %v1162 = vunpack.c.l.b16 %v1130
      %v1163 = vunpack.c.l.b16 %v1131
      %v1164 = vunpack.c.l.b16 %v1132
      %v1165 = vunpack.c.l.b16 %v1133
      %v1166 = vunpack.c.l.b16 %v1134
      %v1167 = vunpack.c.l.b16 %v1135
      %v1168 = vunpack.c.l.b16 %v1136
      %v1169 = vunpack.c.l.b16 %v1137
      %v1170 = vunpack.c.l.b16 %v1138
      %v1171 = vunpack.c.l.b16 %v1139
      %v1172 = vpack.c.b16 %v1157, %v1156
      %v1173 = vpack.c.b16 %v1159, %v1158
      %v1174 = vpack.c.b16 %v1161, %v1160
      %v1175 = vpack.c.b16 %v1163, %v1162
      %v1176 = vpack.c.b16 %v1165, %v1164
      %v1177 = vpack.c.b16 %v1167, %v1166
      %v1178 = vpack.c.b16 %v1169, %v1168
      %v1179 = vpack.c.b16 %v1171, %v1170
      %1188 = vmatprep.subr.bf16.mxu0 0
      %1189 = vmatpush1.bf16.msra.mxu0 %v1179
      %1190 = vmatprep.subr.bf16.mxu0 0
      %1191 = vmatpush1.bf16.msra.mxu0 %v1178
      %1192 = vmatprep.subr.bf16.mxu0 0
      %1193 = vmatpush1.bf16.msra.mxu0 %v1177
      %1194 = vmatprep.subr.bf16.mxu0 0
      %1195 = vmatpush1.bf16.msra.mxu0 %v1176
      %1196 = vmatprep.subr.bf16.mxu0 0
      %1197 = vmatpush1.bf16.msra.mxu0 %v1175
      %1198 = vmatprep.subr.bf16.mxu0 0
      %1199 = vmatpush1.bf16.msra.mxu0 %v1174
      %1200 = vmatprep.subr.bf16.mxu0 0
      %1201 = vmatpush1.bf16.msra.mxu0 %v1173
      %1202 = vmatprep.subr.bf16.mxu0 0
      %1203 = vmatpush1.bf16.msra.mxu0 %v1172
      %1204 = vmatprep.subr.bf16.mxu0 0
      %1205 = vmatpush2.bf16.msra.mxu0 0
      %1206 = vmatprep.subr.bf16.mxu0 0
      %1207 = vmatpush2.bf16.msra.mxu0 0
      %1208 = vmatprep.subr.bf16.mxu0 0
      %1209 = vmatpush2.bf16.msra.mxu0 0
      %1210 = vmatprep.subr.bf16.mxu0 0
      %1211 = vmatpush2.bf16.msra.mxu0 0
      %1212 = vmatprep.subr.bf16.mxu0 0
      %1213 = vmatpush2.bf16.msra.mxu0 0
      %1214 = vmatprep.subr.bf16.mxu0 0
      %1215 = vmatpush2.bf16.msra.mxu0 0
      %1216 = vmatprep.subr.bf16.mxu0 0
      %1217 = vmatpush2.bf16.msra.mxu0 0
      %1218 = vmatprep.subr.bf16.mxu0 0
      %1219 = vmatpush2.bf16.msra.mxu0 0
      %1220 = vmatprep.mubr.bf16.mxu0 0
      %1221 = vmatmul.mubr.bf16.gmra.mxu0 %v767
      %v1222 = vpop.f32.mrf.mxu0
      %v1223 = vadd.f32 0.0, %v1222
      %v1224 = vpop.f32.mrf.mxu0
      %v1225 = vpop.f32.mrf.mxu0
      %v1226 = vadd.f32 0.0, %v1225
      %v1227 = vpop.f32.mrf.mxu0
      %1228 = vmatprep.mubr.bf16.mxu0 0
      %1229 = vmatmul.mubr.bf16.gmra.mxu0 %v768
      %v1230 = vpop.f32.mrf.mxu0
      %v1231 = vadd.f32 0.0, %v1230
      %v1232 = vpop.f32.mrf.mxu0
      %v1233 = vpop.f32.mrf.mxu0
      %v1234 = vadd.f32 0.0, %v1233
      %v1235 = vpop.f32.mrf.mxu0
      %1236 = vmatprep.mubr.bf16.mxu0 0
      %1237 = vmatmul.mubr.bf16.gmra.mxu0 %v769
      %v1238 = vpop.f32.mrf.mxu0
      %v1239 = vadd.f32 0.0, %v1238
      %v1240 = vpop.f32.mrf.mxu0
      %v1241 = vpop.f32.mrf.mxu0
      %v1242 = vadd.f32 0.0, %v1241
      %v1243 = vpop.f32.mrf.mxu0
      %1244 = vmatprep.mubr.bf16.mxu0 0
      %1245 = vmatmul.mubr.bf16.gmra.mxu0 %v770
      %v1246 = vpop.f32.mrf.mxu0
      %v1247 = vadd.f32 0.0, %v1246
      %v1248 = vpop.f32.mrf.mxu0
      %v1249 = vpop.f32.mrf.mxu0
      %v1250 = vadd.f32 0.0, %v1249
      %v1251 = vpop.f32.mrf.mxu0
      %1252 = vmatprep.mubr.bf16.mxu0 0
      %1253 = vmatmul.mubr.bf16.gmra.mxu0 %v771
      %v1254 = vpop.f32.mrf.mxu0
      %v1255 = vadd.f32 0.0, %v1254
      %v1256 = vpop.f32.mrf.mxu0
      %v1257 = vpop.f32.mrf.mxu0
      %v1258 = vadd.f32 0.0, %v1257
      %v1259 = vpop.f32.mrf.mxu0
      %1260 = vmatprep.mubr.bf16.mxu0 0
      %1261 = vmatmul.mubr.bf16.gmra.mxu0 %v772
      %v1262 = vpop.f32.mrf.mxu0
      %v1263 = vadd.f32 0.0, %v1262
      %v1264 = vpop.f32.mrf.mxu0
      %v1265 = vpop.f32.mrf.mxu0
      %v1266 = vadd.f32 0.0, %v1265
      %v1267 = vpop.f32.mrf.mxu0
      %1268 = vmatprep.mubr.bf16.mxu0 0
      %1269 = vmatmul.mubr.bf16.gmra.mxu0 %v773
      %v1270 = vpop.f32.mrf.mxu0
      %v1271 = vadd.f32 0.0, %v1270
      %v1272 = vpop.f32.mrf.mxu0
      %v1273 = vpop.f32.mrf.mxu0
      %v1274 = vadd.f32 0.0, %v1273
      %v1275 = vpop.f32.mrf.mxu0
      %1276 = vmatprep.mubr.bf16.mxu0 0
      %1277 = vmatmul.mubr.bf16.gmra.mxu0 %v774
      %v1278 = vpop.f32.mrf.mxu0
      %v1279 = vadd.f32 0.0, %v1278
      %v1280 = vpop.f32.mrf.mxu0
      %v1281 = vpop.f32.mrf.mxu0
      %v1282 = vadd.f32 0.0, %v1281
      %v1283 = vpop.f32.mrf.mxu0
      %1284 = vdwg.mxu0
      %v1301 = vunpack.c.l.b16 %v928
      %v1302 = vunpack.c.l.b16 %v929
      %v1303 = vunpack.c.l.b16 %v930
      %v1304 = vunpack.c.l.b16 %v931
      %v1305 = vunpack.c.l.b16 %v932
      %v1306 = vunpack.c.l.b16 %v933
      %v1307 = vunpack.c.l.b16 %v934
      %v1308 = vunpack.c.l.b16 %v935
      %v1309 = vunpack.c.l.b16 %v936
      %v1310 = vunpack.c.l.b16 %v937
      %v1311 = vunpack.c.l.b16 %v938
      %v1312 = vunpack.c.l.b16 %v939
      %v1313 = vunpack.c.l.b16 %v940
      %v1314 = vunpack.c.l.b16 %v941
      %v1315 = vunpack.c.l.b16 %v942
      %v1316 = vunpack.c.l.b16 %v943
      %v1317 = vpack.c.b16 %v1302, %v1301
      %v1318 = vpack.c.b16 %v1304, %v1303
      %v1319 = vpack.c.b16 %v1306, %v1305
      %v1320 = vpack.c.b16 %v1308, %v1307
      %v1321 = vpack.c.b16 %v1310, %v1309
      %v1322 = vpack.c.b16 %v1312, %v1311
      %v1323 = vpack.c.b16 %v1314, %v1313
      %v1324 = vpack.c.b16 %v1316, %v1315
      %1333 = vmatprep.subr.bf16.mxu0 0
      %1334 = vmatpush1.bf16.msra.mxu0 %v1324
      %1335 = vmatprep.subr.bf16.mxu0 0
      %1336 = vmatpush1.bf16.msra.mxu0 %v1323
      %1337 = vmatprep.subr.bf16.mxu0 0
      %1338 = vmatpush1.bf16.msra.mxu0 %v1322
      %1339 = vmatprep.subr.bf16.mxu0 0
      %1340 = vmatpush1.bf16.msra.mxu0 %v1321
      %1341 = vmatprep.subr.bf16.mxu0 0
      %1342 = vmatpush1.bf16.msra.mxu0 %v1320
      %1343 = vmatprep.subr.bf16.mxu0 0
      %1344 = vmatpush1.bf16.msra.mxu0 %v1319
      %1345 = vmatprep.subr.bf16.mxu0 0
      %1346 = vmatpush1.bf16.msra.mxu0 %v1318
      %1347 = vmatprep.subr.bf16.mxu0 0
      %1348 = vmatpush1.bf16.msra.mxu0 %v1317
      %1349 = vmatprep.subr.bf16.mxu0 0
      %1350 = vmatpush2.bf16.msra.mxu0 0
      %1351 = vmatprep.subr.bf16.mxu0 0
      %1352 = vmatpush2.bf16.msra.mxu0 0
      %1353 = vmatprep.subr.bf16.mxu0 0
      %1354 = vmatpush2.bf16.msra.mxu0 0
      %1355 = vmatprep.subr.bf16.mxu0 0
      %1356 = vmatpush2.bf16.msra.mxu0 0
      %1357 = vmatprep.subr.bf16.mxu0 0
      %1358 = vmatpush2.bf16.msra.mxu0 0
      %1359 = vmatprep.subr.bf16.mxu0 0
      %1360 = vmatpush2.bf16.msra.mxu0 0
      %1361 = vmatprep.subr.bf16.mxu0 0
      %1362 = vmatpush2.bf16.msra.mxu0 0
      %1363 = vmatprep.subr.bf16.mxu0 0
      %1364 = vmatpush2.bf16.msra.mxu0 0
      %1365 = vmatprep.mubr.bf16.mxu0 0
      %1366 = vmatmul.mubr.bf16.gmra.mxu0 %v574
      %v1367 = vpop.f32.mrf.mxu0
      %v1368 = vadd.f32 %v1061, %v1367
      %v1369 = vpop.f32.mrf.mxu0
      %v1370 = vpop.f32.mrf.mxu0
      %v1371 = vadd.f32 %v1064, %v1370
      %v1372 = vpop.f32.mrf.mxu0
      %1373 = vmatprep.mubr.bf16.mxu0 0
      %1374 = vmatmul.mubr.bf16.gmra.mxu0 %v575
      %v1375 = vpop.f32.mrf.mxu0
      %v1376 = vadd.f32 %v1069, %v1375
      %v1377 = vpop.f32.mrf.mxu0
      %v1378 = vpop.f32.mrf.mxu0
      %v1379 = vadd.f32 %v1072, %v1378
      %v1380 = vpop.f32.mrf.mxu0
      %1381 = vmatprep.mubr.bf16.mxu0 0
      %1382 = vmatmul.mubr.bf16.gmra.mxu0 %v576
      %v1383 = vpop.f32.mrf.mxu0
      %v1384 = vadd.f32 %v1077, %v1383
      %v1385 = vpop.f32.mrf.mxu0
      %v1386 = vpop.f32.mrf.mxu0
      %v1387 = vadd.f32 %v1080, %v1386
      %v1388 = vpop.f32.mrf.mxu0
      %1389 = vmatprep.mubr.bf16.mxu0 0
      %1390 = vmatmul.mubr.bf16.gmra.mxu0 %v577
      %v1391 = vpop.f32.mrf.mxu0
      %v1392 = vadd.f32 %v1085, %v1391
      %v1393 = vpop.f32.mrf.mxu0
      %v1394 = vpop.f32.mrf.mxu0
      %v1395 = vadd.f32 %v1088, %v1394
      %v1396 = vpop.f32.mrf.mxu0
      %1397 = vmatprep.mubr.bf16.mxu0 0
      %1398 = vmatmul.mubr.bf16.gmra.mxu0 %v578
      %v1399 = vpop.f32.mrf.mxu0
      %v1400 = vadd.f32 %v1093, %v1399
      %v1401 = vpop.f32.mrf.mxu0
      %v1402 = vpop.f32.mrf.mxu0
      %v1403 = vadd.f32 %v1096, %v1402
      %v1404 = vpop.f32.mrf.mxu0
      %1405 = vmatprep.mubr.bf16.mxu0 0
      %1406 = vmatmul.mubr.bf16.gmra.mxu0 %v579
      %v1407 = vpop.f32.mrf.mxu0
      %v1408 = vadd.f32 %v1101, %v1407
      %v1409 = vpop.f32.mrf.mxu0
      %v1410 = vpop.f32.mrf.mxu0
      %v1411 = vadd.f32 %v1104, %v1410
      %v1412 = vpop.f32.mrf.mxu0
      %1413 = vmatprep.mubr.bf16.mxu0 0
      %1414 = vmatmul.mubr.bf16.gmra.mxu0 %v580
      %v1415 = vpop.f32.mrf.mxu0
      %v1416 = vadd.f32 %v1109, %v1415
      %v1417 = vpop.f32.mrf.mxu0
      %v1418 = vpop.f32.mrf.mxu0
      %v1419 = vadd.f32 %v1112, %v1418
      %v1420 = vpop.f32.mrf.mxu0
      %1421 = vmatprep.mubr.bf16.mxu0 0
      %1422 = vmatmul.mubr.bf16.gmra.mxu0 %v581
      %v1423 = vpop.f32.mrf.mxu0
      %v1424 = vadd.f32 %v1117, %v1423
      %v1425 = vpop.f32.mrf.mxu0
      %v1426 = vpop.f32.mrf.mxu0
      %v1427 = vadd.f32 %v1120, %v1426
      %v1428 = vpop.f32.mrf.mxu0
      %1429 = vdwg.mxu0
      %v1446 = vunpack.c.l.b16 %v945
      %v1447 = vunpack.c.l.b16 %v946
      %v1448 = vunpack.c.l.b16 %v947
      %v1449 = vunpack.c.l.b16 %v948
      %v1450 = vunpack.c.l.b16 %v949
      %v1451 = vunpack.c.l.b16 %v950
      %v1452 = vunpack.c.l.b16 %v951
      %v1453 = vunpack.c.l.b16 %v952
      %v1454 = vunpack.c.l.b16 %v953
      %v1455 = vunpack.c.l.b16 %v954
      %v1456 = vunpack.c.l.b16 %v955
      %v1457 = vunpack.c.l.b16 %v956
      %v1458 = vunpack.c.l.b16 %v957
      %v1459 = vunpack.c.l.b16 %v958
      %v1460 = vunpack.c.l.b16 %v959
      %v1461 = vunpack.c.l.b16 %v960
      %v1462 = vpack.c.b16 %v1447, %v1446
      %v1463 = vpack.c.b16 %v1449, %v1448
      %v1464 = vpack.c.b16 %v1451, %v1450
      %v1465 = vpack.c.b16 %v1453, %v1452
      %v1466 = vpack.c.b16 %v1455, %v1454
      %v1467 = vpack.c.b16 %v1457, %v1456
      %v1468 = vpack.c.b16 %v1459, %v1458
      %v1469 = vpack.c.b16 %v1461, %v1460
      %1478 = vmatprep.subr.bf16.mxu0 0
      %1479 = vmatpush1.bf16.msra.mxu0 %v1469
      %1480 = vmatprep.subr.bf16.mxu0 0
      %1481 = vmatpush1.bf16.msra.mxu0 %v1468
      %1482 = vmatprep.subr.bf16.mxu0 0
      %1483 = vmatpush1.bf16.msra.mxu0 %v1467
      %1484 = vmatprep.subr.bf16.mxu0 0
      %1485 = vmatpush1.bf16.msra.mxu0 %v1466
      %1486 = vmatprep.subr.bf16.mxu0 0
      %1487 = vmatpush1.bf16.msra.mxu0 %v1465
      %1488 = vmatprep.subr.bf16.mxu0 0
      %1489 = vmatpush1.bf16.msra.mxu0 %v1464
      %1490 = vmatprep.subr.bf16.mxu0 0
      %1491 = vmatpush1.bf16.msra.mxu0 %v1463
      %1492 = vmatprep.subr.bf16.mxu0 0
      %1493 = vmatpush1.bf16.msra.mxu0 %v1462
      %1494 = vmatprep.subr.bf16.mxu0 0
      %1495 = vmatpush2.bf16.msra.mxu0 0
      %1496 = vmatprep.subr.bf16.mxu0 0
      %1497 = vmatpush2.bf16.msra.mxu0 0
      %1498 = vmatprep.subr.bf16.mxu0 0
      %1499 = vmatpush2.bf16.msra.mxu0 0
      %1500 = vmatprep.subr.bf16.mxu0 0
      %1501 = vmatpush2.bf16.msra.mxu0 0
      %1502 = vmatprep.subr.bf16.mxu0 0
      %1503 = vmatpush2.bf16.msra.mxu0 0
      %1504 = vmatprep.subr.bf16.mxu0 0
      %1505 = vmatpush2.bf16.msra.mxu0 0
      %1506 = vmatprep.subr.bf16.mxu0 0
      %1507 = vmatpush2.bf16.msra.mxu0 0
      %1508 = vmatprep.subr.bf16.mxu0 0
      %1509 = vmatpush2.bf16.msra.mxu0 0
      %1510 = vmatprep.mubr.bf16.mxu0 0
      %1511 = vmatmul.mubr.bf16.gmra.mxu0 %v574
      %v1512 = vpop.f32.mrf.mxu0
      %v1513 = vadd.f32 %v1223, %v1512
      %v1514 = vpop.f32.mrf.mxu0
      %v1515 = vpop.f32.mrf.mxu0
      %v1516 = vadd.f32 %v1226, %v1515
      %v1517 = vpop.f32.mrf.mxu0
      %1518 = vmatprep.mubr.bf16.mxu0 0
      %1519 = vmatmul.mubr.bf16.gmra.mxu0 %v575
      %v1520 = vpop.f32.mrf.mxu0
      %v1521 = vadd.f32 %v1231, %v1520
      %v1522 = vpop.f32.mrf.mxu0
      %v1523 = vpop.f32.mrf.mxu0
      %v1524 = vadd.f32 %v1234, %v1523
      %v1525 = vpop.f32.mrf.mxu0
      %1526 = vmatprep.mubr.bf16.mxu0 0
      %1527 = vmatmul.mubr.bf16.gmra.mxu0 %v576
      %v1528 = vpop.f32.mrf.mxu0
      %v1529 = vadd.f32 %v1239, %v1528
      %v1530 = vpop.f32.mrf.mxu0
      %v1531 = vpop.f32.mrf.mxu0
      %v1532 = vadd.f32 %v1242, %v1531
      %v1533 = vpop.f32.mrf.mxu0
      %1534 = vmatprep.mubr.bf16.mxu0 0
      %1535 = vmatmul.mubr.bf16.gmra.mxu0 %v577
      %v1536 = vpop.f32.mrf.mxu0
      %v1537 = vadd.f32 %v1247, %v1536
      %v1538 = vpop.f32.mrf.mxu0
      %v1539 = vpop.f32.mrf.mxu0
      %v1540 = vadd.f32 %v1250, %v1539
      %v1541 = vpop.f32.mrf.mxu0
      %1542 = vmatprep.mubr.bf16.mxu0 0
      %1543 = vmatmul.mubr.bf16.gmra.mxu0 %v578
      %v1544 = vpop.f32.mrf.mxu0
      %v1545 = vadd.f32 %v1255, %v1544
      %v1546 = vpop.f32.mrf.mxu0
      %v1547 = vpop.f32.mrf.mxu0
      %v1548 = vadd.f32 %v1258, %v1547
      %v1549 = vpop.f32.mrf.mxu0
      %1550 = vmatprep.mubr.bf16.mxu0 0
      %1551 = vmatmul.mubr.bf16.gmra.mxu0 %v579
      %v1552 = vpop.f32.mrf.mxu0
      %v1553 = vadd.f32 %v1263, %v1552
      %v1554 = vpop.f32.mrf.mxu0
      %v1555 = vpop.f32.mrf.mxu0
      %v1556 = vadd.f32 %v1266, %v1555
      %v1557 = vpop.f32.mrf.mxu0
      %1558 = vmatprep.mubr.bf16.mxu0 0
      %1559 = vmatmul.mubr.bf16.gmra.mxu0 %v580
      %v1560 = vpop.f32.mrf.mxu0
      %v1561 = vadd.f32 %v1271, %v1560
      %v1562 = vpop.f32.mrf.mxu0
      %v1563 = vpop.f32.mrf.mxu0
      %v1564 = vadd.f32 %v1274, %v1563
      %v1565 = vpop.f32.mrf.mxu0
      %1566 = vmatprep.mubr.bf16.mxu0 0
      %1567 = vmatmul.mubr.bf16.gmra.mxu0 %v581
      %v1568 = vpop.f32.mrf.mxu0
      %v1569 = vadd.f32 %v1279, %v1568
      %v1570 = vpop.f32.mrf.mxu0
      %v1571 = vpop.f32.mrf.mxu0
      %v1572 = vadd.f32 %v1282, %v1571
      %v1573 = vpop.f32.mrf.mxu0
      %1574 = vdwg.mxu0
      %s1575 = sadd.s32 36, %s470
      %s1576 = smul.addr %s1575, 4
      %s1577 = scalar_lea.vmem [#allocation2], %s1576
      %v1578 = vld [vmem:[%s1577] sm:$0xf]
      %v1579 = vld [vmem:[%s1577 + $0x4] sm:$0xf]
      %v1580 = vld [vmem:[%s1577 + $0x8] sm:$0xf]
      %v1581 = vld [vmem:[%s1577 + $0xc] sm:$0xf]
      %v1582 = vld [vmem:[%s1577 + $0x10] sm:$0xf]
      %v1583 = vld [vmem:[%s1577 + $0x14] sm:$0xf]
      %v1584 = vld [vmem:[%s1577 + $0x18] sm:$0xf]
      %v1585 = vld [vmem:[%s1577 + $0x1c] sm:$0xf]
      %v1586 = vld [vmem:[%s1577 + $0x20] sm:$0xf]
      %v1587 = vld [vmem:[%s1577 + $0x24] sm:$0xf]
      %v1588 = vld [vmem:[%s1577 + $0x28] sm:$0xf]
      %v1589 = vld [vmem:[%s1577 + $0x2c] sm:$0xf]
      %v1590 = vld [vmem:[%s1577 + $0x30] sm:$0xf]
      %v1591 = vld [vmem:[%s1577 + $0x34] sm:$0xf]
      %v1592 = vld [vmem:[%s1577 + $0x38] sm:$0xf]
      %v1593 = vld [vmem:[%s1577 + $0x3c] sm:$0xf]
      %s1594 = scalar_lea.vmem %s2, 448
      %v1595 = vld [vmem:[%s1594] sm:$0xf]
      %v1596 = vld [vmem:[%s1594 + $0x4] sm:$0xf]
      %v1597 = vld [vmem:[%s1594 + $0x8] sm:$0xf]
      %v1598 = vld [vmem:[%s1594 + $0xc] sm:$0xf]
      %v1599 = vld [vmem:[%s1594 + $0x10] sm:$0xf]
      %v1600 = vld [vmem:[%s1594 + $0x14] sm:$0xf]
      %v1601 = vld [vmem:[%s1594 + $0x18] sm:$0xf]
      %v1602 = vld [vmem:[%s1594 + $0x1c] sm:$0xf]
      %v1603 = vld [vmem:[%s1594 + $0x20] sm:$0xf]
      %v1604 = vld [vmem:[%s1594 + $0x24] sm:$0xf]
      %v1605 = vld [vmem:[%s1594 + $0x28] sm:$0xf]
      %v1606 = vld [vmem:[%s1594 + $0x2c] sm:$0xf]
      %v1607 = vld [vmem:[%s1594 + $0x30] sm:$0xf]
      %v1608 = vld [vmem:[%s1594 + $0x34] sm:$0xf]
      %v1609 = vld [vmem:[%s1594 + $0x38] sm:$0xf]
      %v1610 = vld [vmem:[%s1594 + $0x3c] sm:$0xf]
      %v1627 = vunpack.c.l.b16 %v1578
      %v1628 = vunpack.c.l.b16 %v1579
      %v1629 = vunpack.c.l.b16 %v1580
      %v1630 = vunpack.c.l.b16 %v1581
      %v1631 = vunpack.c.l.b16 %v1582
      %v1632 = vunpack.c.l.b16 %v1583
      %v1633 = vunpack.c.l.b16 %v1584
      %v1634 = vunpack.c.l.b16 %v1585
      %v1635 = vunpack.c.l.b16 %v1586
      %v1636 = vunpack.c.l.b16 %v1587
      %v1637 = vunpack.c.l.b16 %v1588
      %v1638 = vunpack.c.l.b16 %v1589
      %v1639 = vunpack.c.l.b16 %v1590
      %v1640 = vunpack.c.l.b16 %v1591
      %v1641 = vunpack.c.l.b16 %v1592
      %v1642 = vunpack.c.l.b16 %v1593
      %v1643 = vpack.c.b16 %v1628, %v1627
      %v1644 = vpack.c.b16 %v1630, %v1629
      %v1645 = vpack.c.b16 %v1632, %v1631
      %v1646 = vpack.c.b16 %v1634, %v1633
      %v1647 = vpack.c.b16 %v1636, %v1635
      %v1648 = vpack.c.b16 %v1638, %v1637
      %v1649 = vpack.c.b16 %v1640, %v1639
      %v1650 = vpack.c.b16 %v1642, %v1641
      %v1675 = vunpack.c.l.b16 %v1595
      %v1676 = vunpack.c.l.b16 %v1596
      %v1677 = vunpack.c.l.b16 %v1597
      %v1678 = vunpack.c.l.b16 %v1598
      %v1679 = vunpack.c.l.b16 %v1599
      %v1680 = vunpack.c.l.b16 %v1600
      %v1681 = vunpack.c.l.b16 %v1601
      %v1682 = vunpack.c.l.b16 %v1602
      %v1683 = vunpack.c.l.b16 %v1603
      %v1684 = vunpack.c.l.b16 %v1604
      %v1685 = vunpack.c.l.b16 %v1605
      %v1686 = vunpack.c.l.b16 %v1606
      %v1687 = vunpack.c.l.b16 %v1607
      %v1688 = vunpack.c.l.b16 %v1608
      %v1689 = vunpack.c.l.b16 %v1609
      %v1690 = vunpack.c.l.b16 %v1610
      %v1691 = vpack.c.b16 %v1676, %v1675
      %v1692 = vpack.c.b16 %v1678, %v1677
      %v1693 = vpack.c.b16 %v1680, %v1679
      %v1694 = vpack.c.b16 %v1682, %v1681
      %v1695 = vpack.c.b16 %v1684, %v1683
      %v1696 = vpack.c.b16 %v1686, %v1685
      %v1697 = vpack.c.b16 %v1688, %v1687
      %v1698 = vpack.c.b16 %v1690, %v1689
      %1707 = vmatprep.subr.bf16.mxu0 0
      %1708 = vmatpush1.bf16.msra.mxu0 %v1698
      %1709 = vmatprep.subr.bf16.mxu0 0
      %1710 = vmatpush1.bf16.msra.mxu0 %v1697
      %1711 = vmatprep.subr.bf16.mxu0 0
      %1712 = vmatpush1.bf16.msra.mxu0 %v1696
      %1713 = vmatprep.subr.bf16.mxu0 0
      %1714 = vmatpush1.bf16.msra.mxu0 %v1695
      %1715 = vmatprep.subr.bf16.mxu0 0
      %1716 = vmatpush1.bf16.msra.mxu0 %v1694
      %1717 = vmatprep.subr.bf16.mxu0 0
      %1718 = vmatpush1.bf16.msra.mxu0 %v1693
      %1719 = vmatprep.subr.bf16.mxu0 0
      %1720 = vmatpush1.bf16.msra.mxu0 %v1692
      %1721 = vmatprep.subr.bf16.mxu0 0
      %1722 = vmatpush1.bf16.msra.mxu0 %v1691
      %1723 = vmatprep.subr.bf16.mxu0 0
      %1724 = vmatpush2.bf16.msra.mxu0 0
      %1725 = vmatprep.subr.bf16.mxu0 0
      %1726 = vmatpush2.bf16.msra.mxu0 0
      %1727 = vmatprep.subr.bf16.mxu0 0
      %1728 = vmatpush2.bf16.msra.mxu0 0
      %1729 = vmatprep.subr.bf16.mxu0 0
      %1730 = vmatpush2.bf16.msra.mxu0 0
      %1731 = vmatprep.subr.bf16.mxu0 0
      %1732 = vmatpush2.bf16.msra.mxu0 0
      %1733 = vmatprep.subr.bf16.mxu0 0
      %1734 = vmatpush2.bf16.msra.mxu0 0
      %1735 = vmatprep.subr.bf16.mxu0 0
      %1736 = vmatpush2.bf16.msra.mxu0 0
      %1737 = vmatprep.subr.bf16.mxu0 0
      %1738 = vmatpush2.bf16.msra.mxu0 0
      %1739 = vmatprep.mubr.bf16.mxu0 0
      %1740 = vmatmul.mubr.bf16.gmra.mxu0 %v1643
      %v1741 = vpop.f32.mrf.mxu0
      %v1742 = vadd.f32 0.0, %v1741
      %v1743 = vpop.f32.mrf.mxu0
      %v1744 = vpop.f32.mrf.mxu0
      %v1745 = vadd.f32 0.0, %v1744
      %v1746 = vpop.f32.mrf.mxu0
      %1747 = vmatprep.mubr.bf16.mxu0 0
      %1748 = vmatmul.mubr.bf16.gmra.mxu0 %v1644
      %v1749 = vpop.f32.mrf.mxu0
      %v1750 = vadd.f32 0.0, %v1749
      %v1751 = vpop.f32.mrf.mxu0
      %v1752 = vpop.f32.mrf.mxu0
      %v1753 = vadd.f32 0.0, %v1752
      %v1754 = vpop.f32.mrf.mxu0
      %1755 = vmatprep.mubr.bf16.mxu0 0
      %1756 = vmatmul.mubr.bf16.gmra.mxu0 %v1645
      %v1757 = vpop.f32.mrf.mxu0
      %v1758 = vadd.f32 0.0, %v1757
      %v1759 = vpop.f32.mrf.mxu0
      %v1760 = vpop.f32.mrf.mxu0
      %v1761 = vadd.f32 0.0, %v1760
      %v1762 = vpop.f32.mrf.mxu0
      %1763 = vmatprep.mubr.bf16.mxu0 0
      %1764 = vmatmul.mubr.bf16.gmra.mxu0 %v1646
      %v1765 = vpop.f32.mrf.mxu0
      %v1766 = vadd.f32 0.0, %v1765
      %v1767 = vpop.f32.mrf.mxu0
      %v1768 = vpop.f32.mrf.mxu0
      %v1769 = vadd.f32 0.0, %v1768
      %v1770 = vpop.f32.mrf.mxu0
      %1771 = vmatprep.mubr.bf16.mxu0 0
      %1772 = vmatmul.mubr.bf16.gmra.mxu0 %v1647
      %v1773 = vpop.f32.mrf.mxu0
      %v1774 = vadd.f32 0.0, %v1773
      %v1775 = vpop.f32.mrf.mxu0
      %v1776 = vpop.f32.mrf.mxu0
      %v1777 = vadd.f32 0.0, %v1776
      %v1778 = vpop.f32.mrf.mxu0
      %1779 = vmatprep.mubr.bf16.mxu0 0
      %1780 = vmatmul.mubr.bf16.gmra.mxu0 %v1648
      %v1781 = vpop.f32.mrf.mxu0
      %v1782 = vadd.f32 0.0, %v1781
      %v1783 = vpop.f32.mrf.mxu0
      %v1784 = vpop.f32.mrf.mxu0
      %v1785 = vadd.f32 0.0, %v1784
      %v1786 = vpop.f32.mrf.mxu0
      %1787 = vmatprep.mubr.bf16.mxu0 0
      %1788 = vmatmul.mubr.bf16.gmra.mxu0 %v1649
      %v1789 = vpop.f32.mrf.mxu0
      %v1790 = vadd.f32 0.0, %v1789
      %v1791 = vpop.f32.mrf.mxu0
      %v1792 = vpop.f32.mrf.mxu0
      %v1793 = vadd.f32 0.0, %v1792
      %v1794 = vpop.f32.mrf.mxu0
      %1795 = vmatprep.mubr.bf16.mxu0 0
      %1796 = vmatmul.mubr.bf16.gmra.mxu0 %v1650
      %v1797 = vpop.f32.mrf.mxu0
      %v1798 = vadd.f32 0.0, %v1797
      %v1799 = vpop.f32.mrf.mxu0
      %v1800 = vpop.f32.mrf.mxu0
      %v1801 = vadd.f32 0.0, %v1800
      %v1802 = vpop.f32.mrf.mxu0
      %1803 = vdwg.mxu0
      %v1804 = vadd.f32 %v866, %v1742
      %v1805 = vadd.f32 %v869, %v1745
      %v1806 = vadd.f32 %v874, %v1750
      %v1807 = vadd.f32 %v877, %v1753
      %v1808 = vadd.f32 %v882, %v1758
      %v1809 = vadd.f32 %v885, %v1761
      %v1810 = vadd.f32 %v890, %v1766
      %v1811 = vadd.f32 %v893, %v1769
      %v1812 = vadd.f32 %v898, %v1774
      %v1813 = vadd.f32 %v901, %v1777
      %v1814 = vadd.f32 %v906, %v1782
      %v1815 = vadd.f32 %v909, %v1785
      %v1816 = vadd.f32 %v914, %v1790
      %v1817 = vadd.f32 %v917, %v1793
      %v1818 = vadd.f32 %v922, %v1798
      %v1819 = vadd.f32 %v925, %v1801
      %s1820 = scalar_lea.vmem %s2, 384
      %v1821 = vld [vmem:[%s1820] sm:$0xf]
      %v1822 = vld [vmem:[%s1820 + $0x4] sm:$0xf]
      %v1823 = vld [vmem:[%s1820 + $0x8] sm:$0xf]
      %v1824 = vld [vmem:[%s1820 + $0xc] sm:$0xf]
      %v1825 = vld [vmem:[%s1820 + $0x10] sm:$0xf]
      %v1826 = vld [vmem:[%s1820 + $0x14] sm:$0xf]
      %v1827 = vld [vmem:[%s1820 + $0x18] sm:$0xf]
      %v1828 = vld [vmem:[%s1820 + $0x1c] sm:$0xf]
      %v1829 = vld [vmem:[%s1820 + $0x20] sm:$0xf]
      %v1830 = vld [vmem:[%s1820 + $0x24] sm:$0xf]
      %v1831 = vld [vmem:[%s1820 + $0x28] sm:$0xf]
      %v1832 = vld [vmem:[%s1820 + $0x2c] sm:$0xf]
      %v1833 = vld [vmem:[%s1820 + $0x30] sm:$0xf]
      %v1834 = vld [vmem:[%s1820 + $0x34] sm:$0xf]
      %v1835 = vld [vmem:[%s1820 + $0x38] sm:$0xf]
      %v1836 = vld [vmem:[%s1820 + $0x3c] sm:$0xf]
      %v1853 = vunpack.c.l.b16 %v1821
      %v1854 = vunpack.c.l.b16 %v1822
      %v1855 = vunpack.c.l.b16 %v1823
      %v1856 = vunpack.c.l.b16 %v1824
      %v1857 = vunpack.c.l.b16 %v1825
      %v1858 = vunpack.c.l.b16 %v1826
      %v1859 = vunpack.c.l.b16 %v1827
      %v1860 = vunpack.c.l.b16 %v1828
      %v1861 = vunpack.c.l.b16 %v1829
      %v1862 = vunpack.c.l.b16 %v1830
      %v1863 = vunpack.c.l.b16 %v1831
      %v1864 = vunpack.c.l.b16 %v1832
      %v1865 = vunpack.c.l.b16 %v1833
      %v1866 = vunpack.c.l.b16 %v1834
      %v1867 = vunpack.c.l.b16 %v1835
      %v1868 = vunpack.c.l.b16 %v1836
      %v1869 = vpack.c.b16 %v1854, %v1853
      %v1870 = vpack.c.b16 %v1856, %v1855
      %v1871 = vpack.c.b16 %v1858, %v1857
      %v1872 = vpack.c.b16 %v1860, %v1859
      %v1873 = vpack.c.b16 %v1862, %v1861
      %v1874 = vpack.c.b16 %v1864, %v1863
      %v1875 = vpack.c.b16 %v1866, %v1865
      %v1876 = vpack.c.b16 %v1868, %v1867
      %1885 = vmatprep.subr.bf16.mxu0 0
      %1886 = vmatpush1.bf16.msra.mxu0 %v1876
      %1887 = vmatprep.subr.bf16.mxu0 0
      %1888 = vmatpush1.bf16.msra.mxu0 %v1875
      %1889 = vmatprep.subr.bf16.mxu0 0
      %1890 = vmatpush1.bf16.msra.mxu0 %v1874
      %1891 = vmatprep.subr.bf16.mxu0 0
      %1892 = vmatpush1.bf16.msra.mxu0 %v1873
      %1893 = vmatprep.subr.bf16.mxu0 0
      %1894 = vmatpush1.bf16.msra.mxu0 %v1872
      %1895 = vmatprep.subr.bf16.mxu0 0
      %1896 = vmatpush1.bf16.msra.mxu0 %v1871
      %1897 = vmatprep.subr.bf16.mxu0 0
      %1898 = vmatpush1.bf16.msra.mxu0 %v1870
      %1899 = vmatprep.subr.bf16.mxu0 0
      %1900 = vmatpush1.bf16.msra.mxu0 %v1869
      %1901 = vmatprep.subr.bf16.mxu0 0
      %1902 = vmatpush2.bf16.msra.mxu0 0
      %1903 = vmatprep.subr.bf16.mxu0 0
      %1904 = vmatpush2.bf16.msra.mxu0 0
      %1905 = vmatprep.subr.bf16.mxu0 0
      %1906 = vmatpush2.bf16.msra.mxu0 0
      %1907 = vmatprep.subr.bf16.mxu0 0
      %1908 = vmatpush2.bf16.msra.mxu0 0
      %1909 = vmatprep.subr.bf16.mxu0 0
      %1910 = vmatpush2.bf16.msra.mxu0 0
      %1911 = vmatprep.subr.bf16.mxu0 0
      %1912 = vmatpush2.bf16.msra.mxu0 0
      %1913 = vmatprep.subr.bf16.mxu0 0
      %1914 = vmatpush2.bf16.msra.mxu0 0
      %1915 = vmatprep.subr.bf16.mxu0 0
      %1916 = vmatpush2.bf16.msra.mxu0 0
      %1917 = vmatprep.mubr.bf16.mxu0 0
      %1918 = vmatmul.mubr.bf16.gmra.mxu0 %v1643
      %v1919 = vpop.f32.mrf.mxu0
      %v1920 = vadd.f32 0.0, %v1919
      %v1921 = vpop.f32.mrf.mxu0
      %v1922 = vpop.f32.mrf.mxu0
      %v1923 = vadd.f32 0.0, %v1922
      %v1924 = vpop.f32.mrf.mxu0
      %1925 = vmatprep.mubr.bf16.mxu0 0
      %1926 = vmatmul.mubr.bf16.gmra.mxu0 %v1644
      %v1927 = vpop.f32.mrf.mxu0
      %v1928 = vadd.f32 0.0, %v1927
      %v1929 = vpop.f32.mrf.mxu0
      %v1930 = vpop.f32.mrf.mxu0
      %v1931 = vadd.f32 0.0, %v1930
      %v1932 = vpop.f32.mrf.mxu0
      %1933 = vmatprep.mubr.bf16.mxu0 0
      %1934 = vmatmul.mubr.bf16.gmra.mxu0 %v1645
      %v1935 = vpop.f32.mrf.mxu0
      %v1936 = vadd.f32 0.0, %v1935
      %v1937 = vpop.f32.mrf.mxu0
      %v1938 = vpop.f32.mrf.mxu0
      %v1939 = vadd.f32 0.0, %v1938
      %v1940 = vpop.f32.mrf.mxu0
      %1941 = vmatprep.mubr.bf16.mxu0 0
      %1942 = vmatmul.mubr.bf16.gmra.mxu0 %v1646
      %v1943 = vpop.f32.mrf.mxu0
      %v1944 = vadd.f32 0.0, %v1943
      %v1945 = vpop.f32.mrf.mxu0
      %v1946 = vpop.f32.mrf.mxu0
      %v1947 = vadd.f32 0.0, %v1946
      %v1948 = vpop.f32.mrf.mxu0
      %1949 = vmatprep.mubr.bf16.mxu0 0
      %1950 = vmatmul.mubr.bf16.gmra.mxu0 %v1647
      %v1951 = vpop.f32.mrf.mxu0
      %v1952 = vadd.f32 0.0, %v1951
      %v1953 = vpop.f32.mrf.mxu0
      %v1954 = vpop.f32.mrf.mxu0
      %v1955 = vadd.f32 0.0, %v1954
      %v1956 = vpop.f32.mrf.mxu0
      %1957 = vmatprep.mubr.bf16.mxu0 0
      %1958 = vmatmul.mubr.bf16.gmra.mxu0 %v1648
      %v1959 = vpop.f32.mrf.mxu0
      %v1960 = vadd.f32 0.0, %v1959
      %v1961 = vpop.f32.mrf.mxu0
      %v1962 = vpop.f32.mrf.mxu0
      %v1963 = vadd.f32 0.0, %v1962
      %v1964 = vpop.f32.mrf.mxu0
      %1965 = vmatprep.mubr.bf16.mxu0 0
      %1966 = vmatmul.mubr.bf16.gmra.mxu0 %v1649
      %v1967 = vpop.f32.mrf.mxu0
      %v1968 = vadd.f32 0.0, %v1967
      %v1969 = vpop.f32.mrf.mxu0
      %v1970 = vpop.f32.mrf.mxu0
      %v1971 = vadd.f32 0.0, %v1970
      %v1972 = vpop.f32.mrf.mxu0
      %1973 = vmatprep.mubr.bf16.mxu0 0
      %1974 = vmatmul.mubr.bf16.gmra.mxu0 %v1650
      %v1975 = vpop.f32.mrf.mxu0
      %v1976 = vadd.f32 0.0, %v1975
      %v1977 = vpop.f32.mrf.mxu0
      %v1978 = vpop.f32.mrf.mxu0
      %v1979 = vadd.f32 0.0, %v1978
      %v1980 = vpop.f32.mrf.mxu0
      %1981 = vdwg.mxu0
      %s1982 = scalar_lea.vmem %s2, 512
      %v1983 = vld [vmem:[%s1982] sm:$0xf]
      %v1984 = vld [vmem:[%s1982 + $0x4] sm:$0xf]
      %v1985 = vld [vmem:[%s1982 + $0x8] sm:$0xf]
      %v1986 = vld [vmem:[%s1982 + $0xc] sm:$0xf]
      %v1987 = vld [vmem:[%s1982 + $0x10] sm:$0xf]
      %v1988 = vld [vmem:[%s1982 + $0x14] sm:$0xf]
      %v1989 = vld [vmem:[%s1982 + $0x18] sm:$0xf]
      %v1990 = vld [vmem:[%s1982 + $0x1c] sm:$0xf]
      %v1991 = vld [vmem:[%s1982 + $0x20] sm:$0xf]
      %v1992 = vld [vmem:[%s1982 + $0x24] sm:$0xf]
      %v1993 = vld [vmem:[%s1982 + $0x28] sm:$0xf]
      %v1994 = vld [vmem:[%s1982 + $0x2c] sm:$0xf]
      %v1995 = vld [vmem:[%s1982 + $0x30] sm:$0xf]
      %v1996 = vld [vmem:[%s1982 + $0x34] sm:$0xf]
      %v1997 = vld [vmem:[%s1982 + $0x38] sm:$0xf]
      %v1998 = vld [vmem:[%s1982 + $0x3c] sm:$0xf]
      %v2015 = vunpack.c.l.b16 %v1983
      %v2016 = vunpack.c.l.b16 %v1984
      %v2017 = vunpack.c.l.b16 %v1985
      %v2018 = vunpack.c.l.b16 %v1986
      %v2019 = vunpack.c.l.b16 %v1987
      %v2020 = vunpack.c.l.b16 %v1988
      %v2021 = vunpack.c.l.b16 %v1989
      %v2022 = vunpack.c.l.b16 %v1990
      %v2023 = vunpack.c.l.b16 %v1991
      %v2024 = vunpack.c.l.b16 %v1992
      %v2025 = vunpack.c.l.b16 %v1993
      %v2026 = vunpack.c.l.b16 %v1994
      %v2027 = vunpack.c.l.b16 %v1995
      %v2028 = vunpack.c.l.b16 %v1996
      %v2029 = vunpack.c.l.b16 %v1997
      %v2030 = vunpack.c.l.b16 %v1998
      %v2031 = vpack.c.b16 %v2016, %v2015
      %v2032 = vpack.c.b16 %v2018, %v2017
      %v2033 = vpack.c.b16 %v2020, %v2019
      %v2034 = vpack.c.b16 %v2022, %v2021
      %v2035 = vpack.c.b16 %v2024, %v2023
      %v2036 = vpack.c.b16 %v2026, %v2025
      %v2037 = vpack.c.b16 %v2028, %v2027
      %v2038 = vpack.c.b16 %v2030, %v2029
      %2047 = vmatprep.subr.bf16.mxu0 0
      %2048 = vmatpush1.bf16.msra.mxu0 %v2038
      %2049 = vmatprep.subr.bf16.mxu0 0
      %2050 = vmatpush1.bf16.msra.mxu0 %v2037
      %2051 = vmatprep.subr.bf16.mxu0 0
      %2052 = vmatpush1.bf16.msra.mxu0 %v2036
      %2053 = vmatprep.subr.bf16.mxu0 0
      %2054 = vmatpush1.bf16.msra.mxu0 %v2035
      %2055 = vmatprep.subr.bf16.mxu0 0
      %2056 = vmatpush1.bf16.msra.mxu0 %v2034
      %2057 = vmatprep.subr.bf16.mxu0 0
      %2058 = vmatpush1.bf16.msra.mxu0 %v2033
      %2059 = vmatprep.subr.bf16.mxu0 0
      %2060 = vmatpush1.bf16.msra.mxu0 %v2032
      %2061 = vmatprep.subr.bf16.mxu0 0
      %2062 = vmatpush1.bf16.msra.mxu0 %v2031
      %2063 = vmatprep.subr.bf16.mxu0 0
      %2064 = vmatpush2.bf16.msra.mxu0 0
      %2065 = vmatprep.subr.bf16.mxu0 0
      %2066 = vmatpush2.bf16.msra.mxu0 0
      %2067 = vmatprep.subr.bf16.mxu0 0
      %2068 = vmatpush2.bf16.msra.mxu0 0
      %2069 = vmatprep.subr.bf16.mxu0 0
      %2070 = vmatpush2.bf16.msra.mxu0 0
      %2071 = vmatprep.subr.bf16.mxu0 0
      %2072 = vmatpush2.bf16.msra.mxu0 0
      %2073 = vmatprep.subr.bf16.mxu0 0
      %2074 = vmatpush2.bf16.msra.mxu0 0
      %2075 = vmatprep.subr.bf16.mxu0 0
      %2076 = vmatpush2.bf16.msra.mxu0 0
      %2077 = vmatprep.subr.bf16.mxu0 0
      %2078 = vmatpush2.bf16.msra.mxu0 0
      %2079 = vmatprep.mubr.bf16.mxu0 0
      %2080 = vmatmul.mubr.bf16.gmra.mxu0 %v1643
      %v2081 = vpop.f32.mrf.mxu0
      %v2082 = vadd.f32 0.0, %v2081
      %v2083 = vpop.f32.mrf.mxu0
      %v2084 = vpop.f32.mrf.mxu0
      %v2085 = vadd.f32 0.0, %v2084
      %v2086 = vpop.f32.mrf.mxu0
      %2087 = vmatprep.mubr.bf16.mxu0 0
      %2088 = vmatmul.mubr.bf16.gmra.mxu0 %v1644
      %v2089 = vpop.f32.mrf.mxu0
      %v2090 = vadd.f32 0.0, %v2089
      %v2091 = vpop.f32.mrf.mxu0
      %v2092 = vpop.f32.mrf.mxu0
      %v2093 = vadd.f32 0.0, %v2092
      %v2094 = vpop.f32.mrf.mxu0
      %2095 = vmatprep.mubr.bf16.mxu0 0
      %2096 = vmatmul.mubr.bf16.gmra.mxu0 %v1645
      %v2097 = vpop.f32.mrf.mxu0
      %v2098 = vadd.f32 0.0, %v2097
      %v2099 = vpop.f32.mrf.mxu0
      %v2100 = vpop.f32.mrf.mxu0
      %v2101 = vadd.f32 0.0, %v2100
      %v2102 = vpop.f32.mrf.mxu0
      %2103 = vmatprep.mubr.bf16.mxu0 0
      %2104 = vmatmul.mubr.bf16.gmra.mxu0 %v1646
      %v2105 = vpop.f32.mrf.mxu0
      %v2106 = vadd.f32 0.0, %v2105
      %v2107 = vpop.f32.mrf.mxu0
      %v2108 = vpop.f32.mrf.mxu0
      %v2109 = vadd.f32 0.0, %v2108
      %v2110 = vpop.f32.mrf.mxu0
      %2111 = vmatprep.mubr.bf16.mxu0 0
      %2112 = vmatmul.mubr.bf16.gmra.mxu0 %v1647
      %v2113 = vpop.f32.mrf.mxu0
      %v2114 = vadd.f32 0.0, %v2113
      %v2115 = vpop.f32.mrf.mxu0
      %v2116 = vpop.f32.mrf.mxu0
      %v2117 = vadd.f32 0.0, %v2116
      %v2118 = vpop.f32.mrf.mxu0
      %2119 = vmatprep.mubr.bf16.mxu0 0
      %2120 = vmatmul.mubr.bf16.gmra.mxu0 %v1648
      %v2121 = vpop.f32.mrf.mxu0
      %v2122 = vadd.f32 0.0, %v2121
      %v2123 = vpop.f32.mrf.mxu0
      %v2124 = vpop.f32.mrf.mxu0
      %v2125 = vadd.f32 0.0, %v2124
      %v2126 = vpop.f32.mrf.mxu0
      %2127 = vmatprep.mubr.bf16.mxu0 0
      %2128 = vmatmul.mubr.bf16.gmra.mxu0 %v1649
      %v2129 = vpop.f32.mrf.mxu0
      %v2130 = vadd.f32 0.0, %v2129
      %v2131 = vpop.f32.mrf.mxu0
      %v2132 = vpop.f32.mrf.mxu0
      %v2133 = vadd.f32 0.0, %v2132
      %v2134 = vpop.f32.mrf.mxu0
      %2135 = vmatprep.mubr.bf16.mxu0 0
      %2136 = vmatmul.mubr.bf16.gmra.mxu0 %v1650
      %v2137 = vpop.f32.mrf.mxu0
      %v2138 = vadd.f32 0.0, %v2137
      %v2139 = vpop.f32.mrf.mxu0
      %v2140 = vpop.f32.mrf.mxu0
      %v2141 = vadd.f32 0.0, %v2140
      %v2142 = vpop.f32.mrf.mxu0
      %2143 = vdwg.mxu0
      %v2144 = vadd.f32 %v1368, %v1920
      %v2145 = vadd.f32 %v1371, %v1923
      %v2146 = vadd.f32 %v1376, %v1928
      %v2147 = vadd.f32 %v1379, %v1931
      %v2148 = vadd.f32 %v1384, %v1936
      %v2149 = vadd.f32 %v1387, %v1939
      %v2150 = vadd.f32 %v1392, %v1944
      %v2151 = vadd.f32 %v1395, %v1947
      %v2152 = vadd.f32 %v1400, %v1952
      %v2153 = vadd.f32 %v1403, %v1955
      %v2154 = vadd.f32 %v1408, %v1960
      %v2155 = vadd.f32 %v1411, %v1963
      %v2156 = vadd.f32 %v1416, %v1968
      %v2157 = vadd.f32 %v1419, %v1971
      %v2158 = vadd.f32 %v1424, %v1976
      %v2159 = vadd.f32 %v1427, %v1979
      %v2160 = vadd.f32 %v1513, %v2082
      %v2161 = vadd.f32 %v1516, %v2085
      %v2162 = vadd.f32 %v1521, %v2090
      %v2163 = vadd.f32 %v1524, %v2093
      %v2164 = vadd.f32 %v1529, %v2098
      %v2165 = vadd.f32 %v1532, %v2101
      %v2166 = vadd.f32 %v1537, %v2106
      %v2167 = vadd.f32 %v1540, %v2109
      %v2168 = vadd.f32 %v1545, %v2114
      %v2169 = vadd.f32 %v1548, %v2117
      %v2170 = vadd.f32 %v1553, %v2122
      %v2171 = vadd.f32 %v1556, %v2125
      %v2172 = vadd.f32 %v1561, %v2130
      %v2173 = vadd.f32 %v1564, %v2133
      %v2174 = vadd.f32 %v1569, %v2138
      %v2175 = vadd.f32 %v1572, %v2141
      %s2176 = smul.addr %s470, 4
      %s2177 = scalar_lea.vmem [#allocation2], %s2176
      %v2178 = vld [vmem:[%s2177] sm:$0xf]
      %v2179 = vld [vmem:[%s2177 + $0x4] sm:$0xf]
      %v2180 = vld [vmem:[%s2177 + $0x8] sm:$0xf]
      %v2181 = vld [vmem:[%s2177 + $0xc] sm:$0xf]
      %v2182 = vld [vmem:[%s2177 + $0x10] sm:$0xf]
      %v2183 = vld [vmem:[%s2177 + $0x14] sm:$0xf]
      %v2184 = vld [vmem:[%s2177 + $0x18] sm:$0xf]
      %v2185 = vld [vmem:[%s2177 + $0x1c] sm:$0xf]
      %v2186 = vld [vmem:[%s2177 + $0x20] sm:$0xf]
      %v2187 = vld [vmem:[%s2177 + $0x24] sm:$0xf]
      %v2188 = vld [vmem:[%s2177 + $0x28] sm:$0xf]
      %v2189 = vld [vmem:[%s2177 + $0x2c] sm:$0xf]
      %v2190 = vld [vmem:[%s2177 + $0x30] sm:$0xf]
      %v2191 = vld [vmem:[%s2177 + $0x34] sm:$0xf]
      %v2192 = vld [vmem:[%s2177 + $0x38] sm:$0xf]
      %v2193 = vld [vmem:[%s2177 + $0x3c] sm:$0xf]
      %s2194 = scalar_lea.vmem %s3, 64
      %v2195 = vld [vmem:[%s2194] sm:$0xf]
      %v2196 = vld [vmem:[%s2194 + $0x4] sm:$0xf]
      %v2197 = vld [vmem:[%s2194 + $0x8] sm:$0xf]
      %v2198 = vld [vmem:[%s2194 + $0xc] sm:$0xf]
      %v2199 = vld [vmem:[%s2194 + $0x10] sm:$0xf]
      %v2200 = vld [vmem:[%s2194 + $0x14] sm:$0xf]
      %v2201 = vld [vmem:[%s2194 + $0x18] sm:$0xf]
      %v2202 = vld [vmem:[%s2194 + $0x1c] sm:$0xf]
      %v2203 = vld [vmem:[%s2194 + $0x20] sm:$0xf]
      %v2204 = vld [vmem:[%s2194 + $0x24] sm:$0xf]
      %v2205 = vld [vmem:[%s2194 + $0x28] sm:$0xf]
      %v2206 = vld [vmem:[%s2194 + $0x2c] sm:$0xf]
      %v2207 = vld [vmem:[%s2194 + $0x30] sm:$0xf]
      %v2208 = vld [vmem:[%s2194 + $0x34] sm:$0xf]
      %v2209 = vld [vmem:[%s2194 + $0x38] sm:$0xf]
      %v2210 = vld [vmem:[%s2194 + $0x3c] sm:$0xf]
      %v2227 = vunpack.c.l.b16 %v2178
      %v2228 = vunpack.c.l.b16 %v2179
      %v2229 = vunpack.c.l.b16 %v2180
      %v2230 = vunpack.c.l.b16 %v2181
      %v2231 = vunpack.c.l.b16 %v2182
      %v2232 = vunpack.c.l.b16 %v2183
      %v2233 = vunpack.c.l.b16 %v2184
      %v2234 = vunpack.c.l.b16 %v2185
      %v2235 = vunpack.c.l.b16 %v2186
      %v2236 = vunpack.c.l.b16 %v2187
      %v2237 = vunpack.c.l.b16 %v2188
      %v2238 = vunpack.c.l.b16 %v2189
      %v2239 = vunpack.c.l.b16 %v2190
      %v2240 = vunpack.c.l.b16 %v2191
      %v2241 = vunpack.c.l.b16 %v2192
      %v2242 = vunpack.c.l.b16 %v2193
      %v2243 = vpack.c.b16 %v2228, %v2227
      %v2244 = vpack.c.b16 %v2230, %v2229
      %v2245 = vpack.c.b16 %v2232, %v2231
      %v2246 = vpack.c.b16 %v2234, %v2233
      %v2247 = vpack.c.b16 %v2236, %v2235
      %v2248 = vpack.c.b16 %v2238, %v2237
      %v2249 = vpack.c.b16 %v2240, %v2239
      %v2250 = vpack.c.b16 %v2242, %v2241
      %v2275 = vunpack.c.l.b16 %v2195
      %v2276 = vunpack.c.l.b16 %v2196
      %v2277 = vunpack.c.l.b16 %v2197
      %v2278 = vunpack.c.l.b16 %v2198
      %v2279 = vunpack.c.l.b16 %v2199
      %v2280 = vunpack.c.l.b16 %v2200
      %v2281 = vunpack.c.l.b16 %v2201
      %v2282 = vunpack.c.l.b16 %v2202
      %v2283 = vunpack.c.l.b16 %v2203
      %v2284 = vunpack.c.l.b16 %v2204
      %v2285 = vunpack.c.l.b16 %v2205
      %v2286 = vunpack.c.l.b16 %v2206
      %v2287 = vunpack.c.l.b16 %v2207
      %v2288 = vunpack.c.l.b16 %v2208
      %v2289 = vunpack.c.l.b16 %v2209
      %v2290 = vunpack.c.l.b16 %v2210
      %v2291 = vpack.c.b16 %v2276, %v2275
      %v2292 = vpack.c.b16 %v2278, %v2277
      %v2293 = vpack.c.b16 %v2280, %v2279
      %v2294 = vpack.c.b16 %v2282, %v2281
      %v2295 = vpack.c.b16 %v2284, %v2283
      %v2296 = vpack.c.b16 %v2286, %v2285
      %v2297 = vpack.c.b16 %v2288, %v2287
      %v2298 = vpack.c.b16 %v2290, %v2289
      %2307 = vmatprep.subr.bf16.mxu0 0
      %2308 = vmatpush1.bf16.msra.mxu0 %v2298
      %2309 = vmatprep.subr.bf16.mxu0 0
      %2310 = vmatpush1.bf16.msra.mxu0 %v2297
      %2311 = vmatprep.subr.bf16.mxu0 0
      %2312 = vmatpush1.bf16.msra.mxu0 %v2296
      %2313 = vmatprep.subr.bf16.mxu0 0
      %2314 = vmatpush1.bf16.msra.mxu0 %v2295
      %2315 = vmatprep.subr.bf16.mxu0 0
      %2316 = vmatpush1.bf16.msra.mxu0 %v2294
      %2317 = vmatprep.subr.bf16.mxu0 0
      %2318 = vmatpush1.bf16.msra.mxu0 %v2293
      %2319 = vmatprep.subr.bf16.mxu0 0
      %2320 = vmatpush1.bf16.msra.mxu0 %v2292
      %2321 = vmatprep.subr.bf16.mxu0 0
      %2322 = vmatpush1.bf16.msra.mxu0 %v2291
      %2323 = vmatprep.subr.bf16.mxu0 0
      %2324 = vmatpush2.bf16.msra.mxu0 0
      %2325 = vmatprep.subr.bf16.mxu0 0
      %2326 = vmatpush2.bf16.msra.mxu0 0
      %2327 = vmatprep.subr.bf16.mxu0 0
      %2328 = vmatpush2.bf16.msra.mxu0 0
      %2329 = vmatprep.subr.bf16.mxu0 0
      %2330 = vmatpush2.bf16.msra.mxu0 0
      %2331 = vmatprep.subr.bf16.mxu0 0
      %2332 = vmatpush2.bf16.msra.mxu0 0
      %2333 = vmatprep.subr.bf16.mxu0 0
      %2334 = vmatpush2.bf16.msra.mxu0 0
      %2335 = vmatprep.subr.bf16.mxu0 0
      %2336 = vmatpush2.bf16.msra.mxu0 0
      %2337 = vmatprep.subr.bf16.mxu0 0
      %2338 = vmatpush2.bf16.msra.mxu0 0
      %2339 = vmatprep.mubr.bf16.mxu0 0
      %2340 = vmatmul.mubr.bf16.gmra.mxu0 %v2243
      %v2341 = vpop.f32.mrf.mxu0
      %v2342 = vadd.f32 0.0, %v2341
      %v2343 = vpop.f32.mrf.mxu0
      %v2344 = vpop.f32.mrf.mxu0
      %v2345 = vadd.f32 0.0, %v2344
      %v2346 = vpop.f32.mrf.mxu0
      %2347 = vmatprep.mubr.bf16.mxu0 0
      %2348 = vmatmul.mubr.bf16.gmra.mxu0 %v2244
      %v2349 = vpop.f32.mrf.mxu0
      %v2350 = vadd.f32 0.0, %v2349
      %v2351 = vpop.f32.mrf.mxu0
      %v2352 = vpop.f32.mrf.mxu0
      %v2353 = vadd.f32 0.0, %v2352
      %v2354 = vpop.f32.mrf.mxu0
      %2355 = vmatprep.mubr.bf16.mxu0 0
      %2356 = vmatmul.mubr.bf16.gmra.mxu0 %v2245
      %v2357 = vpop.f32.mrf.mxu0
      %v2358 = vadd.f32 0.0, %v2357
      %v2359 = vpop.f32.mrf.mxu0
      %v2360 = vpop.f32.mrf.mxu0
      %v2361 = vadd.f32 0.0, %v2360
      %v2362 = vpop.f32.mrf.mxu0
      %2363 = vmatprep.mubr.bf16.mxu0 0
      %2364 = vmatmul.mubr.bf16.gmra.mxu0 %v2246
      %v2365 = vpop.f32.mrf.mxu0
      %v2366 = vadd.f32 0.0, %v2365
      %v2367 = vpop.f32.mrf.mxu0
      %v2368 = vpop.f32.mrf.mxu0
      %v2369 = vadd.f32 0.0, %v2368
      %v2370 = vpop.f32.mrf.mxu0
      %2371 = vmatprep.mubr.bf16.mxu0 0
      %2372 = vmatmul.mubr.bf16.gmra.mxu0 %v2247
      %v2373 = vpop.f32.mrf.mxu0
      %v2374 = vadd.f32 0.0, %v2373
      %v2375 = vpop.f32.mrf.mxu0
      %v2376 = vpop.f32.mrf.mxu0
      %v2377 = vadd.f32 0.0, %v2376
      %v2378 = vpop.f32.mrf.mxu0
      %2379 = vmatprep.mubr.bf16.mxu0 0
      %2380 = vmatmul.mubr.bf16.gmra.mxu0 %v2248
      %v2381 = vpop.f32.mrf.mxu0
      %v2382 = vadd.f32 0.0, %v2381
      %v2383 = vpop.f32.mrf.mxu0
      %v2384 = vpop.f32.mrf.mxu0
      %v2385 = vadd.f32 0.0, %v2384
      %v2386 = vpop.f32.mrf.mxu0
      %2387 = vmatprep.mubr.bf16.mxu0 0
      %2388 = vmatmul.mubr.bf16.gmra.mxu0 %v2249
      %v2389 = vpop.f32.mrf.mxu0
      %v2390 = vadd.f32 0.0, %v2389
      %v2391 = vpop.f32.mrf.mxu0
      %v2392 = vpop.f32.mrf.mxu0
      %v2393 = vadd.f32 0.0, %v2392
      %v2394 = vpop.f32.mrf.mxu0
      %2395 = vmatprep.mubr.bf16.mxu0 0
      %2396 = vmatmul.mubr.bf16.gmra.mxu0 %v2250
      %v2397 = vpop.f32.mrf.mxu0
      %v2398 = vadd.f32 0.0, %v2397
      %v2399 = vpop.f32.mrf.mxu0
      %v2400 = vpop.f32.mrf.mxu0
      %v2401 = vadd.f32 0.0, %v2400
      %v2402 = vpop.f32.mrf.mxu0
      %2403 = vdwg.mxu0
      %v2404 = vadd.f32 %v1804, %v2342
      %v2405 = vadd.f32 %v1805, %v2345
      %v2406 = vadd.f32 %v1806, %v2350
      %v2407 = vadd.f32 %v1807, %v2353
      %v2408 = vadd.f32 %v1808, %v2358
      %v2409 = vadd.f32 %v1809, %v2361
      %v2410 = vadd.f32 %v1810, %v2366
      %v2411 = vadd.f32 %v1811, %v2369
      %v2412 = vadd.f32 %v1812, %v2374
      %v2413 = vadd.f32 %v1813, %v2377
      %v2414 = vadd.f32 %v1814, %v2382
      %v2415 = vadd.f32 %v1815, %v2385
      %v2416 = vadd.f32 %v1816, %v2390
      %v2417 = vadd.f32 %v1817, %v2393
      %v2418 = vadd.f32 %v1818, %v2398
      %v2419 = vadd.f32 %v1819, %v2401
      %v2420 = vld [vmem:[%s3] sm:$0xf]
      %v2421 = vld [vmem:[%s3 + $0x4] sm:$0xf]
      %v2422 = vld [vmem:[%s3 + $0x8] sm:$0xf]
      %v2423 = vld [vmem:[%s3 + $0xc] sm:$0xf]
      %v2424 = vld [vmem:[%s3 + $0x10] sm:$0xf]
      %v2425 = vld [vmem:[%s3 + $0x14] sm:$0xf]
      %v2426 = vld [vmem:[%s3 + $0x18] sm:$0xf]
      %v2427 = vld [vmem:[%s3 + $0x1c] sm:$0xf]
      %v2428 = vld [vmem:[%s3 + $0x20] sm:$0xf]
      %v2429 = vld [vmem:[%s3 + $0x24] sm:$0xf]
      %v2430 = vld [vmem:[%s3 + $0x28] sm:$0xf]
      %v2431 = vld [vmem:[%s3 + $0x2c] sm:$0xf]
      %v2432 = vld [vmem:[%s3 + $0x30] sm:$0xf]
      %v2433 = vld [vmem:[%s3 + $0x34] sm:$0xf]
      %v2434 = vld [vmem:[%s3 + $0x38] sm:$0xf]
      %v2435 = vld [vmem:[%s3 + $0x3c] sm:$0xf]
      %s2436 = scalar_lea.vmem %s3, 128
      %v2437 = vld [vmem:[%s2436] sm:$0xf]
      %v2438 = vld [vmem:[%s2436 + $0x4] sm:$0xf]
      %v2439 = vld [vmem:[%s2436 + $0x8] sm:$0xf]
      %v2440 = vld [vmem:[%s2436 + $0xc] sm:$0xf]
      %v2441 = vld [vmem:[%s2436 + $0x10] sm:$0xf]
      %v2442 = vld [vmem:[%s2436 + $0x14] sm:$0xf]
      %v2443 = vld [vmem:[%s2436 + $0x18] sm:$0xf]
      %v2444 = vld [vmem:[%s2436 + $0x1c] sm:$0xf]
      %v2445 = vld [vmem:[%s2436 + $0x20] sm:$0xf]
      %v2446 = vld [vmem:[%s2436 + $0x24] sm:$0xf]
      %v2447 = vld [vmem:[%s2436 + $0x28] sm:$0xf]
      %v2448 = vld [vmem:[%s2436 + $0x2c] sm:$0xf]
      %v2449 = vld [vmem:[%s2436 + $0x30] sm:$0xf]
      %v2450 = vld [vmem:[%s2436 + $0x34] sm:$0xf]
      %v2451 = vld [vmem:[%s2436 + $0x38] sm:$0xf]
      %v2452 = vld [vmem:[%s2436 + $0x3c] sm:$0xf]
      %s2453 = scalar_lea.vmem %s3, 192
      %v2454 = vld [vmem:[%s2453] sm:$0xf]
      %v2455 = vld [vmem:[%s2453 + $0x4] sm:$0xf]
      %v2456 = vld [vmem:[%s2453 + $0x8] sm:$0xf]
      %v2457 = vld [vmem:[%s2453 + $0xc] sm:$0xf]
      %v2458 = vld [vmem:[%s2453 + $0x10] sm:$0xf]
      %v2459 = vld [vmem:[%s2453 + $0x14] sm:$0xf]
      %v2460 = vld [vmem:[%s2453 + $0x18] sm:$0xf]
      %v2461 = vld [vmem:[%s2453 + $0x1c] sm:$0xf]
      %v2462 = vld [vmem:[%s2453 + $0x20] sm:$0xf]
      %v2463 = vld [vmem:[%s2453 + $0x24] sm:$0xf]
      %v2464 = vld [vmem:[%s2453 + $0x28] sm:$0xf]
      %v2465 = vld [vmem:[%s2453 + $0x2c] sm:$0xf]
      %v2466 = vld [vmem:[%s2453 + $0x30] sm:$0xf]
      %v2467 = vld [vmem:[%s2453 + $0x34] sm:$0xf]
      %v2468 = vld [vmem:[%s2453 + $0x38] sm:$0xf]
      %v2469 = vld [vmem:[%s2453 + $0x3c] sm:$0xf]
      %v2486 = vunpack.c.l.b16 %v2454
      %v2487 = vunpack.c.l.b16 %v2455
      %v2488 = vunpack.c.l.b16 %v2456
      %v2489 = vunpack.c.l.b16 %v2457
      %v2490 = vunpack.c.l.b16 %v2458
      %v2491 = vunpack.c.l.b16 %v2459
      %v2492 = vunpack.c.l.b16 %v2460
      %v2493 = vunpack.c.l.b16 %v2461
      %v2494 = vunpack.c.l.b16 %v2462
      %v2495 = vunpack.c.l.b16 %v2463
      %v2496 = vunpack.c.l.b16 %v2464
      %v2497 = vunpack.c.l.b16 %v2465
      %v2498 = vunpack.c.l.b16 %v2466
      %v2499 = vunpack.c.l.b16 %v2467
      %v2500 = vunpack.c.l.b16 %v2468
      %v2501 = vunpack.c.l.b16 %v2469
      %v2502 = vpack.c.b16 %v2487, %v2486
      %v2503 = vpack.c.b16 %v2489, %v2488
      %v2504 = vpack.c.b16 %v2491, %v2490
      %v2505 = vpack.c.b16 %v2493, %v2492
      %v2506 = vpack.c.b16 %v2495, %v2494
      %v2507 = vpack.c.b16 %v2497, %v2496
      %v2508 = vpack.c.b16 %v2499, %v2498
      %v2509 = vpack.c.b16 %v2501, %v2500
      %2518 = vmatprep.subr.bf16.mxu0 0
      %2519 = vmatpush1.bf16.msra.mxu0 %v2509
      %2520 = vmatprep.subr.bf16.mxu0 0
      %2521 = vmatpush1.bf16.msra.mxu0 %v2508
      %2522 = vmatprep.subr.bf16.mxu0 0
      %2523 = vmatpush1.bf16.msra.mxu0 %v2507
      %2524 = vmatprep.subr.bf16.mxu0 0
      %2525 = vmatpush1.bf16.msra.mxu0 %v2506
      %2526 = vmatprep.subr.bf16.mxu0 0
      %2527 = vmatpush1.bf16.msra.mxu0 %v2505
      %2528 = vmatprep.subr.bf16.mxu0 0
      %2529 = vmatpush1.bf16.msra.mxu0 %v2504
      %2530 = vmatprep.subr.bf16.mxu0 0
      %2531 = vmatpush1.bf16.msra.mxu0 %v2503
      %2532 = vmatprep.subr.bf16.mxu0 0
      %2533 = vmatpush1.bf16.msra.mxu0 %v2502
      %2534 = vmatprep.subr.bf16.mxu0 0
      %2535 = vmatpush2.bf16.msra.mxu0 0
      %2536 = vmatprep.subr.bf16.mxu0 0
      %2537 = vmatpush2.bf16.msra.mxu0 0
      %2538 = vmatprep.subr.bf16.mxu0 0
      %2539 = vmatpush2.bf16.msra.mxu0 0
      %2540 = vmatprep.subr.bf16.mxu0 0
      %2541 = vmatpush2.bf16.msra.mxu0 0
      %2542 = vmatprep.subr.bf16.mxu0 0
      %2543 = vmatpush2.bf16.msra.mxu0 0
      %2544 = vmatprep.subr.bf16.mxu0 0
      %2545 = vmatpush2.bf16.msra.mxu0 0
      %2546 = vmatprep.subr.bf16.mxu0 0
      %2547 = vmatpush2.bf16.msra.mxu0 0
      %2548 = vmatprep.subr.bf16.mxu0 0
      %2549 = vmatpush2.bf16.msra.mxu0 0
      %2550 = vmatprep.mubr.bf16.mxu0 0
      %2551 = vmatmul.mubr.bf16.gmra.mxu0 %v767
      %v2552 = vpop.f32.mrf.mxu0
      %v2553 = vadd.f32 0.0, %v2552
      %v2554 = vpop.f32.mrf.mxu0
      %v2555 = vpop.f32.mrf.mxu0
      %v2556 = vpop.f32.mrf.mxu0
      %2557 = vmatprep.mubr.bf16.mxu0 0
      %2558 = vmatmul.mubr.bf16.gmra.mxu0 %v768
      %v2559 = vpop.f32.mrf.mxu0
      %v2560 = vadd.f32 0.0, %v2559
      %v2561 = vpop.f32.mrf.mxu0
      %v2562 = vpop.f32.mrf.mxu0
      %v2563 = vpop.f32.mrf.mxu0
      %2564 = vmatprep.mubr.bf16.mxu0 0
      %2565 = vmatmul.mubr.bf16.gmra.mxu0 %v769
      %v2566 = vpop.f32.mrf.mxu0
      %v2567 = vadd.f32 0.0, %v2566
      %v2568 = vpop.f32.mrf.mxu0
      %v2569 = vpop.f32.mrf.mxu0
      %v2570 = vpop.f32.mrf.mxu0
      %2571 = vmatprep.mubr.bf16.mxu0 0
      %2572 = vmatmul.mubr.bf16.gmra.mxu0 %v770
      %v2573 = vpop.f32.mrf.mxu0
      %v2574 = vadd.f32 0.0, %v2573
      %v2575 = vpop.f32.mrf.mxu0
      %v2576 = vpop.f32.mrf.mxu0
      %v2577 = vpop.f32.mrf.mxu0
      %2578 = vmatprep.mubr.bf16.mxu0 0
      %2579 = vmatmul.mubr.bf16.gmra.mxu0 %v771
      %v2580 = vpop.f32.mrf.mxu0
      %v2581 = vadd.f32 0.0, %v2580
      %v2582 = vpop.f32.mrf.mxu0
      %v2583 = vpop.f32.mrf.mxu0
      %v2584 = vpop.f32.mrf.mxu0
      %2585 = vmatprep.mubr.bf16.mxu0 0
      %2586 = vmatmul.mubr.bf16.gmra.mxu0 %v772
      %v2587 = vpop.f32.mrf.mxu0
      %v2588 = vadd.f32 0.0, %v2587
      %v2589 = vpop.f32.mrf.mxu0
      %v2590 = vpop.f32.mrf.mxu0
      %v2591 = vpop.f32.mrf.mxu0
      %2592 = vmatprep.mubr.bf16.mxu0 0
      %2593 = vmatmul.mubr.bf16.gmra.mxu0 %v773
      %v2594 = vpop.f32.mrf.mxu0
      %v2595 = vadd.f32 0.0, %v2594
      %v2596 = vpop.f32.mrf.mxu0
      %v2597 = vpop.f32.mrf.mxu0
      %v2598 = vpop.f32.mrf.mxu0
      %2599 = vmatprep.mubr.bf16.mxu0 0
      %2600 = vmatmul.mubr.bf16.gmra.mxu0 %v774
      %v2601 = vpop.f32.mrf.mxu0
      %v2602 = vadd.f32 0.0, %v2601
      %v2603 = vpop.f32.mrf.mxu0
      %v2604 = vpop.f32.mrf.mxu0
      %v2605 = vpop.f32.mrf.mxu0
      %2606 = vdwg.mxu0
      %s2607 = scalar_lea.vmem %s3, 320
      %v2608 = vld [vmem:[%s2607] sm:$0xf]
      %v2609 = vld [vmem:[%s2607 + $0x4] sm:$0xf]
      %v2610 = vld [vmem:[%s2607 + $0x8] sm:$0xf]
      %v2611 = vld [vmem:[%s2607 + $0xc] sm:$0xf]
      %v2612 = vld [vmem:[%s2607 + $0x10] sm:$0xf]
      %v2613 = vld [vmem:[%s2607 + $0x14] sm:$0xf]
      %v2614 = vld [vmem:[%s2607 + $0x18] sm:$0xf]
      %v2615 = vld [vmem:[%s2607 + $0x1c] sm:$0xf]
      %v2616 = vld [vmem:[%s2607 + $0x20] sm:$0xf]
      %v2617 = vld [vmem:[%s2607 + $0x24] sm:$0xf]
      %v2618 = vld [vmem:[%s2607 + $0x28] sm:$0xf]
      %v2619 = vld [vmem:[%s2607 + $0x2c] sm:$0xf]
      %v2620 = vld [vmem:[%s2607 + $0x30] sm:$0xf]
      %v2621 = vld [vmem:[%s2607 + $0x34] sm:$0xf]
      %v2622 = vld [vmem:[%s2607 + $0x38] sm:$0xf]
      %v2623 = vld [vmem:[%s2607 + $0x3c] sm:$0xf]
      %v2640 = vunpack.c.l.b16 %v2608
      %v2641 = vunpack.c.l.b16 %v2609
      %v2642 = vunpack.c.l.b16 %v2610
      %v2643 = vunpack.c.l.b16 %v2611
      %v2644 = vunpack.c.l.b16 %v2612
      %v2645 = vunpack.c.l.b16 %v2613
      %v2646 = vunpack.c.l.b16 %v2614
      %v2647 = vunpack.c.l.b16 %v2615
      %v2648 = vunpack.c.l.b16 %v2616
      %v2649 = vunpack.c.l.b16 %v2617
      %v2650 = vunpack.c.l.b16 %v2618
      %v2651 = vunpack.c.l.b16 %v2619
      %v2652 = vunpack.c.l.b16 %v2620
      %v2653 = vunpack.c.l.b16 %v2621
      %v2654 = vunpack.c.l.b16 %v2622
      %v2655 = vunpack.c.l.b16 %v2623
      %v2656 = vpack.c.b16 %v2641, %v2640
      %v2657 = vpack.c.b16 %v2643, %v2642
      %v2658 = vpack.c.b16 %v2645, %v2644
      %v2659 = vpack.c.b16 %v2647, %v2646
      %v2660 = vpack.c.b16 %v2649, %v2648
      %v2661 = vpack.c.b16 %v2651, %v2650
      %v2662 = vpack.c.b16 %v2653, %v2652
      %v2663 = vpack.c.b16 %v2655, %v2654
      %2672 = vmatprep.subr.bf16.mxu0 0
      %2673 = vmatpush1.bf16.msra.mxu0 %v2663
      %2674 = vmatprep.subr.bf16.mxu0 0
      %2675 = vmatpush1.bf16.msra.mxu0 %v2662
      %2676 = vmatprep.subr.bf16.mxu0 0
      %2677 = vmatpush1.bf16.msra.mxu0 %v2661
      %2678 = vmatprep.subr.bf16.mxu0 0
      %2679 = vmatpush1.bf16.msra.mxu0 %v2660
      %2680 = vmatprep.subr.bf16.mxu0 0
      %2681 = vmatpush1.bf16.msra.mxu0 %v2659
      %2682 = vmatprep.subr.bf16.mxu0 0
      %2683 = vmatpush1.bf16.msra.mxu0 %v2658
      %2684 = vmatprep.subr.bf16.mxu0 0
      %2685 = vmatpush1.bf16.msra.mxu0 %v2657
      %2686 = vmatprep.subr.bf16.mxu0 0
      %2687 = vmatpush1.bf16.msra.mxu0 %v2656
      %2688 = vmatprep.subr.bf16.mxu0 0
      %2689 = vmatpush2.bf16.msra.mxu0 0
      %2690 = vmatprep.subr.bf16.mxu0 0
      %2691 = vmatpush2.bf16.msra.mxu0 0
      %2692 = vmatprep.subr.bf16.mxu0 0
      %2693 = vmatpush2.bf16.msra.mxu0 0
      %2694 = vmatprep.subr.bf16.mxu0 0
      %2695 = vmatpush2.bf16.msra.mxu0 0
      %2696 = vmatprep.subr.bf16.mxu0 0
      %2697 = vmatpush2.bf16.msra.mxu0 0
      %2698 = vmatprep.subr.bf16.mxu0 0
      %2699 = vmatpush2.bf16.msra.mxu0 0
      %2700 = vmatprep.subr.bf16.mxu0 0
      %2701 = vmatpush2.bf16.msra.mxu0 0
      %2702 = vmatprep.subr.bf16.mxu0 0
      %2703 = vmatpush2.bf16.msra.mxu0 0
      %2704 = vmatprep.mubr.bf16.mxu0 0
      %2705 = vmatmul.mubr.bf16.gmra.mxu0 %v767
      %v2706 = vpop.f32.mrf.mxu0
      %v2707 = vpop.f32.mrf.mxu0
      %v2708 = vpop.f32.mrf.mxu0
      %v2709 = vadd.f32 0.0, %v2708
      %v2710 = vpop.f32.mrf.mxu0
      %2711 = vmatprep.mubr.bf16.mxu0 0
      %2712 = vmatmul.mubr.bf16.gmra.mxu0 %v768
      %v2713 = vpop.f32.mrf.mxu0
      %v2714 = vpop.f32.mrf.mxu0
      %v2715 = vpop.f32.mrf.mxu0
      %v2716 = vadd.f32 0.0, %v2715
      %v2717 = vpop.f32.mrf.mxu0
      %2718 = vmatprep.mubr.bf16.mxu0 0
      %2719 = vmatmul.mubr.bf16.gmra.mxu0 %v769
      %v2720 = vpop.f32.mrf.mxu0
      %v2721 = vpop.f32.mrf.mxu0
      %v2722 = vpop.f32.mrf.mxu0
      %v2723 = vadd.f32 0.0, %v2722
      %v2724 = vpop.f32.mrf.mxu0
      %2725 = vmatprep.mubr.bf16.mxu0 0
      %2726 = vmatmul.mubr.bf16.gmra.mxu0 %v770
      %v2727 = vpop.f32.mrf.mxu0
      %v2728 = vpop.f32.mrf.mxu0
      %v2729 = vpop.f32.mrf.mxu0
      %v2730 = vadd.f32 0.0, %v2729
      %v2731 = vpop.f32.mrf.mxu0
      %2732 = vmatprep.mubr.bf16.mxu0 0
      %2733 = vmatmul.mubr.bf16.gmra.mxu0 %v771
      %v2734 = vpop.f32.mrf.mxu0
      %v2735 = vpop.f32.mrf.mxu0
      %v2736 = vpop.f32.mrf.mxu0
      %v2737 = vadd.f32 0.0, %v2736
      %v2738 = vpop.f32.mrf.mxu0
      %2739 = vmatprep.mubr.bf16.mxu0 0
      %2740 = vmatmul.mubr.bf16.gmra.mxu0 %v772
      %v2741 = vpop.f32.mrf.mxu0
      %v2742 = vpop.f32.mrf.mxu0
      %v2743 = vpop.f32.mrf.mxu0
      %v2744 = vadd.f32 0.0, %v2743
      %v2745 = vpop.f32.mrf.mxu0
      %2746 = vmatprep.mubr.bf16.mxu0 0
      %2747 = vmatmul.mubr.bf16.gmra.mxu0 %v773
      %v2748 = vpop.f32.mrf.mxu0
      %v2749 = vpop.f32.mrf.mxu0
      %v2750 = vpop.f32.mrf.mxu0
      %v2751 = vadd.f32 0.0, %v2750
      %v2752 = vpop.f32.mrf.mxu0
      %2753 = vmatprep.mubr.bf16.mxu0 0
      %2754 = vmatmul.mubr.bf16.gmra.mxu0 %v774
      %v2755 = vpop.f32.mrf.mxu0
      %v2756 = vpop.f32.mrf.mxu0
      %v2757 = vpop.f32.mrf.mxu0
      %v2758 = vadd.f32 0.0, %v2757
      %v2759 = vpop.f32.mrf.mxu0
      %2760 = vdwg.mxu0
      %v2777 = vunpack.c.l.b16 %v2420
      %v2778 = vunpack.c.l.b16 %v2421
      %v2779 = vunpack.c.l.b16 %v2422
      %v2780 = vunpack.c.l.b16 %v2423
      %v2781 = vunpack.c.l.b16 %v2424
      %v2782 = vunpack.c.l.b16 %v2425
      %v2783 = vunpack.c.l.b16 %v2426
      %v2784 = vunpack.c.l.b16 %v2427
      %v2785 = vunpack.c.l.b16 %v2428
      %v2786 = vunpack.c.l.b16 %v2429
      %v2787 = vunpack.c.l.b16 %v2430
      %v2788 = vunpack.c.l.b16 %v2431
      %v2789 = vunpack.c.l.b16 %v2432
      %v2790 = vunpack.c.l.b16 %v2433
      %v2791 = vunpack.c.l.b16 %v2434
      %v2792 = vunpack.c.l.b16 %v2435
      %v2793 = vpack.c.b16 %v2778, %v2777
      %v2794 = vpack.c.b16 %v2780, %v2779
      %v2795 = vpack.c.b16 %v2782, %v2781
      %v2796 = vpack.c.b16 %v2784, %v2783
      %v2797 = vpack.c.b16 %v2786, %v2785
      %v2798 = vpack.c.b16 %v2788, %v2787
      %v2799 = vpack.c.b16 %v2790, %v2789
      %v2800 = vpack.c.b16 %v2792, %v2791
      %2809 = vmatprep.subr.bf16.mxu0 0
      %2810 = vmatpush1.bf16.msra.mxu0 %v2800
      %2811 = vmatprep.subr.bf16.mxu0 0
      %2812 = vmatpush1.bf16.msra.mxu0 %v2799
      %2813 = vmatprep.subr.bf16.mxu0 0
      %2814 = vmatpush1.bf16.msra.mxu0 %v2798
      %2815 = vmatprep.subr.bf16.mxu0 0
      %2816 = vmatpush1.bf16.msra.mxu0 %v2797
      %2817 = vmatprep.subr.bf16.mxu0 0
      %2818 = vmatpush1.bf16.msra.mxu0 %v2796
      %2819 = vmatprep.subr.bf16.mxu0 0
      %2820 = vmatpush1.bf16.msra.mxu0 %v2795
      %2821 = vmatprep.subr.bf16.mxu0 0
      %2822 = vmatpush1.bf16.msra.mxu0 %v2794
      %2823 = vmatprep.subr.bf16.mxu0 0
      %2824 = vmatpush1.bf16.msra.mxu0 %v2793
      %2825 = vmatprep.subr.bf16.mxu0 0
      %2826 = vmatpush2.bf16.msra.mxu0 0
      %2827 = vmatprep.subr.bf16.mxu0 0
      %2828 = vmatpush2.bf16.msra.mxu0 0
      %2829 = vmatprep.subr.bf16.mxu0 0
      %2830 = vmatpush2.bf16.msra.mxu0 0
      %2831 = vmatprep.subr.bf16.mxu0 0
      %2832 = vmatpush2.bf16.msra.mxu0 0
      %2833 = vmatprep.subr.bf16.mxu0 0
      %2834 = vmatpush2.bf16.msra.mxu0 0
      %2835 = vmatprep.subr.bf16.mxu0 0
      %2836 = vmatpush2.bf16.msra.mxu0 0
      %2837 = vmatprep.subr.bf16.mxu0 0
      %2838 = vmatpush2.bf16.msra.mxu0 0
      %2839 = vmatprep.subr.bf16.mxu0 0
      %2840 = vmatpush2.bf16.msra.mxu0 0
      %2841 = vmatprep.mubr.bf16.mxu0 0
      %2842 = vmatmul.mubr.bf16.gmra.mxu0 %v2243
      %v2843 = vpop.f32.mrf.mxu0
      %v2844 = vadd.f32 %v2553, %v2843
      %v2845 = vpop.f32.mrf.mxu0
      %v2846 = vpop.f32.mrf.mxu0
      %v2847 = vpop.f32.mrf.mxu0
      %2848 = vmatprep.mubr.bf16.mxu0 0
      %2849 = vmatmul.mubr.bf16.gmra.mxu0 %v2244
      %v2850 = vpop.f32.mrf.mxu0
      %v2851 = vadd.f32 %v2560, %v2850
      %v2852 = vpop.f32.mrf.mxu0
      %v2853 = vpop.f32.mrf.mxu0
      %v2854 = vpop.f32.mrf.mxu0
      %2855 = vmatprep.mubr.bf16.mxu0 0
      %2856 = vmatmul.mubr.bf16.gmra.mxu0 %v2245
      %v2857 = vpop.f32.mrf.mxu0
      %v2858 = vadd.f32 %v2567, %v2857
      %v2859 = vpop.f32.mrf.mxu0
      %v2860 = vpop.f32.mrf.mxu0
      %v2861 = vpop.f32.mrf.mxu0
      %2862 = vmatprep.mubr.bf16.mxu0 0
      %2863 = vmatmul.mubr.bf16.gmra.mxu0 %v2246
      %v2864 = vpop.f32.mrf.mxu0
      %v2865 = vadd.f32 %v2574, %v2864
      %v2866 = vpop.f32.mrf.mxu0
      %v2867 = vpop.f32.mrf.mxu0
      %v2868 = vpop.f32.mrf.mxu0
      %2869 = vmatprep.mubr.bf16.mxu0 0
      %2870 = vmatmul.mubr.bf16.gmra.mxu0 %v2247
      %v2871 = vpop.f32.mrf.mxu0
      %v2872 = vadd.f32 %v2581, %v2871
      %v2873 = vpop.f32.mrf.mxu0
      %v2874 = vpop.f32.mrf.mxu0
      %v2875 = vpop.f32.mrf.mxu0
      %2876 = vmatprep.mubr.bf16.mxu0 0
      %2877 = vmatmul.mubr.bf16.gmra.mxu0 %v2248
      %v2878 = vpop.f32.mrf.mxu0
      %v2879 = vadd.f32 %v2588, %v2878
      %v2880 = vpop.f32.mrf.mxu0
      %v2881 = vpop.f32.mrf.mxu0
      %v2882 = vpop.f32.mrf.mxu0
      %2883 = vmatprep.mubr.bf16.mxu0 0
      %2884 = vmatmul.mubr.bf16.gmra.mxu0 %v2249
      %v2885 = vpop.f32.mrf.mxu0
      %v2886 = vadd.f32 %v2595, %v2885
      %v2887 = vpop.f32.mrf.mxu0
      %v2888 = vpop.f32.mrf.mxu0
      %v2889 = vpop.f32.mrf.mxu0
      %2890 = vmatprep.mubr.bf16.mxu0 0
      %2891 = vmatmul.mubr.bf16.gmra.mxu0 %v2250
      %v2892 = vpop.f32.mrf.mxu0
      %v2893 = vadd.f32 %v2602, %v2892
      %v2894 = vpop.f32.mrf.mxu0
      %v2895 = vpop.f32.mrf.mxu0
      %v2896 = vpop.f32.mrf.mxu0
      %2897 = vdwg.mxu0
      %v2914 = vunpack.c.l.b16 %v2437
      %v2915 = vunpack.c.l.b16 %v2438
      %v2916 = vunpack.c.l.b16 %v2439
      %v2917 = vunpack.c.l.b16 %v2440
      %v2918 = vunpack.c.l.b16 %v2441
      %v2919 = vunpack.c.l.b16 %v2442
      %v2920 = vunpack.c.l.b16 %v2443
      %v2921 = vunpack.c.l.b16 %v2444
      %v2922 = vunpack.c.l.b16 %v2445
      %v2923 = vunpack.c.l.b16 %v2446
      %v2924 = vunpack.c.l.b16 %v2447
      %v2925 = vunpack.c.l.b16 %v2448
      %v2926 = vunpack.c.l.b16 %v2449
      %v2927 = vunpack.c.l.b16 %v2450
      %v2928 = vunpack.c.l.b16 %v2451
      %v2929 = vunpack.c.l.b16 %v2452
      %v2930 = vpack.c.b16 %v2915, %v2914
      %v2931 = vpack.c.b16 %v2917, %v2916
      %v2932 = vpack.c.b16 %v2919, %v2918
      %v2933 = vpack.c.b16 %v2921, %v2920
      %v2934 = vpack.c.b16 %v2923, %v2922
      %v2935 = vpack.c.b16 %v2925, %v2924
      %v2936 = vpack.c.b16 %v2927, %v2926
      %v2937 = vpack.c.b16 %v2929, %v2928
      %2946 = vmatprep.subr.bf16.mxu0 0
      %2947 = vmatpush1.bf16.msra.mxu0 %v2937
      %2948 = vmatprep.subr.bf16.mxu0 0
      %2949 = vmatpush1.bf16.msra.mxu0 %v2936
      %2950 = vmatprep.subr.bf16.mxu0 0
      %2951 = vmatpush1.bf16.msra.mxu0 %v2935
      %2952 = vmatprep.subr.bf16.mxu0 0
      %2953 = vmatpush1.bf16.msra.mxu0 %v2934
      %2954 = vmatprep.subr.bf16.mxu0 0
      %2955 = vmatpush1.bf16.msra.mxu0 %v2933
      %2956 = vmatprep.subr.bf16.mxu0 0
      %2957 = vmatpush1.bf16.msra.mxu0 %v2932
      %2958 = vmatprep.subr.bf16.mxu0 0
      %2959 = vmatpush1.bf16.msra.mxu0 %v2931
      %2960 = vmatprep.subr.bf16.mxu0 0
      %2961 = vmatpush1.bf16.msra.mxu0 %v2930
      %2962 = vmatprep.subr.bf16.mxu0 0
      %2963 = vmatpush2.bf16.msra.mxu0 0
      %2964 = vmatprep.subr.bf16.mxu0 0
      %2965 = vmatpush2.bf16.msra.mxu0 0
      %2966 = vmatprep.subr.bf16.mxu0 0
      %2967 = vmatpush2.bf16.msra.mxu0 0
      %2968 = vmatprep.subr.bf16.mxu0 0
      %2969 = vmatpush2.bf16.msra.mxu0 0
      %2970 = vmatprep.subr.bf16.mxu0 0
      %2971 = vmatpush2.bf16.msra.mxu0 0
      %2972 = vmatprep.subr.bf16.mxu0 0
      %2973 = vmatpush2.bf16.msra.mxu0 0
      %2974 = vmatprep.subr.bf16.mxu0 0
      %2975 = vmatpush2.bf16.msra.mxu0 0
      %2976 = vmatprep.subr.bf16.mxu0 0
      %2977 = vmatpush2.bf16.msra.mxu0 0
      %2978 = vmatprep.mubr.bf16.mxu0 0
      %2979 = vmatmul.mubr.bf16.gmra.mxu0 %v2243
      %v2980 = vpop.f32.mrf.mxu0
      %v2981 = vpop.f32.mrf.mxu0
      %v2982 = vpop.f32.mrf.mxu0
      %v2983 = vadd.f32 %v2709, %v2982
      %v2984 = vpop.f32.mrf.mxu0
      %2985 = vmatprep.mubr.bf16.mxu0 0
      %2986 = vmatmul.mubr.bf16.gmra.mxu0 %v2244
      %v2987 = vpop.f32.mrf.mxu0
      %v2988 = vpop.f32.mrf.mxu0
      %v2989 = vpop.f32.mrf.mxu0
      %v2990 = vadd.f32 %v2716, %v2989
      %v2991 = vpop.f32.mrf.mxu0
      %2992 = vmatprep.mubr.bf16.mxu0 0
      %2993 = vmatmul.mubr.bf16.gmra.mxu0 %v2245
      %v2994 = vpop.f32.mrf.mxu0
      %v2995 = vpop.f32.mrf.mxu0
      %v2996 = vpop.f32.mrf.mxu0
      %v2997 = vadd.f32 %v2723, %v2996
      %v2998 = vpop.f32.mrf.mxu0
      %2999 = vmatprep.mubr.bf16.mxu0 0
      %3000 = vmatmul.mubr.bf16.gmra.mxu0 %v2246
      %v3001 = vpop.f32.mrf.mxu0
      %v3002 = vpop.f32.mrf.mxu0
      %v3003 = vpop.f32.mrf.mxu0
      %v3004 = vadd.f32 %v2730, %v3003
      %v3005 = vpop.f32.mrf.mxu0
      %3006 = vmatprep.mubr.bf16.mxu0 0
      %3007 = vmatmul.mubr.bf16.gmra.mxu0 %v2247
      %v3008 = vpop.f32.mrf.mxu0
      %v3009 = vpop.f32.mrf.mxu0
      %v3010 = vpop.f32.mrf.mxu0
      %v3011 = vadd.f32 %v2737, %v3010
      %v3012 = vpop.f32.mrf.mxu0
      %3013 = vmatprep.mubr.bf16.mxu0 0
      %3014 = vmatmul.mubr.bf16.gmra.mxu0 %v2248
      %v3015 = vpop.f32.mrf.mxu0
      %v3016 = vpop.f32.mrf.mxu0
      %v3017 = vpop.f32.mrf.mxu0
      %v3018 = vadd.f32 %v2744, %v3017
      %v3019 = vpop.f32.mrf.mxu0
      %3020 = vmatprep.mubr.bf16.mxu0 0
      %3021 = vmatmul.mubr.bf16.gmra.mxu0 %v2249
      %v3022 = vpop.f32.mrf.mxu0
      %v3023 = vpop.f32.mrf.mxu0
      %v3024 = vpop.f32.mrf.mxu0
      %v3025 = vadd.f32 %v2751, %v3024
      %v3026 = vpop.f32.mrf.mxu0
      %3027 = vmatprep.mubr.bf16.mxu0 0
      %3028 = vmatmul.mubr.bf16.gmra.mxu0 %v2250
      %v3029 = vpop.f32.mrf.mxu0
      %v3030 = vpop.f32.mrf.mxu0
      %v3031 = vpop.f32.mrf.mxu0
      %v3032 = vadd.f32 %v2758, %v3031
      %v3033 = vpop.f32.mrf.mxu0
      %3034 = vdwg.mxu0
      %s3035 = sadd.s32 48, %s470
      %s3036 = smul.addr %s3035, 4
      %s3037 = scalar_lea.vmem [#allocation2], %s3036
      %v3038 = vld [vmem:[%s3037] sm:$0xf]
      %v3039 = vld [vmem:[%s3037 + $0x4] sm:$0xf]
      %v3040 = vld [vmem:[%s3037 + $0x8] sm:$0xf]
      %v3041 = vld [vmem:[%s3037 + $0xc] sm:$0xf]
      %v3042 = vld [vmem:[%s3037 + $0x10] sm:$0xf]
      %v3043 = vld [vmem:[%s3037 + $0x14] sm:$0xf]
      %v3044 = vld [vmem:[%s3037 + $0x18] sm:$0xf]
      %v3045 = vld [vmem:[%s3037 + $0x1c] sm:$0xf]
      %v3046 = vld [vmem:[%s3037 + $0x20] sm:$0xf]
      %v3047 = vld [vmem:[%s3037 + $0x24] sm:$0xf]
      %v3048 = vld [vmem:[%s3037 + $0x28] sm:$0xf]
      %v3049 = vld [vmem:[%s3037 + $0x2c] sm:$0xf]
      %v3050 = vld [vmem:[%s3037 + $0x30] sm:$0xf]
      %v3051 = vld [vmem:[%s3037 + $0x34] sm:$0xf]
      %v3052 = vld [vmem:[%s3037 + $0x38] sm:$0xf]
      %v3053 = vld [vmem:[%s3037 + $0x3c] sm:$0xf]
      %s3054 = scalar_lea.vmem %s3, 448
      %v3055 = vld [vmem:[%s3054] sm:$0xf]
      %v3056 = vld [vmem:[%s3054 + $0x4] sm:$0xf]
      %v3057 = vld [vmem:[%s3054 + $0x8] sm:$0xf]
      %v3058 = vld [vmem:[%s3054 + $0xc] sm:$0xf]
      %v3059 = vld [vmem:[%s3054 + $0x10] sm:$0xf]
      %v3060 = vld [vmem:[%s3054 + $0x14] sm:$0xf]
      %v3061 = vld [vmem:[%s3054 + $0x18] sm:$0xf]
      %v3062 = vld [vmem:[%s3054 + $0x1c] sm:$0xf]
      %v3063 = vld [vmem:[%s3054 + $0x20] sm:$0xf]
      %v3064 = vld [vmem:[%s3054 + $0x24] sm:$0xf]
      %v3065 = vld [vmem:[%s3054 + $0x28] sm:$0xf]
      %v3066 = vld [vmem:[%s3054 + $0x2c] sm:$0xf]
      %v3067 = vld [vmem:[%s3054 + $0x30] sm:$0xf]
      %v3068 = vld [vmem:[%s3054 + $0x34] sm:$0xf]
      %v3069 = vld [vmem:[%s3054 + $0x38] sm:$0xf]
      %v3070 = vld [vmem:[%s3054 + $0x3c] sm:$0xf]
      %v3087 = vunpack.c.l.b16 %v3038
      %v3088 = vunpack.c.l.b16 %v3039
      %v3089 = vunpack.c.l.b16 %v3040
      %v3090 = vunpack.c.l.b16 %v3041
      %v3091 = vunpack.c.l.b16 %v3042
      %v3092 = vunpack.c.l.b16 %v3043
      %v3093 = vunpack.c.l.b16 %v3044
      %v3094 = vunpack.c.l.b16 %v3045
      %v3095 = vunpack.c.l.b16 %v3046
      %v3096 = vunpack.c.l.b16 %v3047
      %v3097 = vunpack.c.l.b16 %v3048
      %v3098 = vunpack.c.l.b16 %v3049
      %v3099 = vunpack.c.l.b16 %v3050
      %v3100 = vunpack.c.l.b16 %v3051
      %v3101 = vunpack.c.l.b16 %v3052
      %v3102 = vunpack.c.l.b16 %v3053
      %v3103 = vpack.c.b16 %v3088, %v3087
      %v3104 = vpack.c.b16 %v3090, %v3089
      %v3105 = vpack.c.b16 %v3092, %v3091
      %v3106 = vpack.c.b16 %v3094, %v3093
      %v3107 = vpack.c.b16 %v3096, %v3095
      %v3108 = vpack.c.b16 %v3098, %v3097
      %v3109 = vpack.c.b16 %v3100, %v3099
      %v3110 = vpack.c.b16 %v3102, %v3101
      %v3135 = vunpack.c.l.b16 %v3055
      %v3136 = vunpack.c.l.b16 %v3056
      %v3137 = vunpack.c.l.b16 %v3057
      %v3138 = vunpack.c.l.b16 %v3058
      %v3139 = vunpack.c.l.b16 %v3059
      %v3140 = vunpack.c.l.b16 %v3060
      %v3141 = vunpack.c.l.b16 %v3061
      %v3142 = vunpack.c.l.b16 %v3062
      %v3143 = vunpack.c.l.b16 %v3063
      %v3144 = vunpack.c.l.b16 %v3064
      %v3145 = vunpack.c.l.b16 %v3065
      %v3146 = vunpack.c.l.b16 %v3066
      %v3147 = vunpack.c.l.b16 %v3067
      %v3148 = vunpack.c.l.b16 %v3068
      %v3149 = vunpack.c.l.b16 %v3069
      %v3150 = vunpack.c.l.b16 %v3070
      %v3151 = vpack.c.b16 %v3136, %v3135
      %v3152 = vpack.c.b16 %v3138, %v3137
      %v3153 = vpack.c.b16 %v3140, %v3139
      %v3154 = vpack.c.b16 %v3142, %v3141
      %v3155 = vpack.c.b16 %v3144, %v3143
      %v3156 = vpack.c.b16 %v3146, %v3145
      %v3157 = vpack.c.b16 %v3148, %v3147
      %v3158 = vpack.c.b16 %v3150, %v3149
      %3167 = vmatprep.subr.bf16.mxu0 0
      %3168 = vmatpush1.bf16.msra.mxu0 %v3158
      %3169 = vmatprep.subr.bf16.mxu0 0
      %3170 = vmatpush1.bf16.msra.mxu0 %v3157
      %3171 = vmatprep.subr.bf16.mxu0 0
      %3172 = vmatpush1.bf16.msra.mxu0 %v3156
      %3173 = vmatprep.subr.bf16.mxu0 0
      %3174 = vmatpush1.bf16.msra.mxu0 %v3155
      %3175 = vmatprep.subr.bf16.mxu0 0
      %3176 = vmatpush1.bf16.msra.mxu0 %v3154
      %3177 = vmatprep.subr.bf16.mxu0 0
      %3178 = vmatpush1.bf16.msra.mxu0 %v3153
      %3179 = vmatprep.subr.bf16.mxu0 0
      %3180 = vmatpush1.bf16.msra.mxu0 %v3152
      %3181 = vmatprep.subr.bf16.mxu0 0
      %3182 = vmatpush1.bf16.msra.mxu0 %v3151
      %3183 = vmatprep.subr.bf16.mxu0 0
      %3184 = vmatpush2.bf16.msra.mxu0 0
      %3185 = vmatprep.subr.bf16.mxu0 0
      %3186 = vmatpush2.bf16.msra.mxu0 0
      %3187 = vmatprep.subr.bf16.mxu0 0
      %3188 = vmatpush2.bf16.msra.mxu0 0
      %3189 = vmatprep.subr.bf16.mxu0 0
      %3190 = vmatpush2.bf16.msra.mxu0 0
      %3191 = vmatprep.subr.bf16.mxu0 0
      %3192 = vmatpush2.bf16.msra.mxu0 0
      %3193 = vmatprep.subr.bf16.mxu0 0
      %3194 = vmatpush2.bf16.msra.mxu0 0
      %3195 = vmatprep.subr.bf16.mxu0 0
      %3196 = vmatpush2.bf16.msra.mxu0 0
      %3197 = vmatprep.subr.bf16.mxu0 0
      %3198 = vmatpush2.bf16.msra.mxu0 0
      %3199 = vmatprep.mubr.bf16.mxu0 0
      %3200 = vmatmul.mubr.bf16.gmra.mxu0 %v3103
      %v3201 = vpop.f32.mrf.mxu0
      %v3202 = vadd.f32 0.0, %v3201
      %v3203 = vpop.f32.mrf.mxu0
      %v3204 = vpop.f32.mrf.mxu0
      %v3205 = vadd.f32 0.0, %v3204
      %v3206 = vpop.f32.mrf.mxu0
      %3207 = vmatprep.mubr.bf16.mxu0 0
      %3208 = vmatmul.mubr.bf16.gmra.mxu0 %v3104
      %v3209 = vpop.f32.mrf.mxu0
      %v3210 = vadd.f32 0.0, %v3209
      %v3211 = vpop.f32.mrf.mxu0
      %v3212 = vpop.f32.mrf.mxu0
      %v3213 = vadd.f32 0.0, %v3212
      %v3214 = vpop.f32.mrf.mxu0
      %3215 = vmatprep.mubr.bf16.mxu0 0
      %3216 = vmatmul.mubr.bf16.gmra.mxu0 %v3105
      %v3217 = vpop.f32.mrf.mxu0
      %v3218 = vadd.f32 0.0, %v3217
      %v3219 = vpop.f32.mrf.mxu0
      %v3220 = vpop.f32.mrf.mxu0
      %v3221 = vadd.f32 0.0, %v3220
      %v3222 = vpop.f32.mrf.mxu0
      %3223 = vmatprep.mubr.bf16.mxu0 0
      %3224 = vmatmul.mubr.bf16.gmra.mxu0 %v3106
      %v3225 = vpop.f32.mrf.mxu0
      %v3226 = vadd.f32 0.0, %v3225
      %v3227 = vpop.f32.mrf.mxu0
      %v3228 = vpop.f32.mrf.mxu0
      %v3229 = vadd.f32 0.0, %v3228
      %v3230 = vpop.f32.mrf.mxu0
      %3231 = vmatprep.mubr.bf16.mxu0 0
      %3232 = vmatmul.mubr.bf16.gmra.mxu0 %v3107
      %v3233 = vpop.f32.mrf.mxu0
      %v3234 = vadd.f32 0.0, %v3233
      %v3235 = vpop.f32.mrf.mxu0
      %v3236 = vpop.f32.mrf.mxu0
      %v3237 = vadd.f32 0.0, %v3236
      %v3238 = vpop.f32.mrf.mxu0
      %3239 = vmatprep.mubr.bf16.mxu0 0
      %3240 = vmatmul.mubr.bf16.gmra.mxu0 %v3108
      %v3241 = vpop.f32.mrf.mxu0
      %v3242 = vadd.f32 0.0, %v3241
      %v3243 = vpop.f32.mrf.mxu0
      %v3244 = vpop.f32.mrf.mxu0
      %v3245 = vadd.f32 0.0, %v3244
      %v3246 = vpop.f32.mrf.mxu0
      %3247 = vmatprep.mubr.bf16.mxu0 0
      %3248 = vmatmul.mubr.bf16.gmra.mxu0 %v3109
      %v3249 = vpop.f32.mrf.mxu0
      %v3250 = vadd.f32 0.0, %v3249
      %v3251 = vpop.f32.mrf.mxu0
      %v3252 = vpop.f32.mrf.mxu0
      %v3253 = vadd.f32 0.0, %v3252
      %v3254 = vpop.f32.mrf.mxu0
      %3255 = vmatprep.mubr.bf16.mxu0 0
      %3256 = vmatmul.mubr.bf16.gmra.mxu0 %v3110
      %v3257 = vpop.f32.mrf.mxu0
      %v3258 = vadd.f32 0.0, %v3257
      %v3259 = vpop.f32.mrf.mxu0
      %v3260 = vpop.f32.mrf.mxu0
      %v3261 = vadd.f32 0.0, %v3260
      %v3262 = vpop.f32.mrf.mxu0
      %3263 = vdwg.mxu0
      %v3264 = vadd.f32 %v2404, %v3202
      %v3265 = vadd.f32 %v2405, %v3205
      %v3266 = vadd.f32 %v2406, %v3210
      %v3267 = vadd.f32 %v2407, %v3213
      %v3268 = vadd.f32 %v2408, %v3218
      %v3269 = vadd.f32 %v2409, %v3221
      %v3270 = vadd.f32 %v2410, %v3226
      %v3271 = vadd.f32 %v2411, %v3229
      %v3272 = vadd.f32 %v2412, %v3234
      %v3273 = vadd.f32 %v2413, %v3237
      %v3274 = vadd.f32 %v2414, %v3242
      %v3275 = vadd.f32 %v2415, %v3245
      %v3276 = vadd.f32 %v2416, %v3250
      %v3277 = vadd.f32 %v2417, %v3253
      %v3278 = vadd.f32 %v2418, %v3258
      %v3279 = vadd.f32 %v2419, %v3261
      %s3280 = scalar_lea.vmem %s3, 384
      %v3281 = vld [vmem:[%s3280] sm:$0xf]
      %v3282 = vld [vmem:[%s3280 + $0x4] sm:$0xf]
      %v3283 = vld [vmem:[%s3280 + $0x8] sm:$0xf]
      %v3284 = vld [vmem:[%s3280 + $0xc] sm:$0xf]
      %v3285 = vld [vmem:[%s3280 + $0x10] sm:$0xf]
      %v3286 = vld [vmem:[%s3280 + $0x14] sm:$0xf]
      %v3287 = vld [vmem:[%s3280 + $0x18] sm:$0xf]
      %v3288 = vld [vmem:[%s3280 + $0x1c] sm:$0xf]
      %v3289 = vld [vmem:[%s3280 + $0x20] sm:$0xf]
      %v3290 = vld [vmem:[%s3280 + $0x24] sm:$0xf]
      %v3291 = vld [vmem:[%s3280 + $0x28] sm:$0xf]
      %v3292 = vld [vmem:[%s3280 + $0x2c] sm:$0xf]
      %v3293 = vld [vmem:[%s3280 + $0x30] sm:$0xf]
      %v3294 = vld [vmem:[%s3280 + $0x34] sm:$0xf]
      %v3295 = vld [vmem:[%s3280 + $0x38] sm:$0xf]
      %v3296 = vld [vmem:[%s3280 + $0x3c] sm:$0xf]
      %v3313 = vunpack.c.l.b16 %v3281
      %v3314 = vunpack.c.l.b16 %v3282
      %v3315 = vunpack.c.l.b16 %v3283
      %v3316 = vunpack.c.l.b16 %v3284
      %v3317 = vunpack.c.l.b16 %v3285
      %v3318 = vunpack.c.l.b16 %v3286
      %v3319 = vunpack.c.l.b16 %v3287
      %v3320 = vunpack.c.l.b16 %v3288
      %v3321 = vunpack.c.l.b16 %v3289
      %v3322 = vunpack.c.l.b16 %v3290
      %v3323 = vunpack.c.l.b16 %v3291
      %v3324 = vunpack.c.l.b16 %v3292
      %v3325 = vunpack.c.l.b16 %v3293
      %v3326 = vunpack.c.l.b16 %v3294
      %v3327 = vunpack.c.l.b16 %v3295
      %v3328 = vunpack.c.l.b16 %v3296
      %v3329 = vpack.c.b16 %v3314, %v3313
      %v3330 = vpack.c.b16 %v3316, %v3315
      %v3331 = vpack.c.b16 %v3318, %v3317
      %v3332 = vpack.c.b16 %v3320, %v3319
      %v3333 = vpack.c.b16 %v3322, %v3321
      %v3334 = vpack.c.b16 %v3324, %v3323
      %v3335 = vpack.c.b16 %v3326, %v3325
      %v3336 = vpack.c.b16 %v3328, %v3327
      %3345 = vmatprep.subr.bf16.mxu0 0
      %3346 = vmatpush1.bf16.msra.mxu0 %v3336
      %3347 = vmatprep.subr.bf16.mxu0 0
      %3348 = vmatpush1.bf16.msra.mxu0 %v3335
      %3349 = vmatprep.subr.bf16.mxu0 0
      %3350 = vmatpush1.bf16.msra.mxu0 %v3334
      %3351 = vmatprep.subr.bf16.mxu0 0
      %3352 = vmatpush1.bf16.msra.mxu0 %v3333
      %3353 = vmatprep.subr.bf16.mxu0 0
      %3354 = vmatpush1.bf16.msra.mxu0 %v3332
      %3355 = vmatprep.subr.bf16.mxu0 0
      %3356 = vmatpush1.bf16.msra.mxu0 %v3331
      %3357 = vmatprep.subr.bf16.mxu0 0
      %3358 = vmatpush1.bf16.msra.mxu0 %v3330
      %3359 = vmatprep.subr.bf16.mxu0 0
      %3360 = vmatpush1.bf16.msra.mxu0 %v3329
      %3361 = vmatprep.subr.bf16.mxu0 0
      %3362 = vmatpush2.bf16.msra.mxu0 0
      %3363 = vmatprep.subr.bf16.mxu0 0
      %3364 = vmatpush2.bf16.msra.mxu0 0
      %3365 = vmatprep.subr.bf16.mxu0 0
      %3366 = vmatpush2.bf16.msra.mxu0 0
      %3367 = vmatprep.subr.bf16.mxu0 0
      %3368 = vmatpush2.bf16.msra.mxu0 0
      %3369 = vmatprep.subr.bf16.mxu0 0
      %3370 = vmatpush2.bf16.msra.mxu0 0
      %3371 = vmatprep.subr.bf16.mxu0 0
      %3372 = vmatpush2.bf16.msra.mxu0 0
      %3373 = vmatprep.subr.bf16.mxu0 0
      %3374 = vmatpush2.bf16.msra.mxu0 0
      %3375 = vmatprep.subr.bf16.mxu0 0
      %3376 = vmatpush2.bf16.msra.mxu0 0
      %3377 = vmatprep.mubr.bf16.mxu0 0
      %3378 = vmatmul.mubr.bf16.gmra.mxu0 %v3103
      %v3379 = vpop.f32.mrf.mxu0
      %v3380 = vadd.f32 0.0, %v3379
      %v3381 = vpop.f32.mrf.mxu0
      %v3382 = vpop.f32.mrf.mxu0
      %v3383 = vpop.f32.mrf.mxu0
      %3384 = vmatprep.mubr.bf16.mxu0 0
      %3385 = vmatmul.mubr.bf16.gmra.mxu0 %v3104
      %v3386 = vpop.f32.mrf.mxu0
      %v3387 = vadd.f32 0.0, %v3386
      %v3388 = vpop.f32.mrf.mxu0
      %v3389 = vpop.f32.mrf.mxu0
      %v3390 = vpop.f32.mrf.mxu0
      %3391 = vmatprep.mubr.bf16.mxu0 0
      %3392 = vmatmul.mubr.bf16.gmra.mxu0 %v3105
      %v3393 = vpop.f32.mrf.mxu0
      %v3394 = vadd.f32 0.0, %v3393
      %v3395 = vpop.f32.mrf.mxu0
      %v3396 = vpop.f32.mrf.mxu0
      %v3397 = vpop.f32.mrf.mxu0
      %3398 = vmatprep.mubr.bf16.mxu0 0
      %3399 = vmatmul.mubr.bf16.gmra.mxu0 %v3106
      %v3400 = vpop.f32.mrf.mxu0
      %v3401 = vadd.f32 0.0, %v3400
      %v3402 = vpop.f32.mrf.mxu0
      %v3403 = vpop.f32.mrf.mxu0
      %v3404 = vpop.f32.mrf.mxu0
      %3405 = vmatprep.mubr.bf16.mxu0 0
      %3406 = vmatmul.mubr.bf16.gmra.mxu0 %v3107
      %v3407 = vpop.f32.mrf.mxu0
      %v3408 = vadd.f32 0.0, %v3407
      %v3409 = vpop.f32.mrf.mxu0
      %v3410 = vpop.f32.mrf.mxu0
      %v3411 = vpop.f32.mrf.mxu0
      %3412 = vmatprep.mubr.bf16.mxu0 0
      %3413 = vmatmul.mubr.bf16.gmra.mxu0 %v3108
      %v3414 = vpop.f32.mrf.mxu0
      %v3415 = vadd.f32 0.0, %v3414
      %v3416 = vpop.f32.mrf.mxu0
      %v3417 = vpop.f32.mrf.mxu0
      %v3418 = vpop.f32.mrf.mxu0
      %3419 = vmatprep.mubr.bf16.mxu0 0
      %3420 = vmatmul.mubr.bf16.gmra.mxu0 %v3109
      %v3421 = vpop.f32.mrf.mxu0
      %v3422 = vadd.f32 0.0, %v3421
      %v3423 = vpop.f32.mrf.mxu0
      %v3424 = vpop.f32.mrf.mxu0
      %v3425 = vpop.f32.mrf.mxu0
      %3426 = vmatprep.mubr.bf16.mxu0 0
      %3427 = vmatmul.mubr.bf16.gmra.mxu0 %v3110
      %v3428 = vpop.f32.mrf.mxu0
      %v3429 = vadd.f32 0.0, %v3428
      %v3430 = vpop.f32.mrf.mxu0
      %v3431 = vpop.f32.mrf.mxu0
      %v3432 = vpop.f32.mrf.mxu0
      %3433 = vdwg.mxu0
      %s3434 = scalar_lea.vmem %s3, 512
      %v3435 = vld [vmem:[%s3434] sm:$0xf]
      %v3436 = vld [vmem:[%s3434 + $0x4] sm:$0xf]
      %v3437 = vld [vmem:[%s3434 + $0x8] sm:$0xf]
      %v3438 = vld [vmem:[%s3434 + $0xc] sm:$0xf]
      %v3439 = vld [vmem:[%s3434 + $0x10] sm:$0xf]
      %v3440 = vld [vmem:[%s3434 + $0x14] sm:$0xf]
      %v3441 = vld [vmem:[%s3434 + $0x18] sm:$0xf]
      %v3442 = vld [vmem:[%s3434 + $0x1c] sm:$0xf]
      %v3443 = vld [vmem:[%s3434 + $0x20] sm:$0xf]
      %v3444 = vld [vmem:[%s3434 + $0x24] sm:$0xf]
      %v3445 = vld [vmem:[%s3434 + $0x28] sm:$0xf]
      %v3446 = vld [vmem:[%s3434 + $0x2c] sm:$0xf]
      %v3447 = vld [vmem:[%s3434 + $0x30] sm:$0xf]
      %v3448 = vld [vmem:[%s3434 + $0x34] sm:$0xf]
      %v3449 = vld [vmem:[%s3434 + $0x38] sm:$0xf]
      %v3450 = vld [vmem:[%s3434 + $0x3c] sm:$0xf]
      %v3467 = vunpack.c.l.b16 %v3435
      %v3468 = vunpack.c.l.b16 %v3436
      %v3469 = vunpack.c.l.b16 %v3437
      %v3470 = vunpack.c.l.b16 %v3438
      %v3471 = vunpack.c.l.b16 %v3439
      %v3472 = vunpack.c.l.b16 %v3440
      %v3473 = vunpack.c.l.b16 %v3441
      %v3474 = vunpack.c.l.b16 %v3442
      %v3475 = vunpack.c.l.b16 %v3443
      %v3476 = vunpack.c.l.b16 %v3444
      %v3477 = vunpack.c.l.b16 %v3445
      %v3478 = vunpack.c.l.b16 %v3446
      %v3479 = vunpack.c.l.b16 %v3447
      %v3480 = vunpack.c.l.b16 %v3448
      %v3481 = vunpack.c.l.b16 %v3449
      %v3482 = vunpack.c.l.b16 %v3450
      %v3483 = vpack.c.b16 %v3468, %v3467
      %v3484 = vpack.c.b16 %v3470, %v3469
      %v3485 = vpack.c.b16 %v3472, %v3471
      %v3486 = vpack.c.b16 %v3474, %v3473
      %v3487 = vpack.c.b16 %v3476, %v3475
      %v3488 = vpack.c.b16 %v3478, %v3477
      %v3489 = vpack.c.b16 %v3480, %v3479
      %v3490 = vpack.c.b16 %v3482, %v3481
      %3499 = vmatprep.subr.bf16.mxu0 0
      %3500 = vmatpush1.bf16.msra.mxu0 %v3490
      %3501 = vmatprep.subr.bf16.mxu0 0
      %3502 = vmatpush1.bf16.msra.mxu0 %v3489
      %3503 = vmatprep.subr.bf16.mxu0 0
      %3504 = vmatpush1.bf16.msra.mxu0 %v3488
      %3505 = vmatprep.subr.bf16.mxu0 0
      %3506 = vmatpush1.bf16.msra.mxu0 %v3487
      %3507 = vmatprep.subr.bf16.mxu0 0
      %3508 = vmatpush1.bf16.msra.mxu0 %v3486
      %3509 = vmatprep.subr.bf16.mxu0 0
      %3510 = vmatpush1.bf16.msra.mxu0 %v3485
      %3511 = vmatprep.subr.bf16.mxu0 0
      %3512 = vmatpush1.bf16.msra.mxu0 %v3484
      %3513 = vmatprep.subr.bf16.mxu0 0
      %3514 = vmatpush1.bf16.msra.mxu0 %v3483
      %3515 = vmatprep.subr.bf16.mxu0 0
      %3516 = vmatpush2.bf16.msra.mxu0 0
      %3517 = vmatprep.subr.bf16.mxu0 0
      %3518 = vmatpush2.bf16.msra.mxu0 0
      %3519 = vmatprep.subr.bf16.mxu0 0
      %3520 = vmatpush2.bf16.msra.mxu0 0
      %3521 = vmatprep.subr.bf16.mxu0 0
      %3522 = vmatpush2.bf16.msra.mxu0 0
      %3523 = vmatprep.subr.bf16.mxu0 0
      %3524 = vmatpush2.bf16.msra.mxu0 0
      %3525 = vmatprep.subr.bf16.mxu0 0
      %3526 = vmatpush2.bf16.msra.mxu0 0
      %3527 = vmatprep.subr.bf16.mxu0 0
      %3528 = vmatpush2.bf16.msra.mxu0 0
      %3529 = vmatprep.subr.bf16.mxu0 0
      %3530 = vmatpush2.bf16.msra.mxu0 0
      %3531 = vmatprep.mubr.bf16.mxu0 0
      %3532 = vmatmul.mubr.bf16.gmra.mxu0 %v3103
      %v3533 = vpop.f32.mrf.mxu0
      %v3534 = vpop.f32.mrf.mxu0
      %v3535 = vpop.f32.mrf.mxu0
      %v3536 = vadd.f32 0.0, %v3535
      %v3537 = vpop.f32.mrf.mxu0
      %3538 = vmatprep.mubr.bf16.mxu0 0
      %3539 = vmatmul.mubr.bf16.gmra.mxu0 %v3104
      %v3540 = vpop.f32.mrf.mxu0
      %v3541 = vpop.f32.mrf.mxu0
      %v3542 = vpop.f32.mrf.mxu0
      %v3543 = vadd.f32 0.0, %v3542
      %v3544 = vpop.f32.mrf.mxu0
      %3545 = vmatprep.mubr.bf16.mxu0 0
      %3546 = vmatmul.mubr.bf16.gmra.mxu0 %v3105
      %v3547 = vpop.f32.mrf.mxu0
      %v3548 = vpop.f32.mrf.mxu0
      %v3549 = vpop.f32.mrf.mxu0
      %v3550 = vadd.f32 0.0, %v3549
      %v3551 = vpop.f32.mrf.mxu0
      %3552 = vmatprep.mubr.bf16.mxu0 0
      %3553 = vmatmul.mubr.bf16.gmra.mxu0 %v3106
      %v3554 = vpop.f32.mrf.mxu0
      %v3555 = vpop.f32.mrf.mxu0
      %v3556 = vpop.f32.mrf.mxu0
      %v3557 = vadd.f32 0.0, %v3556
      %v3558 = vpop.f32.mrf.mxu0
      %3559 = vmatprep.mubr.bf16.mxu0 0
      %3560 = vmatmul.mubr.bf16.gmra.mxu0 %v3107
      %v3561 = vpop.f32.mrf.mxu0
      %v3562 = vpop.f32.mrf.mxu0
      %v3563 = vpop.f32.mrf.mxu0
      %v3564 = vadd.f32 0.0, %v3563
      %v3565 = vpop.f32.mrf.mxu0
      %3566 = vmatprep.mubr.bf16.mxu0 0
      %3567 = vmatmul.mubr.bf16.gmra.mxu0 %v3108
      %v3568 = vpop.f32.mrf.mxu0
      %v3569 = vpop.f32.mrf.mxu0
      %v3570 = vpop.f32.mrf.mxu0
      %v3571 = vadd.f32 0.0, %v3570
      %v3572 = vpop.f32.mrf.mxu0
      %3573 = vmatprep.mubr.bf16.mxu0 0
      %3574 = vmatmul.mubr.bf16.gmra.mxu0 %v3109
      %v3575 = vpop.f32.mrf.mxu0
      %v3576 = vpop.f32.mrf.mxu0
      %v3577 = vpop.f32.mrf.mxu0
      %v3578 = vadd.f32 0.0, %v3577
      %v3579 = vpop.f32.mrf.mxu0
      %3580 = vmatprep.mubr.bf16.mxu0 0
      %3581 = vmatmul.mubr.bf16.gmra.mxu0 %v3110
      %v3582 = vpop.f32.mrf.mxu0
      %v3583 = vpop.f32.mrf.mxu0
      %v3584 = vpop.f32.mrf.mxu0
      %v3585 = vadd.f32 0.0, %v3584
      %v3586 = vpop.f32.mrf.mxu0
      %3587 = vdwg.mxu0
      %v3588 = vadd.f32 %v2844, %v3380
      %v3589 = vadd.f32 %v2851, %v3387
      %v3590 = vadd.f32 %v2858, %v3394
      %v3591 = vadd.f32 %v2865, %v3401
      %v3592 = vadd.f32 %v2872, %v3408
      %v3593 = vadd.f32 %v2879, %v3415
      %v3594 = vadd.f32 %v2886, %v3422
      %v3595 = vadd.f32 %v2893, %v3429
      %v3596 = vadd.f32 %v2983, %v3536
      %v3597 = vadd.f32 %v2990, %v3543
      %v3598 = vadd.f32 %v2997, %v3550
      %v3599 = vadd.f32 %v3004, %v3557
      %v3600 = vadd.f32 %v3011, %v3564
      %v3601 = vadd.f32 %v3018, %v3571
      %v3602 = vadd.f32 %v3025, %v3578
      %v3603 = vadd.f32 %v3032, %v3585
      %3604 = vst [vmem:[#allocation4] sm:$0xff] %v3264
      %3605 = vst [vmem:[#allocation4 + $0x8] sm:$0xff] %v3265
      %3606 = vst [vmem:[#allocation4 + $0x10] sm:$0xff] %v3266
      %3607 = vst [vmem:[#allocation4 + $0x18] sm:$0xff] %v3267
      %3608 = vst [vmem:[#allocation4 + $0x20] sm:$0xff] %v3268
      %3609 = vst [vmem:[#allocation4 + $0x28] sm:$0xff] %v3269
      %3610 = vst [vmem:[#allocation4 + $0x30] sm:$0xff] %v3270
      %3611 = vst [vmem:[#allocation4 + $0x38] sm:$0xff] %v3271
      %3612 = vst [vmem:[#allocation4 + $0x40] sm:$0xff] %v3272
      %3613 = vst [vmem:[#allocation4 + $0x48] sm:$0xff] %v3273
      %3614 = vst [vmem:[#allocation4 + $0x50] sm:$0xff] %v3274
      %3615 = vst [vmem:[#allocation4 + $0x58] sm:$0xff] %v3275
      %3616 = vst [vmem:[#allocation4 + $0x60] sm:$0xff] %v3276
      %3617 = vst [vmem:[#allocation4 + $0x68] sm:$0xff] %v3277
      %3618 = vst [vmem:[#allocation4 + $0x70] sm:$0xff] %v3278
      %3619 = vst [vmem:[#allocation4 + $0x78] sm:$0xff] %v3279
      %v3620 = vld [vmem:[#allocation4 + $0x6] sm:$0xff]
      %v3621 = vld [vmem:[#allocation4 + $0xe] sm:$0x3]
      %v3622 = vld [vmem:[#allocation4 + $0x16] sm:$0xff]
      %v3623 = vld [vmem:[#allocation4 + $0x1e] sm:$0x3]
      %v3624 = vld [vmem:[#allocation4 + $0x26] sm:$0xff]
      %v3625 = vld [vmem:[#allocation4 + $0x2e] sm:$0x3]
      %v3626 = vld [vmem:[#allocation4 + $0x36] sm:$0xff]
      %v3627 = vld [vmem:[#allocation4 + $0x3e] sm:$0x3]
      %v3628 = vld [vmem:[#allocation4 + $0x46] sm:$0xff]
      %v3629 = vld [vmem:[#allocation4 + $0x4e] sm:$0x3]
      %v3630 = vld [vmem:[#allocation4 + $0x56] sm:$0xff]
      %v3631 = vld [vmem:[#allocation4 + $0x5e] sm:$0x3]
      %v3632 = vld [vmem:[#allocation4 + $0x66] sm:$0xff]
      %v3633 = vld [vmem:[#allocation4 + $0x6e] sm:$0x3]
      %v3634 = vld [vmem:[#allocation4 + $0x76] sm:$0xff]
      %v3635 = vld [vmem:[#allocation4 + $0x7e] sm:$0x3]
      %v3636 = vadd.f32 %v3620, %v2144
      %v3637 = vadd.f32 %v3621, %v2145
      %v3638 = vadd.f32 %v3622, %v2146
      %v3639 = vadd.f32 %v3623, %v2147
      %v3640 = vadd.f32 %v3624, %v2148
      %v3641 = vadd.f32 %v3625, %v2149
      %v3642 = vadd.f32 %v3626, %v2150
      %v3643 = vadd.f32 %v3627, %v2151
      %v3644 = vadd.f32 %v3628, %v2152
      %v3645 = vadd.f32 %v3629, %v2153
      %v3646 = vadd.f32 %v3630, %v2154
      %v3647 = vadd.f32 %v3631, %v2155
      %v3648 = vadd.f32 %v3632, %v2156
      %v3649 = vadd.f32 %v3633, %v2157
      %v3650 = vadd.f32 %v3634, %v2158
      %v3651 = vadd.f32 %v3635, %v2159
      %3652 = vst [vmem:[#allocation4 + $0x6] sm:$0xff] %v3636
      %3653 = vst [vmem:[#allocation4 + $0xe] sm:$0x3] %v3637
      %3654 = vst [vmem:[#allocation4 + $0x16] sm:$0xff] %v3638
      %3655 = vst [vmem:[#allocation4 + $0x1e] sm:$0x3] %v3639
      %3656 = vst [vmem:[#allocation4 + $0x26] sm:$0xff] %v3640
      %3657 = vst [vmem:[#allocation4 + $0x2e] sm:$0x3] %v3641
      %3658 = vst [vmem:[#allocation4 + $0x36] sm:$0xff] %v3642
      %3659 = vst [vmem:[#allocation4 + $0x3e] sm:$0x3] %v3643
      %3660 = vst [vmem:[#allocation4 + $0x46] sm:$0xff] %v3644
      %3661 = vst [vmem:[#allocation4 + $0x4e] sm:$0x3] %v3645
      %3662 = vst [vmem:[#allocation4 + $0x56] sm:$0xff] %v3646
      %3663 = vst [vmem:[#allocation4 + $0x5e] sm:$0x3] %v3647
      %3664 = vst [vmem:[#allocation4 + $0x66] sm:$0xff] %v3648
      %3665 = vst [vmem:[#allocation4 + $0x6e] sm:$0x3] %v3649
      %3666 = vst [vmem:[#allocation4 + $0x76] sm:$0xff] %v3650
      %3667 = vst [vmem:[#allocation4 + $0x7e] sm:$0x3] %v3651
      %v3668 = vld [vmem:[#allocation4] sm:$0xff]
      %v3669 = vld [vmem:[#allocation4 + $0x8] sm:$0x3]
      %v3670 = vld [vmem:[#allocation4 + $0x10] sm:$0xff]
      %v3671 = vld [vmem:[#allocation4 + $0x18] sm:$0x3]
      %v3672 = vld [vmem:[#allocation4 + $0x20] sm:$0xff]
      %v3673 = vld [vmem:[#allocation4 + $0x28] sm:$0x3]
      %v3674 = vld [vmem:[#allocation4 + $0x30] sm:$0xff]
      %v3675 = vld [vmem:[#allocation4 + $0x38] sm:$0x3]
      %v3676 = vld [vmem:[#allocation4 + $0x40] sm:$0xff]
      %v3677 = vld [vmem:[#allocation4 + $0x48] sm:$0x3]
      %v3678 = vld [vmem:[#allocation4 + $0x50] sm:$0xff]
      %v3679 = vld [vmem:[#allocation4 + $0x58] sm:$0x3]
      %v3680 = vld [vmem:[#allocation4 + $0x60] sm:$0xff]
      %v3681 = vld [vmem:[#allocation4 + $0x68] sm:$0x3]
      %v3682 = vld [vmem:[#allocation4 + $0x70] sm:$0xff]
      %v3683 = vld [vmem:[#allocation4 + $0x78] sm:$0x3]
      %vm3700 = vcmask 1041408
      %v3701 = vrot.slane %v2160, 6
      %v3702 = vrot.slane %v2161, 6
      %v3703 = vsel %vm3700, %v3701, %v3702
      %v3704 = vrot.slane %v2162, 6
      %v3705 = vrot.slane %v2163, 6
      %v3706 = vsel %vm3700, %v3704, %v3705
      %v3707 = vrot.slane %v2164, 6
      %v3708 = vrot.slane %v2165, 6
      %v3709 = vsel %vm3700, %v3707, %v3708
      %v3710 = vrot.slane %v2166, 6
      %v3711 = vrot.slane %v2167, 6
      %v3712 = vsel %vm3700, %v3710, %v3711
      %v3713 = vrot.slane %v2168, 6
      %v3714 = vrot.slane %v2169, 6
      %v3715 = vsel %vm3700, %v3713, %v3714
      %v3716 = vrot.slane %v2170, 6
      %v3717 = vrot.slane %v2171, 6
      %v3718 = vsel %vm3700, %v3716, %v3717
      %v3719 = vrot.slane %v2172, 6
      %v3720 = vrot.slane %v2173, 6
      %v3721 = vsel %vm3700, %v3719, %v3720
      %v3722 = vrot.slane %v2174, 6
      %v3723 = vrot.slane %v2175, 6
      %v3724 = vsel %vm3700, %v3722, %v3723
      %v3741 = vadd.f32 %v3668, %v3703
      %v3742 = vadd.f32 %v3669, %v3702
      %v3743 = vadd.f32 %v3670, %v3706
      %v3744 = vadd.f32 %v3671, %v3705
      %v3745 = vadd.f32 %v3672, %v3709
      %v3746 = vadd.f32 %v3673, %v3708
      %v3747 = vadd.f32 %v3674, %v3712
      %v3748 = vadd.f32 %v3675, %v3711
      %v3749 = vadd.f32 %v3676, %v3715
      %v3750 = vadd.f32 %v3677, %v3714
      %v3751 = vadd.f32 %v3678, %v3718
      %v3752 = vadd.f32 %v3679, %v3717
      %v3753 = vadd.f32 %v3680, %v3721
      %v3754 = vadd.f32 %v3681, %v3720
      %v3755 = vadd.f32 %v3682, %v3724
      %v3756 = vadd.f32 %v3683, %v3723
      %3757 = vst [vmem:[#allocation4] sm:$0xff] %v3741
      %3758 = vst [vmem:[#allocation4 + $0x8] sm:$0x3] %v3742
      %3759 = vst [vmem:[#allocation4 + $0x10] sm:$0xff] %v3743
      %3760 = vst [vmem:[#allocation4 + $0x18] sm:$0x3] %v3744
      %3761 = vst [vmem:[#allocation4 + $0x20] sm:$0xff] %v3745
      %3762 = vst [vmem:[#allocation4 + $0x28] sm:$0x3] %v3746
      %3763 = vst [vmem:[#allocation4 + $0x30] sm:$0xff] %v3747
      %3764 = vst [vmem:[#allocation4 + $0x38] sm:$0x3] %v3748
      %3765 = vst [vmem:[#allocation4 + $0x40] sm:$0xff] %v3749
      %3766 = vst [vmem:[#allocation4 + $0x48] sm:$0x3] %v3750
      %3767 = vst [vmem:[#allocation4 + $0x50] sm:$0xff] %v3751
      %3768 = vst [vmem:[#allocation4 + $0x58] sm:$0x3] %v3752
      %3769 = vst [vmem:[#allocation4 + $0x60] sm:$0xff] %v3753
      %3770 = vst [vmem:[#allocation4 + $0x68] sm:$0x3] %v3754
      %3771 = vst [vmem:[#allocation4 + $0x70] sm:$0xff] %v3755
      %3772 = vst [vmem:[#allocation4 + $0x78] sm:$0x3] %v3756
      %v3773 = vld [vmem:[#allocation4 + $0xc] sm:$0xf]
      %v3774 = vld [vmem:[#allocation4 + $0x1c] sm:$0xf]
      %v3775 = vld [vmem:[#allocation4 + $0x2c] sm:$0xf]
      %v3776 = vld [vmem:[#allocation4 + $0x3c] sm:$0xf]
      %v3777 = vld [vmem:[#allocation4 + $0x4c] sm:$0xf]
      %v3778 = vld [vmem:[#allocation4 + $0x5c] sm:$0xf]
      %v3779 = vld [vmem:[#allocation4 + $0x6c] sm:$0xf]
      %v3780 = vld [vmem:[#allocation4 + $0x7c] sm:$0xf]
      %v3781 = vadd.f32 %v3773, %v3588
      %v3782 = vadd.f32 %v3774, %v3589
      %v3783 = vadd.f32 %v3775, %v3590
      %v3784 = vadd.f32 %v3776, %v3591
      %v3785 = vadd.f32 %v3777, %v3592
      %v3786 = vadd.f32 %v3778, %v3593
      %v3787 = vadd.f32 %v3779, %v3594
      %v3788 = vadd.f32 %v3780, %v3595
      %3789 = vst [vmem:[#allocation4 + $0xc] sm:$0xf] %v3781
      %3790 = vst [vmem:[#allocation4 + $0x1c] sm:$0xf] %v3782
      %3791 = vst [vmem:[#allocation4 + $0x2c] sm:$0xf] %v3783
      %3792 = vst [vmem:[#allocation4 + $0x3c] sm:$0xf] %v3784
      %3793 = vst [vmem:[#allocation4 + $0x4c] sm:$0xf] %v3785
      %3794 = vst [vmem:[#allocation4 + $0x5c] sm:$0xf] %v3786
      %3795 = vst [vmem:[#allocation4 + $0x6c] sm:$0xf] %v3787
      %3796 = vst [vmem:[#allocation4 + $0x7c] sm:$0xf] %v3788
      %v3797 = vld [vmem:[#allocation4] sm:$0xf]
      %v3798 = vld [vmem:[#allocation4 + $0x10] sm:$0xf]
      %v3799 = vld [vmem:[#allocation4 + $0x20] sm:$0xf]
      %v3800 = vld [vmem:[#allocation4 + $0x30] sm:$0xf]
      %v3801 = vld [vmem:[#allocation4 + $0x40] sm:$0xf]
      %v3802 = vld [vmem:[#allocation4 + $0x50] sm:$0xf]
      %v3803 = vld [vmem:[#allocation4 + $0x60] sm:$0xf]
      %v3804 = vld [vmem:[#allocation4 + $0x70] sm:$0xf]
      %v3813 = vrot.slane %v3596, 4
      %v3814 = vrot.slane %v3597, 4
      %v3815 = vrot.slane %v3598, 4
      %v3816 = vrot.slane %v3599, 4
      %v3817 = vrot.slane %v3600, 4
      %v3818 = vrot.slane %v3601, 4
      %v3819 = vrot.slane %v3602, 4
      %v3820 = vrot.slane %v3603, 4
      %v3829 = vadd.f32 %v3797, %v3813
      %v3830 = vadd.f32 %v3798, %v3814
      %v3831 = vadd.f32 %v3799, %v3815
      %v3832 = vadd.f32 %v3800, %v3816
      %v3833 = vadd.f32 %v3801, %v3817
      %v3834 = vadd.f32 %v3802, %v3818
      %v3835 = vadd.f32 %v3803, %v3819
      %v3836 = vadd.f32 %v3804, %v3820
      %3837 = vst [vmem:[#allocation4] sm:$0xf] %v3829
      %3838 = vst [vmem:[#allocation4 + $0x10] sm:$0xf] %v3830
      %3839 = vst [vmem:[#allocation4 + $0x20] sm:$0xf] %v3831
      %3840 = vst [vmem:[#allocation4 + $0x30] sm:$0xf] %v3832
      %3841 = vst [vmem:[#allocation4 + $0x40] sm:$0xf] %v3833
      %3842 = vst [vmem:[#allocation4 + $0x50] sm:$0xf] %v3834
      %3843 = vst [vmem:[#allocation4 + $0x60] sm:$0xf] %v3835
      %3844 = vst [vmem:[#allocation4 + $0x70] sm:$0xf] %v3836
      %v3845 = vld [vmem:[#allocation4] sm:$0xff]
      %v3846 = vld [vmem:[#allocation4 + $0x8] sm:$0xff]
      %v3847 = vld [vmem:[#allocation4 + $0x10] sm:$0xff]
      %v3848 = vld [vmem:[#allocation4 + $0x18] sm:$0xff]
      %v3849 = vld [vmem:[#allocation4 + $0x20] sm:$0xff]
      %v3850 = vld [vmem:[#allocation4 + $0x28] sm:$0xff]
      %v3851 = vld [vmem:[#allocation4 + $0x30] sm:$0xff]
      %v3852 = vld [vmem:[#allocation4 + $0x38] sm:$0xff]
      %v3853 = vld [vmem:[#allocation4 + $0x40] sm:$0xff]
      %v3854 = vld [vmem:[#allocation4 + $0x48] sm:$0xff]
      %v3855 = vld [vmem:[#allocation4 + $0x50] sm:$0xff]
      %v3856 = vld [vmem:[#allocation4 + $0x58] sm:$0xff]
      %v3857 = vld [vmem:[#allocation4 + $0x60] sm:$0xff]
      %v3858 = vld [vmem:[#allocation4 + $0x68] sm:$0xff]
      %v3859 = vld [vmem:[#allocation4 + $0x70] sm:$0xff]
      %v3860 = vld [vmem:[#allocation4 + $0x78] sm:$0xff]
      %v3861 = vld [vmem:[%s206] sm:$0x1]
      %v3863 = vlaneseq
      %v3864 = vshrl.u32 %v3863, 7
      %v3865 = vsub.s32 0, %v3864
      %v3866 = vrot.slane %v3861, %v3865
      %v3868 = vadd.f32 %v3845, %v3866
      %v3869 = vadd.f32 %v3846, %v3866
      %v3870 = vadd.f32 %v3847, %v3866
      %v3871 = vadd.f32 %v3848, %v3866
      %v3872 = vadd.f32 %v3849, %v3866
      %v3873 = vadd.f32 %v3850, %v3866
      %v3874 = vadd.f32 %v3851, %v3866
      %v3875 = vadd.f32 %v3852, %v3866
      %v3876 = vadd.f32 %v3853, %v3866
      %v3877 = vadd.f32 %v3854, %v3866
      %v3878 = vadd.f32 %v3855, %v3866
      %v3879 = vadd.f32 %v3856, %v3866
      %v3880 = vadd.f32 %v3857, %v3866
      %v3881 = vadd.f32 %v3858, %v3866
      %v3882 = vadd.f32 %v3859, %v3866
      %v3883 = vadd.f32 %v3860, %v3866
      %v3884 = vmax.f32 %v3868, 0.0
      %v3885 = vmax.f32 %v3869, 0.0
      %v3886 = vmax.f32 %v3870, 0.0
      %v3887 = vmax.f32 %v3871, 0.0
      %v3888 = vmax.f32 %v3872, 0.0
      %v3889 = vmax.f32 %v3873, 0.0
      %v3890 = vmax.f32 %v3874, 0.0
      %v3891 = vmax.f32 %v3875, 0.0
      %v3892 = vmax.f32 %v3876, 0.0
      %v3893 = vmax.f32 %v3877, 0.0
      %v3894 = vmax.f32 %v3878, 0.0
      %v3895 = vmax.f32 %v3879, 0.0
      %v3896 = vmax.f32 %v3880, 0.0
      %v3897 = vmax.f32 %v3881, 0.0
      %v3898 = vmax.f32 %v3882, 0.0
      %v3899 = vmax.f32 %v3883, 0.0
      %v3900 = vpack.c.bf16 %v3885, %v3884
      %v3901 = vpack.c.bf16 %v3887, %v3886
      %v3902 = vpack.c.bf16 %v3889, %v3888
      %v3903 = vpack.c.bf16 %v3891, %v3890
      %v3904 = vpack.c.bf16 %v3893, %v3892
      %v3905 = vpack.c.bf16 %v3895, %v3894
      %v3906 = vpack.c.bf16 %v3897, %v3896
      %v3907 = vpack.c.bf16 %v3899, %v3898
      %v3916 = vunpack.c.l.b16 %v3900
      %v3917 = vunpack.c.h.b16 %v3900
      %v3918 = vunpack.c.l.b16 %v3901
      %v3919 = vunpack.c.h.b16 %v3901
      %v3920 = vunpack.c.l.b16 %v3902
      %v3921 = vunpack.c.h.b16 %v3902
      %v3922 = vunpack.c.l.b16 %v3903
      %v3923 = vunpack.c.h.b16 %v3903
      %v3924 = vunpack.c.l.b16 %v3904
      %v3925 = vunpack.c.h.b16 %v3904
      %v3926 = vunpack.c.l.b16 %v3905
      %v3927 = vunpack.c.h.b16 %v3905
      %v3928 = vunpack.c.l.b16 %v3906
      %v3929 = vunpack.c.h.b16 %v3906
      %v3930 = vunpack.c.l.b16 %v3907
      %v3931 = vunpack.c.h.b16 %v3907
      %v3932 = vpack.c.b16 %v3916, %v3916
      %v3933 = vpack.c.b16 %v3917, %v3917
      %v3934 = vpack.c.b16 %v3918, %v3918
      %v3935 = vpack.c.b16 %v3919, %v3919
      %v3936 = vpack.c.b16 %v3920, %v3920
      %v3937 = vpack.c.b16 %v3921, %v3921
      %v3938 = vpack.c.b16 %v3922, %v3922
      %v3939 = vpack.c.b16 %v3923, %v3923
      %v3940 = vpack.c.b16 %v3924, %v3924
      %v3941 = vpack.c.b16 %v3925, %v3925
      %v3942 = vpack.c.b16 %v3926, %v3926
      %v3943 = vpack.c.b16 %v3927, %v3927
      %v3944 = vpack.c.b16 %v3928, %v3928
      %v3945 = vpack.c.b16 %v3929, %v3929
      %v3946 = vpack.c.b16 %v3930, %v3930
      %v3947 = vpack.c.b16 %v3931, %v3931
      %3964 = vst [vmem:[%s216] sm:$0xf] %v3932
      %3965 = vst [vmem:[%s216 + $0x4] sm:$0xf] %v3933
      %3966 = vst [vmem:[%s216 + $0x8] sm:$0xf] %v3934
      %3967 = vst [vmem:[%s216 + $0xc] sm:$0xf] %v3935
      %3968 = vst [vmem:[%s216 + $0x10] sm:$0xf] %v3936
      %3969 = vst [vmem:[%s216 + $0x14] sm:$0xf] %v3937
      %3970 = vst [vmem:[%s216 + $0x18] sm:$0xf] %v3938
      %3971 = vst [vmem:[%s216 + $0x1c] sm:$0xf] %v3939
      %3972 = vst [vmem:[%s216 + $0x20] sm:$0xf] %v3940
      %3973 = vst [vmem:[%s216 + $0x24] sm:$0xf] %v3941
      %3974 = vst [vmem:[%s216 + $0x28] sm:$0xf] %v3942
      %3975 = vst [vmem:[%s216 + $0x2c] sm:$0xf] %v3943
      %3976 = vst [vmem:[%s216 + $0x30] sm:$0xf] %v3944
      %3977 = vst [vmem:[%s216 + $0x34] sm:$0xf] %v3945
      %3978 = vst [vmem:[%s216 + $0x38] sm:$0xf] %v3946
      %3979 = vst [vmem:[%s216 + $0x3c] sm:$0xf] %v3947
      %s3980 = smul.u32 8, %s21
      %p3981 = scmp.lt.s32.totalorder %s20, 1
      %s3982 = scalar_select %p3981, %s20, 1
      %p3983 = scmp.lt.s32.totalorder %s3980, 15
      %s3984 = scalar_select %p3983, %s3980, 15
      %s3985 = smul.addr %s3984, 2
      %s3986 = smul.addr %s3982, 32
      %s3987 = sadd.s32 %s3985, %s3986
      %s3988 = smul.addr %s3987, 4
      %s3989 = scalar_lea.vmem %s5, %s3988
      // Predicated region
      $region113: #{_aspp_forward.1} parent=35 // pred_check
        %p3990 = pneg %p137
      $region114: #{_aspp_forward.1} parent=35 // pred_check_branch
        %3992 = sbr.rel (%p3990) target = $region116
      $region115: #{_aspp_forward.1} parent=35 // pred_region
        %s3993 = smul.u32 8, %s21
      $region116: #{_aspp_forward.1} parent=35 // pred_fallthru
        _
    $region36: #{_aspp_forward.1} parent=5 // pred_fallthru
      _
    %p3994 = scmp.le.s32.totalorder 2, %s11
    // Predicated region
    $region117: #{_aspp_forward.1} parent=5 // pred_check
      %p3995 = pneg %p3994
    $region118: #{_aspp_forward.1} parent=5 // pred_check_branch
      %3997 = sbr.rel (%p3995) target = $region120
    $region119: #{_aspp_forward.1} parent=5 // pred_region
      %s3998 = ssub.s32 %s11, 2
      // Predicated region
      $region121: #{_aspp_forward.1} parent=119 // pred_check
        %p3999 = pneg %p143
      $region122: #{_aspp_forward.1} parent=119 // pred_check_branch
        %4001 = sbr.rel (%p3999) target = $region124
      $region123: #{_aspp_forward.1} parent=119 // pred_region
        %s4002 = smul.u32 8, %s23
        %p4003 = scmp.lt.s32.totalorder %s22, 1
        %s4004 = scalar_select %p4003, %s22, 1
        %p4005 = scmp.lt.s32.totalorder %s4002, 15
        %s4006 = scalar_select %p4005, %s4002, 15
        %s4007 = smul.addr %s4006, 2
        %s4008 = smul.addr %s4004, 32
        %s4009 = sadd.s32 %s4007, %s4008
        %s4010 = smul.addr %s4009, 4
        %s4011 = scalar_lea.vmem %s5, %s4010
      $region124: #{_aspp_forward.1} parent=119 // pred_fallthru
        _
    $region120: #{_aspp_forward.1} parent=5 // pred_fallthru
      _
  $region6: #{_aspp_forward.1} parent=0 // loop_footer
    %s15 = sadd.s32 1, %s11
  $region7: #{_aspp_forward.1} parent=0 // loop_footer_branch
    %10 = sbr.rel target = $region3
  $region8: #{_aspp_forward.1} parent=0 // loop_exit
    _
  %4012 = vsyncmov [#allocation3]
  %s4013 = vpop.sfrf %4012
  %p4014 = scmp.eq.s32.totalorder %s4013, 0
  %p4015 = pneg %p4014
  %4017 = shalt.err (%p4015)
  %s4018 = scalar_lea.sflag [#allocation3], 1
  %4019 = vsyncmov %s4018
  %s4020 = vpop.sfrf %4019
  %p4021 = scmp.eq.s32.totalorder %s4020, 0
  %p4022 = pneg %p4021
  %4024 = shalt.err (%p4022)

// kernel: _aspp_forward.1
$region0: #{_aspp_forward.1}
  #allocation0 [shape = 'u32[]', space=smem, size = 0x4, offset = 0x4, fixed_abs, tag = 'smem constant byte address 0x4 - core index']
  #allocation1 [shape = 'u32[144,128]{1,0:T(1,128)}', space=vmem, size = 0x12000, scoped, tag = 'internal scratch']
  #allocation2 [shape = 'bf16[2,32,16,128]{3,2,1,0:T(8,128)(2,1)}', space=vmem, size = 0x40000, scoped, tag = 'scratch operand']
  #allocation3 [shape = 's32[2]{0}', space=sflag, size = 0x8, scoped, tag = 'scratch operand']
  #allocation4 [shape = 'f32[8,16,128]{2,1,0:T(8,128)}', space=vmem, size = 0x10000, scoped, tag = 'scratch operand']
  #allocation5 [shape = 's32[]', space=sflag, size = 0x4, offset = 0, fixed_abs, tag = 'sflag constant byte address 0x0 - dummy sync flag']
  #allocation6 [shape = 's32[]', space=sflag, size = 0x4, offset = 0, fixed_abs, tag = 'sflag constant byte address 0x0 - dummy sync flag']
  %s0 = inlined_call_operand.vmem [shape: bf16[2,40,16,128], index: 0, kind: input, shape index: {}]
  %s1 = inlined_call_operand.vmem [shape: bf16[128,128], index: 1, kind: input, shape index: {}]
  %s2 = inlined_call_operand.vmem [shape: bf16[3,3,128,128], index: 2, kind: input, shape index: {}]
  %s3 = inlined_call_operand.vmem [shape: bf16[3,3,128,128], index: 3, kind: input, shape index: {}]
  %s4 = inlined_call_operand.vmem [shape: f32[2,1,128], index: 4, kind: input, shape index: {}]
  %s5 = inlined_call_operand.vmem [shape: bf16[2,16,16,128], index: 5, kind: output, shape index: {}]
  %s6 = sld [smem:[#allocation0]]
  $region125: #{_aspp_forward.1} parent=0
    _
  %s8 = ssub.s32 1, %s6
  %s9 = scalar_select 0, %s8, %s6
  loop: start=0, step=1, limit=6
  $region2: #{_aspp_forward.1} parent=0 // loop_pre_header
    _
  $region3: #{_aspp_forward.1} parent=0 // loop_header
    %s11 = sphi 0, %s15
    %p12 = scmp.ge.s32.totalorder %s11, 6
    %s18 = sphi 0, %s30
    %s19 = sphi 0, %s26
    %s20 = sphi 0, %s18
    %s21 = sphi 0, %s19
    %s22 = sphi 0, %s20
    %s23 = sphi 0, %s21
    %s31 = sphi 0, %s31
    %s33 = sphi 0, %s31
    %s34 = sphi 0, %s33
    %s48 = sphi 0, %s34
    %s52 = sphi 0, %s52
    %s54 = sphi 0, %s52
    %s55 = sphi 0, %s54
    %s69 = sphi 0, %s55
    %s73 = sphi 0, %s73
    %s75 = sphi 0, %s73
    %s76 = sphi 0, %s75
    %s90 = sphi 0, %s76
    %s96 = sphi 0, %s98
    %s99 = sphi 0, %s96
    %s100 = sphi 0, %s99
    %s116 = sphi 0, %s100
    %s124 = sphi 0, %s126
    %s127 = sphi 0, %s124
    %s128 = sphi 0, %s127
    %s144 = sphi 0, %s128
  $region4: #{_aspp_forward.1} parent=0 // loop_header_branch
    %14 = sbr.rel (%p12) target = $region8
  $region5: #{_aspp_forward.1} parent=0 // loop_body
    %s16 = ssub.s32 %s11, 1
    %s17 = ssub.s32 %s11, 2
    %s24 = sadd.s32 1, %s19
    %p25 = scmp.ge.s32.totalorder %s24, 2
    %s26 = scalar_select %p25, 0, %s24
    %s27 = sadd.s32 1, %s18
    %s28 = scalar_select %p25, %s27, %s18
    %p29 = scmp.ge.s32.totalorder %s28, 2
    %s30 = scalar_select %p29, 0, %s28
    %s32 = sadd.s32 %s31, 1
    %p35 = scmp.eq.s32.totalorder %s11, 3
    %p36 = scmp.ne.s32.totalorder %s31, %s33
    %p37 = scmp.eq.s32.totalorder %s11, 0
    %p38 = por %p36, %p37
    %p39 = scmp.ne.s32.totalorder %s31, %s33
    %p40 = scmp.eq.s32.totalorder %s16, 3
    %p41 = por %p39, %p40
    %p42 = scmp.ne.s32.totalorder %s33, %s34
    %p43 = scmp.eq.s32.totalorder %s16, 0
    %p44 = por %p42, %p43
    %p45 = scmp.ne.s32.totalorder %s33, %s34
    %p46 = scmp.eq.s32.totalorder %s17, 3
    %p47 = por %p45, %p46
    %p49 = scmp.ne.s32.totalorder %s34, %s48
    %p50 = scmp.eq.s32.totalorder %s17, 0
    %p51 = por %p49, %p50
    %s53 = sadd.s32 %s52, 1
    %p56 = scmp.eq.s32.totalorder %s11, 3
    %p57 = scmp.ne.s32.totalorder %s52, %s54
    %p58 = scmp.eq.s32.totalorder %s11, 0
    %p59 = por %p57, %p58
    %p60 = scmp.ne.s32.totalorder %s52, %s54
    %p61 = scmp.eq.s32.totalorder %s16, 3
    %p62 = por %p60, %p61
    %p63 = scmp.ne.s32.totalorder %s54, %s55
    %p64 = scmp.eq.s32.totalorder %s16, 0
    %p65 = por %p63, %p64
    %p66 = scmp.ne.s32.totalorder %s54, %s55
    %p67 = scmp.eq.s32.totalorder %s17, 3
    %p68 = por %p66, %p67
    %p70 = scmp.ne.s32.totalorder %s55, %s69
    %p71 = scmp.eq.s32.totalorder %s17, 0
    %p72 = por %p70, %p71
    %s74 = sadd.s32 %s73, 1
    %p77 = scmp.eq.s32.totalorder %s11, 3
    %p78 = scmp.ne.s32.totalorder %s73, %s75
    %p79 = scmp.eq.s32.totalorder %s11, 0
    %p80 = por %p78, %p79
    %p81 = scmp.ne.s32.totalorder %s73, %s75
    %p82 = scmp.eq.s32.totalorder %s16, 3
    %p83 = por %p81, %p82
    %p84 = scmp.ne.s32.totalorder %s75, %s76
    %p85 = scmp.eq.s32.totalorder %s16, 0
    %p86 = por %p84, %p85
    %p87 = scmp.ne.s32.totalorder %s75, %s76
    %p88 = scmp.eq.s32.totalorder %s17, 3
    %p89 = por %p87, %p88
    %p91 = scmp.ne.s32.totalorder %s76, %s90
    %p92 = scmp.eq.s32.totalorder %s17, 0
    %p93 = por %p91, %p92
    %s94 = ssub.s32 %s18, %s30
    %p95 = scmp.eq.s32.totalorder %s94, 0
    %s97 = sadd.s32 %s96, 1
    %s98 = scalar_select %p95, %s96, %s97
    %p101 = pneg %p95
    %p102 = scmp.eq.s32.totalorder %s11, 3
    %p103 = por %p101, %p102
    %p104 = scmp.ne.s32.totalorder %s96, %s99
    %p105 = scmp.eq.s32.totalorder %s11, 0
    %p106 = por %p104, %p105
    %p107 = scmp.ne.s32.totalorder %s96, %s99
    %p108 = scmp.eq.s32.totalorder %s16, 3
    %p109 = por %p107, %p108
    %p110 = scmp.ne.s32.totalorder %s99, %s100
    %p111 = scmp.eq.s32.totalorder %s16, 0
    %p112 = por %p110, %p111
    %p113 = scmp.ne.s32.totalorder %s99, %s100
    %p114 = scmp.eq.s32.totalorder %s17, 3
    %p115 = por %p113, %p114
    %p117 = scmp.ne.s32.totalorder %s100, %s116
    %p118 = scmp.eq.s32.totalorder %s17, 0
    %p119 = por %p117, %p118
    %s120 = ssub.s32 %s18, %s30
    %s121 = ssub.s32 %s19, %s26
    %s122 = sor.u32 %s120, %s121
    %p123 = scmp.eq.s32.totalorder %s122, 0
    %s125 = sadd.s32 %s124, 1
    %s126 = scalar_select %p123, %s124, %s125
    %p129 = pneg %p123
    %p130 = scmp.eq.s32.totalorder %s11, 3
    %p131 = por %p129, %p130
    %p132 = scmp.ne.s32.totalorder %s124, %s127
    %p133 = scmp.eq.s32.totalorder %s11, 0
    %p134 = por %p132, %p133
    %p135 = scmp.ne.s32.totalorder %s124, %s127
    %p136 = scmp.eq.s32.totalorder %s16, 3
    %p137 = por %p135, %p136
    %p138 = scmp.ne.s32.totalorder %s127, %s128
    %p139 = scmp.eq.s32.totalorder %s16, 0
    %p140 = por %p138, %p139
    %p141 = scmp.ne.s32.totalorder %s127, %s128
    %p142 = scmp.eq.s32.totalorder %s17, 3
    %p143 = por %p141, %p142
    %p145 = scmp.ne.s32.totalorder %s128, %s144
    %p146 = scmp.eq.s32.totalorder %s17, 0
    %p147 = por %p145, %p146
    %p148 = scmp.le.s32.totalorder 1, %s11
    %p149 = scmp.lt.s32.totalorder %s11, 5
    %p150 = pnand %p148, %p149
    %p151 = pneg %p150
    // Predicated region
    $region9: #{_aspp_forward.1} parent=5 // pred_check
      _
    $region10: #{_aspp_forward.1} parent=5 // pred_check_branch
      %153 = sbr.rel (%p150) target = $region12
    $region11: #{_aspp_forward.1} parent=5 // pred_region
      %s154 = ssub.s32 %s11, 1
      // Predicated region
      $region13: #{_aspp_forward.1} parent=11 // pred_check
        %p155 = pneg %p44
      $region14: #{_aspp_forward.1} parent=11 // pred_check_branch
        %157 = sbr.rel (%p155) target = $region16
      $region15: #{_aspp_forward.1} parent=11 // pred_region
        _
      $region16: #{_aspp_forward.1} parent=11 // pred_fallthru
        _
      // Predicated region
      $region17: #{_aspp_forward.1} parent=11 // pred_check
        %p158 = pneg %p65
      $region18: #{_aspp_forward.1} parent=11 // pred_check_branch
        %160 = sbr.rel (%p158) target = $region20
      $region19: #{_aspp_forward.1} parent=11 // pred_region
        _
      $region20: #{_aspp_forward.1} parent=11 // pred_fallthru
        _
      // Predicated region
      $region21: #{_aspp_forward.1} parent=11 // pred_check
        %p161 = pneg %p86
      $region22: #{_aspp_forward.1} parent=11 // pred_check_branch
        %163 = sbr.rel (%p161) target = $region24
      $region23: #{_aspp_forward.1} parent=11 // pred_region
        _
      $region24: #{_aspp_forward.1} parent=11 // pred_fallthru
        _
    $region12: #{_aspp_forward.1} parent=5 // pred_fallthru
      _
    %p164 = scmp.lt.s32.totalorder %s11, 4
    // Predicated region
    $region25: #{_aspp_forward.1} parent=5 // pred_check
      %p165 = pneg %p164
    $region26: #{_aspp_forward.1} parent=5 // pred_check_branch
      %167 = sbr.rel (%p165) target = $region28
    $region27: #{_aspp_forward.1} parent=5 // pred_region
      // Predicated region
      $region29: #{_aspp_forward.1} parent=27 // pred_check
        %p168 = pneg %p106
      $region30: #{_aspp_forward.1} parent=27 // pred_check_branch
        %170 = sbr.rel (%p168) target = $region32
      $region31: #{_aspp_forward.1} parent=27 // pred_region
        %p171 = scmp.lt.s32.totalorder %s18, 1
        %s172 = scalar_select %p171, %s18, 1
        %s173 = scalar_lea.vmem %s4, %s172
      $region32: #{_aspp_forward.1} parent=27 // pred_fallthru
        _
    $region28: #{_aspp_forward.1} parent=5 // pred_fallthru
      _
    %p174 = scmp.le.s32.totalorder 1, %s11
    %p175 = scmp.lt.s32.totalorder %s11, 5
    %p176 = pnand %p174, %p175
    %p177 = pneg %p176
    // Predicated region
    $region33: #{_aspp_forward.1} parent=5 // pred_check
      _
    $region34: #{_aspp_forward.1} parent=5 // pred_check_branch
      %179 = sbr.rel (%p176) target = $region36
    $region35: #{_aspp_forward.1} parent=5 // pred_region
      %s180 = ssub.s32 %s11, 1
      %p181 = pneg %p44
      %p182 = pneg %p41
      %p183 = pneg %p65
      %p184 = pneg %p62
      %p185 = pneg %p86
      %p186 = pneg %p83
      %p187 = scmp.lt.s32.totalorder %s20, 1
      %s188 = scalar_select %p187, %s20, 1
      %s189 = scalar_lea.vmem %s4, %s188
      %p190 = pneg %p112
      %p191 = pneg %p109
      %p192 = pneg %p140
      %p193 = pneg %p137
      %s194 = smul.u32 8, %s21
      %p195 = scmp.lt.s32.totalorder %s20, 1
      %s196 = scalar_select %p195, %s20, 1
      %p197 = scmp.lt.s32.totalorder %s194, 15
      %s198 = scalar_select %p197, %s194, 15
      %s199 = smul.addr %s198, 2
      %s200 = smul.addr %s196, 32
      %s201 = sadd.s32 %s199, %s200
      %s202 = smul.addr %s201, 4
      %s203 = scalar_lea.vmem %s5, %s202
      %p204 = scmp.lt.s32.totalorder %s20, 1
      %s205 = scalar_select %p204, %s20, 1
      %s206 = scalar_lea.vmem %s4, %s205
      %s207 = smul.u32 8, %s21
      %p208 = scmp.lt.s32.totalorder %s20, 1
      %s209 = scalar_select %p208, %s20, 1
      %p210 = scmp.lt.s32.totalorder %s207, 15
      %s211 = scalar_select %p210, %s207, 15
      %s212 = smul.addr %s211, 2
      %s213 = smul.addr %s209, 32
      %s214 = sadd.s32 %s212, %s213
      %s215 = smul.addr %s214, 4
      %s216 = scalar_lea.vmem %s5, %s215
      %s217 = smul.u32 8, %s21
      %p219 = scmp.lt.s32.totalorder %s21, 0
      %s220 = ssub.s32 0, %s21
      %s221 = scalar_select %p219, %s220, %s21
      %s222 = sand.u32 %s221, 1
      %s223 = ssub.s32 0, %s222
      %s224 = scalar_select %p219, %s223, %s222
      %p225 = scmp.ne.s32.totalorder %s224, 0
      %p226 = scmp.lt.s32.totalorder %s224, 0
      %p227 = pnand %p226, %p225
      %p228 = pneg %p227
      %s229 = sadd.s32 %s224, 2
      %s230 = scalar_select %p228, %s229, %s224
      %p231 = scmp.eq.s32.totalorder %s21, 0
      // Predicated region
      $region37: #{_aspp_forward.1} parent=35 // pred_check
        %p232 = pneg %p231
      $region38: #{_aspp_forward.1} parent=35 // pred_check_branch
        %234 = sbr.rel (%p232) target = $region40
      $region39: #{_aspp_forward.1} parent=35 // pred_region
        %s235 = smul.u32 %s20, 80
        %s236 = smul.addr %s235, 4
        %s237 = scalar_lea.vmem %s0, %s236
        %p239 = scmp.lt.u32.totalorder 256, 8
        %p240 = pneg %p239
        // Predicated region
        $region41: #{_aspp_forward.1} parent=39 // pred_check
          _
        $region42: #{_aspp_forward.1} parent=39 // pred_check_branch
          %242 = sbr.rel (%p239) target = $region44
        $region43: #{_aspp_forward.1} parent=39 // pred_region
          %s258 = sand.u32 256, 7
          %p259 = scmp.eq.s32.totalorder %s258, 0
          // Predicated region
          $region56: #{_aspp_forward.1} parent=43 // pred_check
            %p260 = pneg %p259
          $region57: #{_aspp_forward.1} parent=43 // pred_check_branch
            %262 = sbr.rel (%p260) target = $region59
          $region58: #{_aspp_forward.1} parent=43 // pred_region
            loop: start=0, step=1, limit=1
            $region60: #{_aspp_forward.1} parent=58 // loop_pre_header
              _
            $region61: #{_aspp_forward.1} parent=58 // loop_header
              %s264 = sphi 0, %s268
              %p265 = scmp.ge.s32.totalorder %s264, 1
              %s269 = sphi %s237, %s237
              %s270 = sphi [#allocation2], [#allocation2]
            $region62: #{_aspp_forward.1} parent=58 // loop_header_branch
              %267 = sbr.rel (%p265) target = $region66
            $region63: #{_aspp_forward.1} parent=58 // loop_body
              %v271 = vld [vmem:[%s269] sm:$0xff]
              %272 = vst [vmem:[%s270] sm:$0xff] %v271
              %v273 = vld [vmem:[%s269 + $0x8] sm:$0xff]
              %274 = vst [vmem:[%s270 + $0x8] sm:$0xff] %v273
              %v275 = vld [vmem:[%s269 + $0x10] sm:$0xff]
              %276 = vst [vmem:[%s270 + $0x10] sm:$0xff] %v275
              %v277 = vld [vmem:[%s269 + $0x18] sm:$0xff]
              %278 = vst [vmem:[%s270 + $0x18] sm:$0xff] %v277
              %v279 = vld [vmem:[%s269 + $0x20] sm:$0xff]
              %280 = vst [vmem:[%s270 + $0x20] sm:$0xff] %v279
              %v281 = vld [vmem:[%s269 + $0x28] sm:$0xff]
              %282 = vst [vmem:[%s270 + $0x28] sm:$0xff] %v281
              %v283 = vld [vmem:[%s269 + $0x30] sm:$0xff]
              %284 = vst [vmem:[%s270 + $0x30] sm:$0xff] %v283
              %v285 = vld [vmem:[%s269 + $0x38] sm:$0xff]
              %286 = vst [vmem:[%s270 + $0x38] sm:$0xff] %v285
              %v287 = vld [vmem:[%s269 + $0x40] sm:$0xff]
              %288 = vst [vmem:[%s270 + $0x40] sm:$0xff] %v287
              %v289 = vld [vmem:[%s269 + $0x48] sm:$0xff]
              %290 = vst [vmem:[%s270 + $0x48] sm:$0xff] %v289
              %v291 = vld [vmem:[%s269 + $0x50] sm:$0xff]
              %292 = vst [vmem:[%s270 + $0x50] sm:$0xff] %v291
              %v293 = vld [vmem:[%s269 + $0x58] sm:$0xff]
              %294 = vst [vmem:[%s270 + $0x58] sm:$0xff] %v293
              %v295 = vld [vmem:[%s269 + $0x60] sm:$0xff]
              %296 = vst [vmem:[%s270 + $0x60] sm:$0xff] %v295
              %v297 = vld [vmem:[%s269 + $0x68] sm:$0xff]
              %298 = vst [vmem:[%s270 + $0x68] sm:$0xff] %v297
              %v299 = vld [vmem:[%s269 + $0x70] sm:$0xff]
              %300 = vst [vmem:[%s270 + $0x70] sm:$0xff] %v299
              %v301 = vld [vmem:[%s269 + $0x78] sm:$0xff]
              %302 = vst [vmem:[%s270 + $0x78] sm:$0xff] %v301
              %v303 = vld [vmem:[%s269 + $0x80] sm:$0xff]
              %304 = vst [vmem:[%s270 + $0x80] sm:$0xff] %v303
              %v305 = vld [vmem:[%s269 + $0x88] sm:$0xff]
              %306 = vst [vmem:[%s270 + $0x88] sm:$0xff] %v305
              %v307 = vld [vmem:[%s269 + $0x90] sm:$0xff]
              %308 = vst [vmem:[%s270 + $0x90] sm:$0xff] %v307
              %v309 = vld [vmem:[%s269 + $0x98] sm:$0xff]
              %310 = vst [vmem:[%s270 + $0x98] sm:$0xff] %v309
              %v311 = vld [vmem:[%s269 + $0xa0] sm:$0xff]
              %312 = vst [vmem:[%s270 + $0xa0] sm:$0xff] %v311
              %v313 = vld [vmem:[%s269 + $0xa8] sm:$0xff]
              %314 = vst [vmem:[%s270 + $0xa8] sm:$0xff] %v313
              %v315 = vld [vmem:[%s269 + $0xb0] sm:$0xff]
              %316 = vst [vmem:[%s270 + $0xb0] sm:$0xff] %v315
              %v317 = vld [vmem:[%s269 + $0xb8] sm:$0xff]
              %318 = vst [vmem:[%s270 + $0xb8] sm:$0xff] %v317
              %v319 = vld [vmem:[%s269 + $0xc0] sm:$0xff]
              %320 = vst [vmem:[%s270 + $0xc0] sm:$0xff] %v319
              %v321 = vld [vmem:[%s269 + $0xc8] sm:$0xff]
              %322 = vst [vmem:[%s270 + $0xc8] sm:$0xff] %v321
              %v323 = vld [vmem:[%s269 + $0xd0] sm:$0xff]
              %324 = vst [vmem:[%s270 + $0xd0] sm:$0xff] %v323
              %v325 = vld [vmem:[%s269 + $0xd8] sm:$0xff]
              %326 = vst [vmem:[%s270 + $0xd8] sm:$0xff] %v325
              %v327 = vld [vmem:[%s269 + $0xe0] sm:$0xff]
              %328 = vst [vmem:[%s270 + $0xe0] sm:$0xff] %v327
              %v329 = vld [vmem:[%s269 + $0xe8] sm:$0xff]
              %330 = vst [vmem:[%s270 + $0xe8] sm:$0xff] %v329
              %v331 = vld [vmem:[%s269 + $0xf0] sm:$0xff]
              %332 = vst [vmem:[%s270 + $0xf0] sm:$0xff] %v331
              %v333 = vld [vmem:[%s269 + $0xf8] sm:$0xff]
              %334 = vst [vmem:[%s270 + $0xf8] sm:$0xff] %v333
            $region64: #{_aspp_forward.1} parent=58 // loop_footer
              %s268 = sadd.s32 1, %s264
            $region65: #{_aspp_forward.1} parent=58 // loop_footer_branch
              %263 = sbr.rel target = $region61
            $region66: #{_aspp_forward.1} parent=58 // loop_exit
              _
          $region59: #{_aspp_forward.1} parent=43 // pred_fallthru
            _
          %p335 = pneg %p259
          // Predicated region
          $region67: #{_aspp_forward.1} parent=43 // pred_check
            _
          $region68: #{_aspp_forward.1} parent=43 // pred_check_branch
            %337 = sbr.rel (%p259) target = $region70
          $region69: #{_aspp_forward.1} parent=43 // pred_region
            %s338 = sand.u32 256, 7
          $region70: #{_aspp_forward.1} parent=43 // pred_fallthru
            _
        $region44: #{_aspp_forward.1} parent=39 // pred_fallthru
          _
        // Predicated region
        $region45: #{_aspp_forward.1} parent=39 // pred_check
          %p243 = pneg %p239
        $region46: #{_aspp_forward.1} parent=39 // pred_check_branch
          %245 = sbr.rel (%p243) target = $region48
        $region47: #{_aspp_forward.1} parent=39 // pred_region
          %s246 = sshll.u32 1, 256
          %s247 = ssub.s32 %s246, 1
          loop: start=0, step=1, limit=1
          $region49: #{_aspp_forward.1} parent=47 // loop_pre_header
            _
          $region50: #{_aspp_forward.1} parent=47 // loop_header
            %s249 = sphi 0, %s253
            %p250 = scmp.ge.s32.totalorder %s249, 1
            %s254 = sphi %s237, %s237
            %s255 = sphi [#allocation2], [#allocation2]
          $region51: #{_aspp_forward.1} parent=47 // loop_header_branch
            %252 = sbr.rel (%p250) target = $region55
          $region52: #{_aspp_forward.1} parent=47 // loop_body
            %v256 = vld [vmem:[%s254] sm:%s247]
            %257 = vst [vmem:[%s255] sm:%s247] %v256
          $region53: #{_aspp_forward.1} parent=47 // loop_footer
            %s253 = sadd.s32 1, %s249
          $region54: #{_aspp_forward.1} parent=47 // loop_footer_branch
            %248 = sbr.rel target = $region50
          $region55: #{_aspp_forward.1} parent=47 // loop_exit
            _
        $region48: #{_aspp_forward.1} parent=39 // pred_fallthru
          _
        // Predicated region
        $region71: #{_aspp_forward.1} parent=39 // pred_check
          _
        $region72: #{_aspp_forward.1} parent=39 // pred_check_branch
          %341 = sbr.rel (0) target = $region74
        $region73: #{_aspp_forward.1} parent=39 // pred_region
          %342 = vsyncadd [#allocation3], 4096
        $region74: #{_aspp_forward.1} parent=39 // pred_fallthru
          _
      $region40: #{_aspp_forward.1} parent=35 // pred_fallthru
        _
      %s343 = sadd.s32 %s21, 1
      %p344 = scmp.lt.s32.totalorder %s343, 2
      // Predicated region
      $region75: #{_aspp_forward.1} parent=35 // pred_check
        %p345 = pneg %p344
      $region76: #{_aspp_forward.1} parent=35 // pred_check_branch
        %347 = sbr.rel (%p345) target = $region78
      $region77: #{_aspp_forward.1} parent=35 // pred_region
        %s348 = ssub.s32 1, %s230
        %s349 = smul.u32 %s343, 8
        %s350 = smul.u32 %s349, 2
        %s351 = smul.u32 %s20, 80
        %s352 = sadd.s32 %s350, %s351
        %s353 = smul.addr %s352, 4
        %s354 = scalar_lea.vmem %s0, %s353
        %s355 = smul.u32 %s348, 64
        %s356 = smul.addr %s355, 4
        %s357 = scalar_lea.vmem [#allocation2], %s356
        %s358 = scalar_lea.sflag [#allocation3], %s348
        %p360 = scmp.lt.u32.totalorder 256, 8
        %p361 = pneg %p360
        // Predicated region
        $region79: #{_aspp_forward.1} parent=77 // pred_check
          _
        $region80: #{_aspp_forward.1} parent=77 // pred_check_branch
          %363 = sbr.rel (%p360) target = $region82
        $region81: #{_aspp_forward.1} parent=77 // pred_region
          %s379 = sand.u32 256, 7
          %p380 = scmp.eq.s32.totalorder %s379, 0
          // Predicated region
          $region94: #{_aspp_forward.1} parent=81 // pred_check
            %p381 = pneg %p380
          $region95: #{_aspp_forward.1} parent=81 // pred_check_branch
            %383 = sbr.rel (%p381) target = $region97
          $region96: #{_aspp_forward.1} parent=81 // pred_region
            loop: start=0, step=1, limit=1
            $region98: #{_aspp_forward.1} parent=96 // loop_pre_header
              _
            $region99: #{_aspp_forward.1} parent=96 // loop_header
              %s385 = sphi 0, %s389
              %p386 = scmp.ge.s32.totalorder %s385, 1
              %s390 = sphi %s354, %s354
              %s391 = sphi %s357, %s357
            $region100: #{_aspp_forward.1} parent=96 // loop_header_branch
              %388 = sbr.rel (%p386) target = $region104
            $region101: #{_aspp_forward.1} parent=96 // loop_body
              %v392 = vld [vmem:[%s390] sm:$0xff]
              %393 = vst [vmem:[%s391] sm:$0xff] %v392
              %v394 = vld [vmem:[%s390 + $0x8] sm:$0xff]
              %395 = vst [vmem:[%s391 + $0x8] sm:$0xff] %v394
              %v396 = vld [vmem:[%s390 + $0x10] sm:$0xff]
              %397 = vst [vmem:[%s391 + $0x10] sm:$0xff] %v396
              %v398 = vld [vmem:[%s390 + $0x18] sm:$0xff]
              %399 = vst [vmem:[%s391 + $0x18] sm:$0xff] %v398
              %v400 = vld [vmem:[%s390 + $0x20] sm:$0xff]
              %401 = vst [vmem:[%s391 + $0x20] sm:$0xff] %v400
              %v402 = vld [vmem:[%s390 + $0x28] sm:$0xff]
              %403 = vst [vmem:[%s391 + $0x28] sm:$0xff] %v402
              %v404 = vld [vmem:[%s390 + $0x30] sm:$0xff]
              %405 = vst [vmem:[%s391 + $0x30] sm:$0xff] %v404
              %v406 = vld [vmem:[%s390 + $0x38] sm:$0xff]
              %407 = vst [vmem:[%s391 + $0x38] sm:$0xff] %v406
              %v408 = vld [vmem:[%s390 + $0x40] sm:$0xff]
              %409 = vst [vmem:[%s391 + $0x40] sm:$0xff] %v408
              %v410 = vld [vmem:[%s390 + $0x48] sm:$0xff]
              %411 = vst [vmem:[%s391 + $0x48] sm:$0xff] %v410
              %v412 = vld [vmem:[%s390 + $0x50] sm:$0xff]
              %413 = vst [vmem:[%s391 + $0x50] sm:$0xff] %v412
              %v414 = vld [vmem:[%s390 + $0x58] sm:$0xff]
              %415 = vst [vmem:[%s391 + $0x58] sm:$0xff] %v414
              %v416 = vld [vmem:[%s390 + $0x60] sm:$0xff]
              %417 = vst [vmem:[%s391 + $0x60] sm:$0xff] %v416
              %v418 = vld [vmem:[%s390 + $0x68] sm:$0xff]
              %419 = vst [vmem:[%s391 + $0x68] sm:$0xff] %v418
              %v420 = vld [vmem:[%s390 + $0x70] sm:$0xff]
              %421 = vst [vmem:[%s391 + $0x70] sm:$0xff] %v420
              %v422 = vld [vmem:[%s390 + $0x78] sm:$0xff]
              %423 = vst [vmem:[%s391 + $0x78] sm:$0xff] %v422
              %v424 = vld [vmem:[%s390 + $0x80] sm:$0xff]
              %425 = vst [vmem:[%s391 + $0x80] sm:$0xff] %v424
              %v426 = vld [vmem:[%s390 + $0x88] sm:$0xff]
              %427 = vst [vmem:[%s391 + $0x88] sm:$0xff] %v426
              %v428 = vld [vmem:[%s390 + $0x90] sm:$0xff]
              %429 = vst [vmem:[%s391 + $0x90] sm:$0xff] %v428
              %v430 = vld [vmem:[%s390 + $0x98] sm:$0xff]
              %431 = vst [vmem:[%s391 + $0x98] sm:$0xff] %v430
              %v432 = vld [vmem:[%s390 + $0xa0] sm:$0xff]
              %433 = vst [vmem:[%s391 + $0xa0] sm:$0xff] %v432
              %v434 = vld [vmem:[%s390 + $0xa8] sm:$0xff]
              %435 = vst [vmem:[%s391 + $0xa8] sm:$0xff] %v434
              %v436 = vld [vmem:[%s390 + $0xb0] sm:$0xff]
              %437 = vst [vmem:[%s391 + $0xb0] sm:$0xff] %v436
              %v438 = vld [vmem:[%s390 + $0xb8] sm:$0xff]
              %439 = vst [vmem:[%s391 + $0xb8] sm:$0xff] %v438
              %v440 = vld [vmem:[%s390 + $0xc0] sm:$0xff]
              %441 = vst [vmem:[%s391 + $0xc0] sm:$0xff] %v440
              %v442 = vld [vmem:[%s390 + $0xc8] sm:$0xff]
              %443 = vst [vmem:[%s391 + $0xc8] sm:$0xff] %v442
              %v444 = vld [vmem:[%s390 + $0xd0] sm:$0xff]
              %445 = vst [vmem:[%s391 + $0xd0] sm:$0xff] %v444
              %v446 = vld [vmem:[%s390 + $0xd8] sm:$0xff]
              %447 = vst [vmem:[%s391 + $0xd8] sm:$0xff] %v446
              %v448 = vld [vmem:[%s390 + $0xe0] sm:$0xff]
              %449 = vst [vmem:[%s391 + $0xe0] sm:$0xff] %v448
              %v450 = vld [vmem:[%s390 + $0xe8] sm:$0xff]
              %451 = vst [vmem:[%s391 + $0xe8] sm:$0xff] %v450
              %v452 = vld [vmem:[%s390 + $0xf0] sm:$0xff]
              %453 = vst [vmem:[%s391 + $0xf0] sm:$0xff] %v452
              %v454 = vld [vmem:[%s390 + $0xf8] sm:$0xff]
              %455 = vst [vmem:[%s391 + $0xf8] sm:$0xff] %v454
            $region102: #{_aspp_forward.1} parent=96 // loop_footer
              %s389 = sadd.s32 1, %s385
            $region103: #{_aspp_forward.1} parent=96 // loop_footer_branch
              %384 = sbr.rel target = $region99
            $region104: #{_aspp_forward.1} parent=96 // loop_exit
              _
          $region97: #{_aspp_forward.1} parent=81 // pred_fallthru
            _
          %p456 = pneg %p380
          // Predicated region
          $region105: #{_aspp_forward.1} parent=81 // pred_check
            _
          $region106: #{_aspp_forward.1} parent=81 // pred_check_branch
            %458 = sbr.rel (%p380) target = $region108
          $region107: #{_aspp_forward.1} parent=81 // pred_region
            %s459 = sand.u32 256, 7
          $region108: #{_aspp_forward.1} parent=81 // pred_fallthru
            _
        $region82: #{_aspp_forward.1} parent=77 // pred_fallthru
          _
        // Predicated region
        $region83: #{_aspp_forward.1} parent=77 // pred_check
          %p364 = pneg %p360
        $region84: #{_aspp_forward.1} parent=77 // pred_check_branch
          %366 = sbr.rel (%p364) target = $region86
        $region85: #{_aspp_forward.1} parent=77 // pred_region
          %s367 = sshll.u32 1, 256
          %s368 = ssub.s32 %s367, 1
          loop: start=0, step=1, limit=1
          $region87: #{_aspp_forward.1} parent=85 // loop_pre_header
            _
          $region88: #{_aspp_forward.1} parent=85 // loop_header
            %s370 = sphi 0, %s374
            %p371 = scmp.ge.s32.totalorder %s370, 1
            %s375 = sphi %s354, %s354
            %s376 = sphi %s357, %s357
          $region89: #{_aspp_forward.1} parent=85 // loop_header_branch
            %373 = sbr.rel (%p371) target = $region93
          $region90: #{_aspp_forward.1} parent=85 // loop_body
            %v377 = vld [vmem:[%s375] sm:%s368]
            %378 = vst [vmem:[%s376] sm:%s368] %v377
          $region91: #{_aspp_forward.1} parent=85 // loop_footer
            %s374 = sadd.s32 1, %s370
          $region92: #{_aspp_forward.1} parent=85 // loop_footer_branch
            %369 = sbr.rel target = $region88
          $region93: #{_aspp_forward.1} parent=85 // loop_exit
            _
        $region86: #{_aspp_forward.1} parent=77 // pred_fallthru
          _
        // Predicated region
        $region109: #{_aspp_forward.1} parent=77 // pred_check
          _
        $region110: #{_aspp_forward.1} parent=77 // pred_check_branch
          %462 = sbr.rel (0) target = $region112
        $region111: #{_aspp_forward.1} parent=77 // pred_region
          %463 = vsyncadd %s358, 4096
        $region112: #{_aspp_forward.1} parent=77 // pred_fallthru
          _
      $region78: #{_aspp_forward.1} parent=35 // pred_fallthru
        _
      %s464 = scalar_lea.sflag [#allocation3], %s230
      %s465 = smul.u32 4, 32
      %s466 = smul.u32 %s465, 2
      %s467 = smul.u32 %s466, 1
      %s468 = sshll.u32 %s467, 4
      %469 = dma.done %s464, %s468
      %s470 = smul.u32 %s230, 64
      %s471 = sadd.s32 24, %s470
      %s472 = smul.addr %s471, 4
      %s473 = scalar_lea.vmem [#allocation2], %s472
      %v474 = vld [vmem:[%s473] sm:$0xf]
      %v475 = vld [vmem:[%s473 + $0x4] sm:$0xf]
      %v476 = vld [vmem:[%s473 + $0x8] sm:$0xf]
      %v477 = vld [vmem:[%s473 + $0xc] sm:$0xf]
      %v478 = vld [vmem:[%s473 + $0x10] sm:$0xf]
      %v479 = vld [vmem:[%s473 + $0x14] sm:$0xf]
      %v480 = vld [vmem:[%s473 + $0x18] sm:$0xf]
      %v481 = vld [vmem:[%s473 + $0x1c] sm:$0xf]
      %v482 = vld [vmem:[%s473 + $0x20] sm:$0xf]
      %v483 = vld [vmem:[%s473 + $0x24] sm:$0xf]
      %v484 = vld [vmem:[%s473 + $0x28] sm:$0xf]
      %v485 = vld [vmem:[%s473 + $0x2c] sm:$0xf]
      %v486 = vld [vmem:[%s473 + $0x30] sm:$0xf]
      %v487 = vld [vmem:[%s473 + $0x34] sm:$0xf]
      %v488 = vld [vmem:[%s473 + $0x38] sm:$0xf]
      %v489 = vld [vmem:[%s473 + $0x3c] sm:$0xf]
      %v490 = vld [vmem:[%s1] sm:$0xf]
      %v491 = vld [vmem:[%s1 + $0x4] sm:$0xf]
      %v492 = vld [vmem:[%s1 + $0x8] sm:$0xf]
      %v493 = vld [vmem:[%s1 + $0xc] sm:$0xf]
      %v494 = vld [vmem:[%s1 + $0x10] sm:$0xf]
      %v495 = vld [vmem:[%s1 + $0x14] sm:$0xf]
      %v496 = vld [vmem:[%s1 + $0x18] sm:$0xf]
      %v497 = vld [vmem:[%s1 + $0x1c] sm:$0xf]
      %v498 = vld [vmem:[%s1 + $0x20] sm:$0xf]
      %v499 = vld [vmem:[%s1 + $0x24] sm:$0xf]
      %v500 = vld [vmem:[%s1 + $0x28] sm:$0xf]
      %v501 = vld [vmem:[%s1 + $0x2c] sm:$0xf]
      %v502 = vld [vmem:[%s1 + $0x30] sm:$0xf]
      %v503 = vld [vmem:[%s1 + $0x34] sm:$0xf]
      %v504 = vld [vmem:[%s1 + $0x38] sm:$0xf]
      %v505 = vld [vmem:[%s1 + $0x3c] sm:$0xf]
      %s506 = sadd.s32 12, %s470
      %s507 = smul.addr %s506, 4
      %s508 = scalar_lea.vmem [#allocation2], %s507
      %v509 = vld [vmem:[%s508] sm:$0xf]
      %v510 = vld [vmem:[%s508 + $0x4] sm:$0xf]
      %v511 = vld [vmem:[%s508 + $0x8] sm:$0xf]
      %v512 = vld [vmem:[%s508 + $0xc] sm:$0xf]
      %v513 = vld [vmem:[%s508 + $0x10] sm:$0xf]
      %v514 = vld [vmem:[%s508 + $0x14] sm:$0xf]
      %v515 = vld [vmem:[%s508 + $0x18] sm:$0xf]
      %v516 = vld [vmem:[%s508 + $0x1c] sm:$0xf]
      %v517 = vld [vmem:[%s508 + $0x20] sm:$0xf]
      %v518 = vld [vmem:[%s508 + $0x24] sm:$0xf]
      %v519 = vld [vmem:[%s508 + $0x28] sm:$0xf]
      %v520 = vld [vmem:[%s508 + $0x2c] sm:$0xf]
      %v521 = vld [vmem:[%s508 + $0x30] sm:$0xf]
      %v522 = vld [vmem:[%s508 + $0x34] sm:$0xf]
      %v523 = vld [vmem:[%s508 + $0x38] sm:$0xf]
      %v524 = vld [vmem:[%s508 + $0x3c] sm:$0xf]
      %s525 = scalar_lea.vmem %s2, 64
      %v526 = vld [vmem:[%s525] sm:$0xf]
      %v527 = vld [vmem:[%s525 + $0x4] sm:$0xf]
      %v528 = vld [vmem:[%s525 + $0x8] sm:$0xf]
      %v529 = vld [vmem:[%s525 + $0xc] sm:$0xf]
      %v530 = vld [vmem:[%s525 + $0x10] sm:$0xf]
      %v531 = vld [vmem:[%s525 + $0x14] sm:$0xf]
      %v532 = vld [vmem:[%s525 + $0x18] sm:$0xf]
      %v533 = vld [vmem:[%s525 + $0x1c] sm:$0xf]
      %v534 = vld [vmem:[%s525 + $0x20] sm:$0xf]
      %v535 = vld [vmem:[%s525 + $0x24] sm:$0xf]
      %v536 = vld [vmem:[%s525 + $0x28] sm:$0xf]
      %v537 = vld [vmem:[%s525 + $0x2c] sm:$0xf]
      %v538 = vld [vmem:[%s525 + $0x30] sm:$0xf]
      %v539 = vld [vmem:[%s525 + $0x34] sm:$0xf]
      %v540 = vld [vmem:[%s525 + $0x38] sm:$0xf]
      %v541 = vld [vmem:[%s525 + $0x3c] sm:$0xf]
      %v558 = vunpack.c.l.b16 %v509
      %v559 = vunpack.c.l.b16 %v510
      %v560 = vunpack.c.l.b16 %v511
      %v561 = vunpack.c.l.b16 %v512
      %v562 = vunpack.c.l.b16 %v513
      %v563 = vunpack.c.l.b16 %v514
      %v564 = vunpack.c.l.b16 %v515
      %v565 = vunpack.c.l.b16 %v516
      %v566 = vunpack.c.l.b16 %v517
      %v567 = vunpack.c.l.b16 %v518
      %v568 = vunpack.c.l.b16 %v519
      %v569 = vunpack.c.l.b16 %v520
      %v570 = vunpack.c.l.b16 %v521
      %v571 = vunpack.c.l.b16 %v522
      %v572 = vunpack.c.l.b16 %v523
      %v573 = vunpack.c.l.b16 %v524
      %v574 = vpack.c.b16 %v559, %v558
      %v575 = vpack.c.b16 %v561, %v560
      %v576 = vpack.c.b16 %v563, %v562
      %v577 = vpack.c.b16 %v565, %v564
      %v578 = vpack.c.b16 %v567, %v566
      %v579 = vpack.c.b16 %v569, %v568
      %v580 = vpack.c.b16 %v571, %v570
      %v581 = vpack.c.b16 %v573, %v572
      %v606 = vunpack.c.l.b16 %v526
      %v607 = vunpack.c.l.b16 %v527
      %v608 = vunpack.c.l.b16 %v528
      %v609 = vunpack.c.l.b16 %v529
      %v610 = vunpack.c.l.b16 %v530
      %v611 = vunpack.c.l.b16 %v531
      %v612 = vunpack.c.l.b16 %v532
      %v613 = vunpack.c.l.b16 %v533
      %v614 = vunpack.c.l.b16 %v534
      %v615 = vunpack.c.l.b16 %v535
      %v616 = vunpack.c.l.b16 %v536
      %v617 = vunpack.c.l.b16 %v537
      %v618 = vunpack.c.l.b16 %v538
      %v619 = vunpack.c.l.b16 %v539
      %v620 = vunpack.c.l.b16 %v540
      %v621 = vunpack.c.l.b16 %v541
      %v622 = vpack.c.b16 %v607, %v606
      %v623 = vpack.c.b16 %v609, %v608
      %v624 = vpack.c.b16 %v611, %v610
      %v625 = vpack.c.b16 %v613, %v612
      %v626 = vpack.c.b16 %v615, %v614
      %v627 = vpack.c.b16 %v617, %v616
      %v628 = vpack.c.b16 %v619, %v618
      %v629 = vpack.c.b16 %v621, %v620
      %638 = vmatprep.subr.bf16.mxu0 0
      %639 = vmatpush1.bf16.msra.mxu0 %v629
      %640 = vmatprep.subr.bf16.mxu0 0
      %641 = vmatpush1.bf16.msra.mxu0 %v628
      %642 = vmatprep.subr.bf16.mxu0 0
      %643 = vmatpush1.bf16.msra.mxu0 %v627
      %644 = vmatprep.subr.bf16.mxu0 0
      %645 = vmatpush1.bf16.msra.mxu0 %v626
      %646 = vmatprep.subr.bf16.mxu0 0
      %647 = vmatpush1.bf16.msra.mxu0 %v625
      %648 = vmatprep.subr.bf16.mxu0 0
      %649 = vmatpush1.bf16.msra.mxu0 %v624
      %650 = vmatprep.subr.bf16.mxu0 0
      %651 = vmatpush1.bf16.msra.mxu0 %v623
      %652 = vmatprep.subr.bf16.mxu0 0
      %653 = vmatpush1.bf16.msra.mxu0 %v622
      %654 = vmatprep.subr.bf16.mxu0 0
      %655 = vmatpush2.bf16.msra.mxu0 0
      %656 = vmatprep.subr.bf16.mxu0 0
      %657 = vmatpush2.bf16.msra.mxu0 0
      %658 = vmatprep.subr.bf16.mxu0 0
      %659 = vmatpush2.bf16.msra.mxu0 0
      %660 = vmatprep.subr.bf16.mxu0 0
      %661 = vmatpush2.bf16.msra.mxu0 0
      %662 = vmatprep.subr.bf16.mxu0 0
      %663 = vmatpush2.bf16.msra.mxu0 0
      %664 = vmatprep.subr.bf16.mxu0 0
      %665 = vmatpush2.bf16.msra.mxu0 0
      %666 = vmatprep.subr.bf16.mxu0 0
      %667 = vmatpush2.bf16.msra.mxu0 0
      %668 = vmatprep.subr.bf16.mxu0 0
      %669 = vmatpush2.bf16.msra.mxu0 0
      %670 = vmatprep.mubr.bf16.mxu0 0
      %671 = vmatmul.mubr.bf16.gmra.mxu0 %v574
      %v672 = vpop.f32.mrf.mxu0
      %v673 = vadd.f32 0.0, %v672
      %v674 = vpop.f32.mrf.mxu0
      %v675 = vpop.f32.mrf.mxu0
      %v676 = vadd.f32 0.0, %v675
      %v677 = vpop.f32.mrf.mxu0
      %678 = vmatprep.mubr.bf16.mxu0 0
      %679 = vmatmul.mubr.bf16.gmra.mxu0 %v575
      %v680 = vpop.f32.mrf.mxu0
      %v681 = vadd.f32 0.0, %v680
      %v682 = vpop.f32.mrf.mxu0
      %v683 = vpop.f32.mrf.mxu0
      %v684 = vadd.f32 0.0, %v683
      %v685 = vpop.f32.mrf.mxu0
      %686 = vmatprep.mubr.bf16.mxu0 0
      %687 = vmatmul.mubr.bf16.gmra.mxu0 %v576
      %v688 = vpop.f32.mrf.mxu0
      %v689 = vadd.f32 0.0, %v688
      %v690 = vpop.f32.mrf.mxu0
      %v691 = vpop.f32.mrf.mxu0
      %v692 = vadd.f32 0.0, %v691
      %v693 = vpop.f32.mrf.mxu0
      %694 = vmatprep.mubr.bf16.mxu0 0
      %695 = vmatmul.mubr.bf16.gmra.mxu0 %v577
      %v696 = vpop.f32.mrf.mxu0
      %v697 = vadd.f32 0.0, %v696
      %v698 = vpop.f32.mrf.mxu0
      %v699 = vpop.f32.mrf.mxu0
      %v700 = vadd.f32 0.0, %v699
      %v701 = vpop.f32.mrf.mxu0
      %702 = vmatprep.mubr.bf16.mxu0 0
      %703 = vmatmul.mubr.bf16.gmra.mxu0 %v578
      %v704 = vpop.f32.mrf.mxu0
      %v705 = vadd.f32 0.0, %v704
      %v706 = vpop.f32.mrf.mxu0
      %v707 = vpop.f32.mrf.mxu0
      %v708 = vadd.f32 0.0, %v707
      %v709 = vpop.f32.mrf.mxu0
      %710 = vmatprep.mubr.bf16.mxu0 0
      %711 = vmatmul.mubr.bf16.gmra.mxu0 %v579
      %v712 = vpop.f32.mrf.mxu0
      %v713 = vadd.f32 0.0, %v712
      %v714 = vpop.f32.mrf.mxu0
      %v715 = vpop.f32.mrf.mxu0
      %v716 = vadd.f32 0.0, %v715
      %v717 = vpop.f32.mrf.mxu0
      %718 = vmatprep.mubr.bf16.mxu0 0
      %719 = vmatmul.mubr.bf16.gmra.mxu0 %v580
      %v720 = vpop.f32.mrf.mxu0
      %v721 = vadd.f32 0.0, %v720
      %v722 = vpop.f32.mrf.mxu0
      %v723 = vpop.f32.mrf.mxu0
      %v724 = vadd.f32 0.0, %v723
      %v725 = vpop.f32.mrf.mxu0
      %726 = vmatprep.mubr.bf16.mxu0 0
      %727 = vmatmul.mubr.bf16.gmra.mxu0 %v581
      %v728 = vpop.f32.mrf.mxu0
      %v729 = vadd.f32 0.0, %v728
      %v730 = vpop.f32.mrf.mxu0
      %v731 = vpop.f32.mrf.mxu0
      %v732 = vadd.f32 0.0, %v731
      %v733 = vpop.f32.mrf.mxu0
      %734 = vdwg.mxu0
      %v751 = vunpack.c.l.b16 %v474
      %v752 = vunpack.c.l.b16 %v475
      %v753 = vunpack.c.l.b16 %v476
      %v754 = vunpack.c.l.b16 %v477
      %v755 = vunpack.c.l.b16 %v478
      %v756 = vunpack.c.l.b16 %v479
      %v757 = vunpack.c.l.b16 %v480
      %v758 = vunpack.c.l.b16 %v481
      %v759 = vunpack.c.l.b16 %v482
      %v760 = vunpack.c.l.b16 %v483
      %v761 = vunpack.c.l.b16 %v484
      %v762 = vunpack.c.l.b16 %v485
      %v763 = vunpack.c.l.b16 %v486
      %v764 = vunpack.c.l.b16 %v487
      %v765 = vunpack.c.l.b16 %v488
      %v766 = vunpack.c.l.b16 %v489
      %v767 = vpack.c.b16 %v752, %v751
      %v768 = vpack.c.b16 %v754, %v753
      %v769 = vpack.c.b16 %v756, %v755
      %v770 = vpack.c.b16 %v758, %v757
      %v771 = vpack.c.b16 %v760, %v759
      %v772 = vpack.c.b16 %v762, %v761
      %v773 = vpack.c.b16 %v764, %v763
      %v774 = vpack.c.b16 %v766, %v765
      %v799 = vunpack.c.l.b16 %v490
      %v800 = vunpack.c.l.b16 %v491
      %v801 = vunpack.c.l.b16 %v492
      %v802 = vunpack.c.l.b16 %v493
      %v803 = vunpack.c.l.b16 %v494
      %v804 = vunpack.c.l.b16 %v495
      %v805 = vunpack.c.l.b16 %v496
      %v806 = vunpack.c.l.b16 %v497
      %v807 = vunpack.c.l.b16 %v498
      %v808 = vunpack.c.l.b16 %v499
      %v809 = vunpack.c.l.b16 %v500
      %v810 = vunpack.c.l.b16 %v501
      %v811 = vunpack.c.l.b16 %v502
      %v812 = vunpack.c.l.b16 %v503
      %v813 = vunpack.c.l.b16 %v504
      %v814 = vunpack.c.l.b16 %v505
      %v815 = vpack.c.b16 %v800, %v799
      %v816 = vpack.c.b16 %v802, %v801
      %v817 = vpack.c.b16 %v804, %v803
      %v818 = vpack.c.b16 %v806, %v805
      %v819 = vpack.c.b16 %v808, %v807
      %v820 = vpack.c.b16 %v810, %v809
      %v821 = vpack.c.b16 %v812, %v811
      %v822 = vpack.c.b16 %v814, %v813
      %831 = vmatprep.subr.bf16.mxu0 0
      %832 = vmatpush1.bf16.msra.mxu0 %v822
      %833 = vmatprep.subr.bf16.mxu0 0
      %834 = vmatpush1.bf16.msra.mxu0 %v821
      %835 = vmatprep.subr.bf16.mxu0 0
      %836 = vmatpush1.bf16.msra.mxu0 %v820
      %837 = vmatprep.subr.bf16.mxu0 0
      %838 = vmatpush1.bf16.msra.mxu0 %v819
      %839 = vmatprep.subr.bf16.mxu0 0
      %840 = vmatpush1.bf16.msra.mxu0 %v818
      %841 = vmatprep.subr.bf16.mxu0 0
      %842 = vmatpush1.bf16.msra.mxu0 %v817
      %843 = vmatprep.subr.bf16.mxu0 0
      %844 = vmatpush1.bf16.msra.mxu0 %v816
      %845 = vmatprep.subr.bf16.mxu0 0
      %846 = vmatpush1.bf16.msra.mxu0 %v815
      %847 = vmatprep.subr.bf16.mxu0 0
      %848 = vmatpush2.bf16.msra.mxu0 0
      %849 = vmatprep.subr.bf16.mxu0 0
      %850 = vmatpush2.bf16.msra.mxu0 0
      %851 = vmatprep.subr.bf16.mxu0 0
      %852 = vmatpush2.bf16.msra.mxu0 0
      %853 = vmatprep.subr.bf16.mxu0 0
      %854 = vmatpush2.bf16.msra.mxu0 0
      %855 = vmatprep.subr.bf16.mxu0 0
      %856 = vmatpush2.bf16.msra.mxu0 0
      %857 = vmatprep.subr.bf16.mxu0 0
      %858 = vmatpush2.bf16.msra.mxu0 0
      %859 = vmatprep.subr.bf16.mxu0 0
      %860 = vmatpush2.bf16.msra.mxu0 0
      %861 = vmatprep.subr.bf16.mxu0 0
      %862 = vmatpush2.bf16.msra.mxu0 0
      %863 = vmatprep.mubr.bf16.mxu0 0
      %864 = vmatmul.mubr.bf16.gmra.mxu0 %v767
      %v865 = vpop.f32.mrf.mxu0
      %v866 = vadd.f32 %v673, %v865
      %v867 = vpop.f32.mrf.mxu0
      %v868 = vpop.f32.mrf.mxu0
      %v869 = vadd.f32 %v676, %v868
      %v870 = vpop.f32.mrf.mxu0
      %871 = vmatprep.mubr.bf16.mxu0 0
      %872 = vmatmul.mubr.bf16.gmra.mxu0 %v768
      %v873 = vpop.f32.mrf.mxu0
      %v874 = vadd.f32 %v681, %v873
      %v875 = vpop.f32.mrf.mxu0
      %v876 = vpop.f32.mrf.mxu0
      %v877 = vadd.f32 %v684, %v876
      %v878 = vpop.f32.mrf.mxu0
      %879 = vmatprep.mubr.bf16.mxu0 0
      %880 = vmatmul.mubr.bf16.gmra.mxu0 %v769
      %v881 = vpop.f32.mrf.mxu0
      %v882 = vadd.f32 %v689, %v881
      %v883 = vpop.f32.mrf.mxu0
      %v884 = vpop.f32.mrf.mxu0
      %v885 = vadd.f32 %v692, %v884
      %v886 = vpop.f32.mrf.mxu0
      %887 = vmatprep.mubr.bf16.mxu0 0
      %888 = vmatmul.mubr.bf16.gmra.mxu0 %v770
      %v889 = vpop.f32.mrf.mxu0
      %v890 = vadd.f32 %v697, %v889
      %v891 = vpop.f32.mrf.mxu0
      %v892 = vpop.f32.mrf.mxu0
      %v893 = vadd.f32 %v700, %v892
      %v894 = vpop.f32.mrf.mxu0
      %895 = vmatprep.mubr.bf16.mxu0 0
      %896 = vmatmul.mubr.bf16.gmra.mxu0 %v771
      %v897 = vpop.f32.mrf.mxu0
      %v898 = vadd.f32 %v705, %v897
      %v899 = vpop.f32.mrf.mxu0
      %v900 = vpop.f32.mrf.mxu0
      %v901 = vadd.f32 %v708, %v900
      %v902 = vpop.f32.mrf.mxu0
      %903 = vmatprep.mubr.bf16.mxu0 0
      %904 = vmatmul.mubr.bf16.gmra.mxu0 %v772
      %v905 = vpop.f32.mrf.mxu0
      %v906 = vadd.f32 %v713, %v905
      %v907 = vpop.f32.mrf.mxu0
      %v908 = vpop.f32.mrf.mxu0
      %v909 = vadd.f32 %v716, %v908
      %v910 = vpop.f32.mrf.mxu0
      %911 = vmatprep.mubr.bf16.mxu0 0
      %912 = vmatmul.mubr.bf16.gmra.mxu0 %v773
      %v913 = vpop.f32.mrf.mxu0
      %v914 = vadd.f32 %v721, %v913
      %v915 = vpop.f32.mrf.mxu0
      %v916 = vpop.f32.mrf.mxu0
      %v917 = vadd.f32 %v724, %v916
      %v918 = vpop.f32.mrf.mxu0
      %919 = vmatprep.mubr.bf16.mxu0 0
      %920 = vmatmul.mubr.bf16.gmra.mxu0 %v774
      %v921 = vpop.f32.mrf.mxu0
      %v922 = vadd.f32 %v729, %v921
      %v923 = vpop.f32.mrf.mxu0
      %v924 = vpop.f32.mrf.mxu0
      %v925 = vadd.f32 %v732, %v924
      %v926 = vpop.f32.mrf.mxu0
      %927 = vdwg.mxu0
      %v928 = vld [vmem:[%s2] sm:$0xf]
      %v929 = vld [vmem:[%s2 + $0x4] sm:$0xf]
      %v930 = vld [vmem:[%s2 + $0x8] sm:$0xf]
      %v931 = vld [vmem:[%s2 + $0xc] sm:$0xf]
      %v932 = vld [vmem:[%s2 + $0x10] sm:$0xf]
      %v933 = vld [vmem:[%s2 + $0x14] sm:$0xf]
      %v934 = vld [vmem:[%s2 + $0x18] sm:$0xf]
      %v935 = vld [vmem:[%s2 + $0x1c] sm:$0xf]
      %v936 = vld [vmem:[%s2 + $0x20] sm:$0xf]
      %v937 = vld [vmem:[%s2 + $0x24] sm:$0xf]
      %v938 = vld [vmem:[%s2 + $0x28] sm:$0xf]
      %v939 = vld [vmem:[%s2 + $0x2c] sm:$0xf]
      %v940 = vld [vmem:[%s2 + $0x30] sm:$0xf]
      %v941 = vld [vmem:[%s2 + $0x34] sm:$0xf]
      %v942 = vld [vmem:[%s2 + $0x38] sm:$0xf]
      %v943 = vld [vmem:[%s2 + $0x3c] sm:$0xf]
      %s944 = scalar_lea.vmem %s2, 128
      %v945 = vld [vmem:[%s944] sm:$0xf]
      %v946 = vld [vmem:[%s944 + $0x4] sm:$0xf]
      %v947 = vld [vmem:[%s944 + $0x8] sm:$0xf]
      %v948 = vld [vmem:[%s944 + $0xc] sm:$0xf]
      %v949 = vld [vmem:[%s944 + $0x10] sm:$0xf]
      %v950 = vld [vmem:[%s944 + $0x14] sm:$0xf]
      %v951 = vld [vmem:[%s944 + $0x18] sm:$0xf]
      %v952 = vld [vmem:[%s944 + $0x1c] sm:$0xf]
      %v953 = vld [vmem:[%s944 + $0x20] sm:$0xf]
      %v954 = vld [vmem:[%s944 + $0x24] sm:$0xf]
      %v955 = vld [vmem:[%s944 + $0x28] sm:$0xf]
      %v956 = vld [vmem:[%s944 + $0x2c] sm:$0xf]
      %v957 = vld [vmem:[%s944 + $0x30] sm:$0xf]
      %v958 = vld [vmem:[%s944 + $0x34] sm:$0xf]
      %v959 = vld [vmem:[%s944 + $0x38] sm:$0xf]
      %v960 = vld [vmem:[%s944 + $0x3c] sm:$0xf]
      %s961 = scalar_lea.vmem %s2, 192
      %v962 = vld [vmem:[%s961] sm:$0xf]
      %v963 = vld [vmem:[%s961 + $0x4] sm:$0xf]
      %v964 = vld [vmem:[%s961 + $0x8] sm:$0xf]
      %v965 = vld [vmem:[%s961 + $0xc] sm:$0xf]
      %v966 = vld [vmem:[%s961 + $0x10] sm:$0xf]
      %v967 = vld [vmem:[%s961 + $0x14] sm:$0xf]
      %v968 = vld [vmem:[%s961 + $0x18] sm:$0xf]
      %v969 = vld [vmem:[%s961 + $0x1c] sm:$0xf]
      %v970 = vld [vmem:[%s961 + $0x20] sm:$0xf]
      %v971 = vld [vmem:[%s961 + $0x24] sm:$0xf]
      %v972 = vld [vmem:[%s961 + $0x28] sm:$0xf]
      %v973 = vld [vmem:[%s961 + $0x2c] sm:$0xf]
      %v974 = vld [vmem:[%s961 + $0x30] sm:$0xf]
      %v975 = vld [vmem:[%s961 + $0x34] sm:$0xf]
      %v976 = vld [vmem:[%s961 + $0x38] sm:$0xf]
      %v977 = vld [vmem:[%s961 + $0x3c] sm:$0xf]
      %v994 = vunpack.c.l.b16 %v962
      %v995 = vunpack.c.l.b16 %v963
      %v996 = vunpack.c.l.b16 %v964
      %v997 = vunpack.c.l.b16 %v965
      %v998 = vunpack.c.l.b16 %v966
      %v999 = vunpack.c.l.b16 %v967
      %v1000 = vunpack.c.l.b16 %v968
      %v1001 = vunpack.c.l.b16 %v969
      %v1002 = vunpack.c.l.b16 %v970
      %v1003 = vunpack.c.l.b16 %v971
      %v1004 = vunpack.c.l.b16 %v972
      %v1005 = vunpack.c.l.b16 %v973
      %v1006 = vunpack.c.l.b16 %v974
      %v1007 = vunpack.c.l.b16 %v975
      %v1008 = vunpack.c.l.b16 %v976
      %v1009 = vunpack.c.l.b16 %v977
      %v1010 = vpack.c.b16 %v995, %v994
      %v1011 = vpack.c.b16 %v997, %v996
      %v1012 = vpack.c.b16 %v999, %v998
      %v1013 = vpack.c.b16 %v1001, %v1000
      %v1014 = vpack.c.b16 %v1003, %v1002
      %v1015 = vpack.c.b16 %v1005, %v1004
      %v1016 = vpack.c.b16 %v1007, %v1006
      %v1017 = vpack.c.b16 %v1009, %v1008
      %1026 = vmatprep.subr.bf16.mxu0 0
      %1027 = vmatpush1.bf16.msra.mxu0 %v1017
      %1028 = vmatprep.subr.bf16.mxu0 0
      %1029 = vmatpush1.bf16.msra.mxu0 %v1016
      %1030 = vmatprep.subr.bf16.mxu0 0
      %1031 = vmatpush1.bf16.msra.mxu0 %v1015
      %1032 = vmatprep.subr.bf16.mxu0 0
      %1033 = vmatpush1.bf16.msra.mxu0 %v1014
      %1034 = vmatprep.subr.bf16.mxu0 0
      %1035 = vmatpush1.bf16.msra.mxu0 %v1013
      %1036 = vmatprep.subr.bf16.mxu0 0
      %1037 = vmatpush1.bf16.msra.mxu0 %v1012
      %1038 = vmatprep.subr.bf16.mxu0 0
      %1039 = vmatpush1.bf16.msra.mxu0 %v1011
      %1040 = vmatprep.subr.bf16.mxu0 0
      %1041 = vmatpush1.bf16.msra.mxu0 %v1010
      %1042 = vmatprep.subr.bf16.mxu0 0
      %1043 = vmatpush2.bf16.msra.mxu0 0
      %1044 = vmatprep.subr.bf16.mxu0 0
      %1045 = vmatpush2.bf16.msra.mxu0 0
      %1046 = vmatprep.subr.bf16.mxu0 0
      %1047 = vmatpush2.bf16.msra.mxu0 0
      %1048 = vmatprep.subr.bf16.mxu0 0
      %1049 = vmatpush2.bf16.msra.mxu0 0
      %1050 = vmatprep.subr.bf16.mxu0 0
      %1051 = vmatpush2.bf16.msra.mxu0 0
      %1052 = vmatprep.subr.bf16.mxu0 0
      %1053 = vmatpush2.bf16.msra.mxu0 0
      %1054 = vmatprep.subr.bf16.mxu0 0
      %1055 = vmatpush2.bf16.msra.mxu0 0
      %1056 = vmatprep.subr.bf16.mxu0 0
      %1057 = vmatpush2.bf16.msra.mxu0 0
      %1058 = vmatprep.mubr.bf16.mxu0 0
      %1059 = vmatmul.mubr.bf16.gmra.mxu0 %v767
      %v1060 = vpop.f32.mrf.mxu0
      %v1061 = vadd.f32 0.0, %v1060
      %v1062 = vpop.f32.mrf.mxu0
      %v1063 = vpop.f32.mrf.mxu0
      %v1064 = vadd.f32 0.0, %v1063
      %v1065 = vpop.f32.mrf.mxu0
      %1066 = vmatprep.mubr.bf16.mxu0 0
      %1067 = vmatmul.mubr.bf16.gmra.mxu0 %v768
      %v1068 = vpop.f32.mrf.mxu0
      %v1069 = vadd.f32 0.0, %v1068
      %v1070 = vpop.f32.mrf.mxu0
      %v1071 = vpop.f32.mrf.mxu0
      %v1072 = vadd.f32 0.0, %v1071
      %v1073 = vpop.f32.mrf.mxu0
      %1074 = vmatprep.mubr.bf16.mxu0 0
      %1075 = vmatmul.mubr.bf16.gmra.mxu0 %v769
      %v1076 = vpop.f32.mrf.mxu0
      %v1077 = vadd.f32 0.0, %v1076
      %v1078 = vpop.f32.mrf.mxu0
      %v1079 = vpop.f32.mrf.mxu0
      %v1080 = vadd.f32 0.0, %v1079
      %v1081 = vpop.f32.mrf.mxu0
      %1082 = vmatprep.mubr.bf16.mxu0 0
      %1083 = vmatmul.mubr.bf16.gmra.mxu0 %v770
      %v1084 = vpop.f32.mrf.mxu0
      %v1085 = vadd.f32 0.0, %v1084
      %v1086 = vpop.f32.mrf.mxu0
      %v1087 = vpop.f32.mrf.mxu0
      %v1088 = vadd.f32 0.0, %v1087
      %v1089 = vpop.f32.mrf.mxu0
      %1090 = vmatprep.mubr.bf16.mxu0 0
      %1091 = vmatmul.mubr.bf16.gmra.mxu0 %v771
      %v1092 = vpop.f32.mrf.mxu0
      %v1093 = vadd.f32 0.0, %v1092
      %v1094 = vpop.f32.mrf.mxu0
      %v1095 = vpop.f32.mrf.mxu0
      %v1096 = vadd.f32 0.0, %v1095
      %v1097 = vpop.f32.mrf.mxu0
      %1098 = vmatprep.mubr.bf16.mxu0 0
      %1099 = vmatmul.mubr.bf16.gmra.mxu0 %v772
      %v1100 = vpop.f32.mrf.mxu0
      %v1101 = vadd.f32 0.0, %v1100
      %v1102 = vpop.f32.mrf.mxu0
      %v1103 = vpop.f32.mrf.mxu0
      %v1104 = vadd.f32 0.0, %v1103
      %v1105 = vpop.f32.mrf.mxu0
      %1106 = vmatprep.mubr.bf16.mxu0 0
      %1107 = vmatmul.mubr.bf16.gmra.mxu0 %v773
      %v1108 = vpop.f32.mrf.mxu0
      %v1109 = vadd.f32 0.0, %v1108
      %v1110 = vpop.f32.mrf.mxu0
      %v1111 = vpop.f32.mrf.mxu0
      %v1112 = vadd.f32 0.0, %v1111
      %v1113 = vpop.f32.mrf.mxu0
      %1114 = vmatprep.mubr.bf16.mxu0 0
      %1115 = vmatmul.mubr.bf16.gmra.mxu0 %v774
      %v1116 = vpop.f32.mrf.mxu0
      %v1117 = vadd.f32 0.0, %v1116
      %v1118 = vpop.f32.mrf.mxu0
      %v1119 = vpop.f32.mrf.mxu0
      %v1120 = vadd.f32 0.0, %v1119
      %v1121 = vpop.f32.mrf.mxu0
      %1122 = vdwg.mxu0
      %s1123 = scalar_lea.vmem %s2, 320
      %v1124 = vld [vmem:[%s1123] sm:$0xf]
      %v1125 = vld [vmem:[%s1123 + $0x4] sm:$0xf]
      %v1126 = vld [vmem:[%s1123 + $0x8] sm:$0xf]
      %v1127 = vld [vmem:[%s1123 + $0xc] sm:$0xf]
      %v1128 = vld [vmem:[%s1123 + $0x10] sm:$0xf]
      %v1129 = vld [vmem:[%s1123 + $0x14] sm:$0xf]
      %v1130 = vld [vmem:[%s1123 + $0x18] sm:$0xf]
      %v1131 = vld [vmem:[%s1123 + $0x1c] sm:$0xf]
      %v1132 = vld [vmem:[%s1123 + $0x20] sm:$0xf]
      %v1133 = vld [vmem:[%s1123 + $0x24] sm:$0xf]
      %v1134 = vld [vmem:[%s1123 + $0x28] sm:$0xf]
      %v1135 = vld [vmem:[%s1123 + $0x2c] sm:$0xf]
      %v1136 = vld [vmem:[%s1123 + $0x30] sm:$0xf]
      %v1137 = vld [vmem:[%s1123 + $0x34] sm:$0xf]
      %v1138 = vld [vmem:[%s1123 + $0x38] sm:$0xf]
      %v1139 = vld [vmem:[%s1123 + $0x3c] sm:$0xf]
      %v1156 = vunpack.c.l.b16 %v1124
      %v1157 = vunpack.c.l.b16 %v1125
      %v1158 = vunpack.c.l.b16 %v1126
      %v1159 = vunpack.c.l.b16 %v1127
      %v1160 = vunpack.c.l.b16 %v1128
      %v1161 = vunpack.c.l.b16 %v1129
      %v1162 = vunpack.c.l.b16 %v1130
      %v1163 = vunpack.c.l.b16 %v1131
      %v1164 = vunpack.c.l.b16 %v1132
      %v1165 = vunpack.c.l.b16 %v1133
      %v1166 = vunpack.c.l.b16 %v1134
      %v1167 = vunpack.c.l.b16 %v1135
      %v1168 = vunpack.c.l.b16 %v1136
      %v1169 = vunpack.c.l.b16 %v1137
      %v1170 = vunpack.c.l.b16 %v1138
      %v1171 = vunpack.c.l.b16 %v1139
      %v1172 = vpack.c.b16 %v1157, %v1156
      %v1173 = vpack.c.b16 %v1159, %v1158
      %v1174 = vpack.c.b16 %v1161, %v1160
      %v1175 = vpack.c.b16 %v1163, %v1162
      %v1176 = vpack.c.b16 %v1165, %v1164
      %v1177 = vpack.c.b16 %v1167, %v1166
      %v1178 = vpack.c.b16 %v1169, %v1168
      %v1179 = vpack.c.b16 %v1171, %v1170
      %1188 = vmatprep.subr.bf16.mxu0 0
      %1189 = vmatpush1.bf16.msra.mxu0 %v1179
      %1190 = vmatprep.subr.bf16.mxu0 0
      %1191 = vmatpush1.bf16.msra.mxu0 %v1178
      %1192 = vmatprep.subr.bf16.mxu0 0
      %1193 = vmatpush1.bf16.msra.mxu0 %v1177
      %1194 = vmatprep.subr.bf16.mxu0 0
      %1195 = vmatpush1.bf16.msra.mxu0 %v1176
      %1196 = vmatprep.subr.bf16.mxu0 0
      %1197 = vmatpush1.bf16.msra.mxu0 %v1175
      %1198 = vmatprep.subr.bf16.mxu0 0
      %1199 = vmatpush1.bf16.msra.mxu0 %v1174
      %1200 = vmatprep.subr.bf16.mxu0 0
      %1201 = vmatpush1.bf16.msra.mxu0 %v1173
      %1202 = vmatprep.subr.bf16.mxu0 0
      %1203 = vmatpush1.bf16.msra.mxu0 %v1172
      %1204 = vmatprep.subr.bf16.mxu0 0
      %1205 = vmatpush2.bf16.msra.mxu0 0
      %1206 = vmatprep.subr.bf16.mxu0 0
      %1207 = vmatpush2.bf16.msra.mxu0 0
      %1208 = vmatprep.subr.bf16.mxu0 0
      %1209 = vmatpush2.bf16.msra.mxu0 0
      %1210 = vmatprep.subr.bf16.mxu0 0
      %1211 = vmatpush2.bf16.msra.mxu0 0
      %1212 = vmatprep.subr.bf16.mxu0 0
      %1213 = vmatpush2.bf16.msra.mxu0 0
      %1214 = vmatprep.subr.bf16.mxu0 0
      %1215 = vmatpush2.bf16.msra.mxu0 0
      %1216 = vmatprep.subr.bf16.mxu0 0
      %1217 = vmatpush2.bf16.msra.mxu0 0
      %1218 = vmatprep.subr.bf16.mxu0 0
      %1219 = vmatpush2.bf16.msra.mxu0 0
      %1220 = vmatprep.mubr.bf16.mxu0 0
      %1221 = vmatmul.mubr.bf16.gmra.mxu0 %v767
      %v1222 = vpop.f32.mrf.mxu0
      %v1223 = vadd.f32 0.0, %v1222
      %v1224 = vpop.f32.mrf.mxu0
      %v1225 = vpop.f32.mrf.mxu0
      %v1226 = vadd.f32 0.0, %v1225
      %v1227 = vpop.f32.mrf.mxu0
      %1228 = vmatprep.mubr.bf16.mxu0 0
      %1229 = vmatmul.mubr.bf16.gmra.mxu0 %v768
      %v1230 = vpop.f32.mrf.mxu0
      %v1231 = vadd.f32 0.0, %v1230
      %v1232 = vpop.f32.mrf.mxu0
      %v1233 = vpop.f32.mrf.mxu0
      %v1234 = vadd.f32 0.0, %v1233
      %v1235 = vpop.f32.mrf.mxu0
      %1236 = vmatprep.mubr.bf16.mxu0 0
      %1237 = vmatmul.mubr.bf16.gmra.mxu0 %v769
      %v1238 = vpop.f32.mrf.mxu0
      %v1239 = vadd.f32 0.0, %v1238
      %v1240 = vpop.f32.mrf.mxu0
      %v1241 = vpop.f32.mrf.mxu0
      %v1242 = vadd.f32 0.0, %v1241
      %v1243 = vpop.f32.mrf.mxu0
      %1244 = vmatprep.mubr.bf16.mxu0 0
      %1245 = vmatmul.mubr.bf16.gmra.mxu0 %v770
      %v1246 = vpop.f32.mrf.mxu0
      %v1247 = vadd.f32 0.0, %v1246
      %v1248 = vpop.f32.mrf.mxu0
      %v1249 = vpop.f32.mrf.mxu0
      %v1250 = vadd.f32 0.0, %v1249
      %v1251 = vpop.f32.mrf.mxu0
      %1252 = vmatprep.mubr.bf16.mxu0 0
      %1253 = vmatmul.mubr.bf16.gmra.mxu0 %v771
      %v1254 = vpop.f32.mrf.mxu0
      %v1255 = vadd.f32 0.0, %v1254
      %v1256 = vpop.f32.mrf.mxu0
      %v1257 = vpop.f32.mrf.mxu0
      %v1258 = vadd.f32 0.0, %v1257
      %v1259 = vpop.f32.mrf.mxu0
      %1260 = vmatprep.mubr.bf16.mxu0 0
      %1261 = vmatmul.mubr.bf16.gmra.mxu0 %v772
      %v1262 = vpop.f32.mrf.mxu0
      %v1263 = vadd.f32 0.0, %v1262
      %v1264 = vpop.f32.mrf.mxu0
      %v1265 = vpop.f32.mrf.mxu0
      %v1266 = vadd.f32 0.0, %v1265
      %v1267 = vpop.f32.mrf.mxu0
      %1268 = vmatprep.mubr.bf16.mxu0 0
      %1269 = vmatmul.mubr.bf16.gmra.mxu0 %v773
      %v1270 = vpop.f32.mrf.mxu0
      %v1271 = vadd.f32 0.0, %v1270
      %v1272 = vpop.f32.mrf.mxu0
      %v1273 = vpop.f32.mrf.mxu0
      %v1274 = vadd.f32 0.0, %v1273
      %v1275 = vpop.f32.mrf.mxu0
      %1276 = vmatprep.mubr.bf16.mxu0 0
      %1277 = vmatmul.mubr.bf16.gmra.mxu0 %v774
      %v1278 = vpop.f32.mrf.mxu0
      %v1279 = vadd.f32 0.0, %v1278
      %v1280 = vpop.f32.mrf.mxu0
      %v1281 = vpop.f32.mrf.mxu0
      %v1282 = vadd.f32 0.0, %v1281
      %v1283 = vpop.f32.mrf.mxu0
      %1284 = vdwg.mxu0
      %v1301 = vunpack.c.l.b16 %v928
      %v1302 = vunpack.c.l.b16 %v929
      %v1303 = vunpack.c.l.b16 %v930
      %v1304 = vunpack.c.l.b16 %v931
      %v1305 = vunpack.c.l.b16 %v932
      %v1306 = vunpack.c.l.b16 %v933
      %v1307 = vunpack.c.l.b16 %v934
      %v1308 = vunpack.c.l.b16 %v935
      %v1309 = vunpack.c.l.b16 %v936
      %v1310 = vunpack.c.l.b16 %v937
      %v1311 = vunpack.c.l.b16 %v938
      %v1312 = vunpack.c.l.b16 %v939
      %v1313 = vunpack.c.l.b16 %v940
      %v1314 = vunpack.c.l.b16 %v941
      %v1315 = vunpack.c.l.b16 %v942
      %v1316 = vunpack.c.l.b16 %v943
      %v1317 = vpack.c.b16 %v1302, %v1301
      %v1318 = vpack.c.b16 %v1304, %v1303
      %v1319 = vpack.c.b16 %v1306, %v1305
      %v1320 = vpack.c.b16 %v1308, %v1307
      %v1321 = vpack.c.b16 %v1310, %v1309
      %v1322 = vpack.c.b16 %v1312, %v1311
      %v1323 = vpack.c.b16 %v1314, %v1313
      %v1324 = vpack.c.b16 %v1316, %v1315
      %1333 = vmatprep.subr.bf16.mxu0 0
      %1334 = vmatpush1.bf16.msra.mxu0 %v1324
      %1335 = vmatprep.subr.bf16.mxu0 0
      %1336 = vmatpush1.bf16.msra.mxu0 %v1323
      %1337 = vmatprep.subr.bf16.mxu0 0
      %1338 = vmatpush1.bf16.msra.mxu0 %v1322
      %1339 = vmatprep.subr.bf16.mxu0 0
      %1340 = vmatpush1.bf16.msra.mxu0 %v1321
      %1341 = vmatprep.subr.bf16.mxu0 0
      %1342 = vmatpush1.bf16.msra.mxu0 %v1320
      %1343 = vmatprep.subr.bf16.mxu0 0
      %1344 = vmatpush1.bf16.msra.mxu0 %v1319
      %1345 = vmatprep.subr.bf16.mxu0 0
      %1346 = vmatpush1.bf16.msra.mxu0 %v1318
      %1347 = vmatprep.subr.bf16.mxu0 0
      %1348 = vmatpush1.bf16.msra.mxu0 %v1317
      %1349 = vmatprep.subr.bf16.mxu0 0
      %1350 = vmatpush2.bf16.msra.mxu0 0
      %1351 = vmatprep.subr.bf16.mxu0 0
      %1352 = vmatpush2.bf16.msra.mxu0 0
      %1353 = vmatprep.subr.bf16.mxu0 0
      %1354 = vmatpush2.bf16.msra.mxu0 0
      %1355 = vmatprep.subr.bf16.mxu0 0
      %1356 = vmatpush2.bf16.msra.mxu0 0
      %1357 = vmatprep.subr.bf16.mxu0 0
      %1358 = vmatpush2.bf16.msra.mxu0 0
      %1359 = vmatprep.subr.bf16.mxu0 0
      %1360 = vmatpush2.bf16.msra.mxu0 0
      %1361 = vmatprep.subr.bf16.mxu0 0
      %1362 = vmatpush2.bf16.msra.mxu0 0
      %1363 = vmatprep.subr.bf16.mxu0 0
      %1364 = vmatpush2.bf16.msra.mxu0 0
      %1365 = vmatprep.mubr.bf16.mxu0 0
      %1366 = vmatmul.mubr.bf16.gmra.mxu0 %v574
      %v1367 = vpop.f32.mrf.mxu0
      %v1368 = vadd.f32 %v1061, %v1367
      %v1369 = vpop.f32.mrf.mxu0
      %v1370 = vpop.f32.mrf.mxu0
      %v1371 = vadd.f32 %v1064, %v1370
      %v1372 = vpop.f32.mrf.mxu0
      %1373 = vmatprep.mubr.bf16.mxu0 0
      %1374 = vmatmul.mubr.bf16.gmra.mxu0 %v575
      %v1375 = vpop.f32.mrf.mxu0
      %v1376 = vadd.f32 %v1069, %v1375
      %v1377 = vpop.f32.mrf.mxu0
      %v1378 = vpop.f32.mrf.mxu0
      %v1379 = vadd.f32 %v1072, %v1378
      %v1380 = vpop.f32.mrf.mxu0
      %1381 = vmatprep.mubr.bf16.mxu0 0
      %1382 = vmatmul.mubr.bf16.gmra.mxu0 %v576
      %v1383 = vpop.f32.mrf.mxu0
      %v1384 = vadd.f32 %v1077, %v1383
      %v1385 = vpop.f32.mrf.mxu0
      %v1386 = vpop.f32.mrf.mxu0
      %v1387 = vadd.f32 %v1080, %v1386
      %v1388 = vpop.f32.mrf.mxu0
      %1389 = vmatprep.mubr.bf16.mxu0 0
      %1390 = vmatmul.mubr.bf16.gmra.mxu0 %v577
      %v1391 = vpop.f32.mrf.mxu0
      %v1392 = vadd.f32 %v1085, %v1391
      %v1393 = vpop.f32.mrf.mxu0
      %v1394 = vpop.f32.mrf.mxu0
      %v1395 = vadd.f32 %v1088, %v1394
      %v1396 = vpop.f32.mrf.mxu0
      %1397 = vmatprep.mubr.bf16.mxu0 0
      %1398 = vmatmul.mubr.bf16.gmra.mxu0 %v578
      %v1399 = vpop.f32.mrf.mxu0
      %v1400 = vadd.f32 %v1093, %v1399
      %v1401 = vpop.f32.mrf.mxu0
      %v1402 = vpop.f32.mrf.mxu0
      %v1403 = vadd.f32 %v1096, %v1402
      %v1404 = vpop.f32.mrf.mxu0
      %1405 = vmatprep.mubr.bf16.mxu0 0
      %1406 = vmatmul.mubr.bf16.gmra.mxu0 %v579
      %v1407 = vpop.f32.mrf.mxu0
      %v1408 = vadd.f32 %v1101, %v1407
      %v1409 = vpop.f32.mrf.mxu0
      %v1410 = vpop.f32.mrf.mxu0
      %v1411 = vadd.f32 %v1104, %v1410
      %v1412 = vpop.f32.mrf.mxu0
      %1413 = vmatprep.mubr.bf16.mxu0 0
      %1414 = vmatmul.mubr.bf16.gmra.mxu0 %v580
      %v1415 = vpop.f32.mrf.mxu0
      %v1416 = vadd.f32 %v1109, %v1415
      %v1417 = vpop.f32.mrf.mxu0
      %v1418 = vpop.f32.mrf.mxu0
      %v1419 = vadd.f32 %v1112, %v1418
      %v1420 = vpop.f32.mrf.mxu0
      %1421 = vmatprep.mubr.bf16.mxu0 0
      %1422 = vmatmul.mubr.bf16.gmra.mxu0 %v581
      %v1423 = vpop.f32.mrf.mxu0
      %v1424 = vadd.f32 %v1117, %v1423
      %v1425 = vpop.f32.mrf.mxu0
      %v1426 = vpop.f32.mrf.mxu0
      %v1427 = vadd.f32 %v1120, %v1426
      %v1428 = vpop.f32.mrf.mxu0
      %1429 = vdwg.mxu0
      %v1446 = vunpack.c.l.b16 %v945
      %v1447 = vunpack.c.l.b16 %v946
      %v1448 = vunpack.c.l.b16 %v947
      %v1449 = vunpack.c.l.b16 %v948
      %v1450 = vunpack.c.l.b16 %v949
      %v1451 = vunpack.c.l.b16 %v950
      %v1452 = vunpack.c.l.b16 %v951
      %v1453 = vunpack.c.l.b16 %v952
      %v1454 = vunpack.c.l.b16 %v953
      %v1455 = vunpack.c.l.b16 %v954
      %v1456 = vunpack.c.l.b16 %v955
      %v1457 = vunpack.c.l.b16 %v956
      %v1458 = vunpack.c.l.b16 %v957
      %v1459 = vunpack.c.l.b16 %v958
      %v1460 = vunpack.c.l.b16 %v959
      %v1461 = vunpack.c.l.b16 %v960
      %v1462 = vpack.c.b16 %v1447, %v1446
      %v1463 = vpack.c.b16 %v1449, %v1448
      %v1464 = vpack.c.b16 %v1451, %v1450
      %v1465 = vpack.c.b16 %v1453, %v1452
      %v1466 = vpack.c.b16 %v1455, %v1454
      %v1467 = vpack.c.b16 %v1457, %v1456
      %v1468 = vpack.c.b16 %v1459, %v1458
      %v1469 = vpack.c.b16 %v1461, %v1460
      %1478 = vmatprep.subr.bf16.mxu0 0
      %1479 = vmatpush1.bf16.msra.mxu0 %v1469
      %1480 = vmatprep.subr.bf16.mxu0 0
      %1481 = vmatpush1.bf16.msra.mxu0 %v1468
      %1482 = vmatprep.subr.bf16.mxu0 0
      %1483 = vmatpush1.bf16.msra.mxu0 %v1467
      %1484 = vmatprep.subr.bf16.mxu0 0
      %1485 = vmatpush1.bf16.msra.mxu0 %v1466
      %1486 = vmatprep.subr.bf16.mxu0 0
      %1487 = vmatpush1.bf16.msra.mxu0 %v1465
      %1488 = vmatprep.subr.bf16.mxu0 0
      %1489 = vmatpush1.bf16.msra.mxu0 %v1464
      %1490 = vmatprep.subr.bf16.mxu0 0
      %1491 = vmatpush1.bf16.msra.mxu0 %v1463
      %1492 = vmatprep.subr.bf16.mxu0 0
      %1493 = vmatpush1.bf16.msra.mxu0 %v1462
      %1494 = vmatprep.subr.bf16.mxu0 0
      %1495 = vmatpush2.bf16.msra.mxu0 0
      %1496 = vmatprep.subr.bf16.mxu0 0
      %1497 = vmatpush2.bf16.msra.mxu0 0
      %1498 = vmatprep.subr.bf16.mxu0 0
      %1499 = vmatpush2.bf16.msra.mxu0 0
      %1500 = vmatprep.subr.bf16.mxu0 0
      %1501 = vmatpush2.bf16.msra.mxu0 0
      %1502 = vmatprep.subr.bf16.mxu0 0
      %1503 = vmatpush2.bf16.msra.mxu0 0
      %1504 = vmatprep.subr.bf16.mxu0 0
      %1505 = vmatpush2.bf16.msra.mxu0 0
      %1506 = vmatprep.subr.bf16.mxu0 0
      %1507 = vmatpush2.bf16.msra.mxu0 0
      %1508 = vmatprep.subr.bf16.mxu0 0
      %1509 = vmatpush2.bf16.msra.mxu0 0
      %1510 = vmatprep.mubr.bf16.mxu0 0
      %1511 = vmatmul.mubr.bf16.gmra.mxu0 %v574
      %v1512 = vpop.f32.mrf.mxu0
      %v1513 = vadd.f32 %v1223, %v1512
      %v1514 = vpop.f32.mrf.mxu0
      %v1515 = vpop.f32.mrf.mxu0
      %v1516 = vadd.f32 %v1226, %v1515
      %v1517 = vpop.f32.mrf.mxu0
      %1518 = vmatprep.mubr.bf16.mxu0 0
      %1519 = vmatmul.mubr.bf16.gmra.mxu0 %v575
      %v1520 = vpop.f32.mrf.mxu0
      %v1521 = vadd.f32 %v1231, %v1520
      %v1522 = vpop.f32.mrf.mxu0
      %v1523 = vpop.f32.mrf.mxu0
      %v1524 = vadd.f32 %v1234, %v1523
      %v1525 = vpop.f32.mrf.mxu0
      %1526 = vmatprep.mubr.bf16.mxu0 0
      %1527 = vmatmul.mubr.bf16.gmra.mxu0 %v576
      %v1528 = vpop.f32.mrf.mxu0
      %v1529 = vadd.f32 %v1239, %v1528
      %v1530 = vpop.f32.mrf.mxu0
      %v1531 = vpop.f32.mrf.mxu0
      %v1532 = vadd.f32 %v1242, %v1531
      %v1533 = vpop.f32.mrf.mxu0
      %1534 = vmatprep.mubr.bf16.mxu0 0
      %1535 = vmatmul.mubr.bf16.gmra.mxu0 %v577
      %v1536 = vpop.f32.mrf.mxu0
      %v1537 = vadd.f32 %v1247, %v1536
      %v1538 = vpop.f32.mrf.mxu0
      %v1539 = vpop.f32.mrf.mxu0
      %v1540 = vadd.f32 %v1250, %v1539
      %v1541 = vpop.f32.mrf.mxu0
      %1542 = vmatprep.mubr.bf16.mxu0 0
      %1543 = vmatmul.mubr.bf16.gmra.mxu0 %v578
      %v1544 = vpop.f32.mrf.mxu0
      %v1545 = vadd.f32 %v1255, %v1544
      %v1546 = vpop.f32.mrf.mxu0
      %v1547 = vpop.f32.mrf.mxu0
      %v1548 = vadd.f32 %v1258, %v1547
      %v1549 = vpop.f32.mrf.mxu0
      %1550 = vmatprep.mubr.bf16.mxu0 0
      %1551 = vmatmul.mubr.bf16.gmra.mxu0 %v579
      %v1552 = vpop.f32.mrf.mxu0
      %v1553 = vadd.f32 %v1263, %v1552
      %v1554 = vpop.f32.mrf.mxu0
      %v1555 = vpop.f32.mrf.mxu0
      %v1556 = vadd.f32 %v1266, %v1555
      %v1557 = vpop.f32.mrf.mxu0
      %1558 = vmatprep.mubr.bf16.mxu0 0
      %1559 = vmatmul.mubr.bf16.gmra.mxu0 %v580
      %v1560 = vpop.f32.mrf.mxu0
      %v1561 = vadd.f32 %v1271, %v1560
      %v1562 = vpop.f32.mrf.mxu0
      %v1563 = vpop.f32.mrf.mxu0
      %v1564 = vadd.f32 %v1274, %v1563
      %v1565 = vpop.f32.mrf.mxu0
      %1566 = vmatprep.mubr.bf16.mxu0 0
      %1567 = vmatmul.mubr.bf16.gmra.mxu0 %v581
      %v1568 = vpop.f32.mrf.mxu0
      %v1569 = vadd.f32 %v1279, %v1568
      %v1570 = vpop.f32.mrf.mxu0
      %v1571 = vpop.f32.mrf.mxu0
      %v1572 = vadd.f32 %v1282, %v1571
      %v1573 = vpop.f32.mrf.mxu0
      %1574 = vdwg.mxu0
      %s1575 = sadd.s32 36, %s470
      %s1576 = smul.addr %s1575, 4
      %s1577 = scalar_lea.vmem [#allocation2], %s1576
      %v1578 = vld [vmem:[%s1577] sm:$0xf]
      %v1579 = vld [vmem:[%s1577 + $0x4] sm:$0xf]
      %v1580 = vld [vmem:[%s1577 + $0x8] sm:$0xf]
      %v1581 = vld [vmem:[%s1577 + $0xc] sm:$0xf]
      %v1582 = vld [vmem:[%s1577 + $0x10] sm:$0xf]
      %v1583 = vld [vmem:[%s1577 + $0x14] sm:$0xf]
      %v1584 = vld [vmem:[%s1577 + $0x18] sm:$0xf]
      %v1585 = vld [vmem:[%s1577 + $0x1c] sm:$0xf]
      %v1586 = vld [vmem:[%s1577 + $0x20] sm:$0xf]
      %v1587 = vld [vmem:[%s1577 + $0x24] sm:$0xf]
      %v1588 = vld [vmem:[%s1577 + $0x28] sm:$0xf]
      %v1589 = vld [vmem:[%s1577 + $0x2c] sm:$0xf]
      %v1590 = vld [vmem:[%s1577 + $0x30] sm:$0xf]
      %v1591 = vld [vmem:[%s1577 + $0x34] sm:$0xf]
      %v1592 = vld [vmem:[%s1577 + $0x38] sm:$0xf]
      %v1593 = vld [vmem:[%s1577 + $0x3c] sm:$0xf]
      %s1594 = scalar_lea.vmem %s2, 448
      %v1595 = vld [vmem:[%s1594] sm:$0xf]
      %v1596 = vld [vmem:[%s1594 + $0x4] sm:$0xf]
      %v1597 = vld [vmem:[%s1594 + $0x8] sm:$0xf]
      %v1598 = vld [vmem:[%s1594 + $0xc] sm:$0xf]
      %v1599 = vld [vmem:[%s1594 + $0x10] sm:$0xf]
      %v1600 = vld [vmem:[%s1594 + $0x14] sm:$0xf]
      %v1601 = vld [vmem:[%s1594 + $0x18] sm:$0xf]
      %v1602 = vld [vmem:[%s1594 + $0x1c] sm:$0xf]
      %v1603 = vld [vmem:[%s1594 + $0x20] sm:$0xf]
      %v1604 = vld [vmem:[%s1594 + $0x24] sm:$0xf]
      %v1605 = vld [vmem:[%s1594 + $0x28] sm:$0xf]
      %v1606 = vld [vmem:[%s1594 + $0x2c] sm:$0xf]
      %v1607 = vld [vmem:[%s1594 + $0x30] sm:$0xf]
      %v1608 = vld [vmem:[%s1594 + $0x34] sm:$0xf]
      %v1609 = vld [vmem:[%s1594 + $0x38] sm:$0xf]
      %v1610 = vld [vmem:[%s1594 + $0x3c] sm:$0xf]
      %v1627 = vunpack.c.l.b16 %v1578
      %v1628 = vunpack.c.l.b16 %v1579
      %v1629 = vunpack.c.l.b16 %v1580
      %v1630 = vunpack.c.l.b16 %v1581
      %v1631 = vunpack.c.l.b16 %v1582
      %v1632 = vunpack.c.l.b16 %v1583
      %v1633 = vunpack.c.l.b16 %v1584
      %v1634 = vunpack.c.l.b16 %v1585
      %v1635 = vunpack.c.l.b16 %v1586
      %v1636 = vunpack.c.l.b16 %v1587
      %v1637 = vunpack.c.l.b16 %v1588
      %v1638 = vunpack.c.l.b16 %v1589
      %v1639 = vunpack.c.l.b16 %v1590
      %v1640 = vunpack.c.l.b16 %v1591
      %v1641 = vunpack.c.l.b16 %v1592
      %v1642 = vunpack.c.l.b16 %v1593
      %v1643 = vpack.c.b16 %v1628, %v1627
      %v1644 = vpack.c.b16 %v1630, %v1629
      %v1645 = vpack.c.b16 %v1632, %v1631
      %v1646 = vpack.c.b16 %v1634, %v1633
      %v1647 = vpack.c.b16 %v1636, %v1635
      %v1648 = vpack.c.b16 %v1638, %v1637
      %v1649 = vpack.c.b16 %v1640, %v1639
      %v1650 = vpack.c.b16 %v1642, %v1641
      %v1675 = vunpack.c.l.b16 %v1595
      %v1676 = vunpack.c.l.b16 %v1596
      %v1677 = vunpack.c.l.b16 %v1597
      %v1678 = vunpack.c.l.b16 %v1598
      %v1679 = vunpack.c.l.b16 %v1599
      %v1680 = vunpack.c.l.b16 %v1600
      %v1681 = vunpack.c.l.b16 %v1601
      %v1682 = vunpack.c.l.b16 %v1602
      %v1683 = vunpack.c.l.b16 %v1603
      %v1684 = vunpack.c.l.b16 %v1604
      %v1685 = vunpack.c.l.b16 %v1605
      %v1686 = vunpack.c.l.b16 %v1606
      %v1687 = vunpack.c.l.b16 %v1607
      %v1688 = vunpack.c.l.b16 %v1608
      %v1689 = vunpack.c.l.b16 %v1609
      %v1690 = vunpack.c.l.b16 %v1610
      %v1691 = vpack.c.b16 %v1676, %v1675
      %v1692 = vpack.c.b16 %v1678, %v1677
      %v1693 = vpack.c.b16 %v1680, %v1679
      %v1694 = vpack.c.b16 %v1682, %v1681
      %v1695 = vpack.c.b16 %v1684, %v1683
      %v1696 = vpack.c.b16 %v1686, %v1685
      %v1697 = vpack.c.b16 %v1688, %v1687
      %v1698 = vpack.c.b16 %v1690, %v1689
      %1707 = vmatprep.subr.bf16.mxu0 0
      %1708 = vmatpush1.bf16.msra.mxu0 %v1698
      %1709 = vmatprep.subr.bf16.mxu0 0
      %1710 = vmatpush1.bf16.msra.mxu0 %v1697
      %1711 = vmatprep.subr.bf16.mxu0 0
      %1712 = vmatpush1.bf16.msra.mxu0 %v1696
      %1713 = vmatprep.subr.bf16.mxu0 0
      %1714 = vmatpush1.bf16.msra.mxu0 %v1695
      %1715 = vmatprep.subr.bf16.mxu0 0
      %1716 = vmatpush1.bf16.msra.mxu0 %v1694
      %1717 = vmatprep.subr.bf16.mxu0 0
      %1718 = vmatpush1.bf16.msra.mxu0 %v1693
      %1719 = vmatprep.subr.bf16.mxu0 0
      %1720 = vmatpush1.bf16.msra.mxu0 %v1692
      %1721 = vmatprep.subr.bf16.mxu0 0
      %1722 = vmatpush1.bf16.msra.mxu0 %v1691
      %1723 = vmatprep.subr.bf16.mxu0 0
      %1724 = vmatpush2.bf16.msra.mxu0 0
      %1725 = vmatprep.subr.bf16.mxu0 0
      %1726 = vmatpush2.bf16.msra.mxu0 0
      %1727 = vmatprep.subr.bf16.mxu0 0
      %1728 = vmatpush2.bf16.msra.mxu0 0
      %1729 = vmatprep.subr.bf16.mxu0 0
      %1730 = vmatpush2.bf16.msra.mxu0 0
      %1731 = vmatprep.subr.bf16.mxu0 0
      %1732 = vmatpush2.bf16.msra.mxu0 0
      %1733 = vmatprep.subr.bf16.mxu0 0
      %1734 = vmatpush2.bf16.msra.mxu0 0
      %1735 = vmatprep.subr.bf16.mxu0 0
      %1736 = vmatpush2.bf16.msra.mxu0 0
      %1737 = vmatprep.subr.bf16.mxu0 0
      %1738 = vmatpush2.bf16.msra.mxu0 0
      %1739 = vmatprep.mubr.bf16.mxu0 0
      %1740 = vmatmul.mubr.bf16.gmra.mxu0 %v1643
      %v1741 = vpop.f32.mrf.mxu0
      %v1742 = vadd.f32 0.0, %v1741
      %v1743 = vpop.f32.mrf.mxu0
      %v1744 = vpop.f32.mrf.mxu0
      %v1745 = vadd.f32 0.0, %v1744
      %v1746 = vpop.f32.mrf.mxu0
      %1747 = vmatprep.mubr.bf16.mxu0 0
      %1748 = vmatmul.mubr.bf16.gmra.mxu0 %v1644
      %v1749 = vpop.f32.mrf.mxu0
      %v1750 = vadd.f32 0.0, %v1749
      %v1751 = vpop.f32.mrf.mxu0
      %v1752 = vpop.f32.mrf.mxu0
      %v1753 = vadd.f32 0.0, %v1752
      %v1754 = vpop.f32.mrf.mxu0
      %1755 = vmatprep.mubr.bf16.mxu0 0
      %1756 = vmatmul.mubr.bf16.gmra.mxu0 %v1645
      %v1757 = vpop.f32.mrf.mxu0
      %v1758 = vadd.f32 0.0, %v1757
      %v1759 = vpop.f32.mrf.mxu0
      %v1760 = vpop.f32.mrf.mxu0
      %v1761 = vadd.f32 0.0, %v1760
      %v1762 = vpop.f32.mrf.mxu0
      %1763 = vmatprep.mubr.bf16.mxu0 0
      %1764 = vmatmul.mubr.bf16.gmra.mxu0 %v1646
      %v1765 = vpop.f32.mrf.mxu0
      %v1766 = vadd.f32 0.0, %v1765
      %v1767 = vpop.f32.mrf.mxu0
      %v1768 = vpop.f32.mrf.mxu0
      %v1769 = vadd.f32 0.0, %v1768
      %v1770 = vpop.f32.mrf.mxu0
      %1771 = vmatprep.mubr.bf16.mxu0 0
      %1772 = vmatmul.mubr.bf16.gmra.mxu0 %v1647
      %v1773 = vpop.f32.mrf.mxu0
      %v1774 = vadd.f32 0.0, %v1773
      %v1775 = vpop.f32.mrf.mxu0
      %v1776 = vpop.f32.mrf.mxu0
      %v1777 = vadd.f32 0.0, %v1776
      %v1778 = vpop.f32.mrf.mxu0
      %1779 = vmatprep.mubr.bf16.mxu0 0
      %1780 = vmatmul.mubr.bf16.gmra.mxu0 %v1648
      %v1781 = vpop.f32.mrf.mxu0
      %v1782 = vadd.f32 0.0, %v1781
      %v1783 = vpop.f32.mrf.mxu0
      %v1784 = vpop.f32.mrf.mxu0
      %v1785 = vadd.f32 0.0, %v1784
      %v1786 = vpop.f32.mrf.mxu0
      %1787 = vmatprep.mubr.bf16.mxu0 0
      %1788 = vmatmul.mubr.bf16.gmra.mxu0 %v1649
      %v1789 = vpop.f32.mrf.mxu0
      %v1790 = vadd.f32 0.0, %v1789
      %v1791 = vpop.f32.mrf.mxu0
      %v1792 = vpop.f32.mrf.mxu0
      %v1793 = vadd.f32 0.0, %v1792
      %v1794 = vpop.f32.mrf.mxu0
      %1795 = vmatprep.mubr.bf16.mxu0 0
      %1796 = vmatmul.mubr.bf16.gmra.mxu0 %v1650
      %v1797 = vpop.f32.mrf.mxu0
      %v1798 = vadd.f32 0.0, %v1797
      %v1799 = vpop.f32.mrf.mxu0
      %v1800 = vpop.f32.mrf.mxu0
      %v1801 = vadd.f32 0.0, %v1800
      %v1802 = vpop.f32.mrf.mxu0
      %1803 = vdwg.mxu0
      %v1804 = vadd.f32 %v866, %v1742
      %v1805 = vadd.f32 %v869, %v1745
      %v1806 = vadd.f32 %v874, %v1750
      %v1807 = vadd.f32 %v877, %v1753
      %v1808 = vadd.f32 %v882, %v1758
      %v1809 = vadd.f32 %v885, %v1761
      %v1810 = vadd.f32 %v890, %v1766
      %v1811 = vadd.f32 %v893, %v1769
      %v1812 = vadd.f32 %v898, %v1774
      %v1813 = vadd.f32 %v901, %v1777
      %v1814 = vadd.f32 %v906, %v1782
      %v1815 = vadd.f32 %v909, %v1785
      %v1816 = vadd.f32 %v914, %v1790
      %v1817 = vadd.f32 %v917, %v1793
      %v1818 = vadd.f32 %v922, %v1798
      %v1819 = vadd.f32 %v925, %v1801
      %s1820 = scalar_lea.vmem %s2, 384
      %v1821 = vld [vmem:[%s1820] sm:$0xf]
      %v1822 = vld [vmem:[%s1820 + $0x4] sm:$0xf]
      %v1823 = vld [vmem:[%s1820 + $0x8] sm:$0xf]
      %v1824 = vld [vmem:[%s1820 + $0xc] sm:$0xf]
      %v1825 = vld [vmem:[%s1820 + $0x10] sm:$0xf]
      %v1826 = vld [vmem:[%s1820 + $0x14] sm:$0xf]
      %v1827 = vld [vmem:[%s1820 + $0x18] sm:$0xf]
      %v1828 = vld [vmem:[%s1820 + $0x1c] sm:$0xf]
      %v1829 = vld [vmem:[%s1820 + $0x20] sm:$0xf]
      %v1830 = vld [vmem:[%s1820 + $0x24] sm:$0xf]
      %v1831 = vld [vmem:[%s1820 + $0x28] sm:$0xf]
      %v1832 = vld [vmem:[%s1820 + $0x2c] sm:$0xf]
      %v1833 = vld [vmem:[%s1820 + $0x30] sm:$0xf]
      %v1834 = vld [vmem:[%s1820 + $0x34] sm:$0xf]
      %v1835 = vld [vmem:[%s1820 + $0x38] sm:$0xf]
      %v1836 = vld [vmem:[%s1820 + $0x3c] sm:$0xf]
      %v1853 = vunpack.c.l.b16 %v1821
      %v1854 = vunpack.c.l.b16 %v1822
      %v1855 = vunpack.c.l.b16 %v1823
      %v1856 = vunpack.c.l.b16 %v1824
      %v1857 = vunpack.c.l.b16 %v1825
      %v1858 = vunpack.c.l.b16 %v1826
      %v1859 = vunpack.c.l.b16 %v1827
      %v1860 = vunpack.c.l.b16 %v1828
      %v1861 = vunpack.c.l.b16 %v1829
      %v1862 = vunpack.c.l.b16 %v1830
      %v1863 = vunpack.c.l.b16 %v1831
      %v1864 = vunpack.c.l.b16 %v1832
      %v1865 = vunpack.c.l.b16 %v1833
      %v1866 = vunpack.c.l.b16 %v1834
      %v1867 = vunpack.c.l.b16 %v1835
      %v1868 = vunpack.c.l.b16 %v1836
      %v1869 = vpack.c.b16 %v1854, %v1853
      %v1870 = vpack.c.b16 %v1856, %v1855
      %v1871 = vpack.c.b16 %v1858, %v1857
      %v1872 = vpack.c.b16 %v1860, %v1859
      %v1873 = vpack.c.b16 %v1862, %v1861
      %v1874 = vpack.c.b16 %v1864, %v1863
      %v1875 = vpack.c.b16 %v1866, %v1865
      %v1876 = vpack.c.b16 %v1868, %v1867
      %1885 = vmatprep.subr.bf16.mxu0 0
      %1886 = vmatpush1.bf16.msra.mxu0 %v1876
      %1887 = vmatprep.subr.bf16.mxu0 0
      %1888 = vmatpush1.bf16.msra.mxu0 %v1875
      %1889 = vmatprep.subr.bf16.mxu0 0
      %1890 = vmatpush1.bf16.msra.mxu0 %v1874
      %1891 = vmatprep.subr.bf16.mxu0 0
      %1892 = vmatpush1.bf16.msra.mxu0 %v1873
      %1893 = vmatprep.subr.bf16.mxu0 0
      %1894 = vmatpush1.bf16.msra.mxu0 %v1872
      %1895 = vmatprep.subr.bf16.mxu0 0
      %1896 = vmatpush1.bf16.msra.mxu0 %v1871
      %1897 = vmatprep.subr.bf16.mxu0 0
      %1898 = vmatpush1.bf16.msra.mxu0 %v1870
      %1899 = vmatprep.subr.bf16.mxu0 0
      %1900 = vmatpush1.bf16.msra.mxu0 %v1869
      %1901 = vmatprep.subr.bf16.mxu0 0
      %1902 = vmatpush2.bf16.msra.mxu0 0
      %1903 = vmatprep.subr.bf16.mxu0 0
      %1904 = vmatpush2.bf16.msra.mxu0 0
      %1905 = vmatprep.subr.bf16.mxu0 0
      %1906 = vmatpush2.bf16.msra.mxu0 0
      %1907 = vmatprep.subr.bf16.mxu0 0
      %1908 = vmatpush2.bf16.msra.mxu0 0
      %1909 = vmatprep.subr.bf16.mxu0 0
      %1910 = vmatpush2.bf16.msra.mxu0 0
      %1911 = vmatprep.subr.bf16.mxu0 0
      %1912 = vmatpush2.bf16.msra.mxu0 0
      %1913 = vmatprep.subr.bf16.mxu0 0
      %1914 = vmatpush2.bf16.msra.mxu0 0
      %1915 = vmatprep.subr.bf16.mxu0 0
      %1916 = vmatpush2.bf16.msra.mxu0 0
      %1917 = vmatprep.mubr.bf16.mxu0 0
      %1918 = vmatmul.mubr.bf16.gmra.mxu0 %v1643
      %v1919 = vpop.f32.mrf.mxu0
      %v1920 = vadd.f32 0.0, %v1919
      %v1921 = vpop.f32.mrf.mxu0
      %v1922 = vpop.f32.mrf.mxu0
      %v1923 = vadd.f32 0.0, %v1922
      %v1924 = vpop.f32.mrf.mxu0
      %1925 = vmatprep.mubr.bf16.mxu0 0
      %1926 = vmatmul.mubr.bf16.gmra.mxu0 %v1644
      %v1927 = vpop.f32.mrf.mxu0
      %v1928 = vadd.f32 0.0, %v1927
      %v1929 = vpop.f32.mrf.mxu0
      %v1930 = vpop.f32.mrf.mxu0
      %v1931 = vadd.f32 0.0, %v1930
      %v1932 = vpop.f32.mrf.mxu0
      %1933 = vmatprep.mubr.bf16.mxu0 0
      %1934 = vmatmul.mubr.bf16.gmra.mxu0 %v1645
      %v1935 = vpop.f32.mrf.mxu0
      %v1936 = vadd.f32 0.0, %v1935
      %v1937 = vpop.f32.mrf.mxu0
      %v1938 = vpop.f32.mrf.mxu0
      %v1939 = vadd.f32 0.0, %v1938
      %v1940 = vpop.f32.mrf.mxu0
      %1941 = vmatprep.mubr.bf16.mxu0 0
      %1942 = vmatmul.mubr.bf16.gmra.mxu0 %v1646
      %v1943 = vpop.f32.mrf.mxu0
      %v1944 = vadd.f32 0.0, %v1943
      %v1945 = vpop.f32.mrf.mxu0
      %v1946 = vpop.f32.mrf.mxu0
      %v1947 = vadd.f32 0.0, %v1946
      %v1948 = vpop.f32.mrf.mxu0
      %1949 = vmatprep.mubr.bf16.mxu0 0
      %1950 = vmatmul.mubr.bf16.gmra.mxu0 %v1647
      %v1951 = vpop.f32.mrf.mxu0
      %v1952 = vadd.f32 0.0, %v1951
      %v1953 = vpop.f32.mrf.mxu0
      %v1954 = vpop.f32.mrf.mxu0
      %v1955 = vadd.f32 0.0, %v1954
      %v1956 = vpop.f32.mrf.mxu0
      %1957 = vmatprep.mubr.bf16.mxu0 0
      %1958 = vmatmul.mubr.bf16.gmra.mxu0 %v1648
      %v1959 = vpop.f32.mrf.mxu0
      %v1960 = vadd.f32 0.0, %v1959
      %v1961 = vpop.f32.mrf.mxu0
      %v1962 = vpop.f32.mrf.mxu0
      %v1963 = vadd.f32 0.0, %v1962
      %v1964 = vpop.f32.mrf.mxu0
      %1965 = vmatprep.mubr.bf16.mxu0 0
      %1966 = vmatmul.mubr.bf16.gmra.mxu0 %v1649
      %v1967 = vpop.f32.mrf.mxu0
      %v1968 = vadd.f32 0.0, %v1967
      %v1969 = vpop.f32.mrf.mxu0
      %v1970 = vpop.f32.mrf.mxu0
      %v1971 = vadd.f32 0.0, %v1970
      %v1972 = vpop.f32.mrf.mxu0
      %1973 = vmatprep.mubr.bf16.mxu0 0
      %1974 = vmatmul.mubr.bf16.gmra.mxu0 %v1650
      %v1975 = vpop.f32.mrf.mxu0
      %v1976 = vadd.f32 0.0, %v1975
      %v1977 = vpop.f32.mrf.mxu0
      %v1978 = vpop.f32.mrf.mxu0
      %v1979 = vadd.f32 0.0, %v1978
      %v1980 = vpop.f32.mrf.mxu0
      %1981 = vdwg.mxu0
      %s1982 = scalar_lea.vmem %s2, 512
      %v1983 = vld [vmem:[%s1982] sm:$0xf]
      %v1984 = vld [vmem:[%s1982 + $0x4] sm:$0xf]
      %v1985 = vld [vmem:[%s1982 + $0x8] sm:$0xf]
      %v1986 = vld [vmem:[%s1982 + $0xc] sm:$0xf]
      %v1987 = vld [vmem:[%s1982 + $0x10] sm:$0xf]
      %v1988 = vld [vmem:[%s1982 + $0x14] sm:$0xf]
      %v1989 = vld [vmem:[%s1982 + $0x18] sm:$0xf]
      %v1990 = vld [vmem:[%s1982 + $0x1c] sm:$0xf]
      %v1991 = vld [vmem:[%s1982 + $0x20] sm:$0xf]
      %v1992 = vld [vmem:[%s1982 + $0x24] sm:$0xf]
      %v1993 = vld [vmem:[%s1982 + $0x28] sm:$0xf]
      %v1994 = vld [vmem:[%s1982 + $0x2c] sm:$0xf]
      %v1995 = vld [vmem:[%s1982 + $0x30] sm:$0xf]
      %v1996 = vld [vmem:[%s1982 + $0x34] sm:$0xf]
      %v1997 = vld [vmem:[%s1982 + $0x38] sm:$0xf]
      %v1998 = vld [vmem:[%s1982 + $0x3c] sm:$0xf]
      %v2015 = vunpack.c.l.b16 %v1983
      %v2016 = vunpack.c.l.b16 %v1984
      %v2017 = vunpack.c.l.b16 %v1985
      %v2018 = vunpack.c.l.b16 %v1986
      %v2019 = vunpack.c.l.b16 %v1987
      %v2020 = vunpack.c.l.b16 %v1988
      %v2021 = vunpack.c.l.b16 %v1989
      %v2022 = vunpack.c.l.b16 %v1990
      %v2023 = vunpack.c.l.b16 %v1991
      %v2024 = vunpack.c.l.b16 %v1992
      %v2025 = vunpack.c.l.b16 %v1993
      %v2026 = vunpack.c.l.b16 %v1994
      %v2027 = vunpack.c.l.b16 %v1995
      %v2028 = vunpack.c.l.b16 %v1996
      %v2029 = vunpack.c.l.b16 %v1997
      %v2030 = vunpack.c.l.b16 %v1998
      %v2031 = vpack.c.b16 %v2016, %v2015
      %v2032 = vpack.c.b16 %v2018, %v2017
      %v2033 = vpack.c.b16 %v2020, %v2019
      %v2034 = vpack.c.b16 %v2022, %v2021
      %v2035 = vpack.c.b16 %v2024, %v2023
      %v2036 = vpack.c.b16 %v2026, %v2025
      %v2037 = vpack.c.b16 %v2028, %v2027
      %v2038 = vpack.c.b16 %v2030, %v2029
      %2047 = vmatprep.subr.bf16.mxu0 0
      %2048 = vmatpush1.bf16.msra.mxu0 %v2038
      %2049 = vmatprep.subr.bf16.mxu0 0
      %2050 = vmatpush1.bf16.msra.mxu0 %v2037
      %2051 = vmatprep.subr.bf16.mxu0 0
      %2052 = vmatpush1.bf16.msra.mxu0 %v2036
      %2053 = vmatprep.subr.bf16.mxu0 0
      %2054 = vmatpush1.bf16.msra.mxu0 %v2035
      %2055 = vmatprep.subr.bf16.mxu0 0
      %2056 = vmatpush1.bf16.msra.mxu0 %v2034
      %2057 = vmatprep.subr.bf16.mxu0 0
      %2058 = vmatpush1.bf16.msra.mxu0 %v2033
      %2059 = vmatprep.subr.bf16.mxu0 0
      %2060 = vmatpush1.bf16.msra.mxu0 %v2032
      %2061 = vmatprep.subr.bf16.mxu0 0
      %2062 = vmatpush1.bf16.msra.mxu0 %v2031
      %2063 = vmatprep.subr.bf16.mxu0 0
      %2064 = vmatpush2.bf16.msra.mxu0 0
      %2065 = vmatprep.subr.bf16.mxu0 0
      %2066 = vmatpush2.bf16.msra.mxu0 0
      %2067 = vmatprep.subr.bf16.mxu0 0
      %2068 = vmatpush2.bf16.msra.mxu0 0
      %2069 = vmatprep.subr.bf16.mxu0 0
      %2070 = vmatpush2.bf16.msra.mxu0 0
      %2071 = vmatprep.subr.bf16.mxu0 0
      %2072 = vmatpush2.bf16.msra.mxu0 0
      %2073 = vmatprep.subr.bf16.mxu0 0
      %2074 = vmatpush2.bf16.msra.mxu0 0
      %2075 = vmatprep.subr.bf16.mxu0 0
      %2076 = vmatpush2.bf16.msra.mxu0 0
      %2077 = vmatprep.subr.bf16.mxu0 0
      %2078 = vmatpush2.bf16.msra.mxu0 0
      %2079 = vmatprep.mubr.bf16.mxu0 0
      %2080 = vmatmul.mubr.bf16.gmra.mxu0 %v1643
      %v2081 = vpop.f32.mrf.mxu0
      %v2082 = vadd.f32 0.0, %v2081
      %v2083 = vpop.f32.mrf.mxu0
      %v2084 = vpop.f32.mrf.mxu0
      %v2085 = vadd.f32 0.0, %v2084
      %v2086 = vpop.f32.mrf.mxu0
      %2087 = vmatprep.mubr.bf16.mxu0 0
      %2088 = vmatmul.mubr.bf16.gmra.mxu0 %v1644
      %v2089 = vpop.f32.mrf.mxu0
      %v2090 = vadd.f32 0.0, %v2089
      %v2091 = vpop.f32.mrf.mxu0
      %v2092 = vpop.f32.mrf.mxu0
      %v2093 = vadd.f32 0.0, %v2092
      %v2094 = vpop.f32.mrf.mxu0
      %2095 = vmatprep.mubr.bf16.mxu0 0
      %2096 = vmatmul.mubr.bf16.gmra.mxu0 %v1645
      %v2097 = vpop.f32.mrf.mxu0
      %v2098 = vadd.f32 0.0, %v2097
      %v2099 = vpop.f32.mrf.mxu0
      %v2100 = vpop.f32.mrf.mxu0
      %v2101 = vadd.f32 0.0, %v2100
      %v2102 = vpop.f32.mrf.mxu0
      %2103 = vmatprep.mubr.bf16.mxu0 0
      %2104 = vmatmul.mubr.bf16.gmra.mxu0 %v1646
      %v2105 = vpop.f32.mrf.mxu0
      %v2106 = vadd.f32 0.0, %v2105
      %v2107 = vpop.f32.mrf.mxu0
      %v2108 = vpop.f32.mrf.mxu0
      %v2109 = vadd.f32 0.0, %v2108
      %v2110 = vpop.f32.mrf.mxu0
      %2111 = vmatprep.mubr.bf16.mxu0 0
      %2112 = vmatmul.mubr.bf16.gmra.mxu0 %v1647
      %v2113 = vpop.f32.mrf.mxu0
      %v2114 = vadd.f32 0.0, %v2113
      %v2115 = vpop.f32.mrf.mxu0
      %v2116 = vpop.f32.mrf.mxu0
      %v2117 = vadd.f32 0.0, %v2116
      %v2118 = vpop.f32.mrf.mxu0
      %2119 = vmatprep.mubr.bf16.mxu0 0
      %2120 = vmatmul.mubr.bf16.gmra.mxu0 %v1648
      %v2121 = vpop.f32.mrf.mxu0
      %v2122 = vadd.f32 0.0, %v2121
      %v2123 = vpop.f32.mrf.mxu0
      %v2124 = vpop.f32.mrf.mxu0
      %v2125 = vadd.f32 0.0, %v2124
      %v2126 = vpop.f32.mrf.mxu0
      %2127 = vmatprep.mubr.bf16.mxu0 0
      %2128 = vmatmul.mubr.bf16.gmra.mxu0 %v1649
      %v2129 = vpop.f32.mrf.mxu0
      %v2130 = vadd.f32 0.0, %v2129
      %v2131 = vpop.f32.mrf.mxu0
      %v2132 = vpop.f32.mrf.mxu0
      %v2133 = vadd.f32 0.0, %v2132
      %v2134 = vpop.f32.mrf.mxu0
      %2135 = vmatprep.mubr.bf16.mxu0 0
      %2136 = vmatmul.mubr.bf16.gmra.mxu0 %v1650
      %v2137 = vpop.f32.mrf.mxu0
      %v2138 = vadd.f32 0.0, %v2137
      %v2139 = vpop.f32.mrf.mxu0
      %v2140 = vpop.f32.mrf.mxu0
      %v2141 = vadd.f32 0.0, %v2140
      %v2142 = vpop.f32.mrf.mxu0
      %2143 = vdwg.mxu0
      %v2144 = vadd.f32 %v1368, %v1920
      %v2145 = vadd.f32 %v1371, %v1923
      %v2146 = vadd.f32 %v1376, %v1928
      %v2147 = vadd.f32 %v1379, %v1931
      %v2148 = vadd.f32 %v1384, %v1936
      %v2149 = vadd.f32 %v1387, %v1939
      %v2150 = vadd.f32 %v1392, %v1944
      %v2151 = vadd.f32 %v1395, %v1947
      %v2152 = vadd.f32 %v1400, %v1952
      %v2153 = vadd.f32 %v1403, %v1955
      %v2154 = vadd.f32 %v1408, %v1960
      %v2155 = vadd.f32 %v1411, %v1963
      %v2156 = vadd.f32 %v1416, %v1968
      %v2157 = vadd.f32 %v1419, %v1971
      %v2158 = vadd.f32 %v1424, %v1976
      %v2159 = vadd.f32 %v1427, %v1979
      %v2160 = vadd.f32 %v1513, %v2082
      %v2161 = vadd.f32 %v1516, %v2085
      %v2162 = vadd.f32 %v1521, %v2090
      %v2163 = vadd.f32 %v1524, %v2093
      %v2164 = vadd.f32 %v1529, %v2098
      %v2165 = vadd.f32 %v1532, %v2101
      %v2166 = vadd.f32 %v1537, %v2106
      %v2167 = vadd.f32 %v1540, %v2109
      %v2168 = vadd.f32 %v1545, %v2114
      %v2169 = vadd.f32 %v1548, %v2117
      %v2170 = vadd.f32 %v1553, %v2122
      %v2171 = vadd.f32 %v1556, %v2125
      %v2172 = vadd.f32 %v1561, %v2130
      %v2173 = vadd.f32 %v1564, %v2133
      %v2174 = vadd.f32 %v1569, %v2138
      %v2175 = vadd.f32 %v1572, %v2141
      %s2176 = smul.addr %s470, 4
      %s2177 = scalar_lea.vmem [#allocation2], %s2176
      %v2178 = vld [vmem:[%s2177] sm:$0xf]
      %v2179 = vld [vmem:[%s2177 + $0x4] sm:$0xf]
      %v2180 = vld [vmem:[%s2177 + $0x8] sm:$0xf]
      %v2181 = vld [vmem:[%s2177 + $0xc] sm:$0xf]
      %v2182 = vld [vmem:[%s2177 + $0x10] sm:$0xf]
      %v2183 = vld [vmem:[%s2177 + $0x14] sm:$0xf]
      %v2184 = vld [vmem:[%s2177 + $0x18] sm:$0xf]
      %v2185 = vld [vmem:[%s2177 + $0x1c] sm:$0xf]
      %v2186 = vld [vmem:[%s2177 + $0x20] sm:$0xf]
      %v2187 = vld [vmem:[%s2177 + $0x24] sm:$0xf]
      %v2188 = vld [vmem:[%s2177 + $0x28] sm:$0xf]
      %v2189 = vld [vmem:[%s2177 + $0x2c] sm:$0xf]
      %v2190 = vld [vmem:[%s2177 + $0x30] sm:$0xf]
      %v2191 = vld [vmem:[%s2177 + $0x34] sm:$0xf]
      %v2192 = vld [vmem:[%s2177 + $0x38] sm:$0xf]
      %v2193 = vld [vmem:[%s2177 + $0x3c] sm:$0xf]
      %s2194 = scalar_lea.vmem %s3, 64
      %v2195 = vld [vmem:[%s2194] sm:$0xf]
      %v2196 = vld [vmem:[%s2194 + $0x4] sm:$0xf]
      %v2197 = vld [vmem:[%s2194 + $0x8] sm:$0xf]
      %v2198 = vld [vmem:[%s2194 + $0xc] sm:$0xf]
      %v2199 = vld [vmem:[%s2194 + $0x10] sm:$0xf]
      %v2200 = vld [vmem:[%s2194 + $0x14] sm:$0xf]
      %v2201 = vld [vmem:[%s2194 + $0x18] sm:$0xf]
      %v2202 = vld [vmem:[%s2194 + $0x1c] sm:$0xf]
      %v2203 = vld [vmem:[%s2194 + $0x20] sm:$0xf]
      %v2204 = vld [vmem:[%s2194 + $0x24] sm:$0xf]
      %v2205 = vld [vmem:[%s2194 + $0x28] sm:$0xf]
      %v2206 = vld [vmem:[%s2194 + $0x2c] sm:$0xf]
      %v2207 = vld [vmem:[%s2194 + $0x30] sm:$0xf]
      %v2208 = vld [vmem:[%s2194 + $0x34] sm:$0xf]
      %v2209 = vld [vmem:[%s2194 + $0x38] sm:$0xf]
      %v2210 = vld [vmem:[%s2194 + $0x3c] sm:$0xf]
      %v2227 = vunpack.c.l.b16 %v2178
      %v2228 = vunpack.c.l.b16 %v2179
      %v2229 = vunpack.c.l.b16 %v2180
      %v2230 = vunpack.c.l.b16 %v2181
      %v2231 = vunpack.c.l.b16 %v2182
      %v2232 = vunpack.c.l.b16 %v2183
      %v2233 = vunpack.c.l.b16 %v2184
      %v2234 = vunpack.c.l.b16 %v2185
      %v2235 = vunpack.c.l.b16 %v2186
      %v2236 = vunpack.c.l.b16 %v2187
      %v2237 = vunpack.c.l.b16 %v2188
      %v2238 = vunpack.c.l.b16 %v2189
      %v2239 = vunpack.c.l.b16 %v2190
      %v2240 = vunpack.c.l.b16 %v2191
      %v2241 = vunpack.c.l.b16 %v2192
      %v2242 = vunpack.c.l.b16 %v2193
      %v2243 = vpack.c.b16 %v2228, %v2227
      %v2244 = vpack.c.b16 %v2230, %v2229
      %v2245 = vpack.c.b16 %v2232, %v2231
      %v2246 = vpack.c.b16 %v2234, %v2233
      %v2247 = vpack.c.b16 %v2236, %v2235
      %v2248 = vpack.c.b16 %v2238, %v2237
      %v2249 = vpack.c.b16 %v2240, %v2239
      %v2250 = vpack.c.b16 %v2242, %v2241
      %v2275 = vunpack.c.l.b16 %v2195
      %v2276 = vunpack.c.l.b16 %v2196
      %v2277 = vunpack.c.l.b16 %v2197
      %v2278 = vunpack.c.l.b16 %v2198
      %v2279 = vunpack.c.l.b16 %v2199
      %v2280 = vunpack.c.l.b16 %v2200
      %v2281 = vunpack.c.l.b16 %v2201
      %v2282 = vunpack.c.l.b16 %v2202
      %v2283 = vunpack.c.l.b16 %v2203
      %v2284 = vunpack.c.l.b16 %v2204
      %v2285 = vunpack.c.l.b16 %v2205
      %v2286 = vunpack.c.l.b16 %v2206
      %v2287 = vunpack.c.l.b16 %v2207
      %v2288 = vunpack.c.l.b16 %v2208
      %v2289 = vunpack.c.l.b16 %v2209
      %v2290 = vunpack.c.l.b16 %v2210
      %v2291 = vpack.c.b16 %v2276, %v2275
      %v2292 = vpack.c.b16 %v2278, %v2277
      %v2293 = vpack.c.b16 %v2280, %v2279
      %v2294 = vpack.c.b16 %v2282, %v2281
      %v2295 = vpack.c.b16 %v2284, %v2283
      %v2296 = vpack.c.b16 %v2286, %v2285
      %v2297 = vpack.c.b16 %v2288, %v2287
      %v2298 = vpack.c.b16 %v2290, %v2289
      %2307 = vmatprep.subr.bf16.mxu0 0
      %2308 = vmatpush1.bf16.msra.mxu0 %v2298
      %2309 = vmatprep.subr.bf16.mxu0 0
      %2310 = vmatpush1.bf16.msra.mxu0 %v2297
      %2311 = vmatprep.subr.bf16.mxu0 0
      %2312 = vmatpush1.bf16.msra.mxu0 %v2296
      %2313 = vmatprep.subr.bf16.mxu0 0
      %2314 = vmatpush1.bf16.msra.mxu0 %v2295
      %2315 = vmatprep.subr.bf16.mxu0 0
      %2316 = vmatpush1.bf16.msra.mxu0 %v2294
      %2317 = vmatprep.subr.bf16.mxu0 0
      %2318 = vmatpush1.bf16.msra.mxu0 %v2293
      %2319 = vmatprep.subr.bf16.mxu0 0
      %2320 = vmatpush1.bf16.msra.mxu0 %v2292
      %2321 = vmatprep.subr.bf16.mxu0 0
      %2322 = vmatpush1.bf16.msra.mxu0 %v2291
      %2323 = vmatprep.subr.bf16.mxu0 0
      %2324 = vmatpush2.bf16.msra.mxu0 0
      %2325 = vmatprep.subr.bf16.mxu0 0
      %2326 = vmatpush2.bf16.msra.mxu0 0
      %2327 = vmatprep.subr.bf16.mxu0 0
      %2328 = vmatpush2.bf16.msra.mxu0 0
      %2329 = vmatprep.subr.bf16.mxu0 0
      %2330 = vmatpush2.bf16.msra.mxu0 0
      %2331 = vmatprep.subr.bf16.mxu0 0
      %2332 = vmatpush2.bf16.msra.mxu0 0
      %2333 = vmatprep.subr.bf16.mxu0 0
      %2334 = vmatpush2.bf16.msra.mxu0 0
      %2335 = vmatprep.subr.bf16.mxu0 0
      %2336 = vmatpush2.bf16.msra.mxu0 0
      %2337 = vmatprep.subr.bf16.mxu0 0
      %2338 = vmatpush2.bf16.msra.mxu0 0
      %2339 = vmatprep.mubr.bf16.mxu0 0
      %2340 = vmatmul.mubr.bf16.gmra.mxu0 %v2243
      %v2341 = vpop.f32.mrf.mxu0
      %v2342 = vadd.f32 0.0, %v2341
      %v2343 = vpop.f32.mrf.mxu0
      %v2344 = vpop.f32.mrf.mxu0
      %v2345 = vadd.f32 0.0, %v2344
      %v2346 = vpop.f32.mrf.mxu0
      %2347 = vmatprep.mubr.bf16.mxu0 0
      %2348 = vmatmul.mubr.bf16.gmra.mxu0 %v2244
      %v2349 = vpop.f32.mrf.mxu0
      %v2350 = vadd.f32 0.0, %v2349
      %v2351 = vpop.f32.mrf.mxu0
      %v2352 = vpop.f32.mrf.mxu0
      %v2353 = vadd.f32 0.0, %v2352
      %v2354 = vpop.f32.mrf.mxu0
      %2355 = vmatprep.mubr.bf16.mxu0 0
      %2356 = vmatmul.mubr.bf16.gmra.mxu0 %v2245
      %v2357 = vpop.f32.mrf.mxu0
      %v2358 = vadd.f32 0.0, %v2357
      %v2359 = vpop.f32.mrf.mxu0
      %v2360 = vpop.f32.mrf.mxu0
      %v2361 = vadd.f32 0.0, %v2360
      %v2362 = vpop.f32.mrf.mxu0
      %2363 = vmatprep.mubr.bf16.mxu0 0
      %2364 = vmatmul.mubr.bf16.gmra.mxu0 %v2246
      %v2365 = vpop.f32.mrf.mxu0
      %v2366 = vadd.f32 0.0, %v2365
      %v2367 = vpop.f32.mrf.mxu0
      %v2368 = vpop.f32.mrf.mxu0
      %v2369 = vadd.f32 0.0, %v2368
      %v2370 = vpop.f32.mrf.mxu0
      %2371 = vmatprep.mubr.bf16.mxu0 0
      %2372 = vmatmul.mubr.bf16.gmra.mxu0 %v2247
      %v2373 = vpop.f32.mrf.mxu0
      %v2374 = vadd.f32 0.0, %v2373
      %v2375 = vpop.f32.mrf.mxu0
      %v2376 = vpop.f32.mrf.mxu0
      %v2377 = vadd.f32 0.0, %v2376
      %v2378 = vpop.f32.mrf.mxu0
      %2379 = vmatprep.mubr.bf16.mxu0 0
      %2380 = vmatmul.mubr.bf16.gmra.mxu0 %v2248
      %v2381 = vpop.f32.mrf.mxu0
      %v2382 = vadd.f32 0.0, %v2381
      %v2383 = vpop.f32.mrf.mxu0
      %v2384 = vpop.f32.mrf.mxu0
      %v2385 = vadd.f32 0.0, %v2384
      %v2386 = vpop.f32.mrf.mxu0
      %2387 = vmatprep.mubr.bf16.mxu0 0
      %2388 = vmatmul.mubr.bf16.gmra.mxu0 %v2249
      %v2389 = vpop.f32.mrf.mxu0
      %v2390 = vadd.f32 0.0, %v2389
      %v2391 = vpop.f32.mrf.mxu0
      %v2392 = vpop.f32.mrf.mxu0
      %v2393 = vadd.f32 0.0, %v2392
      %v2394 = vpop.f32.mrf.mxu0
      %2395 = vmatprep.mubr.bf16.mxu0 0
      %2396 = vmatmul.mubr.bf16.gmra.mxu0 %v2250
      %v2397 = vpop.f32.mrf.mxu0
      %v2398 = vadd.f32 0.0, %v2397
      %v2399 = vpop.f32.mrf.mxu0
      %v2400 = vpop.f32.mrf.mxu0
      %v2401 = vadd.f32 0.0, %v2400
      %v2402 = vpop.f32.mrf.mxu0
      %2403 = vdwg.mxu0
      %v2404 = vadd.f32 %v1804, %v2342
      %v2405 = vadd.f32 %v1805, %v2345
      %v2406 = vadd.f32 %v1806, %v2350
      %v2407 = vadd.f32 %v1807, %v2353
      %v2408 = vadd.f32 %v1808, %v2358
      %v2409 = vadd.f32 %v1809, %v2361
      %v2410 = vadd.f32 %v1810, %v2366
      %v2411 = vadd.f32 %v1811, %v2369
      %v2412 = vadd.f32 %v1812, %v2374
      %v2413 = vadd.f32 %v1813, %v2377
      %v2414 = vadd.f32 %v1814, %v2382
      %v2415 = vadd.f32 %v1815, %v2385
      %v2416 = vadd.f32 %v1816, %v2390
      %v2417 = vadd.f32 %v1817, %v2393
      %v2418 = vadd.f32 %v1818, %v2398
      %v2419 = vadd.f32 %v1819, %v2401
      %v2420 = vld [vmem:[%s3] sm:$0xf]
      %v2421 = vld [vmem:[%s3 + $0x4] sm:$0xf]
      %v2422 = vld [vmem:[%s3 + $0x8] sm:$0xf]
      %v2423 = vld [vmem:[%s3 + $0xc] sm:$0xf]
      %v2424 = vld [vmem:[%s3 + $0x10] sm:$0xf]
      %v2425 = vld [vmem:[%s3 + $0x14] sm:$0xf]
      %v2426 = vld [vmem:[%s3 + $0x18] sm:$0xf]
      %v2427 = vld [vmem:[%s3 + $0x1c] sm:$0xf]
      %v2428 = vld [vmem:[%s3 + $0x20] sm:$0xf]
      %v2429 = vld [vmem:[%s3 + $0x24] sm:$0xf]
      %v2430 = vld [vmem:[%s3 + $0x28] sm:$0xf]
      %v2431 = vld [vmem:[%s3 + $0x2c] sm:$0xf]
      %v2432 = vld [vmem:[%s3 + $0x30] sm:$0xf]
      %v2433 = vld [vmem:[%s3 + $0x34] sm:$0xf]
      %v2434 = vld [vmem:[%s3 + $0x38] sm:$0xf]
      %v2435 = vld [vmem:[%s3 + $0x3c] sm:$0xf]
      %s2436 = scalar_lea.vmem %s3, 128
      %v2437 = vld [vmem:[%s2436] sm:$0xf]
      %v2438 = vld [vmem:[%s2436 + $0x4] sm:$0xf]
      %v2439 = vld [vmem:[%s2436 + $0x8] sm:$0xf]
      %v2440 = vld [vmem:[%s2436 + $0xc] sm:$0xf]
      %v2441 = vld [vmem:[%s2436 + $0x10] sm:$0xf]
      %v2442 = vld [vmem:[%s2436 + $0x14] sm:$0xf]
      %v2443 = vld [vmem:[%s2436 + $0x18] sm:$0xf]
      %v2444 = vld [vmem:[%s2436 + $0x1c] sm:$0xf]
      %v2445 = vld [vmem:[%s2436 + $0x20] sm:$0xf]
      %v2446 = vld [vmem:[%s2436 + $0x24] sm:$0xf]
      %v2447 = vld [vmem:[%s2436 + $0x28] sm:$0xf]
      %v2448 = vld [vmem:[%s2436 + $0x2c] sm:$0xf]
      %v2449 = vld [vmem:[%s2436 + $0x30] sm:$0xf]
      %v2450 = vld [vmem:[%s2436 + $0x34] sm:$0xf]
      %v2451 = vld [vmem:[%s2436 + $0x38] sm:$0xf]
      %v2452 = vld [vmem:[%s2436 + $0x3c] sm:$0xf]
      %s2453 = scalar_lea.vmem %s3, 192
      %v2454 = vld [vmem:[%s2453] sm:$0xf]
      %v2455 = vld [vmem:[%s2453 + $0x4] sm:$0xf]
      %v2456 = vld [vmem:[%s2453 + $0x8] sm:$0xf]
      %v2457 = vld [vmem:[%s2453 + $0xc] sm:$0xf]
      %v2458 = vld [vmem:[%s2453 + $0x10] sm:$0xf]
      %v2459 = vld [vmem:[%s2453 + $0x14] sm:$0xf]
      %v2460 = vld [vmem:[%s2453 + $0x18] sm:$0xf]
      %v2461 = vld [vmem:[%s2453 + $0x1c] sm:$0xf]
      %v2462 = vld [vmem:[%s2453 + $0x20] sm:$0xf]
      %v2463 = vld [vmem:[%s2453 + $0x24] sm:$0xf]
      %v2464 = vld [vmem:[%s2453 + $0x28] sm:$0xf]
      %v2465 = vld [vmem:[%s2453 + $0x2c] sm:$0xf]
      %v2466 = vld [vmem:[%s2453 + $0x30] sm:$0xf]
      %v2467 = vld [vmem:[%s2453 + $0x34] sm:$0xf]
      %v2468 = vld [vmem:[%s2453 + $0x38] sm:$0xf]
      %v2469 = vld [vmem:[%s2453 + $0x3c] sm:$0xf]
      %v2486 = vunpack.c.l.b16 %v2454
      %v2487 = vunpack.c.l.b16 %v2455
      %v2488 = vunpack.c.l.b16 %v2456
      %v2489 = vunpack.c.l.b16 %v2457
      %v2490 = vunpack.c.l.b16 %v2458
      %v2491 = vunpack.c.l.b16 %v2459
      %v2492 = vunpack.c.l.b16 %v2460
      %v2493 = vunpack.c.l.b16 %v2461
      %v2494 = vunpack.c.l.b16 %v2462
      %v2495 = vunpack.c.l.b16 %v2463
      %v2496 = vunpack.c.l.b16 %v2464
      %v2497 = vunpack.c.l.b16 %v2465
      %v2498 = vunpack.c.l.b16 %v2466
      %v2499 = vunpack.c.l.b16 %v2467
      %v2500 = vunpack.c.l.b16 %v2468
      %v2501 = vunpack.c.l.b16 %v2469
      %v2502 = vpack.c.b16 %v2487, %v2486
      %v2503 = vpack.c.b16 %v2489, %v2488
      %v2504 = vpack.c.b16 %v2491, %v2490
      %v2505 = vpack.c.b16 %v2493, %v2492
      %v2506 = vpack.c.b16 %v2495, %v2494
      %v2507 = vpack.c.b16 %v2497, %v2496
      %v2508 = vpack.c.b16 %v2499, %v2498
      %v2509 = vpack.c.b16 %v2501, %v2500
      %2518 = vmatprep.subr.bf16.mxu0 0
      %2519 = vmatpush1.bf16.msra.mxu0 %v2509
      %2520 = vmatprep.subr.bf16.mxu0 0
      %2521 = vmatpush1.bf16.msra.mxu0 %v2508
      %2522 = vmatprep.subr.bf16.mxu0 0
      %2523 = vmatpush1.bf16.msra.mxu0 %v2507
      %2524 = vmatprep.subr.bf16.mxu0 0
      %2525 = vmatpush1.bf16.msra.mxu0 %v2506
      %2526 = vmatprep.subr.bf16.mxu0 0
      %2527 = vmatpush1.bf16.msra.mxu0 %v2505
      %2528 = vmatprep.subr.bf16.mxu0 0
      %2529 = vmatpush1.bf16.msra.mxu0 %v2504
      %2530 = vmatprep.subr.bf16.mxu0 0
      %2531 = vmatpush1.bf16.msra.mxu0 %v2503
      %2532 = vmatprep.subr.bf16.mxu0 0
      %2533 = vmatpush1.bf16.msra.mxu0 %v2502
      %2534 = vmatprep.subr.bf16.mxu0 0
      %2535 = vmatpush2.bf16.msra.mxu0 0
      %2536 = vmatprep.subr.bf16.mxu0 0
      %2537 = vmatpush2.bf16.msra.mxu0 0
      %2538 = vmatprep.subr.bf16.mxu0 0
      %2539 = vmatpush2.bf16.msra.mxu0 0
      %2540 = vmatprep.subr.bf16.mxu0 0
      %2541 = vmatpush2.bf16.msra.mxu0 0
      %2542 = vmatprep.subr.bf16.mxu0 0
      %2543 = vmatpush2.bf16.msra.mxu0 0
      %2544 = vmatprep.subr.bf16.mxu0 0
      %2545 = vmatpush2.bf16.msra.mxu0 0
      %2546 = vmatprep.subr.bf16.mxu0 0
      %2547 = vmatpush2.bf16.msra.mxu0 0
      %2548 = vmatprep.subr.bf16.mxu0 0
      %2549 = vmatpush2.bf16.msra.mxu0 0
      %2550 = vmatprep.mubr.bf16.mxu0 0
      %2551 = vmatmul.mubr.bf16.gmra.mxu0 %v767
      %v2552 = vpop.f32.mrf.mxu0
      %v2553 = vadd.f32 0.0, %v2552
      %v2554 = vpop.f32.mrf.mxu0
      %v2555 = vpop.f32.mrf.mxu0
      %v2556 = vpop.f32.mrf.mxu0
      %2557 = vmatprep.mubr.bf16.mxu0 0
      %2558 = vmatmul.mubr.bf16.gmra.mxu0 %v768
      %v2559 = vpop.f32.mrf.mxu0
      %v2560 = vadd.f32 0.0, %v2559
      %v2561 = vpop.f32.mrf.mxu0
      %v2562 = vpop.f32.mrf.mxu0
      %v2563 = vpop.f32.mrf.mxu0
      %2564 = vmatprep.mubr.bf16.mxu0 0
      %2565 = vmatmul.mubr.bf16.gmra.mxu0 %v769
      %v2566 = vpop.f32.mrf.mxu0
      %v2567 = vadd.f32 0.0, %v2566
      %v2568 = vpop.f32.mrf.mxu0
      %v2569 = vpop.f32.mrf.mxu0
      %v2570 = vpop.f32.mrf.mxu0
      %2571 = vmatprep.mubr.bf16.mxu0 0
      %2572 = vmatmul.mubr.bf16.gmra.mxu0 %v770
      %v2573 = vpop.f32.mrf.mxu0
      %v2574 = vadd.f32 0.0, %v2573
      %v2575 = vpop.f32.mrf.mxu0
      %v2576 = vpop.f32.mrf.mxu0
      %v2577 = vpop.f32.mrf.mxu0
      %2578 = vmatprep.mubr.bf16.mxu0 0
      %2579 = vmatmul.mubr.bf16.gmra.mxu0 %v771
      %v2580 = vpop.f32.mrf.mxu0
      %v2581 = vadd.f32 0.0, %v2580
      %v2582 = vpop.f32.mrf.mxu0
      %v2583 = vpop.f32.mrf.mxu0
      %v2584 = vpop.f32.mrf.mxu0
      %2585 = vmatprep.mubr.bf16.mxu0 0
      %2586 = vmatmul.mubr.bf16.gmra.mxu0 %v772
      %v2587 = vpop.f32.mrf.mxu0
      %v2588 = vadd.f32 0.0, %v2587
      %v2589 = vpop.f32.mrf.mxu0
      %v2590 = vpop.f32.mrf.mxu0
      %v2591 = vpop.f32.mrf.mxu0
      %2592 = vmatprep.mubr.bf16.mxu0 0
      %2593 = vmatmul.mubr.bf16.gmra.mxu0 %v773
      %v2594 = vpop.f32.mrf.mxu0
      %v2595 = vadd.f32 0.0, %v2594
      %v2596 = vpop.f32.mrf.mxu0
      %v2597 = vpop.f32.mrf.mxu0
      %v2598 = vpop.f32.mrf.mxu0
      %2599 = vmatprep.mubr.bf16.mxu0 0
      %2600 = vmatmul.mubr.bf16.gmra.mxu0 %v774
      %v2601 = vpop.f32.mrf.mxu0
      %v2602 = vadd.f32 0.0, %v2601
      %v2603 = vpop.f32.mrf.mxu0
      %v2604 = vpop.f32.mrf.mxu0
      %v2605 = vpop.f32.mrf.mxu0
      %2606 = vdwg.mxu0
      %s2607 = scalar_lea.vmem %s3, 320
      %v2608 = vld [vmem:[%s2607] sm:$0xf]
      %v2609 = vld [vmem:[%s2607 + $0x4] sm:$0xf]
      %v2610 = vld [vmem:[%s2607 + $0x8] sm:$0xf]
      %v2611 = vld [vmem:[%s2607 + $0xc] sm:$0xf]
      %v2612 = vld [vmem:[%s2607 + $0x10] sm:$0xf]
      %v2613 = vld [vmem:[%s2607 + $0x14] sm:$0xf]
      %v2614 = vld [vmem:[%s2607 + $0x18] sm:$0xf]
      %v2615 = vld [vmem:[%s2607 + $0x1c] sm:$0xf]
      %v2616 = vld [vmem:[%s2607 + $0x20] sm:$0xf]
      %v2617 = vld [vmem:[%s2607 + $0x24] sm:$0xf]
      %v2618 = vld [vmem:[%s2607 + $0x28] sm:$0xf]
      %v2619 = vld [vmem:[%s2607 + $0x2c] sm:$0xf]
      %v2620 = vld [vmem:[%s2607 + $0x30] sm:$0xf]
      %v2621 = vld [vmem:[%s2607 + $0x34] sm:$0xf]
      %v2622 = vld [vmem:[%s2607 + $0x38] sm:$0xf]
      %v2623 = vld [vmem:[%s2607 + $0x3c] sm:$0xf]
      %v2640 = vunpack.c.l.b16 %v2608
      %v2641 = vunpack.c.l.b16 %v2609
      %v2642 = vunpack.c.l.b16 %v2610
      %v2643 = vunpack.c.l.b16 %v2611
      %v2644 = vunpack.c.l.b16 %v2612
      %v2645 = vunpack.c.l.b16 %v2613
      %v2646 = vunpack.c.l.b16 %v2614
      %v2647 = vunpack.c.l.b16 %v2615
      %v2648 = vunpack.c.l.b16 %v2616
      %v2649 = vunpack.c.l.b16 %v2617
      %v2650 = vunpack.c.l.b16 %v2618
      %v2651 = vunpack.c.l.b16 %v2619
      %v2652 = vunpack.c.l.b16 %v2620
      %v2653 = vunpack.c.l.b16 %v2621
      %v2654 = vunpack.c.l.b16 %v2622
      %v2655 = vunpack.c.l.b16 %v2623
      %v2656 = vpack.c.b16 %v2641, %v2640
      %v2657 = vpack.c.b16 %v2643, %v2642
      %v2658 = vpack.c.b16 %v2645, %v2644
      %v2659 = vpack.c.b16 %v2647, %v2646
      %v2660 = vpack.c.b16 %v2649, %v2648
      %v2661 = vpack.c.b16 %v2651, %v2650
      %v2662 = vpack.c.b16 %v2653, %v2652
      %v2663 = vpack.c.b16 %v2655, %v2654
      %2672 = vmatprep.subr.bf16.mxu0 0
      %2673 = vmatpush1.bf16.msra.mxu0 %v2663
      %2674 = vmatprep.subr.bf16.mxu0 0
      %2675 = vmatpush1.bf16.msra.mxu0 %v2662
      %2676 = vmatprep.subr.bf16.mxu0 0
      %2677 = vmatpush1.bf16.msra.mxu0 %v2661
      %2678 = vmatprep.subr.bf16.mxu0 0
      %2679 = vmatpush1.bf16.msra.mxu0 %v2660
      %2680 = vmatprep.subr.bf16.mxu0 0
      %2681 = vmatpush1.bf16.msra.mxu0 %v2659
      %2682 = vmatprep.subr.bf16.mxu0 0
      %2683 = vmatpush1.bf16.msra.mxu0 %v2658
      %2684 = vmatprep.subr.bf16.mxu0 0
      %2685 = vmatpush1.bf16.msra.mxu0 %v2657
      %2686 = vmatprep.subr.bf16.mxu0 0
      %2687 = vmatpush1.bf16.msra.mxu0 %v2656
      %2688 = vmatprep.subr.bf16.mxu0 0
      %2689 = vmatpush2.bf16.msra.mxu0 0
      %2690 = vmatprep.subr.bf16.mxu0 0
      %2691 = vmatpush2.bf16.msra.mxu0 0
      %2692 = vmatprep.subr.bf16.mxu0 0
      %2693 = vmatpush2.bf16.msra.mxu0 0
      %2694 = vmatprep.subr.bf16.mxu0 0
      %2695 = vmatpush2.bf16.msra.mxu0 0
      %2696 = vmatprep.subr.bf16.mxu0 0
      %2697 = vmatpush2.bf16.msra.mxu0 0
      %2698 = vmatprep.subr.bf16.mxu0 0
      %2699 = vmatpush2.bf16.msra.mxu0 0
      %2700 = vmatprep.subr.bf16.mxu0 0
      %2701 = vmatpush2.bf16.msra.mxu0 0
      %2702 = vmatprep.subr.bf16.mxu0 0
      %2703 = vmatpush2.bf16.msra.mxu0 0
      %2704 = vmatprep.mubr.bf16.mxu0 0
      %2705 = vmatmul.mubr.bf16.gmra.mxu0 %v767
      %v2706 = vpop.f32.mrf.mxu0
      %v2707 = vpop.f32.mrf.mxu0
      %v2708 = vpop.f32.mrf.mxu0
      %v2709 = vadd.f32 0.0, %v2708
      %v2710 = vpop.f32.mrf.mxu0
      %2711 = vmatprep.mubr.bf16.mxu0 0
      %2712 = vmatmul.mubr.bf16.gmra.mxu0 %v768
      %v2713 = vpop.f32.mrf.mxu0
      %v2714 = vpop.f32.mrf.mxu0
      %v2715 = vpop.f32.mrf.mxu0
      %v2716 = vadd.f32 0.0, %v2715
      %v2717 = vpop.f32.mrf.mxu0
      %2718 = vmatprep.mubr.bf16.mxu0 0
      %2719 = vmatmul.mubr.bf16.gmra.mxu0 %v769
      %v2720 = vpop.f32.mrf.mxu0
      %v2721 = vpop.f32.mrf.mxu0
      %v2722 = vpop.f32.mrf.mxu0
      %v2723 = vadd.f32 0.0, %v2722
      %v2724 = vpop.f32.mrf.mxu0
      %2725 = vmatprep.mubr.bf16.mxu0 0
      %2726 = vmatmul.mubr.bf16.gmra.mxu0 %v770
      %v2727 = vpop.f32.mrf.mxu0
      %v2728 = vpop.f32.mrf.mxu0
      %v2729 = vpop.f32.mrf.mxu0
      %v2730 = vadd.f32 0.0, %v2729
      %v2731 = vpop.f32.mrf.mxu0
      %2732 = vmatprep.mubr.bf16.mxu0 0
      %2733 = vmatmul.mubr.bf16.gmra.mxu0 %v771
      %v2734 = vpop.f32.mrf.mxu0
      %v2735 = vpop.f32.mrf.mxu0
      %v2736 = vpop.f32.mrf.mxu0
      %v2737 = vadd.f32 0.0, %v2736
      %v2738 = vpop.f32.mrf.mxu0
      %2739 = vmatprep.mubr.bf16.mxu0 0
      %2740 = vmatmul.mubr.bf16.gmra.mxu0 %v772
      %v2741 = vpop.f32.mrf.mxu0
      %v2742 = vpop.f32.mrf.mxu0
      %v2743 = vpop.f32.mrf.mxu0
      %v2744 = vadd.f32 0.0, %v2743
      %v2745 = vpop.f32.mrf.mxu0
      %2746 = vmatprep.mubr.bf16.mxu0 0
      %2747 = vmatmul.mubr.bf16.gmra.mxu0 %v773
      %v2748 = vpop.f32.mrf.mxu0
      %v2749 = vpop.f32.mrf.mxu0
      %v2750 = vpop.f32.mrf.mxu0
      %v2751 = vadd.f32 0.0, %v2750
      %v2752 = vpop.f32.mrf.mxu0
      %2753 = vmatprep.mubr.bf16.mxu0 0
      %2754 = vmatmul.mubr.bf16.gmra.mxu0 %v774
      %v2755 = vpop.f32.mrf.mxu0
      %v2756 = vpop.f32.mrf.mxu0
      %v2757 = vpop.f32.mrf.mxu0
      %v2758 = vadd.f32 0.0, %v2757
      %v2759 = vpop.f32.mrf.mxu0
      %2760 = vdwg.mxu0
      %v2777 = vunpack.c.l.b16 %v2420
      %v2778 = vunpack.c.l.b16 %v2421
      %v2779 = vunpack.c.l.b16 %v2422
      %v2780 = vunpack.c.l.b16 %v2423
      %v2781 = vunpack.c.l.b16 %v2424
      %v2782 = vunpack.c.l.b16 %v2425
      %v2783 = vunpack.c.l.b16 %v2426
      %v2784 = vunpack.c.l.b16 %v2427
      %v2785 = vunpack.c.l.b16 %v2428
      %v2786 = vunpack.c.l.b16 %v2429
      %v2787 = vunpack.c.l.b16 %v2430
      %v2788 = vunpack.c.l.b16 %v2431
      %v2789 = vunpack.c.l.b16 %v2432
      %v2790 = vunpack.c.l.b16 %v2433
      %v2791 = vunpack.c.l.b16 %v2434
      %v2792 = vunpack.c.l.b16 %v2435
      %v2793 = vpack.c.b16 %v2778, %v2777
      %v2794 = vpack.c.b16 %v2780, %v2779
      %v2795 = vpack.c.b16 %v2782, %v2781
      %v2796 = vpack.c.b16 %v2784, %v2783
      %v2797 = vpack.c.b16 %v2786, %v2785
      %v2798 = vpack.c.b16 %v2788, %v2787
      %v2799 = vpack.c.b16 %v2790, %v2789
      %v2800 = vpack.c.b16 %v2792, %v2791
      %2809 = vmatprep.subr.bf16.mxu0 0
      %2810 = vmatpush1.bf16.msra.mxu0 %v2800
      %2811 = vmatprep.subr.bf16.mxu0 0
      %2812 = vmatpush1.bf16.msra.mxu0 %v2799
      %2813 = vmatprep.subr.bf16.mxu0 0
      %2814 = vmatpush1.bf16.msra.mxu0 %v2798
      %2815 = vmatprep.subr.bf16.mxu0 0
      %2816 = vmatpush1.bf16.msra.mxu0 %v2797
      %2817 = vmatprep.subr.bf16.mxu0 0
      %2818 = vmatpush1.bf16.msra.mxu0 %v2796
      %2819 = vmatprep.subr.bf16.mxu0 0
      %2820 = vmatpush1.bf16.msra.mxu0 %v2795
      %2821 = vmatprep.subr.bf16.mxu0 0
      %2822 = vmatpush1.bf16.msra.mxu0 %v2794
      %2823 = vmatprep.subr.bf16.mxu0 0
      %2824 = vmatpush1.bf16.msra.mxu0 %v2793
      %2825 = vmatprep.subr.bf16.mxu0 0
      %2826 = vmatpush2.bf16.msra.mxu0 0
      %2827 = vmatprep.subr.bf16.mxu0 0
      %2828 = vmatpush2.bf16.msra.mxu0 0
      %2829 = vmatprep.subr.bf16.mxu0 0
      %2830 = vmatpush2.bf16.msra.mxu0 0
      %2831 = vmatprep.subr.bf16.mxu0 0
      %2832 = vmatpush2.bf16.msra.mxu0 0
      %2833 = vmatprep.subr.bf16.mxu0 0
      %2834 = vmatpush2.bf16.msra.mxu0 0
      %2835 = vmatprep.subr.bf16.mxu0 0
      %2836 = vmatpush2.bf16.msra.mxu0 0
      %2837 = vmatprep.subr.bf16.mxu0 0
      %2838 = vmatpush2.bf16.msra.mxu0 0
      %2839 = vmatprep.subr.bf16.mxu0 0
      %2840 = vmatpush2.bf16.msra.mxu0 0
      %2841 = vmatprep.mubr.bf16.mxu0 0
      %2842 = vmatmul.mubr.bf16.gmra.mxu0 %v2243
      %v2843 = vpop.f32.mrf.mxu0
      %v2844 = vadd.f32 %v2553, %v2843
      %v2845 = vpop.f32.mrf.mxu0
      %v2846 = vpop.f32.mrf.mxu0
      %v2847 = vpop.f32.mrf.mxu0
      %2848 = vmatprep.mubr.bf16.mxu0 0
      %2849 = vmatmul.mubr.bf16.gmra.mxu0 %v2244
      %v2850 = vpop.f32.mrf.mxu0
      %v2851 = vadd.f32 %v2560, %v2850
      %v2852 = vpop.f32.mrf.mxu0
      %v2853 = vpop.f32.mrf.mxu0
      %v2854 = vpop.f32.mrf.mxu0
      %2855 = vmatprep.mubr.bf16.mxu0 0
      %2856 = vmatmul.mubr.bf16.gmra.mxu0 %v2245
      %v2857 = vpop.f32.mrf.mxu0
      %v2858 = vadd.f32 %v2567, %v2857
      %v2859 = vpop.f32.mrf.mxu0
      %v2860 = vpop.f32.mrf.mxu0
      %v2861 = vpop.f32.mrf.mxu0
      %2862 = vmatprep.mubr.bf16.mxu0 0
      %2863 = vmatmul.mubr.bf16.gmra.mxu0 %v2246
      %v2864 = vpop.f32.mrf.mxu0
      %v2865 = vadd.f32 %v2574, %v2864
      %v2866 = vpop.f32.mrf.mxu0
      %v2867 = vpop.f32.mrf.mxu0
      %v2868 = vpop.f32.mrf.mxu0
      %2869 = vmatprep.mubr.bf16.mxu0 0
      %2870 = vmatmul.mubr.bf16.gmra.mxu0 %v2247
      %v2871 = vpop.f32.mrf.mxu0
      %v2872 = vadd.f32 %v2581, %v2871
      %v2873 = vpop.f32.mrf.mxu0
      %v2874 = vpop.f32.mrf.mxu0
      %v2875 = vpop.f32.mrf.mxu0
      %2876 = vmatprep.mubr.bf16.mxu0 0
      %2877 = vmatmul.mubr.bf16.gmra.mxu0 %v2248
      %v2878 = vpop.f32.mrf.mxu0
      %v2879 = vadd.f32 %v2588, %v2878
      %v2880 = vpop.f32.mrf.mxu0
      %v2881 = vpop.f32.mrf.mxu0
      %v2882 = vpop.f32.mrf.mxu0
      %2883 = vmatprep.mubr.bf16.mxu0 0
      %2884 = vmatmul.mubr.bf16.gmra.mxu0 %v2249
      %v2885 = vpop.f32.mrf.mxu0
      %v2886 = vadd.f32 %v2595, %v2885
      %v2887 = vpop.f32.mrf.mxu0
      %v2888 = vpop.f32.mrf.mxu0
      %v2889 = vpop.f32.mrf.mxu0
      %2890 = vmatprep.mubr.bf16.mxu0 0
      %2891 = vmatmul.mubr.bf16.gmra.mxu0 %v2250
      %v2892 = vpop.f32.mrf.mxu0
      %v2893 = vadd.f32 %v2602, %v2892
      %v2894 = vpop.f32.mrf.mxu0
      %v2895 = vpop.f32.mrf.mxu0
      %v2896 = vpop.f32.mrf.mxu0
      %2897 = vdwg.mxu0
      %v2914 = vunpack.c.l.b16 %v2437
      %v2915 = vunpack.c.l.b16 %v2438
      %v2916 = vunpack.c.l.b16 %v2439
      %v2917 = vunpack.c.l.b16 %v2440
      %v2918 = vunpack.c.l.b16 %v2441
      %v2919 = vunpack.c.l.b16 %v2442
      %v2920 = vunpack.c.l.b16 %v2443
      %v2921 = vunpack.c.l.b16 %v2444
      %v2922 = vunpack.c.l.b16 %v2445
      %v2923 = vunpack.c.l.b16 %v2446
      %v2924 = vunpack.c.l.b16 %v2447
      %v2925 = vunpack.c.l.b16 %v2448
      %v2926 = vunpack.c.l.b16 %v2449
      %v2927 = vunpack.c.l.b16 %v2450
      %v2928 = vunpack.c.l.b16 %v2451
      %v2929 = vunpack.c.l.b16 %v2452
      %v2930 = vpack.c.b16 %v2915, %v2914
      %v2931 = vpack.c.b16 %v2917, %v2916
      %v2932 = vpack.c.b16 %v2919, %v2918
      %v2933 = vpack.c.b16 %v2921, %v2920
      %v2934 = vpack.c.b16 %v2923, %v2922
      %v2935 = vpack.c.b16 %v2925, %v2924
      %v2936 = vpack.c.b16 %v2927, %v2926
      %v2937 = vpack.c.b16 %v2929, %v2928
      %2946 = vmatprep.subr.bf16.mxu0 0
      %2947 = vmatpush1.bf16.msra.mxu0 %v2937
      %2948 = vmatprep.subr.bf16.mxu0 0
      %2949 = vmatpush1.bf16.msra.mxu0 %v2936
      %2950 = vmatprep.subr.bf16.mxu0 0
      %2951 = vmatpush1.bf16.msra.mxu0 %v2935
      %2952 = vmatprep.subr.bf16.mxu0 0
      %2953 = vmatpush1.bf16.msra.mxu0 %v2934
      %2954 = vmatprep.subr.bf16.mxu0 0
      %2955 = vmatpush1.bf16.msra.mxu0 %v2933
      %2956 = vmatprep.subr.bf16.mxu0 0
      %2957 = vmatpush1.bf16.msra.mxu0 %v2932
      %2958 = vmatprep.subr.bf16.mxu0 0
      %2959 = vmatpush1.bf16.msra.mxu0 %v2931
      %2960 = vmatprep.subr.bf16.mxu0 0
      %2961 = vmatpush1.bf16.msra.mxu0 %v2930
      %2962 = vmatprep.subr.bf16.mxu0 0
      %2963 = vmatpush2.bf16.msra.mxu0 0
      %2964 = vmatprep.subr.bf16.mxu0 0
      %2965 = vmatpush2.bf16.msra.mxu0 0
      %2966 = vmatprep.subr.bf16.mxu0 0
      %2967 = vmatpush2.bf16.msra.mxu0 0
      %2968 = vmatprep.subr.bf16.mxu0 0
      %2969 = vmatpush2.bf16.msra.mxu0 0
      %2970 = vmatprep.subr.bf16.mxu0 0
      %2971 = vmatpush2.bf16.msra.mxu0 0
      %2972 = vmatprep.subr.bf16.mxu0 0
      %2973 = vmatpush2.bf16.msra.mxu0 0
      %2974 = vmatprep.subr.bf16.mxu0 0
      %2975 = vmatpush2.bf16.msra.mxu0 0
      %2976 = vmatprep.subr.bf16.mxu0 0
      %2977 = vmatpush2.bf16.msra.mxu0 0
      %2978 = vmatprep.mubr.bf16.mxu0 0
      %2979 = vmatmul.mubr.bf16.gmra.mxu0 %v2243
      %v2980 = vpop.f32.mrf.mxu0
      %v2981 = vpop.f32.mrf.mxu0
      %v2982 = vpop.f32.mrf.mxu0
      %v2983 = vadd.f32 %v2709, %v2982
      %v2984 = vpop.f32.mrf.mxu0
      %2985 = vmatprep.mubr.bf16.mxu0 0
      %2986 = vmatmul.mubr.bf16.gmra.mxu0 %v2244
      %v2987 = vpop.f32.mrf.mxu0
      %v2988 = vpop.f32.mrf.mxu0
      %v2989 = vpop.f32.mrf.mxu0
      %v2990 = vadd.f32 %v2716, %v2989
      %v2991 = vpop.f32.mrf.mxu0
      %2992 = vmatprep.mubr.bf16.mxu0 0
      %2993 = vmatmul.mubr.bf16.gmra.mxu0 %v2245
      %v2994 = vpop.f32.mrf.mxu0
      %v2995 = vpop.f32.mrf.mxu0
      %v2996 = vpop.f32.mrf.mxu0
      %v2997 = vadd.f32 %v2723, %v2996
      %v2998 = vpop.f32.mrf.mxu0
      %2999 = vmatprep.mubr.bf16.mxu0 0
      %3000 = vmatmul.mubr.bf16.gmra.mxu0 %v2246
      %v3001 = vpop.f32.mrf.mxu0
      %v3002 = vpop.f32.mrf.mxu0
      %v3003 = vpop.f32.mrf.mxu0
      %v3004 = vadd.f32 %v2730, %v3003
      %v3005 = vpop.f32.mrf.mxu0
      %3006 = vmatprep.mubr.bf16.mxu0 0
      %3007 = vmatmul.mubr.bf16.gmra.mxu0 %v2247
      %v3008 = vpop.f32.mrf.mxu0
      %v3009 = vpop.f32.mrf.mxu0
      %v3010 = vpop.f32.mrf.mxu0
      %v3011 = vadd.f32 %v2737, %v3010
      %v3012 = vpop.f32.mrf.mxu0
      %3013 = vmatprep.mubr.bf16.mxu0 0
      %3014 = vmatmul.mubr.bf16.gmra.mxu0 %v2248
      %v3015 = vpop.f32.mrf.mxu0
      %v3016 = vpop.f32.mrf.mxu0
      %v3017 = vpop.f32.mrf.mxu0
      %v3018 = vadd.f32 %v2744, %v3017
      %v3019 = vpop.f32.mrf.mxu0
      %3020 = vmatprep.mubr.bf16.mxu0 0
      %3021 = vmatmul.mubr.bf16.gmra.mxu0 %v2249
      %v3022 = vpop.f32.mrf.mxu0
      %v3023 = vpop.f32.mrf.mxu0
      %v3024 = vpop.f32.mrf.mxu0
      %v3025 = vadd.f32 %v2751, %v3024
      %v3026 = vpop.f32.mrf.mxu0
      %3027 = vmatprep.mubr.bf16.mxu0 0
      %3028 = vmatmul.mubr.bf16.gmra.mxu0 %v2250
      %v3029 = vpop.f32.mrf.mxu0
      %v3030 = vpop.f32.mrf.mxu0
      %v3031 = vpop.f32.mrf.mxu0
      %v3032 = vadd.f32 %v2758, %v3031
      %v3033 = vpop.f32.mrf.mxu0
      %3034 = vdwg.mxu0
      %s3035 = sadd.s32 48, %s470
      %s3036 = smul.addr %s3035, 4
      %s3037 = scalar_lea.vmem [#allocation2], %s3036
      %v3038 = vld [vmem:[%s3037] sm:$0xf]
      %v3039 = vld [vmem:[%s3037 + $0x4] sm:$0xf]
      %v3040 = vld [vmem:[%s3037 + $0x8] sm:$0xf]
      %v3041 = vld [vmem:[%s3037 + $0xc] sm:$0xf]
      %v3042 = vld [vmem:[%s3037 + $0x10] sm:$0xf]
      %v3043 = vld [vmem:[%s3037 + $0x14] sm:$0xf]
      %v3044 = vld [vmem:[%s3037 + $0x18] sm:$0xf]
      %v3045 = vld [vmem:[%s3037 + $0x1c] sm:$0xf]
      %v3046 = vld [vmem:[%s3037 + $0x20] sm:$0xf]
      %v3047 = vld [vmem:[%s3037 + $0x24] sm:$0xf]
      %v3048 = vld [vmem:[%s3037 + $0x28] sm:$0xf]
      %v3049 = vld [vmem:[%s3037 + $0x2c] sm:$0xf]
      %v3050 = vld [vmem:[%s3037 + $0x30] sm:$0xf]
      %v3051 = vld [vmem:[%s3037 + $0x34] sm:$0xf]
      %v3052 = vld [vmem:[%s3037 + $0x38] sm:$0xf]
      %v3053 = vld [vmem:[%s3037 + $0x3c] sm:$0xf]
      %s3054 = scalar_lea.vmem %s3, 448
      %v3055 = vld [vmem:[%s3054] sm:$0xf]
      %v3056 = vld [vmem:[%s3054 + $0x4] sm:$0xf]
      %v3057 = vld [vmem:[%s3054 + $0x8] sm:$0xf]
      %v3058 = vld [vmem:[%s3054 + $0xc] sm:$0xf]
      %v3059 = vld [vmem:[%s3054 + $0x10] sm:$0xf]
      %v3060 = vld [vmem:[%s3054 + $0x14] sm:$0xf]
      %v3061 = vld [vmem:[%s3054 + $0x18] sm:$0xf]
      %v3062 = vld [vmem:[%s3054 + $0x1c] sm:$0xf]
      %v3063 = vld [vmem:[%s3054 + $0x20] sm:$0xf]
      %v3064 = vld [vmem:[%s3054 + $0x24] sm:$0xf]
      %v3065 = vld [vmem:[%s3054 + $0x28] sm:$0xf]
      %v3066 = vld [vmem:[%s3054 + $0x2c] sm:$0xf]
      %v3067 = vld [vmem:[%s3054 + $0x30] sm:$0xf]
      %v3068 = vld [vmem:[%s3054 + $0x34] sm:$0xf]
      %v3069 = vld [vmem:[%s3054 + $0x38] sm:$0xf]
      %v3070 = vld [vmem:[%s3054 + $0x3c] sm:$0xf]
      %v3087 = vunpack.c.l.b16 %v3038
      %v3088 = vunpack.c.l.b16 %v3039
      %v3089 = vunpack.c.l.b16 %v3040
      %v3090 = vunpack.c.l.b16 %v3041
      %v3091 = vunpack.c.l.b16 %v3042
      %v3092 = vunpack.c.l.b16 %v3043
      %v3093 = vunpack.c.l.b16 %v3044
      %v3094 = vunpack.c.l.b16 %v3045
      %v3095 = vunpack.c.l.b16 %v3046
      %v3096 = vunpack.c.l.b16 %v3047
      %v3097 = vunpack.c.l.b16 %v3048
      %v3098 = vunpack.c.l.b16 %v3049
      %v3099 = vunpack.c.l.b16 %v3050
      %v3100 = vunpack.c.l.b16 %v3051
      %v3101 = vunpack.c.l.b16 %v3052
      %v3102 = vunpack.c.l.b16 %v3053
      %v3103 = vpack.c.b16 %v3088, %v3087
      %v3104 = vpack.c.b16 %v3090, %v3089
      %v3105 = vpack.c.b16 %v3092, %v3091
      %v3106 = vpack.c.b16 %v3094, %v3093
      %v3107 = vpack.c.b16 %v3096, %v3095
      %v3108 = vpack.c.b16 %v3098, %v3097
      %v3109 = vpack.c.b16 %v3100, %v3099
      %v3110 = vpack.c.b16 %v3102, %v3101
      %v3135 = vunpack.c.l.b16 %v3055
      %v3136 = vunpack.c.l.b16 %v3056
      %v3137 = vunpack.c.l.b16 %v3057
      %v3138 = vunpack.c.l.b16 %v3058
      %v3139 = vunpack.c.l.b16 %v3059
      %v3140 = vunpack.c.l.b16 %v3060
      %v3141 = vunpack.c.l.b16 %v3061
      %v3142 = vunpack.c.l.b16 %v3062
      %v3143 = vunpack.c.l.b16 %v3063
      %v3144 = vunpack.c.l.b16 %v3064
      %v3145 = vunpack.c.l.b16 %v3065
      %v3146 = vunpack.c.l.b16 %v3066
      %v3147 = vunpack.c.l.b16 %v3067
      %v3148 = vunpack.c.l.b16 %v3068
      %v3149 = vunpack.c.l.b16 %v3069
      %v3150 = vunpack.c.l.b16 %v3070
      %v3151 = vpack.c.b16 %v3136, %v3135
      %v3152 = vpack.c.b16 %v3138, %v3137
      %v3153 = vpack.c.b16 %v3140, %v3139
      %v3154 = vpack.c.b16 %v3142, %v3141
      %v3155 = vpack.c.b16 %v3144, %v3143
      %v3156 = vpack.c.b16 %v3146, %v3145
      %v3157 = vpack.c.b16 %v3148, %v3147
      %v3158 = vpack.c.b16 %v3150, %v3149
      %3167 = vmatprep.subr.bf16.mxu0 0
      %3168 = vmatpush1.bf16.msra.mxu0 %v3158
      %3169 = vmatprep.subr.bf16.mxu0 0
      %3170 = vmatpush1.bf16.msra.mxu0 %v3157
      %3171 = vmatprep.subr.bf16.mxu0 0
      %3172 = vmatpush1.bf16.msra.mxu0 %v3156
      %3173 = vmatprep.subr.bf16.mxu0 0
      %3174 = vmatpush1.bf16.msra.mxu0 %v3155
      %3175 = vmatprep.subr.bf16.mxu0 0
      %3176 = vmatpush1.bf16.msra.mxu0 %v3154
      %3177 = vmatprep.subr.bf16.mxu0 0
      %3178 = vmatpush1.bf16.msra.mxu0 %v3153
      %3179 = vmatprep.subr.bf16.mxu0 0
      %3180 = vmatpush1.bf16.msra.mxu0 %v3152
      %3181 = vmatprep.subr.bf16.mxu0 0
      %3182 = vmatpush1.bf16.msra.mxu0 %v3151
      %3183 = vmatprep.subr.bf16.mxu0 0
      %3184 = vmatpush2.bf16.msra.mxu0 0
      %3185 = vmatprep.subr.bf16.mxu0 0
      %3186 = vmatpush2.bf16.msra.mxu0 0
      %3187 = vmatprep.subr.bf16.mxu0 0
      %3188 = vmatpush2.bf16.msra.mxu0 0
      %3189 = vmatprep.subr.bf16.mxu0 0
      %3190 = vmatpush2.bf16.msra.mxu0 0
      %3191 = vmatprep.subr.bf16.mxu0 0
      %3192 = vmatpush2.bf16.msra.mxu0 0
      %3193 = vmatprep.subr.bf16.mxu0 0
      %3194 = vmatpush2.bf16.msra.mxu0 0
      %3195 = vmatprep.subr.bf16.mxu0 0
      %3196 = vmatpush2.bf16.msra.mxu0 0
      %3197 = vmatprep.subr.bf16.mxu0 0
      %3198 = vmatpush2.bf16.msra.mxu0 0
      %3199 = vmatprep.mubr.bf16.mxu0 0
      %3200 = vmatmul.mubr.bf16.gmra.mxu0 %v3103
      %v3201 = vpop.f32.mrf.mxu0
      %v3202 = vadd.f32 0.0, %v3201
      %v3203 = vpop.f32.mrf.mxu0
      %v3204 = vpop.f32.mrf.mxu0
      %v3205 = vadd.f32 0.0, %v3204
      %v3206 = vpop.f32.mrf.mxu0
      %3207 = vmatprep.mubr.bf16.mxu0 0
      %3208 = vmatmul.mubr.bf16.gmra.mxu0 %v3104
      %v3209 = vpop.f32.mrf.mxu0
      %v3210 = vadd.f32 0.0, %v3209
      %v3211 = vpop.f32.mrf.mxu0
      %v3212 = vpop.f32.mrf.mxu0
      %v3213 = vadd.f32 0.0, %v3212
      %v3214 = vpop.f32.mrf.mxu0
      %3215 = vmatprep.mubr.bf16.mxu0 0
      %3216 = vmatmul.mubr.bf16.gmra.mxu0 %v3105
      %v3217 = vpop.f32.mrf.mxu0
      %v3218 = vadd.f32 0.0, %v3217
      %v3219 = vpop.f32.mrf.mxu0
      %v3220 = vpop.f32.mrf.mxu0
      %v3221 = vadd.f32 0.0, %v3220
      %v3222 = vpop.f32.mrf.mxu0
      %3223 = vmatprep.mubr.bf16.mxu0 0
      %3224 = vmatmul.mubr.bf16.gmra.mxu0 %v3106
      %v3225 = vpop.f32.mrf.mxu0
      %v3226 = vadd.f32 0.0, %v3225
      %v3227 = vpop.f32.mrf.mxu0
      %v3228 = vpop.f32.mrf.mxu0
      %v3229 = vadd.f32 0.0, %v3228
      %v3230 = vpop.f32.mrf.mxu0
      %3231 = vmatprep.mubr.bf16.mxu0 0
      %3232 = vmatmul.mubr.bf16.gmra.mxu0 %v3107
      %v3233 = vpop.f32.mrf.mxu0
      %v3234 = vadd.f32 0.0, %v3233
      %v3235 = vpop.f32.mrf.mxu0
      %v3236 = vpop.f32.mrf.mxu0
      %v3237 = vadd.f32 0.0, %v3236
      %v3238 = vpop.f32.mrf.mxu0
      %3239 = vmatprep.mubr.bf16.mxu0 0
      %3240 = vmatmul.mubr.bf16.gmra.mxu0 %v3108
      %v3241 = vpop.f32.mrf.mxu0
      %v3242 = vadd.f32 0.0, %v3241
      %v3243 = vpop.f32.mrf.mxu0
      %v3244 = vpop.f32.mrf.mxu0
      %v3245 = vadd.f32 0.0, %v3244
      %v3246 = vpop.f32.mrf.mxu0
      %3247 = vmatprep.mubr.bf16.mxu0 0
      %3248 = vmatmul.mubr.bf16.gmra.mxu0 %v3109
      %v3249 = vpop.f32.mrf.mxu0
      %v3250 = vadd.f32 0.0, %v3249
      %v3251 = vpop.f32.mrf.mxu0
      %v3252 = vpop.f32.mrf.mxu0
      %v3253 = vadd.f32 0.0, %v3252
      %v3254 = vpop.f32.mrf.mxu0
      %3255 = vmatprep.mubr.bf16.mxu0 0
      %3256 = vmatmul.mubr.bf16.gmra.mxu0 %v3110
      %v3257 = vpop.f32.mrf.mxu0
      %v3258 = vadd.f32 0.0, %v3257
      %v3259 = vpop.f32.mrf.mxu0
      %v3260 = vpop.f32.mrf.mxu0
      %v3261 = vadd.f32 0.0, %v3260
      %v3262 = vpop.f32.mrf.mxu0
      %3263 = vdwg.mxu0
      %v3264 = vadd.f32 %v2404, %v3202
      %v3265 = vadd.f32 %v2405, %v3205
      %v3266 = vadd.f32 %v2406, %v3210
      %v3267 = vadd.f32 %v2407, %v3213
      %v3268 = vadd.f32 %v2408, %v3218
      %v3269 = vadd.f32 %v2409, %v3221
      %v3270 = vadd.f32 %v2410, %v3226
      %v3271 = vadd.f32 %v2411, %v3229
      %v3272 = vadd.f32 %v2412, %v3234
      %v3273 = vadd.f32 %v2413, %v3237
      %v3274 = vadd.f32 %v2414, %v3242
      %v3275 = vadd.f32 %v2415, %v3245
      %v3276 = vadd.f32 %v2416, %v3250
      %v3277 = vadd.f32 %v2417, %v3253
      %v3278 = vadd.f32 %v2418, %v3258
      %v3279 = vadd.f32 %v2419, %v3261
      %s3280 = scalar_lea.vmem %s3, 384
      %v3281 = vld [vmem:[%s3280] sm:$0xf]
      %v3282 = vld [vmem:[%s3280 + $0x4] sm:$0xf]
      %v3283 = vld [vmem:[%s3280 + $0x8] sm:$0xf]
      %v3284 = vld [vmem:[%s3280 + $0xc] sm:$0xf]
      %v3285 = vld [vmem:[%s3280 + $0x10] sm:$0xf]
      %v3286 = vld [vmem:[%s3280 + $0x14] sm:$0xf]
      %v3287 = vld [vmem:[%s3280 + $0x18] sm:$0xf]
      %v3288 = vld [vmem:[%s3280 + $0x1c] sm:$0xf]
      %v3289 = vld [vmem:[%s3280 + $0x20] sm:$0xf]
      %v3290 = vld [vmem:[%s3280 + $0x24] sm:$0xf]
      %v3291 = vld [vmem:[%s3280 + $0x28] sm:$0xf]
      %v3292 = vld [vmem:[%s3280 + $0x2c] sm:$0xf]
      %v3293 = vld [vmem:[%s3280 + $0x30] sm:$0xf]
      %v3294 = vld [vmem:[%s3280 + $0x34] sm:$0xf]
      %v3295 = vld [vmem:[%s3280 + $0x38] sm:$0xf]
      %v3296 = vld [vmem:[%s3280 + $0x3c] sm:$0xf]
      %v3313 = vunpack.c.l.b16 %v3281
      %v3314 = vunpack.c.l.b16 %v3282
      %v3315 = vunpack.c.l.b16 %v3283
      %v3316 = vunpack.c.l.b16 %v3284
      %v3317 = vunpack.c.l.b16 %v3285
      %v3318 = vunpack.c.l.b16 %v3286
      %v3319 = vunpack.c.l.b16 %v3287
      %v3320 = vunpack.c.l.b16 %v3288
      %v3321 = vunpack.c.l.b16 %v3289
      %v3322 = vunpack.c.l.b16 %v3290
      %v3323 = vunpack.c.l.b16 %v3291
      %v3324 = vunpack.c.l.b16 %v3292
      %v3325 = vunpack.c.l.b16 %v3293
      %v3326 = vunpack.c.l.b16 %v3294
      %v3327 = vunpack.c.l.b16 %v3295
      %v3328 = vunpack.c.l.b16 %v3296
      %v3329 = vpack.c.b16 %v3314, %v3313
      %v3330 = vpack.c.b16 %v3316, %v3315
      %v3331 = vpack.c.b16 %v3318, %v3317
      %v3332 = vpack.c.b16 %v3320, %v3319
      %v3333 = vpack.c.b16 %v3322, %v3321
      %v3334 = vpack.c.b16 %v3324, %v3323
      %v3335 = vpack.c.b16 %v3326, %v3325
      %v3336 = vpack.c.b16 %v3328, %v3327
      %3345 = vmatprep.subr.bf16.mxu0 0
      %3346 = vmatpush1.bf16.msra.mxu0 %v3336
      %3347 = vmatprep.subr.bf16.mxu0 0
      %3348 = vmatpush1.bf16.msra.mxu0 %v3335
      %3349 = vmatprep.subr.bf16.mxu0 0
      %3350 = vmatpush1.bf16.msra.mxu0 %v3334
      %3351 = vmatprep.subr.bf16.mxu0 0
      %3352 = vmatpush1.bf16.msra.mxu0 %v3333
      %3353 = vmatprep.subr.bf16.mxu0 0
      %3354 = vmatpush1.bf16.msra.mxu0 %v3332
      %3355 = vmatprep.subr.bf16.mxu0 0
      %3356 = vmatpush1.bf16.msra.mxu0 %v3331
      %3357 = vmatprep.subr.bf16.mxu0 0
      %3358 = vmatpush1.bf16.msra.mxu0 %v3330
      %3359 = vmatprep.subr.bf16.mxu0 0
      %3360 = vmatpush1.bf16.msra.mxu0 %v3329
      %3361 = vmatprep.subr.bf16.mxu0 0
      %3362 = vmatpush2.bf16.msra.mxu0 0
      %3363 = vmatprep.subr.bf16.mxu0 0
      %3364 = vmatpush2.bf16.msra.mxu0 0
      %3365 = vmatprep.subr.bf16.mxu0 0
      %3366 = vmatpush2.bf16.msra.mxu0 0
      %3367 = vmatprep.subr.bf16.mxu0 0
      %3368 = vmatpush2.bf16.msra.mxu0 0
      %3369 = vmatprep.subr.bf16.mxu0 0
      %3370 = vmatpush2.bf16.msra.mxu0 0
      %3371 = vmatprep.subr.bf16.mxu0 0
      %3372 = vmatpush2.bf16.msra.mxu0 0
      %3373 = vmatprep.subr.bf16.mxu0 0
      %3374 = vmatpush2.bf16.msra.mxu0 0
      %3375 = vmatprep.subr.bf16.mxu0 0
      %3376 = vmatpush2.bf16.msra.mxu0 0
      %3377 = vmatprep.mubr.bf16.mxu0 0
      %3378 = vmatmul.mubr.bf16.gmra.mxu0 %v3103
      %v3379 = vpop.f32.mrf.mxu0
      %v3380 = vadd.f32 0.0, %v3379
      %v3381 = vpop.f32.mrf.mxu0
      %v3382 = vpop.f32.mrf.mxu0
      %v3383 = vpop.f32.mrf.mxu0
      %3384 = vmatprep.mubr.bf16.mxu0 0
      %3385 = vmatmul.mubr.bf16.gmra.mxu0 %v3104
      %v3386 = vpop.f32.mrf.mxu0
      %v3387 = vadd.f32 0.0, %v3386
      %v3388 = vpop.f32.mrf.mxu0
      %v3389 = vpop.f32.mrf.mxu0
      %v3390 = vpop.f32.mrf.mxu0
      %3391 = vmatprep.mubr.bf16.mxu0 0
      %3392 = vmatmul.mubr.bf16.gmra.mxu0 %v3105
      %v3393 = vpop.f32.mrf.mxu0
      %v3394 = vadd.f32 0.0, %v3393
      %v3395 = vpop.f32.mrf.mxu0
      %v3396 = vpop.f32.mrf.mxu0
      %v3397 = vpop.f32.mrf.mxu0
      %3398 = vmatprep.mubr.bf16.mxu0 0
      %3399 = vmatmul.mubr.bf16.gmra.mxu0 %v3106
      %v3400 = vpop.f32.mrf.mxu0
      %v3401 = vadd.f32 0.0, %v3400
      %v3402 = vpop.f32.mrf.mxu0
      %v3403 = vpop.f32.mrf.mxu0
      %v3404 = vpop.f32.mrf.mxu0
      %3405 = vmatprep.mubr.bf16.mxu0 0
      %3406 = vmatmul.mubr.bf16.gmra.mxu0 %v3107
      %v3407 = vpop.f32.mrf.mxu0
      %v3408 = vadd.f32 0.0, %v3407
      %v3409 = vpop.f32.mrf.mxu0
      %v3410 = vpop.f32.mrf.mxu0
      %v3411 = vpop.f32.mrf.mxu0
      %3412 = vmatprep.mubr.bf16.mxu0 0
      %3413 = vmatmul.mubr.bf16.gmra.mxu0 %v3108
      %v3414 = vpop.f32.mrf.mxu0
      %v3415 = vadd.f32 0.0, %v3414
      %v3416 = vpop.f32.mrf.mxu0
      %v3417 = vpop.f32.mrf.mxu0
      %v3418 = vpop.f32.mrf.mxu0
      %3419 = vmatprep.mubr.bf16.mxu0 0
      %3420 = vmatmul.mubr.bf16.gmra.mxu0 %v3109
      %v3421 = vpop.f32.mrf.mxu0
      %v3422 = vadd.f32 0.0, %v3421
      %v3423 = vpop.f32.mrf.mxu0
      %v3424 = vpop.f32.mrf.mxu0
      %v3425 = vpop.f32.mrf.mxu0
      %3426 = vmatprep.mubr.bf16.mxu0 0
      %3427 = vmatmul.mubr.bf16.gmra.mxu0 %v3110
      %v3428 = vpop.f32.mrf.mxu0
      %v3429 = vadd.f32 0.0, %v3428
      %v3430 = vpop.f32.mrf.mxu0
      %v3431 = vpop.f32.mrf.mxu0
      %v3432 = vpop.f32.mrf.mxu0
      %3433 = vdwg.mxu0
      %s3434 = scalar_lea.vmem %s3, 512
      %v3435 = vld [vmem:[%s3434] sm:$0xf]
      %v3436 = vld [vmem:[%s3434 + $0x4] sm:$0xf]
      %v3437 = vld [vmem:[%s3434 + $0x8] sm:$0xf]
      %v3438 = vld [vmem:[%s3434 + $0xc] sm:$0xf]
      %v3439 = vld [vmem:[%s3434 + $0x10] sm:$0xf]
      %v3440 = vld [vmem:[%s3434 + $0x14] sm:$0xf]
      %v3441 = vld [vmem:[%s3434 + $0x18] sm:$0xf]
      %v3442 = vld [vmem:[%s3434 + $0x1c] sm:$0xf]
      %v3443 = vld [vmem:[%s3434 + $0x20] sm:$0xf]
      %v3444 = vld [vmem:[%s3434 + $0x24] sm:$0xf]
      %v3445 = vld [vmem:[%s3434 + $0x28] sm:$0xf]
      %v3446 = vld [vmem:[%s3434 + $0x2c] sm:$0xf]
      %v3447 = vld [vmem:[%s3434 + $0x30] sm:$0xf]
      %v3448 = vld [vmem:[%s3434 + $0x34] sm:$0xf]
      %v3449 = vld [vmem:[%s3434 + $0x38] sm:$0xf]
      %v3450 = vld [vmem:[%s3434 + $0x3c] sm:$0xf]
      %v3467 = vunpack.c.l.b16 %v3435
      %v3468 = vunpack.c.l.b16 %v3436
      %v3469 = vunpack.c.l.b16 %v3437
      %v3470 = vunpack.c.l.b16 %v3438
      %v3471 = vunpack.c.l.b16 %v3439
      %v3472 = vunpack.c.l.b16 %v3440
      %v3473 = vunpack.c.l.b16 %v3441
      %v3474 = vunpack.c.l.b16 %v3442
      %v3475 = vunpack.c.l.b16 %v3443
      %v3476 = vunpack.c.l.b16 %v3444
      %v3477 = vunpack.c.l.b16 %v3445
      %v3478 = vunpack.c.l.b16 %v3446
      %v3479 = vunpack.c.l.b16 %v3447
      %v3480 = vunpack.c.l.b16 %v3448
      %v3481 = vunpack.c.l.b16 %v3449
      %v3482 = vunpack.c.l.b16 %v3450
      %v3483 = vpack.c.b16 %v3468, %v3467
      %v3484 = vpack.c.b16 %v3470, %v3469
      %v3485 = vpack.c.b16 %v3472, %v3471
      %v3486 = vpack.c.b16 %v3474, %v3473
      %v3487 = vpack.c.b16 %v3476, %v3475
      %v3488 = vpack.c.b16 %v3478, %v3477
      %v3489 = vpack.c.b16 %v3480, %v3479
      %v3490 = vpack.c.b16 %v3482, %v3481
      %3499 = vmatprep.subr.bf16.mxu0 0
      %3500 = vmatpush1.bf16.msra.mxu0 %v3490
      %3501 = vmatprep.subr.bf16.mxu0 0
      %3502 = vmatpush1.bf16.msra.mxu0 %v3489
      %3503 = vmatprep.subr.bf16.mxu0 0
      %3504 = vmatpush1.bf16.msra.mxu0 %v3488
      %3505 = vmatprep.subr.bf16.mxu0 0
      %3506 = vmatpush1.bf16.msra.mxu0 %v3487
      %3507 = vmatprep.subr.bf16.mxu0 0
      %3508 = vmatpush1.bf16.msra.mxu0 %v3486
      %3509 = vmatprep.subr.bf16.mxu0 0
      %3510 = vmatpush1.bf16.msra.mxu0 %v3485
      %3511 = vmatprep.subr.bf16.mxu0 0
      %3512 = vmatpush1.bf16.msra.mxu0 %v3484
      %3513 = vmatprep.subr.bf16.mxu0 0
      %3514 = vmatpush1.bf16.msra.mxu0 %v3483
      %3515 = vmatprep.subr.bf16.mxu0 0
      %3516 = vmatpush2.bf16.msra.mxu0 0
      %3517 = vmatprep.subr.bf16.mxu0 0
      %3518 = vmatpush2.bf16.msra.mxu0 0
      %3519 = vmatprep.subr.bf16.mxu0 0
      %3520 = vmatpush2.bf16.msra.mxu0 0
      %3521 = vmatprep.subr.bf16.mxu0 0
      %3522 = vmatpush2.bf16.msra.mxu0 0
      %3523 = vmatprep.subr.bf16.mxu0 0
      %3524 = vmatpush2.bf16.msra.mxu0 0
      %3525 = vmatprep.subr.bf16.mxu0 0
      %3526 = vmatpush2.bf16.msra.mxu0 0
      %3527 = vmatprep.subr.bf16.mxu0 0
      %3528 = vmatpush2.bf16.msra.mxu0 0
      %3529 = vmatprep.subr.bf16.mxu0 0
      %3530 = vmatpush2.bf16.msra.mxu0 0
      %3531 = vmatprep.mubr.bf16.mxu0 0
      %3532 = vmatmul.mubr.bf16.gmra.mxu0 %v3103
      %v3533 = vpop.f32.mrf.mxu0
      %v3534 = vpop.f32.mrf.mxu0
      %v3535 = vpop.f32.mrf.mxu0
      %v3536 = vadd.f32 0.0, %v3535
      %v3537 = vpop.f32.mrf.mxu0
      %3538 = vmatprep.mubr.bf16.mxu0 0
      %3539 = vmatmul.mubr.bf16.gmra.mxu0 %v3104
      %v3540 = vpop.f32.mrf.mxu0
      %v3541 = vpop.f32.mrf.mxu0
      %v3542 = vpop.f32.mrf.mxu0
      %v3543 = vadd.f32 0.0, %v3542
      %v3544 = vpop.f32.mrf.mxu0
      %3545 = vmatprep.mubr.bf16.mxu0 0
      %3546 = vmatmul.mubr.bf16.gmra.mxu0 %v3105
      %v3547 = vpop.f32.mrf.mxu0
      %v3548 = vpop.f32.mrf.mxu0
      %v3549 = vpop.f32.mrf.mxu0
      %v3550 = vadd.f32 0.0, %v3549
      %v3551 = vpop.f32.mrf.mxu0
      %3552 = vmatprep.mubr.bf16.mxu0 0
      %3553 = vmatmul.mubr.bf16.gmra.mxu0 %v3106
      %v3554 = vpop.f32.mrf.mxu0
      %v3555 = vpop.f32.mrf.mxu0
      %v3556 = vpop.f32.mrf.mxu0
      %v3557 = vadd.f32 0.0, %v3556
      %v3558 = vpop.f32.mrf.mxu0
      %3559 = vmatprep.mubr.bf16.mxu0 0
      %3560 = vmatmul.mubr.bf16.gmra.mxu0 %v3107
      %v3561 = vpop.f32.mrf.mxu0
      %v3562 = vpop.f32.mrf.mxu0
      %v3563 = vpop.f32.mrf.mxu0
      %v3564 = vadd.f32 0.0, %v3563
      %v3565 = vpop.f32.mrf.mxu0
      %3566 = vmatprep.mubr.bf16.mxu0 0
      %3567 = vmatmul.mubr.bf16.gmra.mxu0 %v3108
      %v3568 = vpop.f32.mrf.mxu0
      %v3569 = vpop.f32.mrf.mxu0
      %v3570 = vpop.f32.mrf.mxu0
      %v3571 = vadd.f32 0.0, %v3570
      %v3572 = vpop.f32.mrf.mxu0
      %3573 = vmatprep.mubr.bf16.mxu0 0
      %3574 = vmatmul.mubr.bf16.gmra.mxu0 %v3109
      %v3575 = vpop.f32.mrf.mxu0
      %v3576 = vpop.f32.mrf.mxu0
      %v3577 = vpop.f32.mrf.mxu0
      %v3578 = vadd.f32 0.0, %v3577
      %v3579 = vpop.f32.mrf.mxu0
      %3580 = vmatprep.mubr.bf16.mxu0 0
      %3581 = vmatmul.mubr.bf16.gmra.mxu0 %v3110
      %v3582 = vpop.f32.mrf.mxu0
      %v3583 = vpop.f32.mrf.mxu0
      %v3584 = vpop.f32.mrf.mxu0
      %v3585 = vadd.f32 0.0, %v3584
      %v3586 = vpop.f32.mrf.mxu0
      %3587 = vdwg.mxu0
      %v3588 = vadd.f32 %v2844, %v3380
      %v3589 = vadd.f32 %v2851, %v3387
      %v3590 = vadd.f32 %v2858, %v3394
      %v3591 = vadd.f32 %v2865, %v3401
      %v3592 = vadd.f32 %v2872, %v3408
      %v3593 = vadd.f32 %v2879, %v3415
      %v3594 = vadd.f32 %v2886, %v3422
      %v3595 = vadd.f32 %v2893, %v3429
      %v3596 = vadd.f32 %v2983, %v3536
      %v3597 = vadd.f32 %v2990, %v3543
      %v3598 = vadd.f32 %v2997, %v3550
      %v3599 = vadd.f32 %v3004, %v3557
      %v3600 = vadd.f32 %v3011, %v3564
      %v3601 = vadd.f32 %v3018, %v3571
      %v3602 = vadd.f32 %v3025, %v3578
      %v3603 = vadd.f32 %v3032, %v3585
      %3604 = vst [vmem:[#allocation4] sm:$0xff] %v3264
      %3605 = vst [vmem:[#allocation4 + $0x8] sm:$0xff] %v3265
      %3606 = vst [vmem:[#allocation4 + $0x10] sm:$0xff] %v3266
      %3607 = vst [vmem:[#allocation4 + $0x18] sm:$0xff] %v3267
      %3608 = vst [vmem:[#allocation4 + $0x20] sm:$0xff] %v3268
      %3609 = vst [vmem:[#allocation4 + $0x28] sm:$0xff] %v3269
      %3610 = vst [vmem:[#allocation4 + $0x30] sm:$0xff] %v3270
      %3611 = vst [vmem:[#allocation4 + $0x38] sm:$0xff] %v3271
      %3612 = vst [vmem:[#allocation4 + $0x40] sm:$0xff] %v3272
      %3613 = vst [vmem:[#allocation4 + $0x48] sm:$0xff] %v3273
      %3614 = vst [vmem:[#allocation4 + $0x50] sm:$0xff] %v3274
      %3615 = vst [vmem:[#allocation4 + $0x58] sm:$0xff] %v3275
      %3616 = vst [vmem:[#allocation4 + $0x60] sm:$0xff] %v3276
      %3617 = vst [vmem:[#allocation4 + $0x68] sm:$0xff] %v3277
      %3618 = vst [vmem:[#allocation4 + $0x70] sm:$0xff] %v3278
      %3619 = vst [vmem:[#allocation4 + $0x78] sm:$0xff] %v3279
      %v3620 = vld [vmem:[#allocation4 + $0x6] sm:$0xff]
      %v3621 = vld [vmem:[#allocation4 + $0xe] sm:$0x3]
      %v3622 = vld [vmem:[#allocation4 + $0x16] sm:$0xff]
      %v3623 = vld [vmem:[#allocation4 + $0x1e] sm:$0x3]
      %v3624 = vld [vmem:[#allocation4 + $0x26] sm:$0xff]
      %v3625 = vld [vmem:[#allocation4 + $0x2e] sm:$0x3]
      %v3626 = vld [vmem:[#allocation4 + $0x36] sm:$0xff]
      %v3627 = vld [vmem:[#allocation4 + $0x3e] sm:$0x3]
      %v3628 = vld [vmem:[#allocation4 + $0x46] sm:$0xff]
      %v3629 = vld [vmem:[#allocation4 + $0x4e] sm:$0x3]
      %v3630 = vld [vmem:[#allocation4 + $0x56] sm:$0xff]
      %v3631 = vld [vmem:[#allocation4 + $0x5e] sm:$0x3]
      %v3632 = vld [vmem:[#allocation4 + $0x66] sm:$0xff]
      %v3633 = vld [vmem:[#allocation4 + $0x6e] sm:$0x3]
      %v3634 = vld [vmem:[#allocation4 + $0x76] sm:$0xff]
      %v3635 = vld [vmem:[#allocation4 + $0x7e] sm:$0x3]
      %v3636 = vadd.f32 %v3620, %v2144
      %v3637 = vadd.f32 %v3621, %v2145
      %v3638 = vadd.f32 %v3622, %v2146
      %v3639 = vadd.f32 %v3623, %v2147
      %v3640 = vadd.f32 %v3624, %v2148
      %v3641 = vadd.f32 %v3625, %v2149
      %v3642 = vadd.f32 %v3626, %v2150
      %v3643 = vadd.f32 %v3627, %v2151
      %v3644 = vadd.f32 %v3628, %v2152
      %v3645 = vadd.f32 %v3629, %v2153
      %v3646 = vadd.f32 %v3630, %v2154
      %v3647 = vadd.f32 %v3631, %v2155
      %v3648 = vadd.f32 %v3632, %v2156
      %v3649 = vadd.f32 %v3633, %v2157
      %v3650 = vadd.f32 %v3634, %v2158
      %v3651 = vadd.f32 %v3635, %v2159
      %3652 = vst [vmem:[#allocation4 + $0x6] sm:$0xff] %v3636
      %3653 = vst [vmem:[#allocation4 + $0xe] sm:$0x3] %v3637
      %3654 = vst [vmem:[#allocation4 + $0x16] sm:$0xff] %v3638
      %3655 = vst [vmem:[#allocation4 + $0x1e] sm:$0x3] %v3639
      %3656 = vst [vmem:[#allocation4 + $0x26] sm:$0xff] %v3640
      %3657 = vst [vmem:[#allocation4 + $0x2e] sm:$0x3] %v3641
      %3658 = vst [vmem:[#allocation4 + $0x36] sm:$0xff] %v3642
      %3659 = vst [vmem:[#allocation4 + $0x3e] sm:$0x3] %v3643
      %3660 = vst [vmem:[#allocation4 + $0x46] sm:$0xff] %v3644
      %3661 = vst [vmem:[#allocation4 + $0x4e] sm:$0x3] %v3645
      %3662 = vst [vmem:[#allocation4 + $0x56] sm:$0xff] %v3646
      %3663 = vst [vmem:[#allocation4 + $0x5e] sm:$0x3] %v3647
      %3664 = vst [vmem:[#allocation4 + $0x66] sm:$0xff] %v3648
      %3665 = vst [vmem:[#allocation4 + $0x6e] sm:$0x3] %v3649
      %3666 = vst [vmem:[#allocation4 + $0x76] sm:$0xff] %v3650
      %3667 = vst [vmem:[#allocation4 + $0x7e] sm:$0x3] %v3651
      %v3668 = vld [vmem:[#allocation4] sm:$0xff]
      %v3669 = vld [vmem:[#allocation4 + $0x8] sm:$0x3]
      %v3670 = vld [vmem:[#allocation4 + $0x10] sm:$0xff]
      %v3671 = vld [vmem:[#allocation4 + $0x18] sm:$0x3]
      %v3672 = vld [vmem:[#allocation4 + $0x20] sm:$0xff]
      %v3673 = vld [vmem:[#allocation4 + $0x28] sm:$0x3]
      %v3674 = vld [vmem:[#allocation4 + $0x30] sm:$0xff]
      %v3675 = vld [vmem:[#allocation4 + $0x38] sm:$0x3]
      %v3676 = vld [vmem:[#allocation4 + $0x40] sm:$0xff]
      %v3677 = vld [vmem:[#allocation4 + $0x48] sm:$0x3]
      %v3678 = vld [vmem:[#allocation4 + $0x50] sm:$0xff]
      %v3679 = vld [vmem:[#allocation4 + $0x58] sm:$0x3]
      %v3680 = vld [vmem:[#allocation4 + $0x60] sm:$0xff]
      %v3681 = vld [vmem:[#allocation4 + $0x68] sm:$0x3]
      %v3682 = vld [vmem:[#allocation4 + $0x70] sm:$0xff]
      %v3683 = vld [vmem:[#allocation4 + $0x78] sm:$0x3]
      %vm3700 = vcmask 1041408
      %v3701 = vrot.slane %v2160, 6
      %v3702 = vrot.slane %v2161, 6
      %v3703 = vsel %vm3700, %v3701, %v3702
      %v3704 = vrot.slane %v2162, 6
      %v3705 = vrot.slane %v2163, 6
      %v3706 = vsel %vm3700, %v3704, %v3705
      %v3707 = vrot.slane %v2164, 6
      %v3708 = vrot.slane %v2165, 6
      %v3709 = vsel %vm3700, %v3707, %v3708
      %v3710 = vrot.slane %v2166, 6
      %v3711 = vrot.slane %v2167, 6
      %v3712 = vsel %vm3700, %v3710, %v3711
      %v3713 = vrot.slane %v2168, 6
      %v3714 = vrot.slane %v2169, 6
      %v3715 = vsel %vm3700, %v3713, %v3714
      %v3716 = vrot.slane %v2170, 6
      %v3717 = vrot.slane %v2171, 6
      %v3718 = vsel %vm3700, %v3716, %v3717
      %v3719 = vrot.slane %v2172, 6
      %v3720 = vrot.slane %v2173, 6
      %v3721 = vsel %vm3700, %v3719, %v3720
      %v3722 = vrot.slane %v2174, 6
      %v3723 = vrot.slane %v2175, 6
      %v3724 = vsel %vm3700, %v3722, %v3723
      %v3741 = vadd.f32 %v3668, %v3703
      %v3742 = vadd.f32 %v3669, %v3702
      %v3743 = vadd.f32 %v3670, %v3706
      %v3744 = vadd.f32 %v3671, %v3705
      %v3745 = vadd.f32 %v3672, %v3709
      %v3746 = vadd.f32 %v3673, %v3708
      %v3747 = vadd.f32 %v3674, %v3712
      %v3748 = vadd.f32 %v3675, %v3711
      %v3749 = vadd.f32 %v3676, %v3715
      %v3750 = vadd.f32 %v3677, %v3714
      %v3751 = vadd.f32 %v3678, %v3718
      %v3752 = vadd.f32 %v3679, %v3717
      %v3753 = vadd.f32 %v3680, %v3721
      %v3754 = vadd.f32 %v3681, %v3720
      %v3755 = vadd.f32 %v3682, %v3724
      %v3756 = vadd.f32 %v3683, %v3723
      %3757 = vst [vmem:[#allocation4] sm:$0xff] %v3741
      %3758 = vst [vmem:[#allocation4 + $0x8] sm:$0x3] %v3742
      %3759 = vst [vmem:[#allocation4 + $0x10] sm:$0xff] %v3743
      %3760 = vst [vmem:[#allocation4 + $0x18] sm:$0x3] %v3744
      %3761 = vst [vmem:[#allocation4 + $0x20] sm:$0xff] %v3745
      %3762 = vst [vmem:[#allocation4 + $0x28] sm:$0x3] %v3746
      %3763 = vst [vmem:[#allocation4 + $0x30] sm:$0xff] %v3747
      %3764 = vst [vmem:[#allocation4 + $0x38] sm:$0x3] %v3748
      %3765 = vst [vmem:[#allocation4 + $0x40] sm:$0xff] %v3749
      %3766 = vst [vmem:[#allocation4 + $0x48] sm:$0x3] %v3750
      %3767 = vst [vmem:[#allocation4 + $0x50] sm:$0xff] %v3751
      %3768 = vst [vmem:[#allocation4 + $0x58] sm:$0x3] %v3752
      %3769 = vst [vmem:[#allocation4 + $0x60] sm:$0xff] %v3753
      %3770 = vst [vmem:[#allocation4 + $0x68] sm:$0x3] %v3754
      %3771 = vst [vmem:[#allocation4 + $0x70] sm:$0xff] %v3755
      %3772 = vst [vmem:[#allocation4 + $0x78] sm:$0x3] %v3756
      %v3773 = vld [vmem:[#allocation4 + $0xc] sm:$0xf]
      %v3774 = vld [vmem:[#allocation4 + $0x1c] sm:$0xf]
      %v3775 = vld [vmem:[#allocation4 + $0x2c] sm:$0xf]
      %v3776 = vld [vmem:[#allocation4 + $0x3c] sm:$0xf]
      %v3777 = vld [vmem:[#allocation4 + $0x4c] sm:$0xf]
      %v3778 = vld [vmem:[#allocation4 + $0x5c] sm:$0xf]
      %v3779 = vld [vmem:[#allocation4 + $0x6c] sm:$0xf]
      %v3780 = vld [vmem:[#allocation4 + $0x7c] sm:$0xf]
      %v3781 = vadd.f32 %v3773, %v3588
      %v3782 = vadd.f32 %v3774, %v3589
      %v3783 = vadd.f32 %v3775, %v3590
      %v3784 = vadd.f32 %v3776, %v3591
      %v3785 = vadd.f32 %v3777, %v3592
      %v3786 = vadd.f32 %v3778, %v3593
      %v3787 = vadd.f32 %v3779, %v3594
      %v3788 = vadd.f32 %v3780, %v3595
      %3789 = vst [vmem:[#allocation4 + $0xc] sm:$0xf] %v3781
      %3790 = vst [vmem:[#allocation4 + $0x1c] sm:$0xf] %v3782
      %3791 = vst [vmem:[#allocation4 + $0x2c] sm:$0xf] %v3783
      %3792 = vst [vmem:[#allocation4 + $0x3c] sm:$0xf] %v3784
      %3793 = vst [vmem:[#allocation4 + $0x4c] sm:$0xf] %v3785
      %3794 = vst [vmem:[#allocation4 + $0x5c] sm:$0xf] %v3786
      %3795 = vst [vmem:[#allocation4 + $0x6c] sm:$0xf] %v3787
      %3796 = vst [vmem:[#allocation4 + $0x7c] sm:$0xf] %v3788
      %v3797 = vld [vmem:[#allocation4] sm:$0xf]
      %v3798 = vld [vmem:[#allocation4 + $0x10] sm:$0xf]
      %v3799 = vld [vmem:[#allocation4 + $0x20] sm:$0xf]
      %v3800 = vld [vmem:[#allocation4 + $0x30] sm:$0xf]
      %v3801 = vld [vmem:[#allocation4 + $0x40] sm:$0xf]
      %v3802 = vld [vmem:[#allocation4 + $0x50] sm:$0xf]
      %v3803 = vld [vmem:[#allocation4 + $0x60] sm:$0xf]
      %v3804 = vld [vmem:[#allocation4 + $0x70] sm:$0xf]
      %v3813 = vrot.slane %v3596, 4
      %v3814 = vrot.slane %v3597, 4
      %v3815 = vrot.slane %v3598, 4
      %v3816 = vrot.slane %v3599, 4
      %v3817 = vrot.slane %v3600, 4
      %v3818 = vrot.slane %v3601, 4
      %v3819 = vrot.slane %v3602, 4
      %v3820 = vrot.slane %v3603, 4
      %v3829 = vadd.f32 %v3797, %v3813
      %v3830 = vadd.f32 %v3798, %v3814
      %v3831 = vadd.f32 %v3799, %v3815
      %v3832 = vadd.f32 %v3800, %v3816
      %v3833 = vadd.f32 %v3801, %v3817
      %v3834 = vadd.f32 %v3802, %v3818
      %v3835 = vadd.f32 %v3803, %v3819
      %v3836 = vadd.f32 %v3804, %v3820
      %3837 = vst [vmem:[#allocation4] sm:$0xf] %v3829
      %3838 = vst [vmem:[#allocation4 + $0x10] sm:$0xf] %v3830
      %3839 = vst [vmem:[#allocation4 + $0x20] sm:$0xf] %v3831
      %3840 = vst [vmem:[#allocation4 + $0x30] sm:$0xf] %v3832
      %3841 = vst [vmem:[#allocation4 + $0x40] sm:$0xf] %v3833
      %3842 = vst [vmem:[#allocation4 + $0x50] sm:$0xf] %v3834
      %3843 = vst [vmem:[#allocation4 + $0x60] sm:$0xf] %v3835
      %3844 = vst [vmem:[#allocation4 + $0x70] sm:$0xf] %v3836
      %v3845 = vld [vmem:[#allocation4] sm:$0xff]
      %v3846 = vld [vmem:[#allocation4 + $0x8] sm:$0xff]
      %v3847 = vld [vmem:[#allocation4 + $0x10] sm:$0xff]
      %v3848 = vld [vmem:[#allocation4 + $0x18] sm:$0xff]
      %v3849 = vld [vmem:[#allocation4 + $0x20] sm:$0xff]
      %v3850 = vld [vmem:[#allocation4 + $0x28] sm:$0xff]
      %v3851 = vld [vmem:[#allocation4 + $0x30] sm:$0xff]
      %v3852 = vld [vmem:[#allocation4 + $0x38] sm:$0xff]
      %v3853 = vld [vmem:[#allocation4 + $0x40] sm:$0xff]
      %v3854 = vld [vmem:[#allocation4 + $0x48] sm:$0xff]
      %v3855 = vld [vmem:[#allocation4 + $0x50] sm:$0xff]
      %v3856 = vld [vmem:[#allocation4 + $0x58] sm:$0xff]
      %v3857 = vld [vmem:[#allocation4 + $0x60] sm:$0xff]
      %v3858 = vld [vmem:[#allocation4 + $0x68] sm:$0xff]
      %v3859 = vld [vmem:[#allocation4 + $0x70] sm:$0xff]
      %v3860 = vld [vmem:[#allocation4 + $0x78] sm:$0xff]
      %v3861 = vld [vmem:[%s206] sm:$0x1]
      %v3863 = vlaneseq
      %v3864 = vshrl.u32 %v3863, 7
      %v3865 = vsub.s32 0, %v3864
      %v3866 = vrot.slane %v3861, %v3865
      %v3868 = vadd.f32 %v3845, %v3866
      %v3869 = vadd.f32 %v3846, %v3866
      %v3870 = vadd.f32 %v3847, %v3866
      %v3871 = vadd.f32 %v3848, %v3866
      %v3872 = vadd.f32 %v3849, %v3866
      %v3873 = vadd.f32 %v3850, %v3866
      %v3874 = vadd.f32 %v3851, %v3866
      %v3875 = vadd.f32 %v3852, %v3866
      %v3876 = vadd.f32 %v3853, %v3866
      %v3877 = vadd.f32 %v3854, %v3866
      %v3878 = vadd.f32 %v3855, %v3866
      %v3879 = vadd.f32 %v3856, %v3866
      %v3880 = vadd.f32 %v3857, %v3866
      %v3881 = vadd.f32 %v3858, %v3866
      %v3882 = vadd.f32 %v3859, %v3866
      %v3883 = vadd.f32 %v3860, %v3866
      %v3884 = vmax.f32 %v3868, 0.0
      %v3885 = vmax.f32 %v3869, 0.0
      %v3886 = vmax.f32 %v3870, 0.0
      %v3887 = vmax.f32 %v3871, 0.0
      %v3888 = vmax.f32 %v3872, 0.0
      %v3889 = vmax.f32 %v3873, 0.0
      %v3890 = vmax.f32 %v3874, 0.0
      %v3891 = vmax.f32 %v3875, 0.0
      %v3892 = vmax.f32 %v3876, 0.0
      %v3893 = vmax.f32 %v3877, 0.0
      %v3894 = vmax.f32 %v3878, 0.0
      %v3895 = vmax.f32 %v3879, 0.0
      %v3896 = vmax.f32 %v3880, 0.0
      %v3897 = vmax.f32 %v3881, 0.0
      %v3898 = vmax.f32 %v3882, 0.0
      %v3899 = vmax.f32 %v3883, 0.0
      %v3900 = vpack.c.bf16 %v3885, %v3884
      %v3901 = vpack.c.bf16 %v3887, %v3886
      %v3902 = vpack.c.bf16 %v3889, %v3888
      %v3903 = vpack.c.bf16 %v3891, %v3890
      %v3904 = vpack.c.bf16 %v3893, %v3892
      %v3905 = vpack.c.bf16 %v3895, %v3894
      %v3906 = vpack.c.bf16 %v3897, %v3896
      %v3907 = vpack.c.bf16 %v3899, %v3898
      %v3916 = vunpack.c.l.b16 %v3900
      %v3917 = vunpack.c.h.b16 %v3900
      %v3918 = vunpack.c.l.b16 %v3901
      %v3919 = vunpack.c.h.b16 %v3901
      %v3920 = vunpack.c.l.b16 %v3902
      %v3921 = vunpack.c.h.b16 %v3902
      %v3922 = vunpack.c.l.b16 %v3903
      %v3923 = vunpack.c.h.b16 %v3903
      %v3924 = vunpack.c.l.b16 %v3904
      %v3925 = vunpack.c.h.b16 %v3904
      %v3926 = vunpack.c.l.b16 %v3905
      %v3927 = vunpack.c.h.b16 %v3905
      %v3928 = vunpack.c.l.b16 %v3906
      %v3929 = vunpack.c.h.b16 %v3906
      %v3930 = vunpack.c.l.b16 %v3907
      %v3931 = vunpack.c.h.b16 %v3907
      %v3932 = vpack.c.b16 %v3916, %v3916
      %v3933 = vpack.c.b16 %v3917, %v3917
      %v3934 = vpack.c.b16 %v3918, %v3918
      %v3935 = vpack.c.b16 %v3919, %v3919
      %v3936 = vpack.c.b16 %v3920, %v3920
      %v3937 = vpack.c.b16 %v3921, %v3921
      %v3938 = vpack.c.b16 %v3922, %v3922
      %v3939 = vpack.c.b16 %v3923, %v3923
      %v3940 = vpack.c.b16 %v3924, %v3924
      %v3941 = vpack.c.b16 %v3925, %v3925
      %v3942 = vpack.c.b16 %v3926, %v3926
      %v3943 = vpack.c.b16 %v3927, %v3927
      %v3944 = vpack.c.b16 %v3928, %v3928
      %v3945 = vpack.c.b16 %v3929, %v3929
      %v3946 = vpack.c.b16 %v3930, %v3930
      %v3947 = vpack.c.b16 %v3931, %v3931
      %3964 = vst [vmem:[%s216] sm:$0xf] %v3932
      %3965 = vst [vmem:[%s216 + $0x4] sm:$0xf] %v3933
      %3966 = vst [vmem:[%s216 + $0x8] sm:$0xf] %v3934
      %3967 = vst [vmem:[%s216 + $0xc] sm:$0xf] %v3935
      %3968 = vst [vmem:[%s216 + $0x10] sm:$0xf] %v3936
      %3969 = vst [vmem:[%s216 + $0x14] sm:$0xf] %v3937
      %3970 = vst [vmem:[%s216 + $0x18] sm:$0xf] %v3938
      %3971 = vst [vmem:[%s216 + $0x1c] sm:$0xf] %v3939
      %3972 = vst [vmem:[%s216 + $0x20] sm:$0xf] %v3940
      %3973 = vst [vmem:[%s216 + $0x24] sm:$0xf] %v3941
      %3974 = vst [vmem:[%s216 + $0x28] sm:$0xf] %v3942
      %3975 = vst [vmem:[%s216 + $0x2c] sm:$0xf] %v3943
      %3976 = vst [vmem:[%s216 + $0x30] sm:$0xf] %v3944
      %3977 = vst [vmem:[%s216 + $0x34] sm:$0xf] %v3945
      %3978 = vst [vmem:[%s216 + $0x38] sm:$0xf] %v3946
      %3979 = vst [vmem:[%s216 + $0x3c] sm:$0xf] %v3947
      %s3980 = smul.u32 8, %s21
      %p3981 = scmp.lt.s32.totalorder %s20, 1
      %s3982 = scalar_select %p3981, %s20, 1
      %p3983 = scmp.lt.s32.totalorder %s3980, 15
      %s3984 = scalar_select %p3983, %s3980, 15
      %s3985 = smul.addr %s3984, 2
      %s3986 = smul.addr %s3982, 32
      %s3987 = sadd.s32 %s3985, %s3986
      %s3988 = smul.addr %s3987, 4
      %s3989 = scalar_lea.vmem %s5, %s3988
      // Predicated region
      $region113: #{_aspp_forward.1} parent=35 // pred_check
        %p3990 = pneg %p137
      $region114: #{_aspp_forward.1} parent=35 // pred_check_branch
        %3992 = sbr.rel (%p3990) target = $region116
      $region115: #{_aspp_forward.1} parent=35 // pred_region
        %s3993 = smul.u32 8, %s21
      $region116: #{_aspp_forward.1} parent=35 // pred_fallthru
        _
    $region36: #{_aspp_forward.1} parent=5 // pred_fallthru
      _
    %p3994 = scmp.le.s32.totalorder 2, %s11
    // Predicated region
    $region117: #{_aspp_forward.1} parent=5 // pred_check
      %p3995 = pneg %p3994
    $region118: #{_aspp_forward.1} parent=5 // pred_check_branch
      %3997 = sbr.rel (%p3995) target = $region120
    $region119: #{_aspp_forward.1} parent=5 // pred_region
      %s3998 = ssub.s32 %s11, 2
      // Predicated region
      $region121: #{_aspp_forward.1} parent=119 // pred_check
        %p3999 = pneg %p143
      $region122: #{_aspp_forward.1} parent=119 // pred_check_branch
        %4001 = sbr.rel (%p3999) target = $region124
      $region123: #{_aspp_forward.1} parent=119 // pred_region
        %s4002 = smul.u32 8, %s23
        %p4003 = scmp.lt.s32.totalorder %s22, 1
        %s4004 = scalar_select %p4003, %s22, 1
        %p4005 = scmp.lt.s32.totalorder %s4002, 15
        %s4006 = scalar_select %p4005, %s4002, 15
        %s4007 = smul.addr %s4006, 2
        %s4008 = smul.addr %s4004, 32
        %s4009 = sadd.s32 %s4007, %s4008
        %s4010 = smul.addr %s4009, 4
        %s4011 = scalar_lea.vmem %s5, %s4010
      $region124: #{_aspp_forward.1} parent=119 // pred_fallthru
        _
    $region120: #{_aspp_forward.1} parent=5 // pred_fallthru
      _
  $region6: #{_aspp_forward.1} parent=0 // loop_footer
    %s15 = sadd.s32 1, %s11
  $region7: #{_aspp_forward.1} parent=0 // loop_footer_branch
    %10 = sbr.rel target = $region3
  $region8: #{_aspp_forward.1} parent=0 // loop_exit
    _
  %4012 = vsyncmov [#allocation3]
  %s4013 = vpop.sfrf %4012
  %p4014 = scmp.eq.s32.totalorder %s4013, 0
  %p4015 = pneg %p4014
  %4017 = shalt.err (%p4015)
  %s4018 = scalar_lea.sflag [#allocation3], 1
  %4019 = vsyncmov %s4018
  %s4020 = vpop.sfrf %4019
  %p4021 = scmp.eq.s32.totalorder %s4020, 0
  %p4022 = pneg %p4021
  %4024 = shalt.err (%p4022)

</llo_original>
